<compile_context>
chip_gen: v7x
topology: tpu7x:2x2x1
jax: 0.10.0
libtpu: 0.0.40
codegen_flags: <defaults>
</compile_context>

<pallas_src>
import jax
import jax.numpy as jnp
from jax.experimental import pallas as pl
from jax.experimental.pallas import tpu as pltpu


_TILE_P = 128   # row tile for the conv GEMMs (multiple of 8)


# ----------------------- Pallas kernels -----------------------

def _conv_pool_relu_kernel(p_ref, w_ref, b_ref, o_ref):
    """Fused conv-as-GEMM + bias + ReLU + 2x2 ceil-mode max-pool.

    p_ref: (4, tp, K) bf16 -- im2col patches for the 4 taps of each pooling
           window (rows ordered (n, hp, wp); out-of-range taps edge-clamped so
           the 4-tap max reproduces ceil_mode pooling).
    w_ref: (K, Cout) bf16, b_ref: (1, Cout) f32, o_ref: (tp, Cout) bf16.
    """
    w = w_ref[...]
    b = b_ref[...]

    def tap(t):
        acc = jnp.dot(p_ref[t], w, preferred_element_type=jnp.float32)
        return jnp.maximum(acc + b, 0.0)          # f32 epilogue math

    m = jnp.maximum(jnp.maximum(tap(0), tap(1)), jnp.maximum(tap(2), tap(3)))
    o_ref[...] = m.astype(o_ref.dtype)


def _linear_kernel(x_ref, w_ref, b_ref, o_ref):
    acc = jnp.dot(x_ref[...], w_ref[...], preferred_element_type=jnp.float32)
    o_ref[...] = acc + b_ref[...]


def _head_kernel(x_ref, w5_ref, b5_ref, w6_ref, b6_ref, o_ref):
    # fc5 -> fc6 fused (no activation between them in the reference model).
    h = jnp.dot(x_ref[...], w5_ref[...], preferred_element_type=jnp.float32)
    h = h + b5_ref[...]
    o = jnp.dot(h, w6_ref[...], preferred_element_type=jnp.float32)
    o_ref[...] = o + b6_ref[...]


# ----------------------- conv / linear glue -----------------------

def _conv_pool_patches(x, kh, kw, pad):
    """x: (N, H, W, Cin).  Returns (patches (4, P, K), (N, Hp, Wp)).

    P = N*Hp*Wp pooled output positions, K = kh*kw*Cin.  Tap t=(sy,sx) holds the
    conv patch at position (min(2hp+sy, Ho-1), min(2wp+sx, Wo-1)); the clamp
    duplicates an in-window element, so max over the 4 taps == ceil_mode pool.
    """
    N, H, W, C = x.shape
    Ho, Wo = H + 2 * pad - kh + 1, W + 2 * pad - kw + 1
    Hp, Wp = -(-Ho // 2), -(-Wo // 2)
    xp = jnp.pad(x, ((0, 0), (pad, pad), (pad, pad), (0, 0)))
    cols = [xp[:, dy:dy + Ho, dx:dx + Wo, :]
            for dy in range(kh) for dx in range(kw)]
    pf = jnp.concatenate(cols, axis=-1)                  # (N, Ho, Wo, kh*kw*C)
    K = kh * kw * C
    taps = []
    for sy in (0, 1):
        iy = jnp.minimum(2 * jnp.arange(Hp) + sy, Ho - 1)
        for sx in (0, 1):
            ix = jnp.minimum(2 * jnp.arange(Wp) + sx, Wo - 1)
            t = pf[:, iy[:, None], ix[None, :], :]       # (N, Hp, Wp, K)
            taps.append(t.reshape(N * Hp * Wp, K))
    return jnp.stack(taps, axis=0), (N, Hp, Wp)


def conv_pool_relu(x, w, b, pad):
    """Conv2d(stride 1, `pad`) -> MaxPool2d(2,2,ceil_mode=True) -> ReLU, fused.

    x: (N, H, W, Cin) bf16; w: (Cout, Cin, kh, kw) f32; b: (Cout,) f32.
    Returns (N, Hp, Wp, Cout) bf16 (channels-last, GEMM-native layout).
    """
    Cout, Cin, kh, kw = w.shape
    patches, (N, Hp, Wp) = _conv_pool_patches(x, kh, kw, pad)
    patches = patches.astype(jnp.bfloat16)
    wm = w.transpose(2, 3, 1, 0).reshape(kh * kw * Cin, Cout).astype(jnp.bfloat16)
    bm = b.reshape(1, Cout).astype(jnp.float32)
    _, P, K = patches.shape

    if P > _TILE_P:          # tile rows: DMA/compute overlap + both v7x cores
        tp = _TILE_P
        grid = (pl.cdiv(P, tp),)
        cparams = pltpu.CompilerParams(dimension_semantics=("parallel",))
    else:                    # tiny layer: one full block, no pointless grid hints
        tp = P
        grid = (1,)
        cparams = None

    out = pl.pallas_call(
        _conv_pool_relu_kernel,
        out_shape=jax.ShapeDtypeStruct((P, Cout), jnp.bfloat16),
        grid=grid,
        in_specs=[
            pl.BlockSpec((4, tp, K), lambda i: (0, i, 0)),
            pl.BlockSpec((K, Cout), lambda i: (0, 0)),   # resident across grid
            pl.BlockSpec((1, Cout), lambda i: (0, 0)),
        ],
        out_specs=pl.BlockSpec((tp, Cout), lambda i: (i, 0)),
        compiler_params=cparams,
        cost_estimate=pl.CostEstimate(
            flops=2 * 4 * P * K * Cout,
            transcendentals=0,
            bytes_accessed=4 * P * K * 2 + K * Cout * 2 + P * Cout * 2),
    )(patches, wm, bm)
    return out.reshape(N, Hp, Wp, Cout)


def _nhwc_to_torch_flat_weight(w, C, H, W):
    """Permute a PyTorch (out, C*H*W) weight to consume NHWC-flattened input."""
    Fout = w.shape[0]
    return w.reshape(Fout, C, H, W).transpose(0, 2, 3, 1).reshape(Fout, C * H * W).T


def branch_head(x, w, b):
    """x: (N, H, W, C) bf16 -> Linear(C*H*W -> Fout) with PyTorch flatten order."""
    N, H, W, C = x.shape
    Fin, Fout = H * W * C, w.shape[0]
    x2 = x.reshape(N, Fin)
    wm = _nhwc_to_torch_flat_weight(w, C, H, W).astype(jnp.bfloat16)
    bm = b.reshape(1, Fout).astype(jnp.float32)
    return pl.pallas_call(
        _linear_kernel,
        out_shape=jax.ShapeDtypeStruct((N, Fout), jnp.float32),
        grid=(1,),
        in_specs=[pl.BlockSpec((N, Fin), lambda i: (0, 0)),
                  pl.BlockSpec((Fin, Fout), lambda i: (0, 0)),
                  pl.BlockSpec((1, Fout), lambda i: (0, 0))],
        out_specs=pl.BlockSpec((N, Fout), lambda i: (0, 0)),
        cost_estimate=pl.CostEstimate(
            flops=2 * N * Fin * Fout, transcendentals=0,
            bytes_accessed=N * Fin * 2 + Fin * Fout * 2 + N * Fout * 4),
    )(x2, wm, bm)


def mlp_head(x, w5, b5, w6, b6):
    """x: (N, H, W, C) bf16 -> fc5 -> fc6 (fused), PyTorch flatten order."""
    N, H, W, C = x.shape
    F5, H5, F6 = H * W * C, w5.shape[0], w6.shape[0]
    x2 = x.reshape(N, F5)
    w5m = _nhwc_to_torch_flat_weight(w5, C, H, W).astype(jnp.bfloat16)
    b5m = b5.reshape(1, H5).astype(jnp.float32)
    w6m = w6.T.astype(jnp.float32)            # tiny second GEMM: keep f32
    b6m = b6.reshape(1, F6).astype(jnp.float32)
    return pl.pallas_call(
        _head_kernel,
        out_shape=jax.ShapeDtypeStruct((N, F6), jnp.float32),
        grid=(1,),
        in_specs=[pl.BlockSpec((N, F5), lambda i: (0, 0)),
                  pl.BlockSpec((F5, H5), lambda i: (0, 0)),
                  pl.BlockSpec((1, H5), lambda i: (0, 0)),
                  pl.BlockSpec((H5, F6), lambda i: (0, 0)),
                  pl.BlockSpec((1, F6), lambda i: (0, 0))],
        out_specs=pl.BlockSpec((N, F6), lambda i: (0, 0)),
        cost_estimate=pl.CostEstimate(
            flops=2 * N * (F5 * H5 + H5 * F6), transcendentals=0,
            bytes_accessed=N * F5 * 2 + F5 * H5 * 2 + H5 * F6 * 4 + N * F6 * 4),
    )(x2, w5m, b5m, w6m, b6m)


# ----------------------- LeNet forward -----------------------

def lenet_forward(x, p):
    # x: (N, 1, 28, 28) f32, PyTorch NCHW.
    xh = x.transpose(0, 2, 3, 1).astype(jnp.bfloat16)              # NHWC bf16

    # conv1 -> pool -> relu.  Computed ONCE and shared: this is exactly what
    # both the early-exit branch (its leading MaxPool+ReLU) and the main path
    # (pool2+relu2) apply to conv1's output.
    h = conv_pool_relu(xh, p["conv1_w"], p["conv1_b"], pad=3)      # (N,15,15,5)

    # early-exit branch: conv3x3 -> pool -> relu -> fc
    br = conv_pool_relu(h, p["bconv_w"], p["bconv_b"], pad=1)      # (N,8,8,10)
    branch = branch_head(br, p["branch_fc_w"], p["branch_fc_b"])   # (N,10)

    # main path
    m = conv_pool_relu(h, p["conv3_w"], p["conv3_b"], pad=3)       # (N,9,9,10)
    m = conv_pool_relu(m, p["conv4_w"], p["conv4_b"], pad=3)       # (N,6,6,20)
    out = mlp_head(m, p["fc5_w"], p["fc5_b"], p["fc6_w"], p["fc6_b"])  # (N,10)
    return branch, out


def lenet_reference(x, p):
    """Pure-JAX f32 reference with PyTorch op-for-op semantics (validation)."""
    def conv(y, w, b, pad):
        out = jax.lax.conv_general_dilated(
            y, w, window_strides=(1, 1), padding=((pad, pad), (pad, pad)),
            dimension_numbers=("NCHW", "OIHW", "NCHW"))
        return out + b[None, :, None, None]

    def pool_relu(y):                 # MaxPool2d(2,2,ceil_mode=True) then ReLU
        H, W = y.shape[2], y.shape[3]
        pooled = jax.lax.reduce_window(
            y, -jnp.inf, jax.lax.max, (1, 1, 2, 2), (1, 1, 2, 2),
            ((0, 0), (0, 0), (0, H % 2), (0, W % 2)))
        return jnp.maximum(pooled, 0.0)

    h = conv(x, p["conv1_w"], p["conv1_b"], 3)
    hp = pool_relu(h)
    br = pool_relu(conv(hp, p["bconv_w"], p["bconv_b"], 1))
    branch = br.reshape(br.shape[0], -1) @ p["branch_fc_w"].T + p["branch_fc_b"]
    m = pool_relu(conv(hp, p["conv3_w"], p["conv3_b"], 3))
    m = pool_relu(conv(m, p["conv4_w"], p["conv4_b"], 3))
    m = m.reshape(m.shape[0], -1) @ p["fc5_w"].T + p["fc5_b"]
    m = m @ p["fc6_w"].T + p["fc6_b"]
    return branch, m


def init_params(key):
    ks = jax.random.split(key, 14)

    def u(k, shape, fan_in):  # PyTorch-style uniform(-1/sqrt(fan_in), 1/sqrt(fan_in))
        bound = 1.0 / (fan_in ** 0.5)
        return jax.random.uniform(k, shape, jnp.float32, -bound, bound)

    return {
        "conv1_w": u(ks[0], (5, 1, 5, 5), 1 * 5 * 5),
        "conv1_b": u(ks[1], (5,), 1 * 5 * 5),
        "bconv_w": u(ks[2], (10, 5, 3, 3), 5 * 3 * 3),
        "bconv_b": u(ks[3], (10,), 5 * 3 * 3),
        "branch_fc_w": u(ks[4], (10, 640), 640),
        "branch_fc_b": u(ks[5], (10,), 640),
        "conv3_w": u(ks[6], (10, 5, 5, 5), 5 * 5 * 5),
        "conv3_b": u(ks[7], (10,), 5 * 5 * 5),
        "conv4_w": u(ks[8], (20, 10, 5, 5), 10 * 5 * 5),
        "conv4_b": u(ks[9], (20,), 10 * 5 * 5),
        "fc5_w": u(ks[10], (84, 720), 720),
        "fc5_b": u(ks[11], (84,), 720),
        "fc6_w": u(ks[12], (10, 84), 84),
        "fc6_b": u(ks[13], (10,), 84),
    }
    # TODO(synk): `self.threshold` nn.Parameter is unused in forward(); omitted.


if __name__ == "__main__":
    key = jax.random.PRNGKey(0)
    pkey, xkey = jax.random.split(key)
    params = init_params(pkey)
    # 28x28x1 input is required by the fixed fc sizes (640 / 720); batch kept small.
    x = jax.random.normal(xkey, (2, 1, 28, 28), jnp.float32)

    branch, out = jax.jit(lenet_forward)(x, params)
    jax.block_until_ready((branch, out))
    assert branch.shape == (2, 10) and out.shape == (2, 10)
    assert branch.dtype == jnp.float32 and out.dtype == jnp.float32

    # validate against a pure-JAX f32 reference (bf16 GEMM operands -> loose tol)
    ref_branch, ref_out = jax.jit(lenet_reference)(x, params)
    assert jnp.allclose(branch, ref_branch, rtol=5e-2, atol=5e-2), (
        float(jnp.max(jnp.abs(branch - ref_branch))))
    assert jnp.allclose(out, ref_out, rtol=5e-2, atol=5e-2), (
        float(jnp.max(jnp.abs(out - ref_out))))

    print("KERNEL_OK")
</pallas_src>

<mosaic_0001>
module attributes {stable_mosaic.version = 11 : i64} {
  func.func @_conv_pool_relu_kernel(%arg0: i32, %arg1: memref<4x128x25xbf16, #tpu.memory_space<vmem>>, %arg2: memref<25x5xbf16, #tpu.memory_space<vmem>>, %arg3: memref<1x5xf32, #tpu.memory_space<vmem>>, %arg4: memref<128x5xbf16, #tpu.memory_space<vmem>>) attributes {dimension_semantics = [#tpu.dimension_semantics<parallel>], iteration_bounds = array<i64: 4>, scalar_prefetch = 0 : i64, scratch_operands = 0 : i64, tpu.core_type = #tpu.core_type<tc>, window_params = [{transform_indices = @transform_0, window_bounds = array<i64: 4, 128, 25>}, {pipeline_mode = #tpu.pipeline_mode<synchronous>, transform_indices = @transform_1, window_bounds = array<i64: 25, 5>}, {pipeline_mode = #tpu.pipeline_mode<synchronous>, transform_indices = @transform_2, window_bounds = array<i64: 1, 5>}, {transform_indices = @transform_3, window_bounds = array<i64: 128, 5>}]} {
    %c0 = arith.constant 0 : index
    %c0_0 = arith.constant 0 : index
    %0 = vector.load %arg2[%c0, %c0_0] : memref<25x5xbf16, #tpu.memory_space<vmem>>, vector<25x5xbf16>
    %c0_1 = arith.constant 0 : index
    %c0_2 = arith.constant 0 : index
    %1 = vector.load %arg3[%c0_1, %c0_2] : memref<1x5xf32, #tpu.memory_space<vmem>>, vector<1x5xf32>
    %c0_3 = arith.constant 0 : index
    %c0_4 = arith.constant 0 : index
    %c0_5 = arith.constant 0 : index
    %2 = vector.load %arg1[%c0_3, %c0_4, %c0_5] : memref<4x128x25xbf16, #tpu.memory_space<vmem>>, vector<1x128x25xbf16>
    %3 = vector.shape_cast %2 : vector<1x128x25xbf16> to vector<128x25xbf16>
    %cst = arith.constant dense<0.000000e+00> : vector<128x5xf32>
    %4 = tpu.matmul %3, %0, %cst {dimension_numbers = #tpu.dot_dimension_numbers<[1], [0], [0], [1], [0, 0, 1, 1], [], []>} : vector<128x25xbf16>, vector<25x5xbf16>, vector<128x5xf32> -> vector<128x5xf32>
    %5 = vector.broadcast %1 : vector<1x5xf32> to vector<128x5xf32>
    %6 = arith.addf %4, %5 : vector<128x5xf32>
    %cst_6 = arith.constant 0.000000e+00 : f32
    %7 = vector.broadcast %cst_6 : f32 to vector<128x5xf32>
    %8 = arith.maximumf %6, %7 : vector<128x5xf32>
    %c1 = arith.constant 1 : index
    %c0_7 = arith.constant 0 : index
    %c0_8 = arith.constant 0 : index
    %9 = vector.load %arg1[%c1, %c0_7, %c0_8] : memref<4x128x25xbf16, #tpu.memory_space<vmem>>, vector<1x128x25xbf16>
    %10 = vector.shape_cast %9 : vector<1x128x25xbf16> to vector<128x25xbf16>
    %cst_9 = arith.constant dense<0.000000e+00> : vector<128x5xf32>
    %11 = tpu.matmul %10, %0, %cst_9 {dimension_numbers = #tpu.dot_dimension_numbers<[1], [0], [0], [1], [0, 0, 1, 1], [], []>} : vector<128x25xbf16>, vector<25x5xbf16>, vector<128x5xf32> -> vector<128x5xf32>
    %12 = vector.broadcast %1 : vector<1x5xf32> to vector<128x5xf32>
    %13 = arith.addf %11, %12 : vector<128x5xf32>
    %cst_10 = arith.constant 0.000000e+00 : f32
    %14 = vector.broadcast %cst_10 : f32 to vector<128x5xf32>
    %15 = arith.maximumf %13, %14 : vector<128x5xf32>
    %16 = arith.maximumf %8, %15 : vector<128x5xf32>
    %c2 = arith.constant 2 : index
    %c0_11 = arith.constant 0 : index
    %c0_12 = arith.constant 0 : index
    %17 = vector.load %arg1[%c2, %c0_11, %c0_12] : memref<4x128x25xbf16, #tpu.memory_space<vmem>>, vector<1x128x25xbf16>
    %18 = vector.shape_cast %17 : vector<1x128x25xbf16> to vector<128x25xbf16>
    %cst_13 = arith.constant dense<0.000000e+00> : vector<128x5xf32>
    %19 = tpu.matmul %18, %0, %cst_13 {dimension_numbers = #tpu.dot_dimension_numbers<[1], [0], [0], [1], [0, 0, 1, 1], [], []>} : vector<128x25xbf16>, vector<25x5xbf16>, vector<128x5xf32> -> vector<128x5xf32>
    %20 = vector.broadcast %1 : vector<1x5xf32> to vector<128x5xf32>
    %21 = arith.addf %19, %20 : vector<128x5xf32>
    %cst_14 = arith.constant 0.000000e+00 : f32
    %22 = vector.broadcast %cst_14 : f32 to vector<128x5xf32>
    %23 = arith.maximumf %21, %22 : vector<128x5xf32>
    %c3 = arith.constant 3 : index
    %c0_15 = arith.constant 0 : index
    %c0_16 = arith.constant 0 : index
    %24 = vector.load %arg1[%c3, %c0_15, %c0_16] : memref<4x128x25xbf16, #tpu.memory_space<vmem>>, vector<1x128x25xbf16>
    %25 = vector.shape_cast %24 : vector<1x128x25xbf16> to vector<128x25xbf16>
    %cst_17 = arith.constant dense<0.000000e+00> : vector<128x5xf32>
    %26 = tpu.matmul %25, %0, %cst_17 {dimension_numbers = #tpu.dot_dimension_numbers<[1], [0], [0], [1], [0, 0, 1, 1], [], []>} : vector<128x25xbf16>, vector<25x5xbf16>, vector<128x5xf32> -> vector<128x5xf32>
    %27 = vector.broadcast %1 : vector<1x5xf32> to vector<128x5xf32>
    %28 = arith.addf %26, %27 : vector<128x5xf32>
    %cst_18 = arith.constant 0.000000e+00 : f32
    %29 = vector.broadcast %cst_18 : f32 to vector<128x5xf32>
    %30 = arith.maximumf %28, %29 : vector<128x5xf32>
    %31 = arith.maximumf %23, %30 : vector<128x5xf32>
    %32 = arith.maximumf %16, %31 : vector<128x5xf32>
    %33 = arith.truncf %32 : vector<128x5xf32> to vector<128x5xbf16>
    %c0_19 = arith.constant 0 : index
    %c0_20 = arith.constant 0 : index
    %34 = vector.load %arg4[%c0_19, %c0_20] : memref<128x5xbf16, #tpu.memory_space<vmem>>, vector<128x5xbf16>
    tpu.vector_store %arg4[%c0_19, %c0_20], %33 {strides = array<i32>} : memref<128x5xbf16, #tpu.memory_space<vmem>>, vector<128x5xbf16>,
    return
  }
  func.func @transform_0(%arg0: i32) -> (i32, i32, i32) {
    %c0_i32 = arith.constant 0 : i32
    %c0_i32_0 = arith.constant 0 : i32
    %c0_i32_1 = arith.constant 0 : i32
    return %c0_i32, %arg0, %c0_i32_0 : i32, i32, i32
  }
  func.func @transform_1(%arg0: i32) -> (i32, i32) {
    %c0_i32 = arith.constant 0 : i32
    %c0_i32_0 = arith.constant 0 : i32
    %c0_i32_1 = arith.constant 0 : i32
    return %c0_i32, %c0_i32_0 : i32, i32
  }
  func.func @transform_2(%arg0: i32) -> (i32, i32) {
    %c0_i32 = arith.constant 0 : i32
    %c0_i32_0 = arith.constant 0 : i32
    %c0_i32_1 = arith.constant 0 : i32
    return %c0_i32, %c0_i32_0 : i32, i32
  }
  func.func @transform_3(%arg0: i32) -> (i32, i32) {
    %c0_i32 = arith.constant 0 : i32
    %c0_i32_0 = arith.constant 0 : i32
    return %arg0, %c0_i32 : i32, i32
  }
}

module attributes {stable_mosaic.version = 11 : i64} {
  func.func @_conv_pool_relu_kernel(%arg0: i32, %arg1: memref<4x128x125xbf16, #tpu.memory_space<vmem>>, %arg2: memref<125x10xbf16, #tpu.memory_space<vmem>>, %arg3: memref<1x10xf32, #tpu.memory_space<vmem>>, %arg4: memref<128x10xbf16, #tpu.memory_space<vmem>>) attributes {dimension_semantics = [#tpu.dimension_semantics<parallel>], iteration_bounds = array<i64: 2>, scalar_prefetch = 0 : i64, scratch_operands = 0 : i64, tpu.core_type = #tpu.core_type<tc>, window_params = [{transform_indices = @transform_0, window_bounds = array<i64: 4, 128, 125>}, {pipeline_mode = #tpu.pipeline_mode<synchronous>, transform_indices = @transform_1, window_bounds = array<i64: 125, 10>}, {pipeline_mode = #tpu.pipeline_mode<synchronous>, transform_indices = @transform_2, window_bounds = array<i64: 1, 10>}, {transform_indices = @transform_3, window_bounds = array<i64: 128, 10>}]} {
    %c0 = arith.constant 0 : index
    %c0_0 = arith.constant 0 : index
    %0 = vector.load %arg2[%c0, %c0_0] : memref<125x10xbf16, #tpu.memory_space<vmem>>, vector<125x10xbf16>
    %c0_1 = arith.constant 0 : index
    %c0_2 = arith.constant 0 : index
    %1 = vector.load %arg3[%c0_1, %c0_2] : memref<1x10xf32, #tpu.memory_space<vmem>>, vector<1x10xf32>
    %c0_3 = arith.constant 0 : index
    %c0_4 = arith.constant 0 : index
    %c0_5 = arith.constant 0 : index
    %2 = vector.load %arg1[%c0_3, %c0_4, %c0_5] : memref<4x128x125xbf16, #tpu.memory_space<vmem>>, vector<1x128x125xbf16>
    %3 = vector.shape_cast %2 : vector<1x128x125xbf16> to vector<128x125xbf16>
    %cst = arith.constant dense<0.000000e+00> : vector<128x10xf32>
    %4 = tpu.matmul %3, %0, %cst {dimension_numbers = #tpu.dot_dimension_numbers<[1], [0], [0], [1], [0, 0, 1, 1], [], []>} : vector<128x125xbf16>, vector<125x10xbf16>, vector<128x10xf32> -> vector<128x10xf32>
    %5 = vector.broadcast %1 : vector<1x10xf32> to vector<128x10xf32>
    %6 = arith.addf %4, %5 : vector<128x10xf32>
    %cst_6 = arith.constant 0.000000e+00 : f32
    %7 = vector.broadcast %cst_6 : f32 to vector<128x10xf32>
    %8 = arith.maximumf %6, %7 : vector<128x10xf32>
    %c1 = arith.constant 1 : index
    %c0_7 = arith.constant 0 : index
    %c0_8 = arith.constant 0 : index
    %9 = vector.load %arg1[%c1, %c0_7, %c0_8] : memref<4x128x125xbf16, #tpu.memory_space<vmem>>, vector<1x128x125xbf16>
    %10 = vector.shape_cast %9 : vector<1x128x125xbf16> to vector<128x125xbf16>
    %cst_9 = arith.constant dense<0.000000e+00> : vector<128x10xf32>
    %11 = tpu.matmul %10, %0, %cst_9 {dimension_numbers = #tpu.dot_dimension_numbers<[1], [0], [0], [1], [0, 0, 1, 1], [], []>} : vector<128x125xbf16>, vector<125x10xbf16>, vector<128x10xf32> -> vector<128x10xf32>
    %12 = vector.broadcast %1 : vector<1x10xf32> to vector<128x10xf32>
    %13 = arith.addf %11, %12 : vector<128x10xf32>
    %cst_10 = arith.constant 0.000000e+00 : f32
    %14 = vector.broadcast %cst_10 : f32 to vector<128x10xf32>
    %15 = arith.maximumf %13, %14 : vector<128x10xf32>
    %16 = arith.maximumf %8, %15 : vector<128x10xf32>
    %c2 = arith.constant 2 : index
    %c0_11 = arith.constant 0 : index
    %c0_12 = arith.constant 0 : index
    %17 = vector.load %arg1[%c2, %c0_11, %c0_12] : memref<4x128x125xbf16, #tpu.memory_space<vmem>>, vector<1x128x125xbf16>
    %18 = vector.shape_cast %17 : vector<1x128x125xbf16> to vector<128x125xbf16>
    %cst_13 = arith.constant dense<0.000000e+00> : vector<128x10xf32>
    %19 = tpu.matmul %18, %0, %cst_13 {dimension_numbers = #tpu.dot_dimension_numbers<[1], [0], [0], [1], [0, 0, 1, 1], [], []>} : vector<128x125xbf16>, vector<125x10xbf16>, vector<128x10xf32> -> vector<128x10xf32>
    %20 = vector.broadcast %1 : vector<1x10xf32> to vector<128x10xf32>
    %21 = arith.addf %19, %20 : vector<128x10xf32>
    %cst_14 = arith.constant 0.000000e+00 : f32
    %22 = vector.broadcast %cst_14 : f32 to vector<128x10xf32>
    %23 = arith.maximumf %21, %22 : vector<128x10xf32>
    %c3 = arith.constant 3 : index
    %c0_15 = arith.constant 0 : index
    %c0_16 = arith.constant 0 : index
    %24 = vector.load %arg1[%c3, %c0_15, %c0_16] : memref<4x128x125xbf16, #tpu.memory_space<vmem>>, vector<1x128x125xbf16>
    %25 = vector.shape_cast %24 : vector<1x128x125xbf16> to vector<128x125xbf16>
    %cst_17 = arith.constant dense<0.000000e+00> : vector<128x10xf32>
    %26 = tpu.matmul %25, %0, %cst_17 {dimension_numbers = #tpu.dot_dimension_numbers<[1], [0], [0], [1], [0, 0, 1, 1], [], []>} : vector<128x125xbf16>, vector<125x10xbf16>, vector<128x10xf32> -> vector<128x10xf32>
    %27 = vector.broadcast %1 : vector<1x10xf32> to vector<128x10xf32>
    %28 = arith.addf %26, %27 : vector<128x10xf32>
    %cst_18 = arith.constant 0.000000e+00 : f32
    %29 = vector.broadcast %cst_18 : f32 to vector<128x10xf32>
    %30 = arith.maximumf %28, %29 : vector<128x10xf32>
    %31 = arith.maximumf %23, %30 : vector<128x10xf32>
    %32 = arith.maximumf %16, %31 : vector<128x10xf32>
    %33 = arith.truncf %32 : vector<128x10xf32> to vector<128x10xbf16>
    %c0_19 = arith.constant 0 : index
    %c0_20 = arith.constant 0 : index
    %34 = vector.load %arg4[%c0_19, %c0_20] : memref<128x10xbf16, #tpu.memory_space<vmem>>, vector<128x10xbf16>
    tpu.vector_store %arg4[%c0_19, %c0_20], %33 {strides = array<i32>} : memref<128x10xbf16, #tpu.memory_space<vmem>>, vector<128x10xbf16>,
    return
  }
  func.func @transform_0(%arg0: i32) -> (i32, i32, i32) {
    %c0_i32 = arith.constant 0 : i32
    %c0_i32_0 = arith.constant 0 : i32
    %c0_i32_1 = arith.constant 0 : i32
    return %c0_i32, %arg0, %c0_i32_0 : i32, i32, i32
  }
  func.func @transform_1(%arg0: i32) -> (i32, i32) {
    %c0_i32 = arith.constant 0 : i32
    %c0_i32_0 = arith.constant 0 : i32
    %c0_i32_1 = arith.constant 0 : i32
    return %c0_i32, %c0_i32_0 : i32, i32
  }
  func.func @transform_2(%arg0: i32) -> (i32, i32) {
    %c0_i32 = arith.constant 0 : i32
    %c0_i32_0 = arith.constant 0 : i32
    %c0_i32_1 = arith.constant 0 : i32
    return %c0_i32, %c0_i32_0 : i32, i32
  }
  func.func @transform_3(%arg0: i32) -> (i32, i32) {
    %c0_i32 = arith.constant 0 : i32
    %c0_i32_0 = arith.constant 0 : i32
    return %arg0, %c0_i32 : i32, i32
  }
}

module attributes {stable_mosaic.version = 11 : i64} {
  func.func @_conv_pool_relu_kernel(%arg0: i32, %arg1: memref<4x72x250xbf16, #tpu.memory_space<vmem>>, %arg2: memref<250x20xbf16, #tpu.memory_space<vmem>>, %arg3: memref<1x20xf32, #tpu.memory_space<vmem>>, %arg4: memref<72x20xbf16, #tpu.memory_space<vmem>>) attributes {dimension_semantics = [#tpu.dimension_semantics<arbitrary>], iteration_bounds = array<i64: 1>, scalar_prefetch = 0 : i64, scratch_operands = 0 : i64, tpu.core_type = #tpu.core_type<tc>, window_params = [{transform_indices = @transform_0, window_bounds = array<i64: 4, 72, 250>}, {pipeline_mode = #tpu.pipeline_mode<synchronous>, transform_indices = @transform_1, window_bounds = array<i64: 250, 20>}, {pipeline_mode = #tpu.pipeline_mode<synchronous>, transform_indices = @transform_2, window_bounds = array<i64: 1, 20>}, {transform_indices = @transform_3, window_bounds = array<i64: 72, 20>}]} {
    %c0 = arith.constant 0 : index
    %c0_0 = arith.constant 0 : index
    %0 = vector.load %arg2[%c0, %c0_0] : memref<250x20xbf16, #tpu.memory_space<vmem>>, vector<250x20xbf16>
    %c0_1 = arith.constant 0 : index
    %c0_2 = arith.constant 0 : index
    %1 = vector.load %arg3[%c0_1, %c0_2] : memref<1x20xf32, #tpu.memory_space<vmem>>, vector<1x20xf32>
    %c0_3 = arith.constant 0 : index
    %c0_4 = arith.constant 0 : index
    %c0_5 = arith.constant 0 : index
    %2 = vector.load %arg1[%c0_3, %c0_4, %c0_5] : memref<4x72x250xbf16, #tpu.memory_space<vmem>>, vector<1x72x250xbf16>
    %3 = vector.shape_cast %2 : vector<1x72x250xbf16> to vector<72x250xbf16>
    %cst = arith.constant dense<0.000000e+00> : vector<72x20xf32>
    %4 = tpu.matmul %3, %0, %cst {dimension_numbers = #tpu.dot_dimension_numbers<[1], [0], [0], [1], [0, 0, 1, 1], [], []>} : vector<72x250xbf16>, vector<250x20xbf16>, vector<72x20xf32> -> vector<72x20xf32>
    %5 = vector.broadcast %1 : vector<1x20xf32> to vector<72x20xf32>
    %6 = arith.addf %4, %5 : vector<72x20xf32>
    %cst_6 = arith.constant 0.000000e+00 : f32
    %7 = vector.broadcast %cst_6 : f32 to vector<72x20xf32>
    %8 = arith.maximumf %6, %7 : vector<72x20xf32>
    %c1 = arith.constant 1 : index
    %c0_7 = arith.constant 0 : index
    %c0_8 = arith.constant 0 : index
    %9 = vector.load %arg1[%c1, %c0_7, %c0_8] : memref<4x72x250xbf16, #tpu.memory_space<vmem>>, vector<1x72x250xbf16>
    %10 = vector.shape_cast %9 : vector<1x72x250xbf16> to vector<72x250xbf16>
    %cst_9 = arith.constant dense<0.000000e+00> : vector<72x20xf32>
    %11 = tpu.matmul %10, %0, %cst_9 {dimension_numbers = #tpu.dot_dimension_numbers<[1], [0], [0], [1], [0, 0, 1, 1], [], []>} : vector<72x250xbf16>, vector<250x20xbf16>, vector<72x20xf32> -> vector<72x20xf32>
    %12 = vector.broadcast %1 : vector<1x20xf32> to vector<72x20xf32>
    %13 = arith.addf %11, %12 : vector<72x20xf32>
    %cst_10 = arith.constant 0.000000e+00 : f32
    %14 = vector.broadcast %cst_10 : f32 to vector<72x20xf32>
    %15 = arith.maximumf %13, %14 : vector<72x20xf32>
    %16 = arith.maximumf %8, %15 : vector<72x20xf32>
    %c2 = arith.constant 2 : index
    %c0_11 = arith.constant 0 : index
    %c0_12 = arith.constant 0 : index
    %17 = vector.load %arg1[%c2, %c0_11, %c0_12] : memref<4x72x250xbf16, #tpu.memory_space<vmem>>, vector<1x72x250xbf16>
    %18 = vector.shape_cast %17 : vector<1x72x250xbf16> to vector<72x250xbf16>
    %cst_13 = arith.constant dense<0.000000e+00> : vector<72x20xf32>
    %19 = tpu.matmul %18, %0, %cst_13 {dimension_numbers = #tpu.dot_dimension_numbers<[1], [0], [0], [1], [0, 0, 1, 1], [], []>} : vector<72x250xbf16>, vector<250x20xbf16>, vector<72x20xf32> -> vector<72x20xf32>
    %20 = vector.broadcast %1 : vector<1x20xf32> to vector<72x20xf32>
    %21 = arith.addf %19, %20 : vector<72x20xf32>
    %cst_14 = arith.constant 0.000000e+00 : f32
    %22 = vector.broadcast %cst_14 : f32 to vector<72x20xf32>
    %23 = arith.maximumf %21, %22 : vector<72x20xf32>
    %c3 = arith.constant 3 : index
    %c0_15 = arith.constant 0 : index
    %c0_16 = arith.constant 0 : index
    %24 = vector.load %arg1[%c3, %c0_15, %c0_16] : memref<4x72x250xbf16, #tpu.memory_space<vmem>>, vector<1x72x250xbf16>
    %25 = vector.shape_cast %24 : vector<1x72x250xbf16> to vector<72x250xbf16>
    %cst_17 = arith.constant dense<0.000000e+00> : vector<72x20xf32>
    %26 = tpu.matmul %25, %0, %cst_17 {dimension_numbers = #tpu.dot_dimension_numbers<[1], [0], [0], [1], [0, 0, 1, 1], [], []>} : vector<72x250xbf16>, vector<250x20xbf16>, vector<72x20xf32> -> vector<72x20xf32>
    %27 = vector.broadcast %1 : vector<1x20xf32> to vector<72x20xf32>
    %28 = arith.addf %26, %27 : vector<72x20xf32>
    %cst_18 = arith.constant 0.000000e+00 : f32
    %29 = vector.broadcast %cst_18 : f32 to vector<72x20xf32>
    %30 = arith.maximumf %28, %29 : vector<72x20xf32>
    %31 = arith.maximumf %23, %30 : vector<72x20xf32>
    %32 = arith.maximumf %16, %31 : vector<72x20xf32>
    %33 = arith.truncf %32 : vector<72x20xf32> to vector<72x20xbf16>
    %c0_19 = arith.constant 0 : index
    %c0_20 = arith.constant 0 : index
    %34 = vector.load %arg4[%c0_19, %c0_20] : memref<72x20xbf16, #tpu.memory_space<vmem>>, vector<72x20xbf16>
    tpu.vector_store %arg4[%c0_19, %c0_20], %33 {strides = array<i32>} : memref<72x20xbf16, #tpu.memory_space<vmem>>, vector<72x20xbf16>,
    return
  }
  func.func @transform_0(%arg0: i32) -> (i32, i32, i32) {
    %c0_i32 = arith.constant 0 : i32
    %c0_i32_0 = arith.constant 0 : i32
    %c0_i32_1 = arith.constant 0 : i32
    return %c0_i32, %arg0, %c0_i32_0 : i32, i32, i32
  }
  func.func @transform_1(%arg0: i32) -> (i32, i32) {
    %c0_i32 = arith.constant 0 : i32
    %c0_i32_0 = arith.constant 0 : i32
    %c0_i32_1 = arith.constant 0 : i32
    return %c0_i32, %c0_i32_0 : i32, i32
  }
  func.func @transform_2(%arg0: i32) -> (i32, i32) {
    %c0_i32 = arith.constant 0 : i32
    %c0_i32_0 = arith.constant 0 : i32
    %c0_i32_1 = arith.constant 0 : i32
    return %c0_i32, %c0_i32_0 : i32, i32
  }
  func.func @transform_3(%arg0: i32) -> (i32, i32) {
    %c0_i32 = arith.constant 0 : i32
    %c0_i32_0 = arith.constant 0 : i32
    return %arg0, %c0_i32 : i32, i32
  }
}

module attributes {stable_mosaic.version = 11 : i64} {
  func.func @_head_kernel(%arg0: i32, %arg1: memref<2x720xbf16, #tpu.memory_space<vmem>>, %arg2: memref<720x84xbf16, #tpu.memory_space<vmem>>, %arg3: memref<1x84xf32, #tpu.memory_space<vmem>>, %arg4: memref<84x10xf32, #tpu.memory_space<vmem>>, %arg5: memref<1x10xf32, #tpu.memory_space<vmem>>, %arg6: memref<2x10xf32, #tpu.memory_space<vmem>>) attributes {dimension_semantics = [#tpu.dimension_semantics<arbitrary>], iteration_bounds = array<i64: 1>, scalar_prefetch = 0 : i64, scratch_operands = 0 : i64, tpu.core_type = #tpu.core_type<tc>, window_params = [{pipeline_mode = #tpu.pipeline_mode<synchronous>, transform_indices = @transform_0, window_bounds = array<i64: 2, 720>}, {pipeline_mode = #tpu.pipeline_mode<synchronous>, transform_indices = @transform_1, window_bounds = array<i64: 720, 84>}, {pipeline_mode = #tpu.pipeline_mode<synchronous>, transform_indices = @transform_2, window_bounds = array<i64: 1, 84>}, {pipeline_mode = #tpu.pipeline_mode<synchronous>, transform_indices = @transform_3, window_bounds = array<i64: 84, 10>}, {pipeline_mode = #tpu.pipeline_mode<synchronous>, transform_indices = @transform_4, window_bounds = array<i64: 1, 10>}, {pipeline_mode = #tpu.pipeline_mode<synchronous>, transform_indices = @transform_5, window_bounds = array<i64: 2, 10>}]} {
    %c0 = arith.constant 0 : index
    %c0_0 = arith.constant 0 : index
    %0 = vector.load %arg1[%c0, %c0_0] : memref<2x720xbf16, #tpu.memory_space<vmem>>, vector<2x720xbf16>
    %c0_1 = arith.constant 0 : index
    %c0_2 = arith.constant 0 : index
    %1 = vector.load %arg2[%c0_1, %c0_2] : memref<720x84xbf16, #tpu.memory_space<vmem>>, vector<720x84xbf16>
    %cst = arith.constant dense<0.000000e+00> : vector<2x84xf32>
    %2 = tpu.matmul %0, %1, %cst {dimension_numbers = #tpu.dot_dimension_numbers<[1], [0], [0], [1], [0, 0, 1, 1], [], []>} : vector<2x720xbf16>, vector<720x84xbf16>, vector<2x84xf32> -> vector<2x84xf32>
    %c0_3 = arith.constant 0 : index
    %c0_4 = arith.constant 0 : index
    %3 = vector.load %arg3[%c0_3, %c0_4] : memref<1x84xf32, #tpu.memory_space<vmem>>, vector<1x84xf32>
    %4 = vector.broadcast %3 : vector<1x84xf32> to vector<2x84xf32>
    %5 = arith.addf %2, %4 : vector<2x84xf32>
    %c0_5 = arith.constant 0 : index
    %c0_6 = arith.constant 0 : index
    %6 = vector.load %arg4[%c0_5, %c0_6] : memref<84x10xf32, #tpu.memory_space<vmem>>, vector<84x10xf32>
    %cst_7 = arith.constant dense<0.000000e+00> : vector<2x10xf32>
    %7 = tpu.matmul %5, %6, %cst_7 {dimension_numbers = #tpu.dot_dimension_numbers<[1], [0], [0], [1], [0, 0, 1, 1], [], []>} : vector<2x84xf32>, vector<84x10xf32>, vector<2x10xf32> -> vector<2x10xf32>
    %c0_8 = arith.constant 0 : index
    %c0_9 = arith.constant 0 : index
    %8 = vector.load %arg5[%c0_8, %c0_9] : memref<1x10xf32, #tpu.memory_space<vmem>>, vector<1x10xf32>
    %9 = vector.broadcast %8 : vector<1x10xf32> to vector<2x10xf32>
    %10 = arith.addf %7, %9 : vector<2x10xf32>
    %c0_10 = arith.constant 0 : index
    %c0_11 = arith.constant 0 : index
    %11 = vector.load %arg6[%c0_10, %c0_11] : memref<2x10xf32, #tpu.memory_space<vmem>>, vector<2x10xf32>
    tpu.vector_store %arg6[%c0_10, %c0_11], %10 {strides = array<i32>} : memref<2x10xf32, #tpu.memory_space<vmem>>, vector<2x10xf32>,
    return
  }
  func.func @transform_0(%arg0: i32) -> (i32, i32) {
    %c0_i32 = arith.constant 0 : i32
    %c0_i32_0 = arith.constant 0 : i32
    %c0_i32_1 = arith.constant 0 : i32
    return %c0_i32, %c0_i32_0 : i32, i32
  }
  func.func @transform_1(%arg0: i32) -> (i32, i32) {
    %c0_i32 = arith.constant 0 : i32
    %c0_i32_0 = arith.constant 0 : i32
    %c0_i32_1 = arith.constant 0 : i32
    return %c0_i32, %c0_i32_0 : i32, i32
  }
  func.func @transform_2(%arg0: i32) -> (i32, i32) {
    %c0_i32 = arith.constant 0 : i32
    %c0_i32_0 = arith.constant 0 : i32
    %c0_i32_1 = arith.constant 0 : i32
    return %c0_i32, %c0_i32_0 : i32, i32
  }
  func.func @transform_3(%arg0: i32) -> (i32, i32) {
    %c0_i32 = arith.constant 0 : i32
    %c0_i32_0 = arith.constant 0 : i32
    %c0_i32_1 = arith.constant 0 : i32
    return %c0_i32, %c0_i32_0 : i32, i32
  }
  func.func @transform_4(%arg0: i32) -> (i32, i32) {
    %c0_i32 = arith.constant 0 : i32
    %c0_i32_0 = arith.constant 0 : i32
    %c0_i32_1 = arith.constant 0 : i32
    return %c0_i32, %c0_i32_0 : i32, i32
  }
  func.func @transform_5(%arg0: i32) -> (i32, i32) {
    %c0_i32 = arith.constant 0 : i32
    %c0_i32_0 = arith.constant 0 : i32
    %c0_i32_1 = arith.constant 0 : i32
    return %c0_i32, %c0_i32_0 : i32, i32
  }
}

module attributes {stable_mosaic.version = 11 : i64} {
  func.func @_conv_pool_relu_kernel(%arg0: i32, %arg1: memref<4x128x45xbf16, #tpu.memory_space<vmem>>, %arg2: memref<45x10xbf16, #tpu.memory_space<vmem>>, %arg3: memref<1x10xf32, #tpu.memory_space<vmem>>, %arg4: memref<128x10xbf16, #tpu.memory_space<vmem>>) attributes {dimension_semantics = [#tpu.dimension_semantics<arbitrary>], iteration_bounds = array<i64: 1>, scalar_prefetch = 0 : i64, scratch_operands = 0 : i64, tpu.core_type = #tpu.core_type<tc>, window_params = [{transform_indices = @transform_0, window_bounds = array<i64: 4, 128, 45>}, {pipeline_mode = #tpu.pipeline_mode<synchronous>, transform_indices = @transform_1, window_bounds = array<i64: 45, 10>}, {pipeline_mode = #tpu.pipeline_mode<synchronous>, transform_indices = @transform_2, window_bounds = array<i64: 1, 10>}, {transform_indices = @transform_3, window_bounds = array<i64: 128, 10>}]} {
    %c0 = arith.constant 0 : index
    %c0_0 = arith.constant 0 : index
    %0 = vector.load %arg2[%c0, %c0_0] : memref<45x10xbf16, #tpu.memory_space<vmem>>, vector<45x10xbf16>
    %c0_1 = arith.constant 0 : index
    %c0_2 = arith.constant 0 : index
    %1 = vector.load %arg3[%c0_1, %c0_2] : memref<1x10xf32, #tpu.memory_space<vmem>>, vector<1x10xf32>
    %c0_3 = arith.constant 0 : index
    %c0_4 = arith.constant 0 : index
    %c0_5 = arith.constant 0 : index
    %2 = vector.load %arg1[%c0_3, %c0_4, %c0_5] : memref<4x128x45xbf16, #tpu.memory_space<vmem>>, vector<1x128x45xbf16>
    %3 = vector.shape_cast %2 : vector<1x128x45xbf16> to vector<128x45xbf16>
    %cst = arith.constant dense<0.000000e+00> : vector<128x10xf32>
    %4 = tpu.matmul %3, %0, %cst {dimension_numbers = #tpu.dot_dimension_numbers<[1], [0], [0], [1], [0, 0, 1, 1], [], []>} : vector<128x45xbf16>, vector<45x10xbf16>, vector<128x10xf32> -> vector<128x10xf32>
    %5 = vector.broadcast %1 : vector<1x10xf32> to vector<128x10xf32>
    %6 = arith.addf %4, %5 : vector<128x10xf32>
    %cst_6 = arith.constant 0.000000e+00 : f32
    %7 = vector.broadcast %cst_6 : f32 to vector<128x10xf32>
    %8 = arith.maximumf %6, %7 : vector<128x10xf32>
    %c1 = arith.constant 1 : index
    %c0_7 = arith.constant 0 : index
    %c0_8 = arith.constant 0 : index
    %9 = vector.load %arg1[%c1, %c0_7, %c0_8] : memref<4x128x45xbf16, #tpu.memory_space<vmem>>, vector<1x128x45xbf16>
    %10 = vector.shape_cast %9 : vector<1x128x45xbf16> to vector<128x45xbf16>
    %cst_9 = arith.constant dense<0.000000e+00> : vector<128x10xf32>
    %11 = tpu.matmul %10, %0, %cst_9 {dimension_numbers = #tpu.dot_dimension_numbers<[1], [0], [0], [1], [0, 0, 1, 1], [], []>} : vector<128x45xbf16>, vector<45x10xbf16>, vector<128x10xf32> -> vector<128x10xf32>
    %12 = vector.broadcast %1 : vector<1x10xf32> to vector<128x10xf32>
    %13 = arith.addf %11, %12 : vector<128x10xf32>
    %cst_10 = arith.constant 0.000000e+00 : f32
    %14 = vector.broadcast %cst_10 : f32 to vector<128x10xf32>
    %15 = arith.maximumf %13, %14 : vector<128x10xf32>
    %16 = arith.maximumf %8, %15 : vector<128x10xf32>
    %c2 = arith.constant 2 : index
    %c0_11 = arith.constant 0 : index
    %c0_12 = arith.constant 0 : index
    %17 = vector.load %arg1[%c2, %c0_11, %c0_12] : memref<4x128x45xbf16, #tpu.memory_space<vmem>>, vector<1x128x45xbf16>
    %18 = vector.shape_cast %17 : vector<1x128x45xbf16> to vector<128x45xbf16>
    %cst_13 = arith.constant dense<0.000000e+00> : vector<128x10xf32>
    %19 = tpu.matmul %18, %0, %cst_13 {dimension_numbers = #tpu.dot_dimension_numbers<[1], [0], [0], [1], [0, 0, 1, 1], [], []>} : vector<128x45xbf16>, vector<45x10xbf16>, vector<128x10xf32> -> vector<128x10xf32>
    %20 = vector.broadcast %1 : vector<1x10xf32> to vector<128x10xf32>
    %21 = arith.addf %19, %20 : vector<128x10xf32>
    %cst_14 = arith.constant 0.000000e+00 : f32
    %22 = vector.broadcast %cst_14 : f32 to vector<128x10xf32>
    %23 = arith.maximumf %21, %22 : vector<128x10xf32>
    %c3 = arith.constant 3 : index
    %c0_15 = arith.constant 0 : index
    %c0_16 = arith.constant 0 : index
    %24 = vector.load %arg1[%c3, %c0_15, %c0_16] : memref<4x128x45xbf16, #tpu.memory_space<vmem>>, vector<1x128x45xbf16>
    %25 = vector.shape_cast %24 : vector<1x128x45xbf16> to vector<128x45xbf16>
    %cst_17 = arith.constant dense<0.000000e+00> : vector<128x10xf32>
    %26 = tpu.matmul %25, %0, %cst_17 {dimension_numbers = #tpu.dot_dimension_numbers<[1], [0], [0], [1], [0, 0, 1, 1], [], []>} : vector<128x45xbf16>, vector<45x10xbf16>, vector<128x10xf32> -> vector<128x10xf32>
    %27 = vector.broadcast %1 : vector<1x10xf32> to vector<128x10xf32>
    %28 = arith.addf %26, %27 : vector<128x10xf32>
    %cst_18 = arith.constant 0.000000e+00 : f32
    %29 = vector.broadcast %cst_18 : f32 to vector<128x10xf32>
    %30 = arith.maximumf %28, %29 : vector<128x10xf32>
    %31 = arith.maximumf %23, %30 : vector<128x10xf32>
    %32 = arith.maximumf %16, %31 : vector<128x10xf32>
    %33 = arith.truncf %32 : vector<128x10xf32> to vector<128x10xbf16>
    %c0_19 = arith.constant 0 : index
    %c0_20 = arith.constant 0 : index
    %34 = vector.load %arg4[%c0_19, %c0_20] : memref<128x10xbf16, #tpu.memory_space<vmem>>, vector<128x10xbf16>
    tpu.vector_store %arg4[%c0_19, %c0_20], %33 {strides = array<i32>} : memref<128x10xbf16, #tpu.memory_space<vmem>>, vector<128x10xbf16>,
    return
  }
  func.func @transform_0(%arg0: i32) -> (i32, i32, i32) {
    %c0_i32 = arith.constant 0 : i32
    %c0_i32_0 = arith.constant 0 : i32
    %c0_i32_1 = arith.constant 0 : i32
    return %c0_i32, %arg0, %c0_i32_0 : i32, i32, i32
  }
  func.func @transform_1(%arg0: i32) -> (i32, i32) {
    %c0_i32 = arith.constant 0 : i32
    %c0_i32_0 = arith.constant 0 : i32
    %c0_i32_1 = arith.constant 0 : i32
    return %c0_i32, %c0_i32_0 : i32, i32
  }
  func.func @transform_2(%arg0: i32) -> (i32, i32) {
    %c0_i32 = arith.constant 0 : i32
    %c0_i32_0 = arith.constant 0 : i32
    %c0_i32_1 = arith.constant 0 : i32
    return %c0_i32, %c0_i32_0 : i32, i32
  }
  func.func @transform_3(%arg0: i32) -> (i32, i32) {
    %c0_i32 = arith.constant 0 : i32
    %c0_i32_0 = arith.constant 0 : i32
    return %arg0, %c0_i32 : i32, i32
  }
}

module attributes {stable_mosaic.version = 11 : i64} {
  func.func @_linear_kernel(%arg0: i32, %arg1: memref<2x640xbf16, #tpu.memory_space<vmem>>, %arg2: memref<640x10xbf16, #tpu.memory_space<vmem>>, %arg3: memref<1x10xf32, #tpu.memory_space<vmem>>, %arg4: memref<2x10xf32, #tpu.memory_space<vmem>>) attributes {dimension_semantics = [#tpu.dimension_semantics<arbitrary>], iteration_bounds = array<i64: 1>, scalar_prefetch = 0 : i64, scratch_operands = 0 : i64, tpu.core_type = #tpu.core_type<tc>, window_params = [{pipeline_mode = #tpu.pipeline_mode<synchronous>, transform_indices = @transform_0, window_bounds = array<i64: 2, 640>}, {pipeline_mode = #tpu.pipeline_mode<synchronous>, transform_indices = @transform_1, window_bounds = array<i64: 640, 10>}, {pipeline_mode = #tpu.pipeline_mode<synchronous>, transform_indices = @transform_2, window_bounds = array<i64: 1, 10>}, {pipeline_mode = #tpu.pipeline_mode<synchronous>, transform_indices = @transform_3, window_bounds = array<i64: 2, 10>}]} {
    %c0 = arith.constant 0 : index
    %c0_0 = arith.constant 0 : index
    %0 = vector.load %arg1[%c0, %c0_0] : memref<2x640xbf16, #tpu.memory_space<vmem>>, vector<2x640xbf16>
    %c0_1 = arith.constant 0 : index
    %c0_2 = arith.constant 0 : index
    %1 = vector.load %arg2[%c0_1, %c0_2] : memref<640x10xbf16, #tpu.memory_space<vmem>>, vector<640x10xbf16>
    %cst = arith.constant dense<0.000000e+00> : vector<2x10xf32>
    %2 = tpu.matmul %0, %1, %cst {dimension_numbers = #tpu.dot_dimension_numbers<[1], [0], [0], [1], [0, 0, 1, 1], [], []>} : vector<2x640xbf16>, vector<640x10xbf16>, vector<2x10xf32> -> vector<2x10xf32>
    %c0_3 = arith.constant 0 : index
    %c0_4 = arith.constant 0 : index
    %3 = vector.load %arg3[%c0_3, %c0_4] : memref<1x10xf32, #tpu.memory_space<vmem>>, vector<1x10xf32>
    %4 = vector.broadcast %3 : vector<1x10xf32> to vector<2x10xf32>
    %5 = arith.addf %2, %4 : vector<2x10xf32>
    %c0_5 = arith.constant 0 : index
    %c0_6 = arith.constant 0 : index
    %6 = vector.load %arg4[%c0_5, %c0_6] : memref<2x10xf32, #tpu.memory_space<vmem>>, vector<2x10xf32>
    tpu.vector_store %arg4[%c0_5, %c0_6], %5 {strides = array<i32>} : memref<2x10xf32, #tpu.memory_space<vmem>>, vector<2x10xf32>,
    return
  }
  func.func @transform_0(%arg0: i32) -> (i32, i32) {
    %c0_i32 = arith.constant 0 : i32
    %c0_i32_0 = arith.constant 0 : i32
    %c0_i32_1 = arith.constant 0 : i32
    return %c0_i32, %c0_i32_0 : i32, i32
  }
  func.func @transform_1(%arg0: i32) -> (i32, i32) {
    %c0_i32 = arith.constant 0 : i32
    %c0_i32_0 = arith.constant 0 : i32
    %c0_i32_1 = arith.constant 0 : i32
    return %c0_i32, %c0_i32_0 : i32, i32
  }
  func.func @transform_2(%arg0: i32) -> (i32, i32) {
    %c0_i32 = arith.constant 0 : i32
    %c0_i32_0 = arith.constant 0 : i32
    %c0_i32_1 = arith.constant 0 : i32
    return %c0_i32, %c0_i32_0 : i32, i32
  }
  func.func @transform_3(%arg0: i32) -> (i32, i32) {
    %c0_i32 = arith.constant 0 : i32
    %c0_i32_0 = arith.constant 0 : i32
    %c0_i32_1 = arith.constant 0 : i32
    return %c0_i32, %c0_i32_0 : i32, i32
  }
}

</mosaic_0001>

<llo_original>
// kernel: lenet_forward.6
$region0: #{lenet_forward.6}
  #allocation0 [shape = 'u32[]', space=smem, size = 0x4, offset = 0x4, fixed_abs, tag = 'smem constant byte address 0x4 - core index']
  #allocation1 [shape = 'u32[144,128]{1,0:T(1,128)}', space=vmem, size = 0x12000, scoped, tag = 'internal scratch']
  %s0 = inlined_call_operand.vmem [shape: bf16[4,450,25], index: 0, kind: input, shape index: {}]
  %s1 = inlined_call_operand.vmem [shape: bf16[25,5], index: 1, kind: input, shape index: {}]
  %s2 = inlined_call_operand.vmem [shape: f32[1,5], index: 2, kind: input, shape index: {}]
  %s3 = inlined_call_operand.vmem [shape: bf16[450,5], index: 3, kind: output, shape index: {}]
  %s4 = sld [smem:[#allocation0]]
  $region151: #{lenet_forward.6} parent=0
    _
  %s6 = ssub.s32 1, %s4
  %s7 = scalar_select 0, %s6, %s4
  $region1: #{lenet_forward.6} parent=0
    #allocation2 [shape = 'u8[262144]{0}', space=vmem, size = 0x40000, scoped, tag = 'input window, operand 0']
    #allocation3 [shape = 'u8[65536]{0}', space=vmem, size = 0x10000, scoped, tag = 'output window, operand 0']
    loop: start=0, step=1, limit=6
    $region2: #{lenet_forward.6} parent=1 // loop_pre_header
      _
    $region3: #{lenet_forward.6} parent=1 // loop_header
      %s9 = sphi 0, %s13
      %p10 = scmp.ge.s32.totalorder %s9, 6
      %s19 = sphi 0, %s21
      %s22 = sphi 0, %s19
      %s23 = sphi 0, %s22
      %s39 = sphi 0, %s23
      %s43 = sphi 0, %s43
      %s45 = sphi 0, %s43
      %s46 = sphi 0, %s45
      %s60 = sphi 0, %s46
      %s64 = sphi 0, %s64
      %s66 = sphi 0, %s64
      %s67 = sphi 0, %s66
      %s81 = sphi 0, %s67
      %s87 = sphi 0, %s89
      %s90 = sphi 0, %s87
      %s91 = sphi 0, %s90
      %s107 = sphi 0, %s91
    $region4: #{lenet_forward.6} parent=1 // loop_header_branch
      %12 = sbr.rel (%p10) target = $region8
    $region5: #{lenet_forward.6} parent=1 // loop_body
      %s14 = ssub.s32 %s9, 1
      %s15 = ssub.s32 %s9, 2
      %s16 = sadd.s32 %s9, 1
      %s17 = ssub.s32 %s9, %s16
      %p18 = scmp.eq.s32.totalorder %s17, 0
      %s20 = sadd.s32 %s19, 1
      %s21 = scalar_select %p18, %s19, %s20
      %p24 = pneg %p18
      %p25 = scmp.eq.s32.totalorder %s9, 3
      %p26 = por %p24, %p25
      %p27 = scmp.ne.s32.totalorder %s19, %s22
      %p28 = scmp.eq.s32.totalorder %s9, 0
      %p29 = por %p27, %p28
      %p30 = scmp.ne.s32.totalorder %s19, %s22
      %p31 = scmp.eq.s32.totalorder %s14, 3
      %p32 = por %p30, %p31
      %p33 = scmp.ne.s32.totalorder %s22, %s23
      %p34 = scmp.eq.s32.totalorder %s14, 0
      %p35 = por %p33, %p34
      %p36 = scmp.ne.s32.totalorder %s22, %s23
      %p37 = scmp.eq.s32.totalorder %s15, 3
      %p38 = por %p36, %p37
      %p40 = scmp.ne.s32.totalorder %s23, %s39
      %p41 = scmp.eq.s32.totalorder %s15, 0
      %p42 = por %p40, %p41
      %s44 = sadd.s32 %s43, 1
      %p47 = scmp.eq.s32.totalorder %s9, 3
      %p48 = scmp.ne.s32.totalorder %s43, %s45
      %p49 = scmp.eq.s32.totalorder %s9, 0
      %p50 = por %p48, %p49
      %p51 = scmp.ne.s32.totalorder %s43, %s45
      %p52 = scmp.eq.s32.totalorder %s14, 3
      %p53 = por %p51, %p52
      %p54 = scmp.ne.s32.totalorder %s45, %s46
      %p55 = scmp.eq.s32.totalorder %s14, 0
      %p56 = por %p54, %p55
      %p57 = scmp.ne.s32.totalorder %s45, %s46
      %p58 = scmp.eq.s32.totalorder %s15, 3
      %p59 = por %p57, %p58
      %p61 = scmp.ne.s32.totalorder %s46, %s60
      %p62 = scmp.eq.s32.totalorder %s15, 0
      %p63 = por %p61, %p62
      %s65 = sadd.s32 %s64, 1
      %p68 = scmp.eq.s32.totalorder %s9, 3
      %p69 = scmp.ne.s32.totalorder %s64, %s66
      %p70 = scmp.eq.s32.totalorder %s9, 0
      %p71 = por %p69, %p70
      %p72 = scmp.ne.s32.totalorder %s64, %s66
      %p73 = scmp.eq.s32.totalorder %s14, 3
      %p74 = por %p72, %p73
      %p75 = scmp.ne.s32.totalorder %s66, %s67
      %p76 = scmp.eq.s32.totalorder %s14, 0
      %p77 = por %p75, %p76
      %p78 = scmp.ne.s32.totalorder %s66, %s67
      %p79 = scmp.eq.s32.totalorder %s15, 3
      %p80 = por %p78, %p79
      %p82 = scmp.ne.s32.totalorder %s67, %s81
      %p83 = scmp.eq.s32.totalorder %s15, 0
      %p84 = por %p82, %p83
      %s85 = ssub.s32 %s9, %s16
      %p86 = scmp.eq.s32.totalorder %s85, 0
      %s88 = sadd.s32 %s87, 1
      %s89 = scalar_select %p86, %s87, %s88
      %p92 = pneg %p86
      %p93 = scmp.eq.s32.totalorder %s9, 3
      %p94 = por %p92, %p93
      %p95 = scmp.ne.s32.totalorder %s87, %s90
      %p96 = scmp.eq.s32.totalorder %s9, 0
      %p97 = por %p95, %p96
      %p98 = scmp.ne.s32.totalorder %s87, %s90
      %p99 = scmp.eq.s32.totalorder %s14, 3
      %p100 = por %p98, %p99
      %p101 = scmp.ne.s32.totalorder %s90, %s91
      %p102 = scmp.eq.s32.totalorder %s14, 0
      %p103 = por %p101, %p102
      %p104 = scmp.ne.s32.totalorder %s90, %s91
      %p105 = scmp.eq.s32.totalorder %s15, 3
      %p106 = por %p104, %p105
      %p108 = scmp.ne.s32.totalorder %s91, %s107
      %p109 = scmp.eq.s32.totalorder %s15, 0
      %p110 = por %p108, %p109
      %p111 = scmp.le.s32.totalorder 1, %s9
      %p112 = scmp.lt.s32.totalorder %s9, 5
      %p113 = pnand %p111, %p112
      %p114 = pneg %p113
      // Predicated region
      $region9: #{lenet_forward.6} parent=5 // pred_check
        _
      $region10: #{lenet_forward.6} parent=5 // pred_check_branch
        %116 = sbr.rel (%p113) target = $region12
      $region11: #{lenet_forward.6} parent=5 // pred_region
        %s117 = ssub.s32 %s9, 1
        // Predicated region
        $region13: #{lenet_forward.6} parent=11 // pred_check
          %p118 = pneg %p56
        $region14: #{lenet_forward.6} parent=11 // pred_check_branch
          %120 = sbr.rel (%p118) target = $region16
        $region15: #{lenet_forward.6} parent=11 // pred_region
          _
        $region16: #{lenet_forward.6} parent=11 // pred_fallthru
          _
        // Predicated region
        $region17: #{lenet_forward.6} parent=11 // pred_check
          %p121 = pneg %p77
        $region18: #{lenet_forward.6} parent=11 // pred_check_branch
          %123 = sbr.rel (%p121) target = $region20
        $region19: #{lenet_forward.6} parent=11 // pred_region
          _
        $region20: #{lenet_forward.6} parent=11 // pred_fallthru
          _
      $region12: #{lenet_forward.6} parent=5 // pred_fallthru
        _
      %p124 = scmp.lt.s32.totalorder %s9, 4
      // Predicated region
      $region21: #{lenet_forward.6} parent=5 // pred_check
        %p125 = pneg %p124
      $region22: #{lenet_forward.6} parent=5 // pred_check_branch
        %127 = sbr.rel (%p125) target = $region24
      $region23: #{lenet_forward.6} parent=5 // pred_region
        // Predicated region
        $region25: #{lenet_forward.6} parent=23 // pred_check
          %p128 = pneg %p29
        $region26: #{lenet_forward.6} parent=23 // pred_check_branch
          %130 = sbr.rel (%p128) target = $region28
        $region27: #{lenet_forward.6} parent=23 // pred_region
          %s131 = sand.u32 %s19, 1
          %s132 = sand.u32 %s19, 1
          %s133 = smul.addr %s132, 256
          %s134 = scalar_lea.vmem [#allocation2], %s133
          %s135 = smul.u32 16, %s9
          %s136 = ssub.s32 57, %s135
          %p137 = scmp.lt.s32.totalorder %s136, 16
          %s138 = scalar_select %p137, %s136, 16
          %s139 = smul.u32 256, %s138
          %p140 = scmp.ne.s32.totalorder 0, %s139
          %s141 = smul.addr %s135, 4
          %s142 = scalar_lea.vmem %s0, %s141
          // Predicated region
          $region29: #{lenet_forward.6} parent=27 // pred_check
            %p143 = pneg %p140
          $region30: #{lenet_forward.6} parent=27 // pred_check_branch
            %145 = sbr.rel (%p143) target = $region32
          $region31: #{lenet_forward.6} parent=27 // pred_region
            // Predicated region
            $region33: #{lenet_forward.6} parent=31 // pred_check
              _
            $region34: #{lenet_forward.6} parent=31 // pred_check_branch
              %147 = sbr.rel target = $region36
            $region35: #{lenet_forward.6} parent=31 // pred_region
              // Predicated region
              $region55: #{lenet_forward.6} parent=35 // pred_check
                _
              $region56: #{lenet_forward.6} parent=35 // pred_check_branch
                %328 = sbr.rel (0) target = $region58
              $region57: #{lenet_forward.6} parent=35 // pred_region
                %s329 = sshrl.u32 %s138, 4
                // While loop
                $region59: #{lenet_forward.6} parent=57 // loop_pre_header
                  _
                $region60: #{lenet_forward.6} parent=57 // loop_header
                  %s331 = sphi 0, %s333
                  %p332 = scmp.ge.s32.totalorder %s331, %s329
                  %s336 = sphi 0, %s341
                  %s337 = sphi %s142, %s344
                  %s338 = sphi %s134, %s345
                $region61: #{lenet_forward.6} parent=57 // loop_header_branch
                  %335 = sbr.rel (%p332) target = $region65
                $region62: #{lenet_forward.6} parent=57 // loop_body
                  %s339 = sadd.s32 1, %s336
                  %p340 = scmp.ge.s32.totalorder %s339, %s329
                  %s341 = scalar_select %p340, 0, %s339
                  %s342 = smul.u32 %s341, 64
                  %s343 = smul.u32 %s341, 64
                  %s344 = scalar_lea.vmem %s142, %s342
                  %s345 = scalar_lea.vmem %s134, %s343 [#allocation2]
                $region63: #{lenet_forward.6} parent=57 // loop_footer
                  %s333 = sadd.s32 %s331, 1
                $region64: #{lenet_forward.6} parent=57 // loop_footer_branch
                  %330 = sbr.rel target = $region60
                $region65: #{lenet_forward.6} parent=57 // loop_exit
                  _
                %s346 = sshrl.u32 %s138, 4
                %s347 = sand.u32 %s138, 15
                %s348 = smul.u32 %s346, 16
                %s349 = smul.u32 4, %s348
                %s350 = scalar_lea.vmem %s142, %s349
                %s351 = smul.u32 4, %s348
                %s352 = scalar_lea.vmem %s134, %s351 [#allocation2]
                // While loop
                $region66: #{lenet_forward.6} parent=57 // loop_pre_header
                  _
                $region67: #{lenet_forward.6} parent=57 // loop_header
                  %s354 = sphi 0, %s356
                  %p355 = scmp.ge.s32.totalorder %s354, %s347
                  %s359 = sphi 0, %s364
                  %s360 = sphi %s350, %s367
                  %s361 = sphi %s352, %s368
                $region68: #{lenet_forward.6} parent=57 // loop_header_branch
                  %358 = sbr.rel (%p355) target = $region72
                $region69: #{lenet_forward.6} parent=57 // loop_body
                  %s362 = sadd.s32 1, %s359
                  %p363 = scmp.ge.s32.totalorder %s362, %s347
                  %s364 = scalar_select %p363, 0, %s362
                  %s365 = smul.u32 %s364, 4
                  %s366 = smul.u32 %s364, 4
                  %s367 = scalar_lea.vmem %s350, %s365
                  %s368 = scalar_lea.vmem %s352, %s366 [#allocation2]
                $region70: #{lenet_forward.6} parent=57 // loop_footer
                  %s356 = sadd.s32 %s354, 1
                $region71: #{lenet_forward.6} parent=57 // loop_footer_branch
                  %353 = sbr.rel target = $region67
                $region72: #{lenet_forward.6} parent=57 // loop_exit
                  _
                %s370 = sshrl.u32 %s138, 4
                // While loop
                $region73: #{lenet_forward.6} parent=57 // loop_pre_header
                  _
                $region74: #{lenet_forward.6} parent=57 // loop_header
                  %s372 = sphi 0, %s374
                  %p373 = scmp.ge.s32.totalorder %s372, %s370
                  %s377 = sphi 0, %s510
                  %s378 = sphi %s142, %s513
                  %s379 = sphi %s134, %s514
                $region75: #{lenet_forward.6} parent=57 // loop_header_branch
                  %376 = sbr.rel (%p373) target = $region79
                $region76: #{lenet_forward.6} parent=57 // loop_body
                  %v380 = vld [vmem:[%s378] sm:$0xf]
                  %381 = vst [vmem:[%s379] sm:$0xf] %v380
                  %v382 = vld [vmem:[%s378 + $0x4] sm:$0xf]
                  %383 = vst [vmem:[%s379 + $0x4] sm:$0xf] %v382
                  %v384 = vld [vmem:[%s378 + $0x8] sm:$0xf]
                  %385 = vst [vmem:[%s379 + $0x8] sm:$0xf] %v384
                  %v386 = vld [vmem:[%s378 + $0xc] sm:$0xf]
                  %387 = vst [vmem:[%s379 + $0xc] sm:$0xf] %v386
                  %v388 = vld [vmem:[%s378 + $0x10] sm:$0xf]
                  %389 = vst [vmem:[%s379 + $0x10] sm:$0xf] %v388
                  %v390 = vld [vmem:[%s378 + $0x14] sm:$0xf]
                  %391 = vst [vmem:[%s379 + $0x14] sm:$0xf] %v390
                  %v392 = vld [vmem:[%s378 + $0x18] sm:$0xf]
                  %393 = vst [vmem:[%s379 + $0x18] sm:$0xf] %v392
                  %v394 = vld [vmem:[%s378 + $0x1c] sm:$0xf]
                  %395 = vst [vmem:[%s379 + $0x1c] sm:$0xf] %v394
                  %v396 = vld [vmem:[%s378 + $0x20] sm:$0xf]
                  %397 = vst [vmem:[%s379 + $0x20] sm:$0xf] %v396
                  %v398 = vld [vmem:[%s378 + $0x24] sm:$0xf]
                  %399 = vst [vmem:[%s379 + $0x24] sm:$0xf] %v398
                  %v400 = vld [vmem:[%s378 + $0x28] sm:$0xf]
                  %401 = vst [vmem:[%s379 + $0x28] sm:$0xf] %v400
                  %v402 = vld [vmem:[%s378 + $0x2c] sm:$0xf]
                  %403 = vst [vmem:[%s379 + $0x2c] sm:$0xf] %v402
                  %v404 = vld [vmem:[%s378 + $0x30] sm:$0xf]
                  %405 = vst [vmem:[%s379 + $0x30] sm:$0xf] %v404
                  %v406 = vld [vmem:[%s378 + $0x34] sm:$0xf]
                  %407 = vst [vmem:[%s379 + $0x34] sm:$0xf] %v406
                  %v408 = vld [vmem:[%s378 + $0x38] sm:$0xf]
                  %409 = vst [vmem:[%s379 + $0x38] sm:$0xf] %v408
                  %v410 = vld [vmem:[%s378 + $0x3c] sm:$0xf]
                  %411 = vst [vmem:[%s379 + $0x3c] sm:$0xf] %v410
                  %v412 = vld [vmem:[%s378 + $0xe4] sm:$0xf]
                  %413 = vst [vmem:[%s379 + $0x40] sm:$0xf] %v412
                  %v414 = vld [vmem:[%s378 + $0xe8] sm:$0xf]
                  %415 = vst [vmem:[%s379 + $0x44] sm:$0xf] %v414
                  %v416 = vld [vmem:[%s378 + $0xec] sm:$0xf]
                  %417 = vst [vmem:[%s379 + $0x48] sm:$0xf] %v416
                  %v418 = vld [vmem:[%s378 + $0xf0] sm:$0xf]
                  %419 = vst [vmem:[%s379 + $0x4c] sm:$0xf] %v418
                  %v420 = vld [vmem:[%s378 + $0xf4] sm:$0xf]
                  %421 = vst [vmem:[%s379 + $0x50] sm:$0xf] %v420
                  %v422 = vld [vmem:[%s378 + $0xf8] sm:$0xf]
                  %423 = vst [vmem:[%s379 + $0x54] sm:$0xf] %v422
                  %v424 = vld [vmem:[%s378 + $0xfc] sm:$0xf]
                  %425 = vst [vmem:[%s379 + $0x58] sm:$0xf] %v424
                  %v426 = vld [vmem:[%s378 + $0x100] sm:$0xf]
                  %427 = vst [vmem:[%s379 + $0x5c] sm:$0xf] %v426
                  %v428 = vld [vmem:[%s378 + $0x104] sm:$0xf]
                  %429 = vst [vmem:[%s379 + $0x60] sm:$0xf] %v428
                  %v430 = vld [vmem:[%s378 + $0x108] sm:$0xf]
                  %431 = vst [vmem:[%s379 + $0x64] sm:$0xf] %v430
                  %v432 = vld [vmem:[%s378 + $0x10c] sm:$0xf]
                  %433 = vst [vmem:[%s379 + $0x68] sm:$0xf] %v432
                  %v434 = vld [vmem:[%s378 + $0x110] sm:$0xf]
                  %435 = vst [vmem:[%s379 + $0x6c] sm:$0xf] %v434
                  %v436 = vld [vmem:[%s378 + $0x114] sm:$0xf]
                  %437 = vst [vmem:[%s379 + $0x70] sm:$0xf] %v436
                  %v438 = vld [vmem:[%s378 + $0x118] sm:$0xf]
                  %439 = vst [vmem:[%s379 + $0x74] sm:$0xf] %v438
                  %v440 = vld [vmem:[%s378 + $0x11c] sm:$0xf]
                  %441 = vst [vmem:[%s379 + $0x78] sm:$0xf] %v440
                  %v442 = vld [vmem:[%s378 + $0x120] sm:$0xf]
                  %443 = vst [vmem:[%s379 + $0x7c] sm:$0xf] %v442
                  %v444 = vld [vmem:[%s378 + $0x1c8] sm:$0xf]
                  %445 = vst [vmem:[%s379 + $0x80] sm:$0xf] %v444
                  %v446 = vld [vmem:[%s378 + $0x1cc] sm:$0xf]
                  %447 = vst [vmem:[%s379 + $0x84] sm:$0xf] %v446
                  %v448 = vld [vmem:[%s378 + $0x1d0] sm:$0xf]
                  %449 = vst [vmem:[%s379 + $0x88] sm:$0xf] %v448
                  %v450 = vld [vmem:[%s378 + $0x1d4] sm:$0xf]
                  %451 = vst [vmem:[%s379 + $0x8c] sm:$0xf] %v450
                  %v452 = vld [vmem:[%s378 + $0x1d8] sm:$0xf]
                  %453 = vst [vmem:[%s379 + $0x90] sm:$0xf] %v452
                  %v454 = vld [vmem:[%s378 + $0x1dc] sm:$0xf]
                  %455 = vst [vmem:[%s379 + $0x94] sm:$0xf] %v454
                  %v456 = vld [vmem:[%s378 + $0x1e0] sm:$0xf]
                  %457 = vst [vmem:[%s379 + $0x98] sm:$0xf] %v456
                  %v458 = vld [vmem:[%s378 + $0x1e4] sm:$0xf]
                  %459 = vst [vmem:[%s379 + $0x9c] sm:$0xf] %v458
                  %v460 = vld [vmem:[%s378 + $0x1e8] sm:$0xf]
                  %461 = vst [vmem:[%s379 + $0xa0] sm:$0xf] %v460
                  %v462 = vld [vmem:[%s378 + $0x1ec] sm:$0xf]
                  %463 = vst [vmem:[%s379 + $0xa4] sm:$0xf] %v462
                  %v464 = vld [vmem:[%s378 + $0x1f0] sm:$0xf]
                  %465 = vst [vmem:[%s379 + $0xa8] sm:$0xf] %v464
                  %v466 = vld [vmem:[%s378 + $0x1f4] sm:$0xf]
                  %467 = vst [vmem:[%s379 + $0xac] sm:$0xf] %v466
                  %v468 = vld [vmem:[%s378 + $0x1f8] sm:$0xf]
                  %469 = vst [vmem:[%s379 + $0xb0] sm:$0xf] %v468
                  %v470 = vld [vmem:[%s378 + $0x1fc] sm:$0xf]
                  %471 = vst [vmem:[%s379 + $0xb4] sm:$0xf] %v470
                  %v472 = vld [vmem:[%s378 + $0x200] sm:$0xf]
                  %473 = vst [vmem:[%s379 + $0xb8] sm:$0xf] %v472
                  %v474 = vld [vmem:[%s378 + $0x204] sm:$0xf]
                  %475 = vst [vmem:[%s379 + $0xbc] sm:$0xf] %v474
                  %v476 = vld [vmem:[%s378 + $0x2ac] sm:$0xf]
                  %477 = vst [vmem:[%s379 + $0xc0] sm:$0xf] %v476
                  %v478 = vld [vmem:[%s378 + $0x2b0] sm:$0xf]
                  %479 = vst [vmem:[%s379 + $0xc4] sm:$0xf] %v478
                  %v480 = vld [vmem:[%s378 + $0x2b4] sm:$0xf]
                  %481 = vst [vmem:[%s379 + $0xc8] sm:$0xf] %v480
                  %v482 = vld [vmem:[%s378 + $0x2b8] sm:$0xf]
                  %483 = vst [vmem:[%s379 + $0xcc] sm:$0xf] %v482
                  %v484 = vld [vmem:[%s378 + $0x2bc] sm:$0xf]
                  %485 = vst [vmem:[%s379 + $0xd0] sm:$0xf] %v484
                  %v486 = vld [vmem:[%s378 + $0x2c0] sm:$0xf]
                  %487 = vst [vmem:[%s379 + $0xd4] sm:$0xf] %v486
                  %v488 = vld [vmem:[%s378 + $0x2c4] sm:$0xf]
                  %489 = vst [vmem:[%s379 + $0xd8] sm:$0xf] %v488
                  %v490 = vld [vmem:[%s378 + $0x2c8] sm:$0xf]
                  %491 = vst [vmem:[%s379 + $0xdc] sm:$0xf] %v490
                  %v492 = vld [vmem:[%s378 + $0x2cc] sm:$0xf]
                  %493 = vst [vmem:[%s379 + $0xe0] sm:$0xf] %v492
                  %v494 = vld [vmem:[%s378 + $0x2d0] sm:$0xf]
                  %495 = vst [vmem:[%s379 + $0xe4] sm:$0xf] %v494
                  %v496 = vld [vmem:[%s378 + $0x2d4] sm:$0xf]
                  %497 = vst [vmem:[%s379 + $0xe8] sm:$0xf] %v496
                  %v498 = vld [vmem:[%s378 + $0x2d8] sm:$0xf]
                  %499 = vst [vmem:[%s379 + $0xec] sm:$0xf] %v498
                  %v500 = vld [vmem:[%s378 + $0x2dc] sm:$0xf]
                  %501 = vst [vmem:[%s379 + $0xf0] sm:$0xf] %v500
                  %v502 = vld [vmem:[%s378 + $0x2e0] sm:$0xf]
                  %503 = vst [vmem:[%s379 + $0xf4] sm:$0xf] %v502
                  %v504 = vld [vmem:[%s378 + $0x2e4] sm:$0xf]
                  %505 = vst [vmem:[%s379 + $0xf8] sm:$0xf] %v504
                  %v506 = vld [vmem:[%s378 + $0x2e8] sm:$0xf]
                  %507 = vst [vmem:[%s379 + $0xfc] sm:$0xf] %v506
                  %s508 = sadd.s32 1, %s377
                  %p509 = scmp.ge.s32.totalorder %s508, %s370
                  %s510 = scalar_select %p509, 0, %s508
                  %s511 = smul.u32 %s510, 64
                  %s512 = smul.u32 %s510, 64
                  %s513 = scalar_lea.vmem %s142, %s511
                  %s514 = scalar_lea.vmem %s134, %s512 [#allocation2]
                $region77: #{lenet_forward.6} parent=57 // loop_footer
                  %s374 = sadd.s32 %s372, 1
                $region78: #{lenet_forward.6} parent=57 // loop_footer_branch
                  %371 = sbr.rel target = $region74
                $region79: #{lenet_forward.6} parent=57 // loop_exit
                  _
                %s515 = sshrl.u32 %s138, 4
                %s516 = sand.u32 %s138, 15
                %s517 = smul.u32 %s515, 16
                %s518 = smul.u32 4, %s517
                %s519 = scalar_lea.vmem %s142, %s518
                %s520 = smul.u32 4, %s517
                %s521 = scalar_lea.vmem %s134, %s520 [#allocation2]
                // While loop
                $region80: #{lenet_forward.6} parent=57 // loop_pre_header
                  _
                $region81: #{lenet_forward.6} parent=57 // loop_header
                  %s523 = sphi 0, %s525
                  %p524 = scmp.ge.s32.totalorder %s523, %s516
                  %s528 = sphi 0, %s541
                  %s529 = sphi %s519, %s544
                  %s530 = sphi %s521, %s545
                $region82: #{lenet_forward.6} parent=57 // loop_header_branch
                  %527 = sbr.rel (%p524) target = $region86
                $region83: #{lenet_forward.6} parent=57 // loop_body
                  %v531 = vld [vmem:[%s529] sm:$0xf]
                  %532 = vst [vmem:[%s530] sm:$0xf] %v531
                  %v533 = vld [vmem:[%s529 + $0xe4] sm:$0xf]
                  %534 = vst [vmem:[%s530 + $0x40] sm:$0xf] %v533
                  %v535 = vld [vmem:[%s529 + $0x1c8] sm:$0xf]
                  %536 = vst [vmem:[%s530 + $0x80] sm:$0xf] %v535
                  %v537 = vld [vmem:[%s529 + $0x2ac] sm:$0xf]
                  %538 = vst [vmem:[%s530 + $0xc0] sm:$0xf] %v537
                  %s539 = sadd.s32 1, %s528
                  %p540 = scmp.ge.s32.totalorder %s539, %s516
                  %s541 = scalar_select %p540, 0, %s539
                  %s542 = smul.u32 %s541, 4
                  %s543 = smul.u32 %s541, 4
                  %s544 = scalar_lea.vmem %s519, %s542
                  %s545 = scalar_lea.vmem %s521, %s543 [#allocation2]
                $region84: #{lenet_forward.6} parent=57 // loop_footer
                  %s525 = sadd.s32 %s523, 1
                $region85: #{lenet_forward.6} parent=57 // loop_footer_branch
                  %522 = sbr.rel target = $region81
                $region86: #{lenet_forward.6} parent=57 // loop_exit
                  _
              $region58: #{lenet_forward.6} parent=35 // pred_fallthru
                _
            $region36: #{lenet_forward.6} parent=31 // pred_fallthru
              _
            // Predicated region
            $region37: #{lenet_forward.6} parent=31 // pred_check
              _
            $region38: #{lenet_forward.6} parent=31 // pred_check_branch
              %149 = sbr.rel (0) target = $region40
            $region39: #{lenet_forward.6} parent=31 // pred_region
              %s151 = sshrl.u32 %s138, 4
              // While loop
              $region41: #{lenet_forward.6} parent=39 // loop_pre_header
                _
              $region42: #{lenet_forward.6} parent=39 // loop_header
                %s153 = sphi 0, %s155
                %p154 = scmp.ge.s32.totalorder %s153, %s151
                %s158 = sphi 0, %s291
                %s159 = sphi %s142, %s294
                %s160 = sphi %s134, %s295
              $region43: #{lenet_forward.6} parent=39 // loop_header_branch
                %157 = sbr.rel (%p154) target = $region47
              $region44: #{lenet_forward.6} parent=39 // loop_body
                %v161 = vld [vmem:[%s159] sm:$0xf]
                %162 = vst [vmem:[%s160] sm:$0xf] %v161
                %v163 = vld [vmem:[%s159 + $0x4] sm:$0xf]
                %164 = vst [vmem:[%s160 + $0x4] sm:$0xf] %v163
                %v165 = vld [vmem:[%s159 + $0x8] sm:$0xf]
                %166 = vst [vmem:[%s160 + $0x8] sm:$0xf] %v165
                %v167 = vld [vmem:[%s159 + $0xc] sm:$0xf]
                %168 = vst [vmem:[%s160 + $0xc] sm:$0xf] %v167
                %v169 = vld [vmem:[%s159 + $0x10] sm:$0xf]
                %170 = vst [vmem:[%s160 + $0x10] sm:$0xf] %v169
                %v171 = vld [vmem:[%s159 + $0x14] sm:$0xf]
                %172 = vst [vmem:[%s160 + $0x14] sm:$0xf] %v171
                %v173 = vld [vmem:[%s159 + $0x18] sm:$0xf]
                %174 = vst [vmem:[%s160 + $0x18] sm:$0xf] %v173
                %v175 = vld [vmem:[%s159 + $0x1c] sm:$0xf]
                %176 = vst [vmem:[%s160 + $0x1c] sm:$0xf] %v175
                %v177 = vld [vmem:[%s159 + $0x20] sm:$0xf]
                %178 = vst [vmem:[%s160 + $0x20] sm:$0xf] %v177
                %v179 = vld [vmem:[%s159 + $0x24] sm:$0xf]
                %180 = vst [vmem:[%s160 + $0x24] sm:$0xf] %v179
                %v181 = vld [vmem:[%s159 + $0x28] sm:$0xf]
                %182 = vst [vmem:[%s160 + $0x28] sm:$0xf] %v181
                %v183 = vld [vmem:[%s159 + $0x2c] sm:$0xf]
                %184 = vst [vmem:[%s160 + $0x2c] sm:$0xf] %v183
                %v185 = vld [vmem:[%s159 + $0x30] sm:$0xf]
                %186 = vst [vmem:[%s160 + $0x30] sm:$0xf] %v185
                %v187 = vld [vmem:[%s159 + $0x34] sm:$0xf]
                %188 = vst [vmem:[%s160 + $0x34] sm:$0xf] %v187
                %v189 = vld [vmem:[%s159 + $0x38] sm:$0xf]
                %190 = vst [vmem:[%s160 + $0x38] sm:$0xf] %v189
                %v191 = vld [vmem:[%s159 + $0x3c] sm:$0xf]
                %192 = vst [vmem:[%s160 + $0x3c] sm:$0xf] %v191
                %v193 = vld [vmem:[%s159 + $0xe4] sm:$0xf]
                %194 = vst [vmem:[%s160 + $0x40] sm:$0xf] %v193
                %v195 = vld [vmem:[%s159 + $0xe8] sm:$0xf]
                %196 = vst [vmem:[%s160 + $0x44] sm:$0xf] %v195
                %v197 = vld [vmem:[%s159 + $0xec] sm:$0xf]
                %198 = vst [vmem:[%s160 + $0x48] sm:$0xf] %v197
                %v199 = vld [vmem:[%s159 + $0xf0] sm:$0xf]
                %200 = vst [vmem:[%s160 + $0x4c] sm:$0xf] %v199
                %v201 = vld [vmem:[%s159 + $0xf4] sm:$0xf]
                %202 = vst [vmem:[%s160 + $0x50] sm:$0xf] %v201
                %v203 = vld [vmem:[%s159 + $0xf8] sm:$0xf]
                %204 = vst [vmem:[%s160 + $0x54] sm:$0xf] %v203
                %v205 = vld [vmem:[%s159 + $0xfc] sm:$0xf]
                %206 = vst [vmem:[%s160 + $0x58] sm:$0xf] %v205
                %v207 = vld [vmem:[%s159 + $0x100] sm:$0xf]
                %208 = vst [vmem:[%s160 + $0x5c] sm:$0xf] %v207
                %v209 = vld [vmem:[%s159 + $0x104] sm:$0xf]
                %210 = vst [vmem:[%s160 + $0x60] sm:$0xf] %v209
                %v211 = vld [vmem:[%s159 + $0x108] sm:$0xf]
                %212 = vst [vmem:[%s160 + $0x64] sm:$0xf] %v211
                %v213 = vld [vmem:[%s159 + $0x10c] sm:$0xf]
                %214 = vst [vmem:[%s160 + $0x68] sm:$0xf] %v213
                %v215 = vld [vmem:[%s159 + $0x110] sm:$0xf]
                %216 = vst [vmem:[%s160 + $0x6c] sm:$0xf] %v215
                %v217 = vld [vmem:[%s159 + $0x114] sm:$0xf]
                %218 = vst [vmem:[%s160 + $0x70] sm:$0xf] %v217
                %v219 = vld [vmem:[%s159 + $0x118] sm:$0xf]
                %220 = vst [vmem:[%s160 + $0x74] sm:$0xf] %v219
                %v221 = vld [vmem:[%s159 + $0x11c] sm:$0xf]
                %222 = vst [vmem:[%s160 + $0x78] sm:$0xf] %v221
                %v223 = vld [vmem:[%s159 + $0x120] sm:$0xf]
                %224 = vst [vmem:[%s160 + $0x7c] sm:$0xf] %v223
                %v225 = vld [vmem:[%s159 + $0x1c8] sm:$0xf]
                %226 = vst [vmem:[%s160 + $0x80] sm:$0xf] %v225
                %v227 = vld [vmem:[%s159 + $0x1cc] sm:$0xf]
                %228 = vst [vmem:[%s160 + $0x84] sm:$0xf] %v227
                %v229 = vld [vmem:[%s159 + $0x1d0] sm:$0xf]
                %230 = vst [vmem:[%s160 + $0x88] sm:$0xf] %v229
                %v231 = vld [vmem:[%s159 + $0x1d4] sm:$0xf]
                %232 = vst [vmem:[%s160 + $0x8c] sm:$0xf] %v231
                %v233 = vld [vmem:[%s159 + $0x1d8] sm:$0xf]
                %234 = vst [vmem:[%s160 + $0x90] sm:$0xf] %v233
                %v235 = vld [vmem:[%s159 + $0x1dc] sm:$0xf]
                %236 = vst [vmem:[%s160 + $0x94] sm:$0xf] %v235
                %v237 = vld [vmem:[%s159 + $0x1e0] sm:$0xf]
                %238 = vst [vmem:[%s160 + $0x98] sm:$0xf] %v237
                %v239 = vld [vmem:[%s159 + $0x1e4] sm:$0xf]
                %240 = vst [vmem:[%s160 + $0x9c] sm:$0xf] %v239
                %v241 = vld [vmem:[%s159 + $0x1e8] sm:$0xf]
                %242 = vst [vmem:[%s160 + $0xa0] sm:$0xf] %v241
                %v243 = vld [vmem:[%s159 + $0x1ec] sm:$0xf]
                %244 = vst [vmem:[%s160 + $0xa4] sm:$0xf] %v243
                %v245 = vld [vmem:[%s159 + $0x1f0] sm:$0xf]
                %246 = vst [vmem:[%s160 + $0xa8] sm:$0xf] %v245
                %v247 = vld [vmem:[%s159 + $0x1f4] sm:$0xf]
                %248 = vst [vmem:[%s160 + $0xac] sm:$0xf] %v247
                %v249 = vld [vmem:[%s159 + $0x1f8] sm:$0xf]
                %250 = vst [vmem:[%s160 + $0xb0] sm:$0xf] %v249
                %v251 = vld [vmem:[%s159 + $0x1fc] sm:$0xf]
                %252 = vst [vmem:[%s160 + $0xb4] sm:$0xf] %v251
                %v253 = vld [vmem:[%s159 + $0x200] sm:$0xf]
                %254 = vst [vmem:[%s160 + $0xb8] sm:$0xf] %v253
                %v255 = vld [vmem:[%s159 + $0x204] sm:$0xf]
                %256 = vst [vmem:[%s160 + $0xbc] sm:$0xf] %v255
                %v257 = vld [vmem:[%s159 + $0x2ac] sm:$0xf]
                %258 = vst [vmem:[%s160 + $0xc0] sm:$0xf] %v257
                %v259 = vld [vmem:[%s159 + $0x2b0] sm:$0xf]
                %260 = vst [vmem:[%s160 + $0xc4] sm:$0xf] %v259
                %v261 = vld [vmem:[%s159 + $0x2b4] sm:$0xf]
                %262 = vst [vmem:[%s160 + $0xc8] sm:$0xf] %v261
                %v263 = vld [vmem:[%s159 + $0x2b8] sm:$0xf]
                %264 = vst [vmem:[%s160 + $0xcc] sm:$0xf] %v263
                %v265 = vld [vmem:[%s159 + $0x2bc] sm:$0xf]
                %266 = vst [vmem:[%s160 + $0xd0] sm:$0xf] %v265
                %v267 = vld [vmem:[%s159 + $0x2c0] sm:$0xf]
                %268 = vst [vmem:[%s160 + $0xd4] sm:$0xf] %v267
                %v269 = vld [vmem:[%s159 + $0x2c4] sm:$0xf]
                %270 = vst [vmem:[%s160 + $0xd8] sm:$0xf] %v269
                %v271 = vld [vmem:[%s159 + $0x2c8] sm:$0xf]
                %272 = vst [vmem:[%s160 + $0xdc] sm:$0xf] %v271
                %v273 = vld [vmem:[%s159 + $0x2cc] sm:$0xf]
                %274 = vst [vmem:[%s160 + $0xe0] sm:$0xf] %v273
                %v275 = vld [vmem:[%s159 + $0x2d0] sm:$0xf]
                %276 = vst [vmem:[%s160 + $0xe4] sm:$0xf] %v275
                %v277 = vld [vmem:[%s159 + $0x2d4] sm:$0xf]
                %278 = vst [vmem:[%s160 + $0xe8] sm:$0xf] %v277
                %v279 = vld [vmem:[%s159 + $0x2d8] sm:$0xf]
                %280 = vst [vmem:[%s160 + $0xec] sm:$0xf] %v279
                %v281 = vld [vmem:[%s159 + $0x2dc] sm:$0xf]
                %282 = vst [vmem:[%s160 + $0xf0] sm:$0xf] %v281
                %v283 = vld [vmem:[%s159 + $0x2e0] sm:$0xf]
                %284 = vst [vmem:[%s160 + $0xf4] sm:$0xf] %v283
                %v285 = vld [vmem:[%s159 + $0x2e4] sm:$0xf]
                %286 = vst [vmem:[%s160 + $0xf8] sm:$0xf] %v285
                %v287 = vld [vmem:[%s159 + $0x2e8] sm:$0xf]
                %288 = vst [vmem:[%s160 + $0xfc] sm:$0xf] %v287
                %s289 = sadd.s32 1, %s158
                %p290 = scmp.ge.s32.totalorder %s289, %s151
                %s291 = scalar_select %p290, 0, %s289
                %s292 = smul.u32 %s291, 64
                %s293 = smul.u32 %s291, 64
                %s294 = scalar_lea.vmem %s142, %s292
                %s295 = scalar_lea.vmem %s134, %s293 [#allocation2]
              $region45: #{lenet_forward.6} parent=39 // loop_footer
                %s155 = sadd.s32 %s153, 1
              $region46: #{lenet_forward.6} parent=39 // loop_footer_branch
                %152 = sbr.rel target = $region42
              $region47: #{lenet_forward.6} parent=39 // loop_exit
                _
              %s296 = sshrl.u32 %s138, 4
              %s297 = sand.u32 %s138, 15
              %s298 = smul.u32 %s296, 16
              %s299 = smul.u32 4, %s298
              %s300 = scalar_lea.vmem %s142, %s299
              %s301 = smul.u32 4, %s298
              %s302 = scalar_lea.vmem %s134, %s301 [#allocation2]
              // While loop
              $region48: #{lenet_forward.6} parent=39 // loop_pre_header
                _
              $region49: #{lenet_forward.6} parent=39 // loop_header
                %s304 = sphi 0, %s306
                %p305 = scmp.ge.s32.totalorder %s304, %s297
                %s309 = sphi 0, %s322
                %s310 = sphi %s300, %s325
                %s311 = sphi %s302, %s326
              $region50: #{lenet_forward.6} parent=39 // loop_header_branch
                %308 = sbr.rel (%p305) target = $region54
              $region51: #{lenet_forward.6} parent=39 // loop_body
                %v312 = vld [vmem:[%s310] sm:$0xf]
                %313 = vst [vmem:[%s311] sm:$0xf] %v312
                %v314 = vld [vmem:[%s310 + $0xe4] sm:$0xf]
                %315 = vst [vmem:[%s311 + $0x40] sm:$0xf] %v314
                %v316 = vld [vmem:[%s310 + $0x1c8] sm:$0xf]
                %317 = vst [vmem:[%s311 + $0x80] sm:$0xf] %v316
                %v318 = vld [vmem:[%s310 + $0x2ac] sm:$0xf]
                %319 = vst [vmem:[%s311 + $0xc0] sm:$0xf] %v318
                %s320 = sadd.s32 1, %s309
                %p321 = scmp.ge.s32.totalorder %s320, %s297
                %s322 = scalar_select %p321, 0, %s320
                %s323 = smul.u32 %s322, 4
                %s324 = smul.u32 %s322, 4
                %s325 = scalar_lea.vmem %s300, %s323
                %s326 = scalar_lea.vmem %s302, %s324 [#allocation2]
              $region52: #{lenet_forward.6} parent=39 // loop_footer
                %s306 = sadd.s32 %s304, 1
              $region53: #{lenet_forward.6} parent=39 // loop_footer_branch
                %303 = sbr.rel target = $region49
              $region54: #{lenet_forward.6} parent=39 // loop_exit
                _
            $region40: #{lenet_forward.6} parent=31 // pred_fallthru
              _
          $region32: #{lenet_forward.6} parent=27 // pred_fallthru
            _
          %546 = vnop
        $region28: #{lenet_forward.6} parent=23 // pred_fallthru
          _
      $region24: #{lenet_forward.6} parent=5 // pred_fallthru
        _
      %p547 = scmp.le.s32.totalorder 1, %s9
      %p548 = scmp.lt.s32.totalorder %s9, 5
      %p549 = pnand %p547, %p548
      %p550 = pneg %p549
      // Predicated region
      $region87: #{lenet_forward.6} parent=5 // pred_check
        _
      $region88: #{lenet_forward.6} parent=5 // pred_check_branch
        %552 = sbr.rel (%p549) target = $region90
      $region89: #{lenet_forward.6} parent=5 // pred_region
        %s553 = ssub.s32 %s9, 1
        %s554 = sand.u32 %s22, 1
        %s555 = sand.u32 %s22, 1
        %s556 = smul.addr %s555, 256
        %s557 = scalar_lea.vmem [#allocation2], %s556
        // Predicated region
        $region91: #{lenet_forward.6} parent=89 // pred_check
          %p558 = pneg %p35
        $region92: #{lenet_forward.6} parent=89 // pred_check_branch
          %560 = sbr.rel (%p558) target = $region94
        $region93: #{lenet_forward.6} parent=89 // pred_region
          _
        $region94: #{lenet_forward.6} parent=89 // pred_fallthru
          _
        %s561 = sand.u32 %s22, 1
        %s562 = sand.u32 %s22, 1
        %s563 = smul.addr %s562, 256
        %s564 = scalar_lea.vmem [#allocation2], %s563
        %p565 = pneg %p35
        %p566 = pneg %p32
        %p567 = pneg %p56
        %p568 = pneg %p53
        %p569 = pneg %p77
        %p570 = pneg %p74
        %p571 = pneg %p103
        %p572 = pneg %p100
        %s573 = sand.u32 %s90, 1
        %s574 = sand.u32 %s90, 1
        %s575 = smul.addr %s574, 64
        %s576 = scalar_lea.vmem [#allocation3], %s575
        %s577 = smul.u32 16, %s14
        %s578 = ssub.s32 57, %s577
        %p579 = scmp.lt.s32.totalorder %s578, 16
        %s580 = scalar_select %p579, %s578, 16
        %s581 = smul.u32 256, %s580
        %s582 = smul.u32 16, %s14
        %s583 = ssub.s32 57, %s582
        %p584 = scmp.lt.s32.totalorder %s583, 16
        %s585 = scalar_select %p584, %s583, 16
        %s586 = smul.u32 64, %s585
        %v588 = vld [vmem:[%s1] sm:$0xf]
        %v589 = vld [vmem:[%s1 + $0x4] sm:$0xf]
        %v590 = vld [vmem:[%s1 + $0x8] sm:$0xf]
        %v591 = vld [vmem:[%s1 + $0xc] sm:$0x1]
        %v592 = vld [vmem:[%s2] sm:$0x1]
        %v593 = vld [vmem:[%s557] sm:$0xf]
        %v594 = vld [vmem:[%s557 + $0x4] sm:$0xf]
        %v595 = vld [vmem:[%s557 + $0x8] sm:$0xf]
        %v596 = vld [vmem:[%s557 + $0xc] sm:$0xf]
        %v597 = vld [vmem:[%s557 + $0x10] sm:$0xf]
        %v598 = vld [vmem:[%s557 + $0x14] sm:$0xf]
        %v599 = vld [vmem:[%s557 + $0x18] sm:$0xf]
        %v600 = vld [vmem:[%s557 + $0x1c] sm:$0xf]
        %v601 = vld [vmem:[%s557 + $0x20] sm:$0xf]
        %v602 = vld [vmem:[%s557 + $0x24] sm:$0xf]
        %v603 = vld [vmem:[%s557 + $0x28] sm:$0xf]
        %v604 = vld [vmem:[%s557 + $0x2c] sm:$0xf]
        %v605 = vld [vmem:[%s557 + $0x30] sm:$0xf]
        %v606 = vld [vmem:[%s557 + $0x34] sm:$0xf]
        %v607 = vld [vmem:[%s557 + $0x38] sm:$0xf]
        %v608 = vld [vmem:[%s557 + $0x3c] sm:$0xf]
        %v610 = vlaneseq
        %v611 = vshrl.u32 %v610, 7
        %v612 = vsub.s32 0, %v611
        %v613 = vrot.slane %v592, %v612
        %v631 = vunpack.c.l.b16 %v593
        %v632 = vunpack.c.l.b16 %v594
        %v633 = vunpack.c.l.b16 %v595
        %v634 = vunpack.c.l.b16 %v596
        %v635 = vunpack.c.l.b16 %v597
        %v636 = vunpack.c.l.b16 %v598
        %v637 = vunpack.c.l.b16 %v599
        %v638 = vunpack.c.l.b16 %v600
        %v639 = vunpack.c.l.b16 %v601
        %v640 = vunpack.c.l.b16 %v602
        %v641 = vunpack.c.l.b16 %v603
        %v642 = vunpack.c.l.b16 %v604
        %v643 = vunpack.c.l.b16 %v605
        %v644 = vunpack.c.l.b16 %v606
        %v645 = vunpack.c.l.b16 %v607
        %v646 = vunpack.c.l.b16 %v608
        %v647 = vpack.c.b16 %v632, %v631
        %v648 = vpack.c.b16 %v634, %v633
        %v649 = vpack.c.b16 %v636, %v635
        %v650 = vpack.c.b16 %v638, %v637
        %v651 = vpack.c.b16 %v640, %v639
        %v652 = vpack.c.b16 %v642, %v641
        %v653 = vpack.c.b16 %v644, %v643
        %v654 = vpack.c.b16 %v646, %v645
        %v659 = vunpack.c.l.b16 %v588
        %v660 = vunpack.c.l.b16 %v589
        %v661 = vunpack.c.l.b16 %v590
        %v662 = vunpack.c.l.b16 %v591
        %v663 = vpack.c.b16 %v660, %v659
        %v664 = vpack.c.b16 %v662, %v661
        %vm666 = vcmask 203776
        %v668 = vsel %vm666, %v647, 0
        %v671 = vsel %vm666, %v648, 0
        %v674 = vsel %vm666, %v649, 0
        %v677 = vsel %vm666, %v650, 0
        %v680 = vsel %vm666, %v651, 0
        %v683 = vsel %vm666, %v652, 0
        %v686 = vsel %vm666, %v653, 0
        %v689 = vsel %vm666, %v654, 0
        %vm691 = vcmask 1043456
        %vm692 = vcmask 1044480
        %v693 = vsel %vm691, 4294967295, 65535
        %v694 = vsel %vm692, %v693, 0
        %v696 = vand.u32 %v664, %v694
        %698 = vmatprep.subr.bf16.mxu0 0
        %699 = vmatpush1.bf16.msra.mxu0 %v663
        %700 = vmatprep.subr.bf16.mxu0 0
        %701 = vmatpush1.bf16.msra.mxu0 %v696
        %702 = vmatprep.subr.bf16.mxu0 0
        %703 = vmatpush1.bf16.msra.mxu0 0
        %704 = vmatprep.subr.bf16.mxu0 0
        %705 = vmatpush1.bf16.msra.mxu0 0
        %706 = vmatprep.subr.bf16.mxu0 0
        %707 = vmatpush1.bf16.msra.mxu0 0
        %708 = vmatprep.subr.bf16.mxu0 0
        %709 = vmatpush1.bf16.msra.mxu0 0
        %710 = vmatprep.subr.bf16.mxu0 0
        %711 = vmatpush1.bf16.msra.mxu0 0
        %712 = vmatprep.subr.bf16.mxu0 0
        %713 = vmatpush1.bf16.msra.mxu0 0
        %714 = vmatprep.subr.bf16.mxu0 0
        %715 = vmatpush1.bf16.msra.mxu0 0
        %716 = vmatprep.subr.bf16.mxu0 0
        %717 = vmatpush1.bf16.msra.mxu0 0
        %718 = vmatprep.subr.bf16.mxu0 0
        %719 = vmatpush1.bf16.msra.mxu0 0
        %720 = vmatprep.subr.bf16.mxu0 0
        %721 = vmatpush1.bf16.msra.mxu0 0
        %722 = vmatprep.subr.bf16.mxu0 0
        %723 = vmatpush1.bf16.msra.mxu0 0
        %724 = vmatprep.subr.bf16.mxu0 0
        %725 = vmatpush1.bf16.msra.mxu0 0
        %726 = vmatprep.subr.bf16.mxu0 0
        %727 = vmatpush1.bf16.msra.mxu0 0
        %728 = vmatprep.subr.bf16.mxu0 0
        %729 = vmatpush1.bf16.msra.mxu0 0
        %730 = vmatprep.mubr.bf16.mxu0 0
        %731 = vmatmul.mubr.bf16.gmra.mrb[0].mxu0 %v668
        %v732 = vpop.f32.mrb[0].mxu0
        %v733 = vadd.f32 %v613, %v732
        %v734 = vpop.f32.mrb[0].mxu0
        %v735 = vpop.f32.mrb[0].mxu0
        %v736 = vadd.f32 %v613, %v735
        %v737 = vpop.f32.mrb[0].mxu0
        %738 = vmatprep.mubr.bf16.mxu0 0
        %739 = vmatmul.mubr.bf16.gmra.mrb[0].mxu0 %v671
        %v740 = vpop.f32.mrb[0].mxu0
        %v741 = vadd.f32 %v613, %v740
        %v742 = vpop.f32.mrb[0].mxu0
        %v743 = vpop.f32.mrb[0].mxu0
        %v744 = vadd.f32 %v613, %v743
        %v745 = vpop.f32.mrb[0].mxu0
        %746 = vmatprep.mubr.bf16.mxu0 0
        %747 = vmatmul.mubr.bf16.gmra.mrb[0].mxu0 %v674
        %v748 = vpop.f32.mrb[0].mxu0
        %v749 = vadd.f32 %v613, %v748
        %v750 = vpop.f32.mrb[0].mxu0
        %v751 = vpop.f32.mrb[0].mxu0
        %v752 = vadd.f32 %v613, %v751
        %v753 = vpop.f32.mrb[0].mxu0
        %754 = vmatprep.mubr.bf16.mxu0 0
        %755 = vmatmul.mubr.bf16.gmra.mrb[0].mxu0 %v677
        %v756 = vpop.f32.mrb[0].mxu0
        %v757 = vadd.f32 %v613, %v756
        %v758 = vpop.f32.mrb[0].mxu0
        %v759 = vpop.f32.mrb[0].mxu0
        %v760 = vadd.f32 %v613, %v759
        %v761 = vpop.f32.mrb[0].mxu0
        %762 = vmatprep.mubr.bf16.mxu0 0
        %763 = vmatmul.mubr.bf16.gmra.mrb[0].mxu0 %v680
        %v764 = vpop.f32.mrb[0].mxu0
        %v765 = vadd.f32 %v613, %v764
        %v766 = vpop.f32.mrb[0].mxu0
        %v767 = vpop.f32.mrb[0].mxu0
        %v768 = vadd.f32 %v613, %v767
        %v769 = vpop.f32.mrb[0].mxu0
        %770 = vmatprep.mubr.bf16.mxu0 0
        %771 = vmatmul.mubr.bf16.gmra.mrb[0].mxu0 %v683
        %v772 = vpop.f32.mrb[0].mxu0
        %v773 = vadd.f32 %v613, %v772
        %v774 = vpop.f32.mrb[0].mxu0
        %v775 = vpop.f32.mrb[0].mxu0
        %v776 = vadd.f32 %v613, %v775
        %v777 = vpop.f32.mrb[0].mxu0
        %778 = vmatprep.mubr.bf16.mxu0 0
        %779 = vmatmul.mubr.bf16.gmra.mrb[0].mxu0 %v686
        %v780 = vpop.f32.mrb[0].mxu0
        %v781 = vadd.f32 %v613, %v780
        %v782 = vpop.f32.mrb[0].mxu0
        %v783 = vpop.f32.mrb[0].mxu0
        %v784 = vadd.f32 %v613, %v783
        %v785 = vpop.f32.mrb[0].mxu0
        %786 = vmatprep.mubr.bf16.mxu0 0
        %787 = vmatmul.mubr.bf16.gmra.mrb[0].mxu0 %v689
        %v788 = vpop.f32.mrb[0].mxu0
        %v789 = vadd.f32 %v613, %v788
        %v790 = vpop.f32.mrb[0].mxu0
        %v791 = vpop.f32.mrb[0].mxu0
        %v792 = vadd.f32 %v613, %v791
        %v793 = vpop.f32.mrb[0].mxu0
        %794 = vdwg.mxu0
        %v795 = vmax.f32 %v733, 0.0
        %v796 = vmax.f32 %v736, 0.0
        %v797 = vmax.f32 %v741, 0.0
        %v798 = vmax.f32 %v744, 0.0
        %v799 = vmax.f32 %v749, 0.0
        %v800 = vmax.f32 %v752, 0.0
        %v801 = vmax.f32 %v757, 0.0
        %v802 = vmax.f32 %v760, 0.0
        %v803 = vmax.f32 %v765, 0.0
        %v804 = vmax.f32 %v768, 0.0
        %v805 = vmax.f32 %v773, 0.0
        %v806 = vmax.f32 %v776, 0.0
        %v807 = vmax.f32 %v781, 0.0
        %v808 = vmax.f32 %v784, 0.0
        %v809 = vmax.f32 %v789, 0.0
        %v810 = vmax.f32 %v792, 0.0
        %s811 = scalar_lea.vmem %s557, 64 [#allocation2]
        %v812 = vld [vmem:[%s811] sm:$0xf]
        %v813 = vld [vmem:[%s811 + $0x4] sm:$0xf]
        %v814 = vld [vmem:[%s811 + $0x8] sm:$0xf]
        %v815 = vld [vmem:[%s811 + $0xc] sm:$0xf]
        %v816 = vld [vmem:[%s811 + $0x10] sm:$0xf]
        %v817 = vld [vmem:[%s811 + $0x14] sm:$0xf]
        %v818 = vld [vmem:[%s811 + $0x18] sm:$0xf]
        %v819 = vld [vmem:[%s811 + $0x1c] sm:$0xf]
        %v820 = vld [vmem:[%s811 + $0x20] sm:$0xf]
        %v821 = vld [vmem:[%s811 + $0x24] sm:$0xf]
        %v822 = vld [vmem:[%s811 + $0x28] sm:$0xf]
        %v823 = vld [vmem:[%s811 + $0x2c] sm:$0xf]
        %v824 = vld [vmem:[%s811 + $0x30] sm:$0xf]
        %v825 = vld [vmem:[%s811 + $0x34] sm:$0xf]
        %v826 = vld [vmem:[%s811 + $0x38] sm:$0xf]
        %v827 = vld [vmem:[%s811 + $0x3c] sm:$0xf]
        %v844 = vunpack.c.l.b16 %v812
        %v845 = vunpack.c.l.b16 %v813
        %v846 = vunpack.c.l.b16 %v814
        %v847 = vunpack.c.l.b16 %v815
        %v848 = vunpack.c.l.b16 %v816
        %v849 = vunpack.c.l.b16 %v817
        %v850 = vunpack.c.l.b16 %v818
        %v851 = vunpack.c.l.b16 %v819
        %v852 = vunpack.c.l.b16 %v820
        %v853 = vunpack.c.l.b16 %v821
        %v854 = vunpack.c.l.b16 %v822
        %v855 = vunpack.c.l.b16 %v823
        %v856 = vunpack.c.l.b16 %v824
        %v857 = vunpack.c.l.b16 %v825
        %v858 = vunpack.c.l.b16 %v826
        %v859 = vunpack.c.l.b16 %v827
        %v860 = vpack.c.b16 %v845, %v844
        %v861 = vpack.c.b16 %v847, %v846
        %v862 = vpack.c.b16 %v849, %v848
        %v863 = vpack.c.b16 %v851, %v850
        %v864 = vpack.c.b16 %v853, %v852
        %v865 = vpack.c.b16 %v855, %v854
        %v866 = vpack.c.b16 %v857, %v856
        %v867 = vpack.c.b16 %v859, %v858
        %v869 = vsel %vm666, %v860, 0
        %v872 = vsel %vm666, %v861, 0
        %v875 = vsel %vm666, %v862, 0
        %v878 = vsel %vm666, %v863, 0
        %v881 = vsel %vm666, %v864, 0
        %v884 = vsel %vm666, %v865, 0
        %v887 = vsel %vm666, %v866, 0
        %v890 = vsel %vm666, %v867, 0
        %892 = vmatprep.subr.bf16.mxu0 0
        %893 = vmatpush1.bf16.msra.mxu0 %v663
        %894 = vmatprep.subr.bf16.mxu0 0
        %895 = vmatpush1.bf16.msra.mxu0 %v696
        %896 = vmatprep.subr.bf16.mxu0 0
        %897 = vmatpush1.bf16.msra.mxu0 0
        %898 = vmatprep.subr.bf16.mxu0 0
        %899 = vmatpush1.bf16.msra.mxu0 0
        %900 = vmatprep.subr.bf16.mxu0 0
        %901 = vmatpush1.bf16.msra.mxu0 0
        %902 = vmatprep.subr.bf16.mxu0 0
        %903 = vmatpush1.bf16.msra.mxu0 0
        %904 = vmatprep.subr.bf16.mxu0 0
        %905 = vmatpush1.bf16.msra.mxu0 0
        %906 = vmatprep.subr.bf16.mxu0 0
        %907 = vmatpush1.bf16.msra.mxu0 0
        %908 = vmatprep.subr.bf16.mxu0 0
        %909 = vmatpush1.bf16.msra.mxu0 0
        %910 = vmatprep.subr.bf16.mxu0 0
        %911 = vmatpush1.bf16.msra.mxu0 0
        %912 = vmatprep.subr.bf16.mxu0 0
        %913 = vmatpush1.bf16.msra.mxu0 0
        %914 = vmatprep.subr.bf16.mxu0 0
        %915 = vmatpush1.bf16.msra.mxu0 0
        %916 = vmatprep.subr.bf16.mxu0 0
        %917 = vmatpush1.bf16.msra.mxu0 0
        %918 = vmatprep.subr.bf16.mxu0 0
        %919 = vmatpush1.bf16.msra.mxu0 0
        %920 = vmatprep.subr.bf16.mxu0 0
        %921 = vmatpush1.bf16.msra.mxu0 0
        %922 = vmatprep.subr.bf16.mxu0 0
        %923 = vmatpush1.bf16.msra.mxu0 0
        %924 = vmatprep.mubr.bf16.mxu0 0
        %925 = vmatmul.mubr.bf16.gmra.mrb[0].mxu0 %v869
        %v926 = vpop.f32.mrb[0].mxu0
        %v927 = vadd.f32 %v613, %v926
        %v928 = vpop.f32.mrb[0].mxu0
        %v929 = vpop.f32.mrb[0].mxu0
        %v930 = vadd.f32 %v613, %v929
        %v931 = vpop.f32.mrb[0].mxu0
        %932 = vmatprep.mubr.bf16.mxu0 0
        %933 = vmatmul.mubr.bf16.gmra.mrb[0].mxu0 %v872
        %v934 = vpop.f32.mrb[0].mxu0
        %v935 = vadd.f32 %v613, %v934
        %v936 = vpop.f32.mrb[0].mxu0
        %v937 = vpop.f32.mrb[0].mxu0
        %v938 = vadd.f32 %v613, %v937
        %v939 = vpop.f32.mrb[0].mxu0
        %940 = vmatprep.mubr.bf16.mxu0 0
        %941 = vmatmul.mubr.bf16.gmra.mrb[0].mxu0 %v875
        %v942 = vpop.f32.mrb[0].mxu0
        %v943 = vadd.f32 %v613, %v942
        %v944 = vpop.f32.mrb[0].mxu0
        %v945 = vpop.f32.mrb[0].mxu0
        %v946 = vadd.f32 %v613, %v945
        %v947 = vpop.f32.mrb[0].mxu0
        %948 = vmatprep.mubr.bf16.mxu0 0
        %949 = vmatmul.mubr.bf16.gmra.mrb[0].mxu0 %v878
        %v950 = vpop.f32.mrb[0].mxu0
        %v951 = vadd.f32 %v613, %v950
        %v952 = vpop.f32.mrb[0].mxu0
        %v953 = vpop.f32.mrb[0].mxu0
        %v954 = vadd.f32 %v613, %v953
        %v955 = vpop.f32.mrb[0].mxu0
        %956 = vmatprep.mubr.bf16.mxu0 0
        %957 = vmatmul.mubr.bf16.gmra.mrb[0].mxu0 %v881
        %v958 = vpop.f32.mrb[0].mxu0
        %v959 = vadd.f32 %v613, %v958
        %v960 = vpop.f32.mrb[0].mxu0
        %v961 = vpop.f32.mrb[0].mxu0
        %v962 = vadd.f32 %v613, %v961
        %v963 = vpop.f32.mrb[0].mxu0
        %964 = vmatprep.mubr.bf16.mxu0 0
        %965 = vmatmul.mubr.bf16.gmra.mrb[0].mxu0 %v884
        %v966 = vpop.f32.mrb[0].mxu0
        %v967 = vadd.f32 %v613, %v966
        %v968 = vpop.f32.mrb[0].mxu0
        %v969 = vpop.f32.mrb[0].mxu0
        %v970 = vadd.f32 %v613, %v969
        %v971 = vpop.f32.mrb[0].mxu0
        %972 = vmatprep.mubr.bf16.mxu0 0
        %973 = vmatmul.mubr.bf16.gmra.mrb[0].mxu0 %v887
        %v974 = vpop.f32.mrb[0].mxu0
        %v975 = vadd.f32 %v613, %v974
        %v976 = vpop.f32.mrb[0].mxu0
        %v977 = vpop.f32.mrb[0].mxu0
        %v978 = vadd.f32 %v613, %v977
        %v979 = vpop.f32.mrb[0].mxu0
        %980 = vmatprep.mubr.bf16.mxu0 0
        %981 = vmatmul.mubr.bf16.gmra.mrb[0].mxu0 %v890
        %v982 = vpop.f32.mrb[0].mxu0
        %v983 = vadd.f32 %v613, %v982
        %v984 = vpop.f32.mrb[0].mxu0
        %v985 = vpop.f32.mrb[0].mxu0
        %v986 = vadd.f32 %v613, %v985
        %v987 = vpop.f32.mrb[0].mxu0
        %988 = vdwg.mxu0
        %v989 = vmax.f32 %v927, 0.0
        %v990 = vmax.f32 %v930, 0.0
        %v991 = vmax.f32 %v935, 0.0
        %v992 = vmax.f32 %v938, 0.0
        %v993 = vmax.f32 %v943, 0.0
        %v994 = vmax.f32 %v946, 0.0
        %v995 = vmax.f32 %v951, 0.0
        %v996 = vmax.f32 %v954, 0.0
        %v997 = vmax.f32 %v959, 0.0
        %v998 = vmax.f32 %v962, 0.0
        %v999 = vmax.f32 %v967, 0.0
        %v1000 = vmax.f32 %v970, 0.0
        %v1001 = vmax.f32 %v975, 0.0
        %v1002 = vmax.f32 %v978, 0.0
        %v1003 = vmax.f32 %v983, 0.0
        %v1004 = vmax.f32 %v986, 0.0
        %v1005 = vmax.f32 %v795, %v989
        %v1006 = vmax.f32 %v796, %v990
        %v1007 = vmax.f32 %v797, %v991
        %v1008 = vmax.f32 %v798, %v992
        %v1009 = vmax.f32 %v799, %v993
        %v1010 = vmax.f32 %v800, %v994
        %v1011 = vmax.f32 %v801, %v995
        %v1012 = vmax.f32 %v802, %v996
        %v1013 = vmax.f32 %v803, %v997
        %v1014 = vmax.f32 %v804, %v998
        %v1015 = vmax.f32 %v805, %v999
        %v1016 = vmax.f32 %v806, %v1000
        %v1017 = vmax.f32 %v807, %v1001
        %v1018 = vmax.f32 %v808, %v1002
        %v1019 = vmax.f32 %v809, %v1003
        %v1020 = vmax.f32 %v810, %v1004
        %s1021 = scalar_lea.vmem %s557, 128 [#allocation2]
        %v1022 = vld [vmem:[%s1021] sm:$0xf]
        %v1023 = vld [vmem:[%s1021 + $0x4] sm:$0xf]
        %v1024 = vld [vmem:[%s1021 + $0x8] sm:$0xf]
        %v1025 = vld [vmem:[%s1021 + $0xc] sm:$0xf]
        %v1026 = vld [vmem:[%s1021 + $0x10] sm:$0xf]
        %v1027 = vld [vmem:[%s1021 + $0x14] sm:$0xf]
        %v1028 = vld [vmem:[%s1021 + $0x18] sm:$0xf]
        %v1029 = vld [vmem:[%s1021 + $0x1c] sm:$0xf]
        %v1030 = vld [vmem:[%s1021 + $0x20] sm:$0xf]
        %v1031 = vld [vmem:[%s1021 + $0x24] sm:$0xf]
        %v1032 = vld [vmem:[%s1021 + $0x28] sm:$0xf]
        %v1033 = vld [vmem:[%s1021 + $0x2c] sm:$0xf]
        %v1034 = vld [vmem:[%s1021 + $0x30] sm:$0xf]
        %v1035 = vld [vmem:[%s1021 + $0x34] sm:$0xf]
        %v1036 = vld [vmem:[%s1021 + $0x38] sm:$0xf]
        %v1037 = vld [vmem:[%s1021 + $0x3c] sm:$0xf]
        %v1054 = vunpack.c.l.b16 %v1022
        %v1055 = vunpack.c.l.b16 %v1023
        %v1056 = vunpack.c.l.b16 %v1024
        %v1057 = vunpack.c.l.b16 %v1025
        %v1058 = vunpack.c.l.b16 %v1026
        %v1059 = vunpack.c.l.b16 %v1027
        %v1060 = vunpack.c.l.b16 %v1028
        %v1061 = vunpack.c.l.b16 %v1029
        %v1062 = vunpack.c.l.b16 %v1030
        %v1063 = vunpack.c.l.b16 %v1031
        %v1064 = vunpack.c.l.b16 %v1032
        %v1065 = vunpack.c.l.b16 %v1033
        %v1066 = vunpack.c.l.b16 %v1034
        %v1067 = vunpack.c.l.b16 %v1035
        %v1068 = vunpack.c.l.b16 %v1036
        %v1069 = vunpack.c.l.b16 %v1037
        %v1070 = vpack.c.b16 %v1055, %v1054
        %v1071 = vpack.c.b16 %v1057, %v1056
        %v1072 = vpack.c.b16 %v1059, %v1058
        %v1073 = vpack.c.b16 %v1061, %v1060
        %v1074 = vpack.c.b16 %v1063, %v1062
        %v1075 = vpack.c.b16 %v1065, %v1064
        %v1076 = vpack.c.b16 %v1067, %v1066
        %v1077 = vpack.c.b16 %v1069, %v1068
        %v1079 = vsel %vm666, %v1070, 0
        %v1082 = vsel %vm666, %v1071, 0
        %v1085 = vsel %vm666, %v1072, 0
        %v1088 = vsel %vm666, %v1073, 0
        %v1091 = vsel %vm666, %v1074, 0
        %v1094 = vsel %vm666, %v1075, 0
        %v1097 = vsel %vm666, %v1076, 0
        %v1100 = vsel %vm666, %v1077, 0
        %1102 = vmatprep.subr.bf16.mxu0 0
        %1103 = vmatpush1.bf16.msra.mxu0 %v663
        %1104 = vmatprep.subr.bf16.mxu0 0
        %1105 = vmatpush1.bf16.msra.mxu0 %v696
        %1106 = vmatprep.subr.bf16.mxu0 0
        %1107 = vmatpush1.bf16.msra.mxu0 0
        %1108 = vmatprep.subr.bf16.mxu0 0
        %1109 = vmatpush1.bf16.msra.mxu0 0
        %1110 = vmatprep.subr.bf16.mxu0 0
        %1111 = vmatpush1.bf16.msra.mxu0 0
        %1112 = vmatprep.subr.bf16.mxu0 0
        %1113 = vmatpush1.bf16.msra.mxu0 0
        %1114 = vmatprep.subr.bf16.mxu0 0
        %1115 = vmatpush1.bf16.msra.mxu0 0
        %1116 = vmatprep.subr.bf16.mxu0 0
        %1117 = vmatpush1.bf16.msra.mxu0 0
        %1118 = vmatprep.subr.bf16.mxu0 0
        %1119 = vmatpush1.bf16.msra.mxu0 0
        %1120 = vmatprep.subr.bf16.mxu0 0
        %1121 = vmatpush1.bf16.msra.mxu0 0
        %1122 = vmatprep.subr.bf16.mxu0 0
        %1123 = vmatpush1.bf16.msra.mxu0 0
        %1124 = vmatprep.subr.bf16.mxu0 0
        %1125 = vmatpush1.bf16.msra.mxu0 0
        %1126 = vmatprep.subr.bf16.mxu0 0
        %1127 = vmatpush1.bf16.msra.mxu0 0
        %1128 = vmatprep.subr.bf16.mxu0 0
        %1129 = vmatpush1.bf16.msra.mxu0 0
        %1130 = vmatprep.subr.bf16.mxu0 0
        %1131 = vmatpush1.bf16.msra.mxu0 0
        %1132 = vmatprep.subr.bf16.mxu0 0
        %1133 = vmatpush1.bf16.msra.mxu0 0
        %1134 = vmatprep.mubr.bf16.mxu0 0
        %1135 = vmatmul.mubr.bf16.gmra.mrb[0].mxu0 %v1079
        %v1136 = vpop.f32.mrb[0].mxu0
        %v1137 = vadd.f32 %v613, %v1136
        %v1138 = vpop.f32.mrb[0].mxu0
        %v1139 = vpop.f32.mrb[0].mxu0
        %v1140 = vadd.f32 %v613, %v1139
        %v1141 = vpop.f32.mrb[0].mxu0
        %1142 = vmatprep.mubr.bf16.mxu0 0
        %1143 = vmatmul.mubr.bf16.gmra.mrb[0].mxu0 %v1082
        %v1144 = vpop.f32.mrb[0].mxu0
        %v1145 = vadd.f32 %v613, %v1144
        %v1146 = vpop.f32.mrb[0].mxu0
        %v1147 = vpop.f32.mrb[0].mxu0
        %v1148 = vadd.f32 %v613, %v1147
        %v1149 = vpop.f32.mrb[0].mxu0
        %1150 = vmatprep.mubr.bf16.mxu0 0
        %1151 = vmatmul.mubr.bf16.gmra.mrb[0].mxu0 %v1085
        %v1152 = vpop.f32.mrb[0].mxu0
        %v1153 = vadd.f32 %v613, %v1152
        %v1154 = vpop.f32.mrb[0].mxu0
        %v1155 = vpop.f32.mrb[0].mxu0
        %v1156 = vadd.f32 %v613, %v1155
        %v1157 = vpop.f32.mrb[0].mxu0
        %1158 = vmatprep.mubr.bf16.mxu0 0
        %1159 = vmatmul.mubr.bf16.gmra.mrb[0].mxu0 %v1088
        %v1160 = vpop.f32.mrb[0].mxu0
        %v1161 = vadd.f32 %v613, %v1160
        %v1162 = vpop.f32.mrb[0].mxu0
        %v1163 = vpop.f32.mrb[0].mxu0
        %v1164 = vadd.f32 %v613, %v1163
        %v1165 = vpop.f32.mrb[0].mxu0
        %1166 = vmatprep.mubr.bf16.mxu0 0
        %1167 = vmatmul.mubr.bf16.gmra.mrb[0].mxu0 %v1091
        %v1168 = vpop.f32.mrb[0].mxu0
        %v1169 = vadd.f32 %v613, %v1168
        %v1170 = vpop.f32.mrb[0].mxu0
        %v1171 = vpop.f32.mrb[0].mxu0
        %v1172 = vadd.f32 %v613, %v1171
        %v1173 = vpop.f32.mrb[0].mxu0
        %1174 = vmatprep.mubr.bf16.mxu0 0
        %1175 = vmatmul.mubr.bf16.gmra.mrb[0].mxu0 %v1094
        %v1176 = vpop.f32.mrb[0].mxu0
        %v1177 = vadd.f32 %v613, %v1176
        %v1178 = vpop.f32.mrb[0].mxu0
        %v1179 = vpop.f32.mrb[0].mxu0
        %v1180 = vadd.f32 %v613, %v1179
        %v1181 = vpop.f32.mrb[0].mxu0
        %1182 = vmatprep.mubr.bf16.mxu0 0
        %1183 = vmatmul.mubr.bf16.gmra.mrb[0].mxu0 %v1097
        %v1184 = vpop.f32.mrb[0].mxu0
        %v1185 = vadd.f32 %v613, %v1184
        %v1186 = vpop.f32.mrb[0].mxu0
        %v1187 = vpop.f32.mrb[0].mxu0
        %v1188 = vadd.f32 %v613, %v1187
        %v1189 = vpop.f32.mrb[0].mxu0
        %1190 = vmatprep.mubr.bf16.mxu0 0
        %1191 = vmatmul.mubr.bf16.gmra.mrb[0].mxu0 %v1100
        %v1192 = vpop.f32.mrb[0].mxu0
        %v1193 = vadd.f32 %v613, %v1192
        %v1194 = vpop.f32.mrb[0].mxu0
        %v1195 = vpop.f32.mrb[0].mxu0
        %v1196 = vadd.f32 %v613, %v1195
        %v1197 = vpop.f32.mrb[0].mxu0
        %1198 = vdwg.mxu0
        %v1199 = vmax.f32 %v1137, 0.0
        %v1200 = vmax.f32 %v1140, 0.0
        %v1201 = vmax.f32 %v1145, 0.0
        %v1202 = vmax.f32 %v1148, 0.0
        %v1203 = vmax.f32 %v1153, 0.0
        %v1204 = vmax.f32 %v1156, 0.0
        %v1205 = vmax.f32 %v1161, 0.0
        %v1206 = vmax.f32 %v1164, 0.0
        %v1207 = vmax.f32 %v1169, 0.0
        %v1208 = vmax.f32 %v1172, 0.0
        %v1209 = vmax.f32 %v1177, 0.0
        %v1210 = vmax.f32 %v1180, 0.0
        %v1211 = vmax.f32 %v1185, 0.0
        %v1212 = vmax.f32 %v1188, 0.0
        %v1213 = vmax.f32 %v1193, 0.0
        %v1214 = vmax.f32 %v1196, 0.0
        %s1215 = scalar_lea.vmem %s557, 192 [#allocation2]
        %v1216 = vld [vmem:[%s1215] sm:$0xf]
        %v1217 = vld [vmem:[%s1215 + $0x4] sm:$0xf]
        %v1218 = vld [vmem:[%s1215 + $0x8] sm:$0xf]
        %v1219 = vld [vmem:[%s1215 + $0xc] sm:$0xf]
        %v1220 = vld [vmem:[%s1215 + $0x10] sm:$0xf]
        %v1221 = vld [vmem:[%s1215 + $0x14] sm:$0xf]
        %v1222 = vld [vmem:[%s1215 + $0x18] sm:$0xf]
        %v1223 = vld [vmem:[%s1215 + $0x1c] sm:$0xf]
        %v1224 = vld [vmem:[%s1215 + $0x20] sm:$0xf]
        %v1225 = vld [vmem:[%s1215 + $0x24] sm:$0xf]
        %v1226 = vld [vmem:[%s1215 + $0x28] sm:$0xf]
        %v1227 = vld [vmem:[%s1215 + $0x2c] sm:$0xf]
        %v1228 = vld [vmem:[%s1215 + $0x30] sm:$0xf]
        %v1229 = vld [vmem:[%s1215 + $0x34] sm:$0xf]
        %v1230 = vld [vmem:[%s1215 + $0x38] sm:$0xf]
        %v1231 = vld [vmem:[%s1215 + $0x3c] sm:$0xf]
        %v1248 = vunpack.c.l.b16 %v1216
        %v1249 = vunpack.c.l.b16 %v1217
        %v1250 = vunpack.c.l.b16 %v1218
        %v1251 = vunpack.c.l.b16 %v1219
        %v1252 = vunpack.c.l.b16 %v1220
        %v1253 = vunpack.c.l.b16 %v1221
        %v1254 = vunpack.c.l.b16 %v1222
        %v1255 = vunpack.c.l.b16 %v1223
        %v1256 = vunpack.c.l.b16 %v1224
        %v1257 = vunpack.c.l.b16 %v1225
        %v1258 = vunpack.c.l.b16 %v1226
        %v1259 = vunpack.c.l.b16 %v1227
        %v1260 = vunpack.c.l.b16 %v1228
        %v1261 = vunpack.c.l.b16 %v1229
        %v1262 = vunpack.c.l.b16 %v1230
        %v1263 = vunpack.c.l.b16 %v1231
        %v1264 = vpack.c.b16 %v1249, %v1248
        %v1265 = vpack.c.b16 %v1251, %v1250
        %v1266 = vpack.c.b16 %v1253, %v1252
        %v1267 = vpack.c.b16 %v1255, %v1254
        %v1268 = vpack.c.b16 %v1257, %v1256
        %v1269 = vpack.c.b16 %v1259, %v1258
        %v1270 = vpack.c.b16 %v1261, %v1260
        %v1271 = vpack.c.b16 %v1263, %v1262
        %v1273 = vsel %vm666, %v1264, 0
        %v1276 = vsel %vm666, %v1265, 0
        %v1279 = vsel %vm666, %v1266, 0
        %v1282 = vsel %vm666, %v1267, 0
        %v1285 = vsel %vm666, %v1268, 0
        %v1288 = vsel %vm666, %v1269, 0
        %v1291 = vsel %vm666, %v1270, 0
        %v1294 = vsel %vm666, %v1271, 0
        %1296 = vmatprep.subr.bf16.mxu0 0
        %1297 = vmatpush1.bf16.msra.mxu0 %v663
        %1298 = vmatprep.subr.bf16.mxu0 0
        %1299 = vmatpush1.bf16.msra.mxu0 %v696
        %1300 = vmatprep.subr.bf16.mxu0 0
        %1301 = vmatpush1.bf16.msra.mxu0 0
        %1302 = vmatprep.subr.bf16.mxu0 0
        %1303 = vmatpush1.bf16.msra.mxu0 0
        %1304 = vmatprep.subr.bf16.mxu0 0
        %1305 = vmatpush1.bf16.msra.mxu0 0
        %1306 = vmatprep.subr.bf16.mxu0 0
        %1307 = vmatpush1.bf16.msra.mxu0 0
        %1308 = vmatprep.subr.bf16.mxu0 0
        %1309 = vmatpush1.bf16.msra.mxu0 0
        %1310 = vmatprep.subr.bf16.mxu0 0
        %1311 = vmatpush1.bf16.msra.mxu0 0
        %1312 = vmatprep.subr.bf16.mxu0 0
        %1313 = vmatpush1.bf16.msra.mxu0 0
        %1314 = vmatprep.subr.bf16.mxu0 0
        %1315 = vmatpush1.bf16.msra.mxu0 0
        %1316 = vmatprep.subr.bf16.mxu0 0
        %1317 = vmatpush1.bf16.msra.mxu0 0
        %1318 = vmatprep.subr.bf16.mxu0 0
        %1319 = vmatpush1.bf16.msra.mxu0 0
        %1320 = vmatprep.subr.bf16.mxu0 0
        %1321 = vmatpush1.bf16.msra.mxu0 0
        %1322 = vmatprep.subr.bf16.mxu0 0
        %1323 = vmatpush1.bf16.msra.mxu0 0
        %1324 = vmatprep.subr.bf16.mxu0 0
        %1325 = vmatpush1.bf16.msra.mxu0 0
        %1326 = vmatprep.subr.bf16.mxu0 0
        %1327 = vmatpush1.bf16.msra.mxu0 0
        %1328 = vmatprep.mubr.bf16.mxu0 0
        %1329 = vmatmul.mubr.bf16.gmra.mrb[0].mxu0 %v1273
        %v1330 = vpop.f32.mrb[0].mxu0
        %v1331 = vadd.f32 %v613, %v1330
        %v1332 = vpop.f32.mrb[0].mxu0
        %v1333 = vpop.f32.mrb[0].mxu0
        %v1334 = vadd.f32 %v613, %v1333
        %v1335 = vpop.f32.mrb[0].mxu0
        %1336 = vmatprep.mubr.bf16.mxu0 0
        %1337 = vmatmul.mubr.bf16.gmra.mrb[0].mxu0 %v1276
        %v1338 = vpop.f32.mrb[0].mxu0
        %v1339 = vadd.f32 %v613, %v1338
        %v1340 = vpop.f32.mrb[0].mxu0
        %v1341 = vpop.f32.mrb[0].mxu0
        %v1342 = vadd.f32 %v613, %v1341
        %v1343 = vpop.f32.mrb[0].mxu0
        %1344 = vmatprep.mubr.bf16.mxu0 0
        %1345 = vmatmul.mubr.bf16.gmra.mrb[0].mxu0 %v1279
        %v1346 = vpop.f32.mrb[0].mxu0
        %v1347 = vadd.f32 %v613, %v1346
        %v1348 = vpop.f32.mrb[0].mxu0
        %v1349 = vpop.f32.mrb[0].mxu0
        %v1350 = vadd.f32 %v613, %v1349
        %v1351 = vpop.f32.mrb[0].mxu0
        %1352 = vmatprep.mubr.bf16.mxu0 0
        %1353 = vmatmul.mubr.bf16.gmra.mrb[0].mxu0 %v1282
        %v1354 = vpop.f32.mrb[0].mxu0
        %v1355 = vadd.f32 %v613, %v1354
        %v1356 = vpop.f32.mrb[0].mxu0
        %v1357 = vpop.f32.mrb[0].mxu0
        %v1358 = vadd.f32 %v613, %v1357
        %v1359 = vpop.f32.mrb[0].mxu0
        %1360 = vmatprep.mubr.bf16.mxu0 0
        %1361 = vmatmul.mubr.bf16.gmra.mrb[0].mxu0 %v1285
        %v1362 = vpop.f32.mrb[0].mxu0
        %v1363 = vadd.f32 %v613, %v1362
        %v1364 = vpop.f32.mrb[0].mxu0
        %v1365 = vpop.f32.mrb[0].mxu0
        %v1366 = vadd.f32 %v613, %v1365
        %v1367 = vpop.f32.mrb[0].mxu0
        %1368 = vmatprep.mubr.bf16.mxu0 0
        %1369 = vmatmul.mubr.bf16.gmra.mrb[0].mxu0 %v1288
        %v1370 = vpop.f32.mrb[0].mxu0
        %v1371 = vadd.f32 %v613, %v1370
        %v1372 = vpop.f32.mrb[0].mxu0
        %v1373 = vpop.f32.mrb[0].mxu0
        %v1374 = vadd.f32 %v613, %v1373
        %v1375 = vpop.f32.mrb[0].mxu0
        %1376 = vmatprep.mubr.bf16.mxu0 0
        %1377 = vmatmul.mubr.bf16.gmra.mrb[0].mxu0 %v1291
        %v1378 = vpop.f32.mrb[0].mxu0
        %v1379 = vadd.f32 %v613, %v1378
        %v1380 = vpop.f32.mrb[0].mxu0
        %v1381 = vpop.f32.mrb[0].mxu0
        %v1382 = vadd.f32 %v613, %v1381
        %v1383 = vpop.f32.mrb[0].mxu0
        %1384 = vmatprep.mubr.bf16.mxu0 0
        %1385 = vmatmul.mubr.bf16.gmra.mrb[0].mxu0 %v1294
        %v1386 = vpop.f32.mrb[0].mxu0
        %v1387 = vadd.f32 %v613, %v1386
        %v1388 = vpop.f32.mrb[0].mxu0
        %v1389 = vpop.f32.mrb[0].mxu0
        %v1390 = vadd.f32 %v613, %v1389
        %v1391 = vpop.f32.mrb[0].mxu0
        %1392 = vdwg.mxu0
        %v1393 = vmax.f32 %v1331, 0.0
        %v1394 = vmax.f32 %v1334, 0.0
        %v1395 = vmax.f32 %v1339, 0.0
        %v1396 = vmax.f32 %v1342, 0.0
        %v1397 = vmax.f32 %v1347, 0.0
        %v1398 = vmax.f32 %v1350, 0.0
        %v1399 = vmax.f32 %v1355, 0.0
        %v1400 = vmax.f32 %v1358, 0.0
        %v1401 = vmax.f32 %v1363, 0.0
        %v1402 = vmax.f32 %v1366, 0.0
        %v1403 = vmax.f32 %v1371, 0.0
        %v1404 = vmax.f32 %v1374, 0.0
        %v1405 = vmax.f32 %v1379, 0.0
        %v1406 = vmax.f32 %v1382, 0.0
        %v1407 = vmax.f32 %v1387, 0.0
        %v1408 = vmax.f32 %v1390, 0.0
        %v1409 = vmax.f32 %v1199, %v1393
        %v1410 = vmax.f32 %v1200, %v1394
        %v1411 = vmax.f32 %v1201, %v1395
        %v1412 = vmax.f32 %v1202, %v1396
        %v1413 = vmax.f32 %v1203, %v1397
        %v1414 = vmax.f32 %v1204, %v1398
        %v1415 = vmax.f32 %v1205, %v1399
        %v1416 = vmax.f32 %v1206, %v1400
        %v1417 = vmax.f32 %v1207, %v1401
        %v1418 = vmax.f32 %v1208, %v1402
        %v1419 = vmax.f32 %v1209, %v1403
        %v1420 = vmax.f32 %v1210, %v1404
        %v1421 = vmax.f32 %v1211, %v1405
        %v1422 = vmax.f32 %v1212, %v1406
        %v1423 = vmax.f32 %v1213, %v1407
        %v1424 = vmax.f32 %v1214, %v1408
        %v1425 = vmax.f32 %v1005, %v1409
        %v1426 = vmax.f32 %v1006, %v1410
        %v1427 = vmax.f32 %v1007, %v1411
        %v1428 = vmax.f32 %v1008, %v1412
        %v1429 = vmax.f32 %v1009, %v1413
        %v1430 = vmax.f32 %v1010, %v1414
        %v1431 = vmax.f32 %v1011, %v1415
        %v1432 = vmax.f32 %v1012, %v1416
        %v1433 = vmax.f32 %v1013, %v1417
        %v1434 = vmax.f32 %v1014, %v1418
        %v1435 = vmax.f32 %v1015, %v1419
        %v1436 = vmax.f32 %v1016, %v1420
        %v1437 = vmax.f32 %v1017, %v1421
        %v1438 = vmax.f32 %v1018, %v1422
        %v1439 = vmax.f32 %v1019, %v1423
        %v1440 = vmax.f32 %v1020, %v1424
        %v1441 = vpack.c.bf16 %v1426, %v1425
        %v1442 = vpack.c.bf16 %v1428, %v1427
        %v1443 = vpack.c.bf16 %v1430, %v1429
        %v1444 = vpack.c.bf16 %v1432, %v1431
        %v1445 = vpack.c.bf16 %v1434, %v1433
        %v1446 = vpack.c.bf16 %v1436, %v1435
        %v1447 = vpack.c.bf16 %v1438, %v1437
        %v1448 = vpack.c.bf16 %v1440, %v1439
        %v1457 = vunpack.c.l.b16 %v1441
        %v1458 = vunpack.c.h.b16 %v1441
        %v1459 = vunpack.c.l.b16 %v1442
        %v1460 = vunpack.c.h.b16 %v1442
        %v1461 = vunpack.c.l.b16 %v1443
        %v1462 = vunpack.c.h.b16 %v1443
        %v1463 = vunpack.c.l.b16 %v1444
        %v1464 = vunpack.c.h.b16 %v1444
        %v1465 = vunpack.c.l.b16 %v1445
        %v1466 = vunpack.c.h.b16 %v1445
        %v1467 = vunpack.c.l.b16 %v1446
        %v1468 = vunpack.c.h.b16 %v1446
        %v1469 = vunpack.c.l.b16 %v1447
        %v1470 = vunpack.c.h.b16 %v1447
        %v1471 = vunpack.c.l.b16 %v1448
        %v1472 = vunpack.c.h.b16 %v1448
        %v1473 = vpack.c.b16 %v1457, %v1457
        %v1474 = vpack.c.b16 %v1458, %v1458
        %v1475 = vpack.c.b16 %v1459, %v1459
        %v1476 = vpack.c.b16 %v1460, %v1460
        %v1477 = vpack.c.b16 %v1461, %v1461
        %v1478 = vpack.c.b16 %v1462, %v1462
        %v1479 = vpack.c.b16 %v1463, %v1463
        %v1480 = vpack.c.b16 %v1464, %v1464
        %v1481 = vpack.c.b16 %v1465, %v1465
        %v1482 = vpack.c.b16 %v1466, %v1466
        %v1483 = vpack.c.b16 %v1467, %v1467
        %v1484 = vpack.c.b16 %v1468, %v1468
        %v1485 = vpack.c.b16 %v1469, %v1469
        %v1486 = vpack.c.b16 %v1470, %v1470
        %v1487 = vpack.c.b16 %v1471, %v1471
        %v1488 = vpack.c.b16 %v1472, %v1472
        %vm1505 = vcmask 35840
        %1506 = vst.msk [vmem:[%s576] sm:$0xf] %vm1505, %v1473
        %1507 = vst.msk [vmem:[%s576 + $0x4] sm:$0xf] %vm1505, %v1474
        %1508 = vst.msk [vmem:[%s576 + $0x8] sm:$0xf] %vm1505, %v1475
        %1509 = vst.msk [vmem:[%s576 + $0xc] sm:$0xf] %vm1505, %v1476
        %1510 = vst.msk [vmem:[%s576 + $0x10] sm:$0xf] %vm1505, %v1477
        %1511 = vst.msk [vmem:[%s576 + $0x14] sm:$0xf] %vm1505, %v1478
        %1512 = vst.msk [vmem:[%s576 + $0x18] sm:$0xf] %vm1505, %v1479
        %1513 = vst.msk [vmem:[%s576 + $0x1c] sm:$0xf] %vm1505, %v1480
        %1514 = vst.msk [vmem:[%s576 + $0x20] sm:$0xf] %vm1505, %v1481
        %1515 = vst.msk [vmem:[%s576 + $0x24] sm:$0xf] %vm1505, %v1482
        %1516 = vst.msk [vmem:[%s576 + $0x28] sm:$0xf] %vm1505, %v1483
        %1517 = vst.msk [vmem:[%s576 + $0x2c] sm:$0xf] %vm1505, %v1484
        %1518 = vst.msk [vmem:[%s576 + $0x30] sm:$0xf] %vm1505, %v1485
        %1519 = vst.msk [vmem:[%s576 + $0x34] sm:$0xf] %vm1505, %v1486
        %1520 = vst.msk [vmem:[%s576 + $0x38] sm:$0xf] %vm1505, %v1487
        %1521 = vst.msk [vmem:[%s576 + $0x3c] sm:$0xf] %vm1505, %v1488
        %s1522 = sand.u32 %s90, 1
        %s1523 = sand.u32 %s90, 1
        %s1524 = smul.addr %s1523, 64
        %s1525 = scalar_lea.vmem [#allocation3], %s1524
        // Predicated region
        $region95: #{lenet_forward.6} parent=89 // pred_check
          %p1526 = pneg %p100
        $region96: #{lenet_forward.6} parent=89 // pred_check_branch
          %1528 = sbr.rel (%p1526) target = $region98
        $region97: #{lenet_forward.6} parent=89 // pred_region
          %s1529 = smul.u32 16, %s14
          %s1530 = ssub.s32 57, %s1529
          %p1531 = scmp.lt.s32.totalorder %s1530, 16
          %s1532 = scalar_select %p1531, %s1530, 16
          %s1533 = smul.u32 64, %s1532
          %p1534 = scmp.ne.s32.totalorder 0, %s1533
          %s1535 = smul.addr %s1529, 4
          %s1536 = scalar_lea.vmem %s3, %s1535
          // Predicated region
          $region99: #{lenet_forward.6} parent=97 // pred_check
            %p1537 = pneg %p1534
          $region100: #{lenet_forward.6} parent=97 // pred_check_branch
            %1539 = sbr.rel (%p1537) target = $region102
          $region101: #{lenet_forward.6} parent=97 // pred_region
            // Predicated region
            $region103: #{lenet_forward.6} parent=101 // pred_check
              _
            $region104: #{lenet_forward.6} parent=101 // pred_check_branch
              %1541 = sbr.rel target = $region106
            $region105: #{lenet_forward.6} parent=101 // pred_region
              // Predicated region
              $region125: #{lenet_forward.6} parent=105 // pred_check
                _
              $region126: #{lenet_forward.6} parent=105 // pred_check_branch
                %1620 = sbr.rel (0) target = $region128
              $region127: #{lenet_forward.6} parent=105 // pred_region
                %s1622 = sshrl.u32 %s1532, 4
                // While loop
                $region129: #{lenet_forward.6} parent=127 // loop_pre_header
                  _
                $region130: #{lenet_forward.6} parent=127 // loop_header
                  %s1624 = sphi 0, %s1626
                  %p1625 = scmp.ge.s32.totalorder %s1624, %s1622
                  %s1629 = sphi 0, %s1666
                  %s1630 = sphi %s1525, %s1669
                  %s1631 = sphi %s1536, %s1670
                $region131: #{lenet_forward.6} parent=127 // loop_header_branch
                  %1628 = sbr.rel (%p1625) target = $region135
                $region132: #{lenet_forward.6} parent=127 // loop_body
                  %v1632 = vld [vmem:[%s1630] sm:$0xf]
                  %1633 = vst [vmem:[%s1631] sm:$0xf] %v1632
                  %v1634 = vld [vmem:[%s1630 + $0x4] sm:$0xf]
                  %1635 = vst [vmem:[%s1631 + $0x4] sm:$0xf] %v1634
                  %v1636 = vld [vmem:[%s1630 + $0x8] sm:$0xf]
                  %1637 = vst [vmem:[%s1631 + $0x8] sm:$0xf] %v1636
                  %v1638 = vld [vmem:[%s1630 + $0xc] sm:$0xf]
                  %1639 = vst [vmem:[%s1631 + $0xc] sm:$0xf] %v1638
                  %v1640 = vld [vmem:[%s1630 + $0x10] sm:$0xf]
                  %1641 = vst [vmem:[%s1631 + $0x10] sm:$0xf] %v1640
                  %v1642 = vld [vmem:[%s1630 + $0x14] sm:$0xf]
                  %1643 = vst [vmem:[%s1631 + $0x14] sm:$0xf] %v1642
                  %v1644 = vld [vmem:[%s1630 + $0x18] sm:$0xf]
                  %1645 = vst [vmem:[%s1631 + $0x18] sm:$0xf] %v1644
                  %v1646 = vld [vmem:[%s1630 + $0x1c] sm:$0xf]
                  %1647 = vst [vmem:[%s1631 + $0x1c] sm:$0xf] %v1646
                  %v1648 = vld [vmem:[%s1630 + $0x20] sm:$0xf]
                  %1649 = vst [vmem:[%s1631 + $0x20] sm:$0xf] %v1648
                  %v1650 = vld [vmem:[%s1630 + $0x24] sm:$0xf]
                  %1651 = vst [vmem:[%s1631 + $0x24] sm:$0xf] %v1650
                  %v1652 = vld [vmem:[%s1630 + $0x28] sm:$0xf]
                  %1653 = vst [vmem:[%s1631 + $0x28] sm:$0xf] %v1652
                  %v1654 = vld [vmem:[%s1630 + $0x2c] sm:$0xf]
                  %1655 = vst [vmem:[%s1631 + $0x2c] sm:$0xf] %v1654
                  %v1656 = vld [vmem:[%s1630 + $0x30] sm:$0xf]
                  %1657 = vst [vmem:[%s1631 + $0x30] sm:$0xf] %v1656
                  %v1658 = vld [vmem:[%s1630 + $0x34] sm:$0xf]
                  %1659 = vst [vmem:[%s1631 + $0x34] sm:$0xf] %v1658
                  %v1660 = vld [vmem:[%s1630 + $0x38] sm:$0xf]
                  %1661 = vst [vmem:[%s1631 + $0x38] sm:$0xf] %v1660
                  %v1662 = vld [vmem:[%s1630 + $0x3c] sm:$0xf]
                  %1663 = vst [vmem:[%s1631 + $0x3c] sm:$0xf] %v1662
                  %s1664 = sadd.s32 1, %s1629
                  %p1665 = scmp.ge.s32.totalorder %s1664, %s1622
                  %s1666 = scalar_select %p1665, 0, %s1664
                  %s1667 = smul.u32 %s1666, 64
                  %s1668 = smul.u32 %s1666, 64
                  %s1669 = scalar_lea.vmem %s1525, %s1667 [#allocation3]
                  %s1670 = scalar_lea.vmem %s1536, %s1668
                $region133: #{lenet_forward.6} parent=127 // loop_footer
                  %s1626 = sadd.s32 %s1624, 1
                $region134: #{lenet_forward.6} parent=127 // loop_footer_branch
                  %1623 = sbr.rel target = $region130
                $region135: #{lenet_forward.6} parent=127 // loop_exit
                  _
                %s1671 = sshrl.u32 %s1532, 4
                %s1672 = sand.u32 %s1532, 15
                %s1673 = smul.u32 %s1671, 16
                %s1674 = smul.u32 4, %s1673
                %s1675 = scalar_lea.vmem %s1525, %s1674 [#allocation3]
                %s1676 = smul.u32 4, %s1673
                %s1677 = scalar_lea.vmem %s1536, %s1676
                // While loop
                $region136: #{lenet_forward.6} parent=127 // loop_pre_header
                  _
                $region137: #{lenet_forward.6} parent=127 // loop_header
                  %s1679 = sphi 0, %s1681
                  %p1680 = scmp.ge.s32.totalorder %s1679, %s1672
                  %s1684 = sphi 0, %s1691
                  %s1685 = sphi %s1675, %s1694
                  %s1686 = sphi %s1677, %s1695
                $region138: #{lenet_forward.6} parent=127 // loop_header_branch
                  %1683 = sbr.rel (%p1680) target = $region142
                $region139: #{lenet_forward.6} parent=127 // loop_body
                  %v1687 = vld [vmem:[%s1685] sm:$0xf]
                  %1688 = vst [vmem:[%s1686] sm:$0xf] %v1687
                  %s1689 = sadd.s32 1, %s1684
                  %p1690 = scmp.ge.s32.totalorder %s1689, %s1672
                  %s1691 = scalar_select %p1690, 0, %s1689
                  %s1692 = smul.u32 %s1691, 4
                  %s1693 = smul.u32 %s1691, 4
                  %s1694 = scalar_lea.vmem %s1675, %s1692 [#allocation3]
                  %s1695 = scalar_lea.vmem %s1677, %s1693
                $region140: #{lenet_forward.6} parent=127 // loop_footer
                  %s1681 = sadd.s32 %s1679, 1
                $region141: #{lenet_forward.6} parent=127 // loop_footer_branch
                  %1678 = sbr.rel target = $region137
                $region142: #{lenet_forward.6} parent=127 // loop_exit
                  _
              $region128: #{lenet_forward.6} parent=105 // pred_fallthru
                _
            $region106: #{lenet_forward.6} parent=101 // pred_fallthru
              _
            // Predicated region
            $region107: #{lenet_forward.6} parent=101 // pred_check
              _
            $region108: #{lenet_forward.6} parent=101 // pred_check_branch
              %1543 = sbr.rel (0) target = $region110
            $region109: #{lenet_forward.6} parent=101 // pred_region
              %s1545 = sshrl.u32 %s1532, 4
              // While loop
              $region111: #{lenet_forward.6} parent=109 // loop_pre_header
                _
              $region112: #{lenet_forward.6} parent=109 // loop_header
                %s1547 = sphi 0, %s1549
                %p1548 = scmp.ge.s32.totalorder %s1547, %s1545
                %s1552 = sphi 0, %s1589
                %s1553 = sphi %s1525, %s1592
                %s1554 = sphi %s1536, %s1593
              $region113: #{lenet_forward.6} parent=109 // loop_header_branch
                %1551 = sbr.rel (%p1548) target = $region117
              $region114: #{lenet_forward.6} parent=109 // loop_body
                %v1555 = vld [vmem:[%s1553] sm:$0xf]
                %1556 = vst [vmem:[%s1554] sm:$0xf] %v1555
                %v1557 = vld [vmem:[%s1553 + $0x4] sm:$0xf]
                %1558 = vst [vmem:[%s1554 + $0x4] sm:$0xf] %v1557
                %v1559 = vld [vmem:[%s1553 + $0x8] sm:$0xf]
                %1560 = vst [vmem:[%s1554 + $0x8] sm:$0xf] %v1559
                %v1561 = vld [vmem:[%s1553 + $0xc] sm:$0xf]
                %1562 = vst [vmem:[%s1554 + $0xc] sm:$0xf] %v1561
                %v1563 = vld [vmem:[%s1553 + $0x10] sm:$0xf]
                %1564 = vst [vmem:[%s1554 + $0x10] sm:$0xf] %v1563
                %v1565 = vld [vmem:[%s1553 + $0x14] sm:$0xf]
                %1566 = vst [vmem:[%s1554 + $0x14] sm:$0xf] %v1565
                %v1567 = vld [vmem:[%s1553 + $0x18] sm:$0xf]
                %1568 = vst [vmem:[%s1554 + $0x18] sm:$0xf] %v1567
                %v1569 = vld [vmem:[%s1553 + $0x1c] sm:$0xf]
                %1570 = vst [vmem:[%s1554 + $0x1c] sm:$0xf] %v1569
                %v1571 = vld [vmem:[%s1553 + $0x20] sm:$0xf]
                %1572 = vst [vmem:[%s1554 + $0x20] sm:$0xf] %v1571
                %v1573 = vld [vmem:[%s1553 + $0x24] sm:$0xf]
                %1574 = vst [vmem:[%s1554 + $0x24] sm:$0xf] %v1573
                %v1575 = vld [vmem:[%s1553 + $0x28] sm:$0xf]
                %1576 = vst [vmem:[%s1554 + $0x28] sm:$0xf] %v1575
                %v1577 = vld [vmem:[%s1553 + $0x2c] sm:$0xf]
                %1578 = vst [vmem:[%s1554 + $0x2c] sm:$0xf] %v1577
                %v1579 = vld [vmem:[%s1553 + $0x30] sm:$0xf]
                %1580 = vst [vmem:[%s1554 + $0x30] sm:$0xf] %v1579
                %v1581 = vld [vmem:[%s1553 + $0x34] sm:$0xf]
                %1582 = vst [vmem:[%s1554 + $0x34] sm:$0xf] %v1581
                %v1583 = vld [vmem:[%s1553 + $0x38] sm:$0xf]
                %1584 = vst [vmem:[%s1554 + $0x38] sm:$0xf] %v1583
                %v1585 = vld [vmem:[%s1553 + $0x3c] sm:$0xf]
                %1586 = vst [vmem:[%s1554 + $0x3c] sm:$0xf] %v1585
                %s1587 = sadd.s32 1, %s1552
                %p1588 = scmp.ge.s32.totalorder %s1587, %s1545
                %s1589 = scalar_select %p1588, 0, %s1587
                %s1590 = smul.u32 %s1589, 64
                %s1591 = smul.u32 %s1589, 64
                %s1592 = scalar_lea.vmem %s1525, %s1590 [#allocation3]
                %s1593 = scalar_lea.vmem %s1536, %s1591
              $region115: #{lenet_forward.6} parent=109 // loop_footer
                %s1549 = sadd.s32 %s1547, 1
              $region116: #{lenet_forward.6} parent=109 // loop_footer_branch
                %1546 = sbr.rel target = $region112
              $region117: #{lenet_forward.6} parent=109 // loop_exit
                _
              %s1594 = sshrl.u32 %s1532, 4
              %s1595 = sand.u32 %s1532, 15
              %s1596 = smul.u32 %s1594, 16
              %s1597 = smul.u32 4, %s1596
              %s1598 = scalar_lea.vmem %s1525, %s1597 [#allocation3]
              %s1599 = smul.u32 4, %s1596
              %s1600 = scalar_lea.vmem %s1536, %s1599
              // While loop
              $region118: #{lenet_forward.6} parent=109 // loop_pre_header
                _
              $region119: #{lenet_forward.6} parent=109 // loop_header
                %s1602 = sphi 0, %s1604
                %p1603 = scmp.ge.s32.totalorder %s1602, %s1595
                %s1607 = sphi 0, %s1614
                %s1608 = sphi %s1598, %s1617
                %s1609 = sphi %s1600, %s1618
              $region120: #{lenet_forward.6} parent=109 // loop_header_branch
                %1606 = sbr.rel (%p1603) target = $region124
              $region121: #{lenet_forward.6} parent=109 // loop_body
                %v1610 = vld [vmem:[%s1608] sm:$0xf]
                %1611 = vst [vmem:[%s1609] sm:$0xf] %v1610
                %s1612 = sadd.s32 1, %s1607
                %p1613 = scmp.ge.s32.totalorder %s1612, %s1595
                %s1614 = scalar_select %p1613, 0, %s1612
                %s1615 = smul.u32 %s1614, 4
                %s1616 = smul.u32 %s1614, 4
                %s1617 = scalar_lea.vmem %s1598, %s1615 [#allocation3]
                %s1618 = scalar_lea.vmem %s1600, %s1616
              $region122: #{lenet_forward.6} parent=109 // loop_footer
                %s1604 = sadd.s32 %s1602, 1
              $region123: #{lenet_forward.6} parent=109 // loop_footer_branch
                %1601 = sbr.rel target = $region119
              $region124: #{lenet_forward.6} parent=109 // loop_exit
                _
            $region110: #{lenet_forward.6} parent=101 // pred_fallthru
              _
          $region102: #{lenet_forward.6} parent=97 // pred_fallthru
            _
          %1696 = vnop
        $region98: #{lenet_forward.6} parent=89 // pred_fallthru
          _
      $region90: #{lenet_forward.6} parent=5 // pred_fallthru
        _
      %p1697 = scmp.le.s32.totalorder 2, %s9
      // Predicated region
      $region143: #{lenet_forward.6} parent=5 // pred_check
        %p1698 = pneg %p1697
      $region144: #{lenet_forward.6} parent=5 // pred_check_branch
        %1700 = sbr.rel (%p1698) target = $region146
      $region145: #{lenet_forward.6} parent=5 // pred_region
        %s1701 = ssub.s32 %s9, 2
        // Predicated region
        $region147: #{lenet_forward.6} parent=145 // pred_check
          %p1702 = pneg %p106
        $region148: #{lenet_forward.6} parent=145 // pred_check_branch
          %1704 = sbr.rel (%p1702) target = $region150
        $region149: #{lenet_forward.6} parent=145 // pred_region
          %s1705 = sand.u32 %s91, 1
          %s1706 = sand.u32 %s91, 1
          %s1707 = smul.addr %s1706, 64
          %s1708 = scalar_lea.vmem [#allocation3], %s1707
        $region150: #{lenet_forward.6} parent=145 // pred_fallthru
          _
      $region146: #{lenet_forward.6} parent=5 // pred_fallthru
        _
    $region6: #{lenet_forward.6} parent=1 // loop_footer
      %s13 = sadd.s32 1, %s9
    $region7: #{lenet_forward.6} parent=1 // loop_footer_branch
      %8 = sbr.rel target = $region3
    $region8: #{lenet_forward.6} parent=1 // loop_exit
      _

// kernel: lenet_forward.9
$region0: #{lenet_forward.9}
  #allocation0 [shape = 'u32[]', space=smem, size = 0x4, offset = 0x4, fixed_abs, tag = 'smem constant byte address 0x4 - core index']
  #allocation1 [shape = 'u32[144,128]{1,0:T(1,128)}', space=vmem, size = 0x12000, scoped, tag = 'internal scratch']
  %s0 = inlined_call_operand.vmem [shape: bf16[4,162,125], index: 0, kind: input, shape index: {}]
  %s1 = inlined_call_operand.vmem [shape: bf16[125,10], index: 1, kind: input, shape index: {}]
  %s2 = inlined_call_operand.vmem [shape: f32[1,10], index: 2, kind: input, shape index: {}]
  %s3 = inlined_call_operand.vmem [shape: bf16[162,10], index: 3, kind: output, shape index: {}]
  %s4 = sld [smem:[#allocation0]]
  $region151: #{lenet_forward.9} parent=0
    _
  %s6 = ssub.s32 1, %s4
  %s7 = scalar_select 0, %s6, %s4
  $region1: #{lenet_forward.9} parent=0
    #allocation2 [shape = 'u8[262144]{0}', space=vmem, size = 0x40000, scoped, tag = 'input window, operand 0']
    #allocation3 [shape = 'u8[65536]{0}', space=vmem, size = 0x10000, scoped, tag = 'output window, operand 0']
    loop: start=0, step=1, limit=4
    $region2: #{lenet_forward.9} parent=1 // loop_pre_header
      _
    $region3: #{lenet_forward.9} parent=1 // loop_header
      %s9 = sphi 0, %s13
      %p10 = scmp.ge.s32.totalorder %s9, 4
      %s19 = sphi 0, %s21
      %s22 = sphi 0, %s19
      %s23 = sphi 0, %s22
      %s39 = sphi 0, %s23
      %s43 = sphi 0, %s43
      %s45 = sphi 0, %s43
      %s46 = sphi 0, %s45
      %s60 = sphi 0, %s46
      %s64 = sphi 0, %s64
      %s66 = sphi 0, %s64
      %s67 = sphi 0, %s66
      %s81 = sphi 0, %s67
      %s87 = sphi 0, %s89
      %s90 = sphi 0, %s87
      %s91 = sphi 0, %s90
      %s107 = sphi 0, %s91
    $region4: #{lenet_forward.9} parent=1 // loop_header_branch
      %12 = sbr.rel (%p10) target = $region8
    $region5: #{lenet_forward.9} parent=1 // loop_body
      %s14 = ssub.s32 %s9, 1
      %s15 = ssub.s32 %s9, 2
      %s16 = sadd.s32 %s9, 1
      %s17 = ssub.s32 %s9, %s16
      %p18 = scmp.eq.s32.totalorder %s17, 0
      %s20 = sadd.s32 %s19, 1
      %s21 = scalar_select %p18, %s19, %s20
      %p24 = pneg %p18
      %p25 = scmp.eq.s32.totalorder %s9, 1
      %p26 = por %p24, %p25
      %p27 = scmp.ne.s32.totalorder %s19, %s22
      %p28 = scmp.eq.s32.totalorder %s9, 0
      %p29 = por %p27, %p28
      %p30 = scmp.ne.s32.totalorder %s19, %s22
      %p31 = scmp.eq.s32.totalorder %s14, 1
      %p32 = por %p30, %p31
      %p33 = scmp.ne.s32.totalorder %s22, %s23
      %p34 = scmp.eq.s32.totalorder %s14, 0
      %p35 = por %p33, %p34
      %p36 = scmp.ne.s32.totalorder %s22, %s23
      %p37 = scmp.eq.s32.totalorder %s15, 1
      %p38 = por %p36, %p37
      %p40 = scmp.ne.s32.totalorder %s23, %s39
      %p41 = scmp.eq.s32.totalorder %s15, 0
      %p42 = por %p40, %p41
      %s44 = sadd.s32 %s43, 1
      %p47 = scmp.eq.s32.totalorder %s9, 1
      %p48 = scmp.ne.s32.totalorder %s43, %s45
      %p49 = scmp.eq.s32.totalorder %s9, 0
      %p50 = por %p48, %p49
      %p51 = scmp.ne.s32.totalorder %s43, %s45
      %p52 = scmp.eq.s32.totalorder %s14, 1
      %p53 = por %p51, %p52
      %p54 = scmp.ne.s32.totalorder %s45, %s46
      %p55 = scmp.eq.s32.totalorder %s14, 0
      %p56 = por %p54, %p55
      %p57 = scmp.ne.s32.totalorder %s45, %s46
      %p58 = scmp.eq.s32.totalorder %s15, 1
      %p59 = por %p57, %p58
      %p61 = scmp.ne.s32.totalorder %s46, %s60
      %p62 = scmp.eq.s32.totalorder %s15, 0
      %p63 = por %p61, %p62
      %s65 = sadd.s32 %s64, 1
      %p68 = scmp.eq.s32.totalorder %s9, 1
      %p69 = scmp.ne.s32.totalorder %s64, %s66
      %p70 = scmp.eq.s32.totalorder %s9, 0
      %p71 = por %p69, %p70
      %p72 = scmp.ne.s32.totalorder %s64, %s66
      %p73 = scmp.eq.s32.totalorder %s14, 1
      %p74 = por %p72, %p73
      %p75 = scmp.ne.s32.totalorder %s66, %s67
      %p76 = scmp.eq.s32.totalorder %s14, 0
      %p77 = por %p75, %p76
      %p78 = scmp.ne.s32.totalorder %s66, %s67
      %p79 = scmp.eq.s32.totalorder %s15, 1
      %p80 = por %p78, %p79
      %p82 = scmp.ne.s32.totalorder %s67, %s81
      %p83 = scmp.eq.s32.totalorder %s15, 0
      %p84 = por %p82, %p83
      %s85 = ssub.s32 %s9, %s16
      %p86 = scmp.eq.s32.totalorder %s85, 0
      %s88 = sadd.s32 %s87, 1
      %s89 = scalar_select %p86, %s87, %s88
      %p92 = pneg %p86
      %p93 = scmp.eq.s32.totalorder %s9, 1
      %p94 = por %p92, %p93
      %p95 = scmp.ne.s32.totalorder %s87, %s90
      %p96 = scmp.eq.s32.totalorder %s9, 0
      %p97 = por %p95, %p96
      %p98 = scmp.ne.s32.totalorder %s87, %s90
      %p99 = scmp.eq.s32.totalorder %s14, 1
      %p100 = por %p98, %p99
      %p101 = scmp.ne.s32.totalorder %s90, %s91
      %p102 = scmp.eq.s32.totalorder %s14, 0
      %p103 = por %p101, %p102
      %p104 = scmp.ne.s32.totalorder %s90, %s91
      %p105 = scmp.eq.s32.totalorder %s15, 1
      %p106 = por %p104, %p105
      %p108 = scmp.ne.s32.totalorder %s91, %s107
      %p109 = scmp.eq.s32.totalorder %s15, 0
      %p110 = por %p108, %p109
      %p111 = scmp.le.s32.totalorder 1, %s9
      %p112 = scmp.lt.s32.totalorder %s9, 3
      %p113 = pnand %p111, %p112
      %p114 = pneg %p113
      // Predicated region
      $region9: #{lenet_forward.9} parent=5 // pred_check
        _
      $region10: #{lenet_forward.9} parent=5 // pred_check_branch
        %116 = sbr.rel (%p113) target = $region12
      $region11: #{lenet_forward.9} parent=5 // pred_region
        %s117 = ssub.s32 %s9, 1
        // Predicated region
        $region13: #{lenet_forward.9} parent=11 // pred_check
          %p118 = pneg %p56
        $region14: #{lenet_forward.9} parent=11 // pred_check_branch
          %120 = sbr.rel (%p118) target = $region16
        $region15: #{lenet_forward.9} parent=11 // pred_region
          _
        $region16: #{lenet_forward.9} parent=11 // pred_fallthru
          _
        // Predicated region
        $region17: #{lenet_forward.9} parent=11 // pred_check
          %p121 = pneg %p77
        $region18: #{lenet_forward.9} parent=11 // pred_check_branch
          %123 = sbr.rel (%p121) target = $region20
        $region19: #{lenet_forward.9} parent=11 // pred_region
          _
        $region20: #{lenet_forward.9} parent=11 // pred_fallthru
          _
      $region12: #{lenet_forward.9} parent=5 // pred_fallthru
        _
      %p124 = scmp.lt.s32.totalorder %s9, 2
      // Predicated region
      $region21: #{lenet_forward.9} parent=5 // pred_check
        %p125 = pneg %p124
      $region22: #{lenet_forward.9} parent=5 // pred_check_branch
        %127 = sbr.rel (%p125) target = $region24
      $region23: #{lenet_forward.9} parent=5 // pred_region
        // Predicated region
        $region25: #{lenet_forward.9} parent=23 // pred_check
          %p128 = pneg %p29
        $region26: #{lenet_forward.9} parent=23 // pred_check_branch
          %130 = sbr.rel (%p128) target = $region28
        $region27: #{lenet_forward.9} parent=23 // pred_region
          %s131 = sand.u32 %s19, 1
          %s132 = sand.u32 %s19, 1
          %s133 = smul.addr %s132, 256
          %s134 = scalar_lea.vmem [#allocation2], %s133
          %s135 = smul.u32 16, %s9
          %s136 = ssub.s32 21, %s135
          %p137 = scmp.lt.s32.totalorder %s136, 16
          %s138 = scalar_select %p137, %s136, 16
          %s139 = smul.u32 256, %s138
          %p140 = scmp.ne.s32.totalorder 0, %s139
          %s141 = smul.addr %s135, 4
          %s142 = scalar_lea.vmem %s0, %s141
          // Predicated region
          $region29: #{lenet_forward.9} parent=27 // pred_check
            %p143 = pneg %p140
          $region30: #{lenet_forward.9} parent=27 // pred_check_branch
            %145 = sbr.rel (%p143) target = $region32
          $region31: #{lenet_forward.9} parent=27 // pred_region
            // Predicated region
            $region33: #{lenet_forward.9} parent=31 // pred_check
              _
            $region34: #{lenet_forward.9} parent=31 // pred_check_branch
              %147 = sbr.rel target = $region36
            $region35: #{lenet_forward.9} parent=31 // pred_region
              // Predicated region
              $region55: #{lenet_forward.9} parent=35 // pred_check
                _
              $region56: #{lenet_forward.9} parent=35 // pred_check_branch
                %328 = sbr.rel (0) target = $region58
              $region57: #{lenet_forward.9} parent=35 // pred_region
                %s329 = sshrl.u32 %s138, 4
                // While loop
                $region59: #{lenet_forward.9} parent=57 // loop_pre_header
                  _
                $region60: #{lenet_forward.9} parent=57 // loop_header
                  %s331 = sphi 0, %s333
                  %p332 = scmp.ge.s32.totalorder %s331, %s329
                  %s336 = sphi 0, %s341
                  %s337 = sphi %s142, %s344
                  %s338 = sphi %s134, %s345
                $region61: #{lenet_forward.9} parent=57 // loop_header_branch
                  %335 = sbr.rel (%p332) target = $region65
                $region62: #{lenet_forward.9} parent=57 // loop_body
                  %s339 = sadd.s32 1, %s336
                  %p340 = scmp.ge.s32.totalorder %s339, %s329
                  %s341 = scalar_select %p340, 0, %s339
                  %s342 = smul.u32 %s341, 64
                  %s343 = smul.u32 %s341, 64
                  %s344 = scalar_lea.vmem %s142, %s342
                  %s345 = scalar_lea.vmem %s134, %s343 [#allocation2]
                $region63: #{lenet_forward.9} parent=57 // loop_footer
                  %s333 = sadd.s32 %s331, 1
                $region64: #{lenet_forward.9} parent=57 // loop_footer_branch
                  %330 = sbr.rel target = $region60
                $region65: #{lenet_forward.9} parent=57 // loop_exit
                  _
                %s346 = sshrl.u32 %s138, 4
                %s347 = sand.u32 %s138, 15
                %s348 = smul.u32 %s346, 16
                %s349 = smul.u32 4, %s348
                %s350 = scalar_lea.vmem %s142, %s349
                %s351 = smul.u32 4, %s348
                %s352 = scalar_lea.vmem %s134, %s351 [#allocation2]
                // While loop
                $region66: #{lenet_forward.9} parent=57 // loop_pre_header
                  _
                $region67: #{lenet_forward.9} parent=57 // loop_header
                  %s354 = sphi 0, %s356
                  %p355 = scmp.ge.s32.totalorder %s354, %s347
                  %s359 = sphi 0, %s364
                  %s360 = sphi %s350, %s367
                  %s361 = sphi %s352, %s368
                $region68: #{lenet_forward.9} parent=57 // loop_header_branch
                  %358 = sbr.rel (%p355) target = $region72
                $region69: #{lenet_forward.9} parent=57 // loop_body
                  %s362 = sadd.s32 1, %s359
                  %p363 = scmp.ge.s32.totalorder %s362, %s347
                  %s364 = scalar_select %p363, 0, %s362
                  %s365 = smul.u32 %s364, 4
                  %s366 = smul.u32 %s364, 4
                  %s367 = scalar_lea.vmem %s350, %s365
                  %s368 = scalar_lea.vmem %s352, %s366 [#allocation2]
                $region70: #{lenet_forward.9} parent=57 // loop_footer
                  %s356 = sadd.s32 %s354, 1
                $region71: #{lenet_forward.9} parent=57 // loop_footer_branch
                  %353 = sbr.rel target = $region67
                $region72: #{lenet_forward.9} parent=57 // loop_exit
                  _
                %s370 = sshrl.u32 %s138, 4
                // While loop
                $region73: #{lenet_forward.9} parent=57 // loop_pre_header
                  _
                $region74: #{lenet_forward.9} parent=57 // loop_header
                  %s372 = sphi 0, %s374
                  %p373 = scmp.ge.s32.totalorder %s372, %s370
                  %s377 = sphi 0, %s510
                  %s378 = sphi %s142, %s513
                  %s379 = sphi %s134, %s514
                $region75: #{lenet_forward.9} parent=57 // loop_header_branch
                  %376 = sbr.rel (%p373) target = $region79
                $region76: #{lenet_forward.9} parent=57 // loop_body
                  %v380 = vld [vmem:[%s378] sm:$0xf]
                  %381 = vst [vmem:[%s379] sm:$0xf] %v380
                  %v382 = vld [vmem:[%s378 + $0x4] sm:$0xf]
                  %383 = vst [vmem:[%s379 + $0x4] sm:$0xf] %v382
                  %v384 = vld [vmem:[%s378 + $0x8] sm:$0xf]
                  %385 = vst [vmem:[%s379 + $0x8] sm:$0xf] %v384
                  %v386 = vld [vmem:[%s378 + $0xc] sm:$0xf]
                  %387 = vst [vmem:[%s379 + $0xc] sm:$0xf] %v386
                  %v388 = vld [vmem:[%s378 + $0x10] sm:$0xf]
                  %389 = vst [vmem:[%s379 + $0x10] sm:$0xf] %v388
                  %v390 = vld [vmem:[%s378 + $0x14] sm:$0xf]
                  %391 = vst [vmem:[%s379 + $0x14] sm:$0xf] %v390
                  %v392 = vld [vmem:[%s378 + $0x18] sm:$0xf]
                  %393 = vst [vmem:[%s379 + $0x18] sm:$0xf] %v392
                  %v394 = vld [vmem:[%s378 + $0x1c] sm:$0xf]
                  %395 = vst [vmem:[%s379 + $0x1c] sm:$0xf] %v394
                  %v396 = vld [vmem:[%s378 + $0x20] sm:$0xf]
                  %397 = vst [vmem:[%s379 + $0x20] sm:$0xf] %v396
                  %v398 = vld [vmem:[%s378 + $0x24] sm:$0xf]
                  %399 = vst [vmem:[%s379 + $0x24] sm:$0xf] %v398
                  %v400 = vld [vmem:[%s378 + $0x28] sm:$0xf]
                  %401 = vst [vmem:[%s379 + $0x28] sm:$0xf] %v400
                  %v402 = vld [vmem:[%s378 + $0x2c] sm:$0xf]
                  %403 = vst [vmem:[%s379 + $0x2c] sm:$0xf] %v402
                  %v404 = vld [vmem:[%s378 + $0x30] sm:$0xf]
                  %405 = vst [vmem:[%s379 + $0x30] sm:$0xf] %v404
                  %v406 = vld [vmem:[%s378 + $0x34] sm:$0xf]
                  %407 = vst [vmem:[%s379 + $0x34] sm:$0xf] %v406
                  %v408 = vld [vmem:[%s378 + $0x38] sm:$0xf]
                  %409 = vst [vmem:[%s379 + $0x38] sm:$0xf] %v408
                  %v410 = vld [vmem:[%s378 + $0x3c] sm:$0xf]
                  %411 = vst [vmem:[%s379 + $0x3c] sm:$0xf] %v410
                  %v412 = vld [vmem:[%s378 + $0x54] sm:$0xf]
                  %413 = vst [vmem:[%s379 + $0x40] sm:$0xf] %v412
                  %v414 = vld [vmem:[%s378 + $0x58] sm:$0xf]
                  %415 = vst [vmem:[%s379 + $0x44] sm:$0xf] %v414
                  %v416 = vld [vmem:[%s378 + $0x5c] sm:$0xf]
                  %417 = vst [vmem:[%s379 + $0x48] sm:$0xf] %v416
                  %v418 = vld [vmem:[%s378 + $0x60] sm:$0xf]
                  %419 = vst [vmem:[%s379 + $0x4c] sm:$0xf] %v418
                  %v420 = vld [vmem:[%s378 + $0x64] sm:$0xf]
                  %421 = vst [vmem:[%s379 + $0x50] sm:$0xf] %v420
                  %v422 = vld [vmem:[%s378 + $0x68] sm:$0xf]
                  %423 = vst [vmem:[%s379 + $0x54] sm:$0xf] %v422
                  %v424 = vld [vmem:[%s378 + $0x6c] sm:$0xf]
                  %425 = vst [vmem:[%s379 + $0x58] sm:$0xf] %v424
                  %v426 = vld [vmem:[%s378 + $0x70] sm:$0xf]
                  %427 = vst [vmem:[%s379 + $0x5c] sm:$0xf] %v426
                  %v428 = vld [vmem:[%s378 + $0x74] sm:$0xf]
                  %429 = vst [vmem:[%s379 + $0x60] sm:$0xf] %v428
                  %v430 = vld [vmem:[%s378 + $0x78] sm:$0xf]
                  %431 = vst [vmem:[%s379 + $0x64] sm:$0xf] %v430
                  %v432 = vld [vmem:[%s378 + $0x7c] sm:$0xf]
                  %433 = vst [vmem:[%s379 + $0x68] sm:$0xf] %v432
                  %v434 = vld [vmem:[%s378 + $0x80] sm:$0xf]
                  %435 = vst [vmem:[%s379 + $0x6c] sm:$0xf] %v434
                  %v436 = vld [vmem:[%s378 + $0x84] sm:$0xf]
                  %437 = vst [vmem:[%s379 + $0x70] sm:$0xf] %v436
                  %v438 = vld [vmem:[%s378 + $0x88] sm:$0xf]
                  %439 = vst [vmem:[%s379 + $0x74] sm:$0xf] %v438
                  %v440 = vld [vmem:[%s378 + $0x8c] sm:$0xf]
                  %441 = vst [vmem:[%s379 + $0x78] sm:$0xf] %v440
                  %v442 = vld [vmem:[%s378 + $0x90] sm:$0xf]
                  %443 = vst [vmem:[%s379 + $0x7c] sm:$0xf] %v442
                  %v444 = vld [vmem:[%s378 + $0xa8] sm:$0xf]
                  %445 = vst [vmem:[%s379 + $0x80] sm:$0xf] %v444
                  %v446 = vld [vmem:[%s378 + $0xac] sm:$0xf]
                  %447 = vst [vmem:[%s379 + $0x84] sm:$0xf] %v446
                  %v448 = vld [vmem:[%s378 + $0xb0] sm:$0xf]
                  %449 = vst [vmem:[%s379 + $0x88] sm:$0xf] %v448
                  %v450 = vld [vmem:[%s378 + $0xb4] sm:$0xf]
                  %451 = vst [vmem:[%s379 + $0x8c] sm:$0xf] %v450
                  %v452 = vld [vmem:[%s378 + $0xb8] sm:$0xf]
                  %453 = vst [vmem:[%s379 + $0x90] sm:$0xf] %v452
                  %v454 = vld [vmem:[%s378 + $0xbc] sm:$0xf]
                  %455 = vst [vmem:[%s379 + $0x94] sm:$0xf] %v454
                  %v456 = vld [vmem:[%s378 + $0xc0] sm:$0xf]
                  %457 = vst [vmem:[%s379 + $0x98] sm:$0xf] %v456
                  %v458 = vld [vmem:[%s378 + $0xc4] sm:$0xf]
                  %459 = vst [vmem:[%s379 + $0x9c] sm:$0xf] %v458
                  %v460 = vld [vmem:[%s378 + $0xc8] sm:$0xf]
                  %461 = vst [vmem:[%s379 + $0xa0] sm:$0xf] %v460
                  %v462 = vld [vmem:[%s378 + $0xcc] sm:$0xf]
                  %463 = vst [vmem:[%s379 + $0xa4] sm:$0xf] %v462
                  %v464 = vld [vmem:[%s378 + $0xd0] sm:$0xf]
                  %465 = vst [vmem:[%s379 + $0xa8] sm:$0xf] %v464
                  %v466 = vld [vmem:[%s378 + $0xd4] sm:$0xf]
                  %467 = vst [vmem:[%s379 + $0xac] sm:$0xf] %v466
                  %v468 = vld [vmem:[%s378 + $0xd8] sm:$0xf]
                  %469 = vst [vmem:[%s379 + $0xb0] sm:$0xf] %v468
                  %v470 = vld [vmem:[%s378 + $0xdc] sm:$0xf]
                  %471 = vst [vmem:[%s379 + $0xb4] sm:$0xf] %v470
                  %v472 = vld [vmem:[%s378 + $0xe0] sm:$0xf]
                  %473 = vst [vmem:[%s379 + $0xb8] sm:$0xf] %v472
                  %v474 = vld [vmem:[%s378 + $0xe4] sm:$0xf]
                  %475 = vst [vmem:[%s379 + $0xbc] sm:$0xf] %v474
                  %v476 = vld [vmem:[%s378 + $0xfc] sm:$0xf]
                  %477 = vst [vmem:[%s379 + $0xc0] sm:$0xf] %v476
                  %v478 = vld [vmem:[%s378 + $0x100] sm:$0xf]
                  %479 = vst [vmem:[%s379 + $0xc4] sm:$0xf] %v478
                  %v480 = vld [vmem:[%s378 + $0x104] sm:$0xf]
                  %481 = vst [vmem:[%s379 + $0xc8] sm:$0xf] %v480
                  %v482 = vld [vmem:[%s378 + $0x108] sm:$0xf]
                  %483 = vst [vmem:[%s379 + $0xcc] sm:$0xf] %v482
                  %v484 = vld [vmem:[%s378 + $0x10c] sm:$0xf]
                  %485 = vst [vmem:[%s379 + $0xd0] sm:$0xf] %v484
                  %v486 = vld [vmem:[%s378 + $0x110] sm:$0xf]
                  %487 = vst [vmem:[%s379 + $0xd4] sm:$0xf] %v486
                  %v488 = vld [vmem:[%s378 + $0x114] sm:$0xf]
                  %489 = vst [vmem:[%s379 + $0xd8] sm:$0xf] %v488
                  %v490 = vld [vmem:[%s378 + $0x118] sm:$0xf]
                  %491 = vst [vmem:[%s379 + $0xdc] sm:$0xf] %v490
                  %v492 = vld [vmem:[%s378 + $0x11c] sm:$0xf]
                  %493 = vst [vmem:[%s379 + $0xe0] sm:$0xf] %v492
                  %v494 = vld [vmem:[%s378 + $0x120] sm:$0xf]
                  %495 = vst [vmem:[%s379 + $0xe4] sm:$0xf] %v494
                  %v496 = vld [vmem:[%s378 + $0x124] sm:$0xf]
                  %497 = vst [vmem:[%s379 + $0xe8] sm:$0xf] %v496
                  %v498 = vld [vmem:[%s378 + $0x128] sm:$0xf]
                  %499 = vst [vmem:[%s379 + $0xec] sm:$0xf] %v498
                  %v500 = vld [vmem:[%s378 + $0x12c] sm:$0xf]
                  %501 = vst [vmem:[%s379 + $0xf0] sm:$0xf] %v500
                  %v502 = vld [vmem:[%s378 + $0x130] sm:$0xf]
                  %503 = vst [vmem:[%s379 + $0xf4] sm:$0xf] %v502
                  %v504 = vld [vmem:[%s378 + $0x134] sm:$0xf]
                  %505 = vst [vmem:[%s379 + $0xf8] sm:$0xf] %v504
                  %v506 = vld [vmem:[%s378 + $0x138] sm:$0xf]
                  %507 = vst [vmem:[%s379 + $0xfc] sm:$0xf] %v506
                  %s508 = sadd.s32 1, %s377
                  %p509 = scmp.ge.s32.totalorder %s508, %s370
                  %s510 = scalar_select %p509, 0, %s508
                  %s511 = smul.u32 %s510, 64
                  %s512 = smul.u32 %s510, 64
                  %s513 = scalar_lea.vmem %s142, %s511
                  %s514 = scalar_lea.vmem %s134, %s512 [#allocation2]
                $region77: #{lenet_forward.9} parent=57 // loop_footer
                  %s374 = sadd.s32 %s372, 1
                $region78: #{lenet_forward.9} parent=57 // loop_footer_branch
                  %371 = sbr.rel target = $region74
                $region79: #{lenet_forward.9} parent=57 // loop_exit
                  _
                %s515 = sshrl.u32 %s138, 4
                %s516 = sand.u32 %s138, 15
                %s517 = smul.u32 %s515, 16
                %s518 = smul.u32 4, %s517
                %s519 = scalar_lea.vmem %s142, %s518
                %s520 = smul.u32 4, %s517
                %s521 = scalar_lea.vmem %s134, %s520 [#allocation2]
                // While loop
                $region80: #{lenet_forward.9} parent=57 // loop_pre_header
                  _
                $region81: #{lenet_forward.9} parent=57 // loop_header
                  %s523 = sphi 0, %s525
                  %p524 = scmp.ge.s32.totalorder %s523, %s516
                  %s528 = sphi 0, %s541
                  %s529 = sphi %s519, %s544
                  %s530 = sphi %s521, %s545
                $region82: #{lenet_forward.9} parent=57 // loop_header_branch
                  %527 = sbr.rel (%p524) target = $region86
                $region83: #{lenet_forward.9} parent=57 // loop_body
                  %v531 = vld [vmem:[%s529] sm:$0xf]
                  %532 = vst [vmem:[%s530] sm:$0xf] %v531
                  %v533 = vld [vmem:[%s529 + $0x54] sm:$0xf]
                  %534 = vst [vmem:[%s530 + $0x40] sm:$0xf] %v533
                  %v535 = vld [vmem:[%s529 + $0xa8] sm:$0xf]
                  %536 = vst [vmem:[%s530 + $0x80] sm:$0xf] %v535
                  %v537 = vld [vmem:[%s529 + $0xfc] sm:$0xf]
                  %538 = vst [vmem:[%s530 + $0xc0] sm:$0xf] %v537
                  %s539 = sadd.s32 1, %s528
                  %p540 = scmp.ge.s32.totalorder %s539, %s516
                  %s541 = scalar_select %p540, 0, %s539
                  %s542 = smul.u32 %s541, 4
                  %s543 = smul.u32 %s541, 4
                  %s544 = scalar_lea.vmem %s519, %s542
                  %s545 = scalar_lea.vmem %s521, %s543 [#allocation2]
                $region84: #{lenet_forward.9} parent=57 // loop_footer
                  %s525 = sadd.s32 %s523, 1
                $region85: #{lenet_forward.9} parent=57 // loop_footer_branch
                  %522 = sbr.rel target = $region81
                $region86: #{lenet_forward.9} parent=57 // loop_exit
                  _
              $region58: #{lenet_forward.9} parent=35 // pred_fallthru
                _
            $region36: #{lenet_forward.9} parent=31 // pred_fallthru
              _
            // Predicated region
            $region37: #{lenet_forward.9} parent=31 // pred_check
              _
            $region38: #{lenet_forward.9} parent=31 // pred_check_branch
              %149 = sbr.rel (0) target = $region40
            $region39: #{lenet_forward.9} parent=31 // pred_region
              %s151 = sshrl.u32 %s138, 4
              // While loop
              $region41: #{lenet_forward.9} parent=39 // loop_pre_header
                _
              $region42: #{lenet_forward.9} parent=39 // loop_header
                %s153 = sphi 0, %s155
                %p154 = scmp.ge.s32.totalorder %s153, %s151
                %s158 = sphi 0, %s291
                %s159 = sphi %s142, %s294
                %s160 = sphi %s134, %s295
              $region43: #{lenet_forward.9} parent=39 // loop_header_branch
                %157 = sbr.rel (%p154) target = $region47
              $region44: #{lenet_forward.9} parent=39 // loop_body
                %v161 = vld [vmem:[%s159] sm:$0xf]
                %162 = vst [vmem:[%s160] sm:$0xf] %v161
                %v163 = vld [vmem:[%s159 + $0x4] sm:$0xf]
                %164 = vst [vmem:[%s160 + $0x4] sm:$0xf] %v163
                %v165 = vld [vmem:[%s159 + $0x8] sm:$0xf]
                %166 = vst [vmem:[%s160 + $0x8] sm:$0xf] %v165
                %v167 = vld [vmem:[%s159 + $0xc] sm:$0xf]
                %168 = vst [vmem:[%s160 + $0xc] sm:$0xf] %v167
                %v169 = vld [vmem:[%s159 + $0x10] sm:$0xf]
                %170 = vst [vmem:[%s160 + $0x10] sm:$0xf] %v169
                %v171 = vld [vmem:[%s159 + $0x14] sm:$0xf]
                %172 = vst [vmem:[%s160 + $0x14] sm:$0xf] %v171
                %v173 = vld [vmem:[%s159 + $0x18] sm:$0xf]
                %174 = vst [vmem:[%s160 + $0x18] sm:$0xf] %v173
                %v175 = vld [vmem:[%s159 + $0x1c] sm:$0xf]
                %176 = vst [vmem:[%s160 + $0x1c] sm:$0xf] %v175
                %v177 = vld [vmem:[%s159 + $0x20] sm:$0xf]
                %178 = vst [vmem:[%s160 + $0x20] sm:$0xf] %v177
                %v179 = vld [vmem:[%s159 + $0x24] sm:$0xf]
                %180 = vst [vmem:[%s160 + $0x24] sm:$0xf] %v179
                %v181 = vld [vmem:[%s159 + $0x28] sm:$0xf]
                %182 = vst [vmem:[%s160 + $0x28] sm:$0xf] %v181
                %v183 = vld [vmem:[%s159 + $0x2c] sm:$0xf]
                %184 = vst [vmem:[%s160 + $0x2c] sm:$0xf] %v183
                %v185 = vld [vmem:[%s159 + $0x30] sm:$0xf]
                %186 = vst [vmem:[%s160 + $0x30] sm:$0xf] %v185
                %v187 = vld [vmem:[%s159 + $0x34] sm:$0xf]
                %188 = vst [vmem:[%s160 + $0x34] sm:$0xf] %v187
                %v189 = vld [vmem:[%s159 + $0x38] sm:$0xf]
                %190 = vst [vmem:[%s160 + $0x38] sm:$0xf] %v189
                %v191 = vld [vmem:[%s159 + $0x3c] sm:$0xf]
                %192 = vst [vmem:[%s160 + $0x3c] sm:$0xf] %v191
                %v193 = vld [vmem:[%s159 + $0x54] sm:$0xf]
                %194 = vst [vmem:[%s160 + $0x40] sm:$0xf] %v193
                %v195 = vld [vmem:[%s159 + $0x58] sm:$0xf]
                %196 = vst [vmem:[%s160 + $0x44] sm:$0xf] %v195
                %v197 = vld [vmem:[%s159 + $0x5c] sm:$0xf]
                %198 = vst [vmem:[%s160 + $0x48] sm:$0xf] %v197
                %v199 = vld [vmem:[%s159 + $0x60] sm:$0xf]
                %200 = vst [vmem:[%s160 + $0x4c] sm:$0xf] %v199
                %v201 = vld [vmem:[%s159 + $0x64] sm:$0xf]
                %202 = vst [vmem:[%s160 + $0x50] sm:$0xf] %v201
                %v203 = vld [vmem:[%s159 + $0x68] sm:$0xf]
                %204 = vst [vmem:[%s160 + $0x54] sm:$0xf] %v203
                %v205 = vld [vmem:[%s159 + $0x6c] sm:$0xf]
                %206 = vst [vmem:[%s160 + $0x58] sm:$0xf] %v205
                %v207 = vld [vmem:[%s159 + $0x70] sm:$0xf]
                %208 = vst [vmem:[%s160 + $0x5c] sm:$0xf] %v207
                %v209 = vld [vmem:[%s159 + $0x74] sm:$0xf]
                %210 = vst [vmem:[%s160 + $0x60] sm:$0xf] %v209
                %v211 = vld [vmem:[%s159 + $0x78] sm:$0xf]
                %212 = vst [vmem:[%s160 + $0x64] sm:$0xf] %v211
                %v213 = vld [vmem:[%s159 + $0x7c] sm:$0xf]
                %214 = vst [vmem:[%s160 + $0x68] sm:$0xf] %v213
                %v215 = vld [vmem:[%s159 + $0x80] sm:$0xf]
                %216 = vst [vmem:[%s160 + $0x6c] sm:$0xf] %v215
                %v217 = vld [vmem:[%s159 + $0x84] sm:$0xf]
                %218 = vst [vmem:[%s160 + $0x70] sm:$0xf] %v217
                %v219 = vld [vmem:[%s159 + $0x88] sm:$0xf]
                %220 = vst [vmem:[%s160 + $0x74] sm:$0xf] %v219
                %v221 = vld [vmem:[%s159 + $0x8c] sm:$0xf]
                %222 = vst [vmem:[%s160 + $0x78] sm:$0xf] %v221
                %v223 = vld [vmem:[%s159 + $0x90] sm:$0xf]
                %224 = vst [vmem:[%s160 + $0x7c] sm:$0xf] %v223
                %v225 = vld [vmem:[%s159 + $0xa8] sm:$0xf]
                %226 = vst [vmem:[%s160 + $0x80] sm:$0xf] %v225
                %v227 = vld [vmem:[%s159 + $0xac] sm:$0xf]
                %228 = vst [vmem:[%s160 + $0x84] sm:$0xf] %v227
                %v229 = vld [vmem:[%s159 + $0xb0] sm:$0xf]
                %230 = vst [vmem:[%s160 + $0x88] sm:$0xf] %v229
                %v231 = vld [vmem:[%s159 + $0xb4] sm:$0xf]
                %232 = vst [vmem:[%s160 + $0x8c] sm:$0xf] %v231
                %v233 = vld [vmem:[%s159 + $0xb8] sm:$0xf]
                %234 = vst [vmem:[%s160 + $0x90] sm:$0xf] %v233
                %v235 = vld [vmem:[%s159 + $0xbc] sm:$0xf]
                %236 = vst [vmem:[%s160 + $0x94] sm:$0xf] %v235
                %v237 = vld [vmem:[%s159 + $0xc0] sm:$0xf]
                %238 = vst [vmem:[%s160 + $0x98] sm:$0xf] %v237
                %v239 = vld [vmem:[%s159 + $0xc4] sm:$0xf]
                %240 = vst [vmem:[%s160 + $0x9c] sm:$0xf] %v239
                %v241 = vld [vmem:[%s159 + $0xc8] sm:$0xf]
                %242 = vst [vmem:[%s160 + $0xa0] sm:$0xf] %v241
                %v243 = vld [vmem:[%s159 + $0xcc] sm:$0xf]
                %244 = vst [vmem:[%s160 + $0xa4] sm:$0xf] %v243
                %v245 = vld [vmem:[%s159 + $0xd0] sm:$0xf]
                %246 = vst [vmem:[%s160 + $0xa8] sm:$0xf] %v245
                %v247 = vld [vmem:[%s159 + $0xd4] sm:$0xf]
                %248 = vst [vmem:[%s160 + $0xac] sm:$0xf] %v247
                %v249 = vld [vmem:[%s159 + $0xd8] sm:$0xf]
                %250 = vst [vmem:[%s160 + $0xb0] sm:$0xf] %v249
                %v251 = vld [vmem:[%s159 + $0xdc] sm:$0xf]
                %252 = vst [vmem:[%s160 + $0xb4] sm:$0xf] %v251
                %v253 = vld [vmem:[%s159 + $0xe0] sm:$0xf]
                %254 = vst [vmem:[%s160 + $0xb8] sm:$0xf] %v253
                %v255 = vld [vmem:[%s159 + $0xe4] sm:$0xf]
                %256 = vst [vmem:[%s160 + $0xbc] sm:$0xf] %v255
                %v257 = vld [vmem:[%s159 + $0xfc] sm:$0xf]
                %258 = vst [vmem:[%s160 + $0xc0] sm:$0xf] %v257
                %v259 = vld [vmem:[%s159 + $0x100] sm:$0xf]
                %260 = vst [vmem:[%s160 + $0xc4] sm:$0xf] %v259
                %v261 = vld [vmem:[%s159 + $0x104] sm:$0xf]
                %262 = vst [vmem:[%s160 + $0xc8] sm:$0xf] %v261
                %v263 = vld [vmem:[%s159 + $0x108] sm:$0xf]
                %264 = vst [vmem:[%s160 + $0xcc] sm:$0xf] %v263
                %v265 = vld [vmem:[%s159 + $0x10c] sm:$0xf]
                %266 = vst [vmem:[%s160 + $0xd0] sm:$0xf] %v265
                %v267 = vld [vmem:[%s159 + $0x110] sm:$0xf]
                %268 = vst [vmem:[%s160 + $0xd4] sm:$0xf] %v267
                %v269 = vld [vmem:[%s159 + $0x114] sm:$0xf]
                %270 = vst [vmem:[%s160 + $0xd8] sm:$0xf] %v269
                %v271 = vld [vmem:[%s159 + $0x118] sm:$0xf]
                %272 = vst [vmem:[%s160 + $0xdc] sm:$0xf] %v271
                %v273 = vld [vmem:[%s159 + $0x11c] sm:$0xf]
                %274 = vst [vmem:[%s160 + $0xe0] sm:$0xf] %v273
                %v275 = vld [vmem:[%s159 + $0x120] sm:$0xf]
                %276 = vst [vmem:[%s160 + $0xe4] sm:$0xf] %v275
                %v277 = vld [vmem:[%s159 + $0x124] sm:$0xf]
                %278 = vst [vmem:[%s160 + $0xe8] sm:$0xf] %v277
                %v279 = vld [vmem:[%s159 + $0x128] sm:$0xf]
                %280 = vst [vmem:[%s160 + $0xec] sm:$0xf] %v279
                %v281 = vld [vmem:[%s159 + $0x12c] sm:$0xf]
                %282 = vst [vmem:[%s160 + $0xf0] sm:$0xf] %v281
                %v283 = vld [vmem:[%s159 + $0x130] sm:$0xf]
                %284 = vst [vmem:[%s160 + $0xf4] sm:$0xf] %v283
                %v285 = vld [vmem:[%s159 + $0x134] sm:$0xf]
                %286 = vst [vmem:[%s160 + $0xf8] sm:$0xf] %v285
                %v287 = vld [vmem:[%s159 + $0x138] sm:$0xf]
                %288 = vst [vmem:[%s160 + $0xfc] sm:$0xf] %v287
                %s289 = sadd.s32 1, %s158
                %p290 = scmp.ge.s32.totalorder %s289, %s151
                %s291 = scalar_select %p290, 0, %s289
                %s292 = smul.u32 %s291, 64
                %s293 = smul.u32 %s291, 64
                %s294 = scalar_lea.vmem %s142, %s292
                %s295 = scalar_lea.vmem %s134, %s293 [#allocation2]
              $region45: #{lenet_forward.9} parent=39 // loop_footer
                %s155 = sadd.s32 %s153, 1
              $region46: #{lenet_forward.9} parent=39 // loop_footer_branch
                %152 = sbr.rel target = $region42
              $region47: #{lenet_forward.9} parent=39 // loop_exit
                _
              %s296 = sshrl.u32 %s138, 4
              %s297 = sand.u32 %s138, 15
              %s298 = smul.u32 %s296, 16
              %s299 = smul.u32 4, %s298
              %s300 = scalar_lea.vmem %s142, %s299
              %s301 = smul.u32 4, %s298
              %s302 = scalar_lea.vmem %s134, %s301 [#allocation2]
              // While loop
              $region48: #{lenet_forward.9} parent=39 // loop_pre_header
                _
              $region49: #{lenet_forward.9} parent=39 // loop_header
                %s304 = sphi 0, %s306
                %p305 = scmp.ge.s32.totalorder %s304, %s297
                %s309 = sphi 0, %s322
                %s310 = sphi %s300, %s325
                %s311 = sphi %s302, %s326
              $region50: #{lenet_forward.9} parent=39 // loop_header_branch
                %308 = sbr.rel (%p305) target = $region54
              $region51: #{lenet_forward.9} parent=39 // loop_body
                %v312 = vld [vmem:[%s310] sm:$0xf]
                %313 = vst [vmem:[%s311] sm:$0xf] %v312
                %v314 = vld [vmem:[%s310 + $0x54] sm:$0xf]
                %315 = vst [vmem:[%s311 + $0x40] sm:$0xf] %v314
                %v316 = vld [vmem:[%s310 + $0xa8] sm:$0xf]
                %317 = vst [vmem:[%s311 + $0x80] sm:$0xf] %v316
                %v318 = vld [vmem:[%s310 + $0xfc] sm:$0xf]
                %319 = vst [vmem:[%s311 + $0xc0] sm:$0xf] %v318
                %s320 = sadd.s32 1, %s309
                %p321 = scmp.ge.s32.totalorder %s320, %s297
                %s322 = scalar_select %p321, 0, %s320
                %s323 = smul.u32 %s322, 4
                %s324 = smul.u32 %s322, 4
                %s325 = scalar_lea.vmem %s300, %s323
                %s326 = scalar_lea.vmem %s302, %s324 [#allocation2]
              $region52: #{lenet_forward.9} parent=39 // loop_footer
                %s306 = sadd.s32 %s304, 1
              $region53: #{lenet_forward.9} parent=39 // loop_footer_branch
                %303 = sbr.rel target = $region49
              $region54: #{lenet_forward.9} parent=39 // loop_exit
                _
            $region40: #{lenet_forward.9} parent=31 // pred_fallthru
              _
          $region32: #{lenet_forward.9} parent=27 // pred_fallthru
            _
          %546 = vnop
        $region28: #{lenet_forward.9} parent=23 // pred_fallthru
          _
      $region24: #{lenet_forward.9} parent=5 // pred_fallthru
        _
      %p547 = scmp.le.s32.totalorder 1, %s9
      %p548 = scmp.lt.s32.totalorder %s9, 3
      %p549 = pnand %p547, %p548
      %p550 = pneg %p549
      // Predicated region
      $region87: #{lenet_forward.9} parent=5 // pred_check
        _
      $region88: #{lenet_forward.9} parent=5 // pred_check_branch
        %552 = sbr.rel (%p549) target = $region90
      $region89: #{lenet_forward.9} parent=5 // pred_region
        %s553 = ssub.s32 %s9, 1
        %s554 = sand.u32 %s22, 1
        %s555 = sand.u32 %s22, 1
        %s556 = smul.addr %s555, 256
        %s557 = scalar_lea.vmem [#allocation2], %s556
        // Predicated region
        $region91: #{lenet_forward.9} parent=89 // pred_check
          %p558 = pneg %p35
        $region92: #{lenet_forward.9} parent=89 // pred_check_branch
          %560 = sbr.rel (%p558) target = $region94
        $region93: #{lenet_forward.9} parent=89 // pred_region
          _
        $region94: #{lenet_forward.9} parent=89 // pred_fallthru
          _
        %s561 = sand.u32 %s22, 1
        %s562 = sand.u32 %s22, 1
        %s563 = smul.addr %s562, 256
        %s564 = scalar_lea.vmem [#allocation2], %s563
        %p565 = pneg %p35
        %p566 = pneg %p32
        %p567 = pneg %p56
        %p568 = pneg %p53
        %p569 = pneg %p77
        %p570 = pneg %p74
        %p571 = pneg %p103
        %p572 = pneg %p100
        %s573 = sand.u32 %s90, 1
        %s574 = sand.u32 %s90, 1
        %s575 = smul.addr %s574, 64
        %s576 = scalar_lea.vmem [#allocation3], %s575
        %s577 = smul.u32 16, %s14
        %s578 = ssub.s32 21, %s577
        %p579 = scmp.lt.s32.totalorder %s578, 16
        %s580 = scalar_select %p579, %s578, 16
        %s581 = smul.u32 256, %s580
        %s582 = smul.u32 16, %s14
        %s583 = ssub.s32 21, %s582
        %p584 = scmp.lt.s32.totalorder %s583, 16
        %s585 = scalar_select %p584, %s583, 16
        %s586 = smul.u32 64, %s585
        %v588 = vld [vmem:[%s1] sm:$0xf]
        %v589 = vld [vmem:[%s1 + $0x4] sm:$0xf]
        %v590 = vld [vmem:[%s1 + $0x8] sm:$0xf]
        %v591 = vld [vmem:[%s1 + $0xc] sm:$0xf]
        %v592 = vld [vmem:[%s1 + $0x10] sm:$0xf]
        %v593 = vld [vmem:[%s1 + $0x14] sm:$0xf]
        %v594 = vld [vmem:[%s1 + $0x18] sm:$0xf]
        %v595 = vld [vmem:[%s1 + $0x1c] sm:$0xf]
        %v596 = vld [vmem:[%s1 + $0x20] sm:$0xf]
        %v597 = vld [vmem:[%s1 + $0x24] sm:$0xf]
        %v598 = vld [vmem:[%s1 + $0x28] sm:$0xf]
        %v599 = vld [vmem:[%s1 + $0x2c] sm:$0xf]
        %v600 = vld [vmem:[%s1 + $0x30] sm:$0xf]
        %v601 = vld [vmem:[%s1 + $0x34] sm:$0xf]
        %v602 = vld [vmem:[%s1 + $0x38] sm:$0xf]
        %v603 = vld [vmem:[%s1 + $0x3c] sm:$0x7]
        %v604 = vld [vmem:[%s2] sm:$0x1]
        %v605 = vld [vmem:[%s557] sm:$0xf]
        %v606 = vld [vmem:[%s557 + $0x4] sm:$0xf]
        %v607 = vld [vmem:[%s557 + $0x8] sm:$0xf]
        %v608 = vld [vmem:[%s557 + $0xc] sm:$0xf]
        %v609 = vld [vmem:[%s557 + $0x10] sm:$0xf]
        %v610 = vld [vmem:[%s557 + $0x14] sm:$0xf]
        %v611 = vld [vmem:[%s557 + $0x18] sm:$0xf]
        %v612 = vld [vmem:[%s557 + $0x1c] sm:$0xf]
        %v613 = vld [vmem:[%s557 + $0x20] sm:$0xf]
        %v614 = vld [vmem:[%s557 + $0x24] sm:$0xf]
        %v615 = vld [vmem:[%s557 + $0x28] sm:$0xf]
        %v616 = vld [vmem:[%s557 + $0x2c] sm:$0xf]
        %v617 = vld [vmem:[%s557 + $0x30] sm:$0xf]
        %v618 = vld [vmem:[%s557 + $0x34] sm:$0xf]
        %v619 = vld [vmem:[%s557 + $0x38] sm:$0xf]
        %v620 = vld [vmem:[%s557 + $0x3c] sm:$0xf]
        %v622 = vlaneseq
        %v623 = vshrl.u32 %v622, 7
        %v624 = vsub.s32 0, %v623
        %v625 = vrot.slane %v604, %v624
        %v643 = vunpack.c.l.b16 %v605
        %v644 = vunpack.c.l.b16 %v606
        %v645 = vunpack.c.l.b16 %v607
        %v646 = vunpack.c.l.b16 %v608
        %v647 = vunpack.c.l.b16 %v609
        %v648 = vunpack.c.l.b16 %v610
        %v649 = vunpack.c.l.b16 %v611
        %v650 = vunpack.c.l.b16 %v612
        %v651 = vunpack.c.l.b16 %v613
        %v652 = vunpack.c.l.b16 %v614
        %v653 = vunpack.c.l.b16 %v615
        %v654 = vunpack.c.l.b16 %v616
        %v655 = vunpack.c.l.b16 %v617
        %v656 = vunpack.c.l.b16 %v618
        %v657 = vunpack.c.l.b16 %v619
        %v658 = vunpack.c.l.b16 %v620
        %v659 = vpack.c.b16 %v644, %v643
        %v660 = vpack.c.b16 %v646, %v645
        %v661 = vpack.c.b16 %v648, %v647
        %v662 = vpack.c.b16 %v650, %v649
        %v663 = vpack.c.b16 %v652, %v651
        %v664 = vpack.c.b16 %v654, %v653
        %v665 = vpack.c.b16 %v656, %v655
        %v666 = vpack.c.b16 %v658, %v657
        %v683 = vunpack.c.l.b16 %v588
        %v684 = vunpack.c.l.b16 %v589
        %v685 = vunpack.c.l.b16 %v590
        %v686 = vunpack.c.l.b16 %v591
        %v687 = vunpack.c.l.b16 %v592
        %v688 = vunpack.c.l.b16 %v593
        %v689 = vunpack.c.l.b16 %v594
        %v690 = vunpack.c.l.b16 %v595
        %v691 = vunpack.c.l.b16 %v596
        %v692 = vunpack.c.l.b16 %v597
        %v693 = vunpack.c.l.b16 %v598
        %v694 = vunpack.c.l.b16 %v599
        %v695 = vunpack.c.l.b16 %v600
        %v696 = vunpack.c.l.b16 %v601
        %v697 = vunpack.c.l.b16 %v602
        %v698 = vunpack.c.l.b16 %v603
        %v699 = vpack.c.b16 %v684, %v683
        %v700 = vpack.c.b16 %v686, %v685
        %v701 = vpack.c.b16 %v688, %v687
        %v702 = vpack.c.b16 %v690, %v689
        %v703 = vpack.c.b16 %v692, %v691
        %v704 = vpack.c.b16 %v694, %v693
        %v705 = vpack.c.b16 %v696, %v695
        %v706 = vpack.c.b16 %v698, %v697
        %vm714 = vcmask 1022976
        %v716 = vsel %vm714, %v659, 0
        %v719 = vsel %vm714, %v660, 0
        %v722 = vsel %vm714, %v661, 0
        %v725 = vsel %vm714, %v662, 0
        %v728 = vsel %vm714, %v663, 0
        %v731 = vsel %vm714, %v664, 0
        %v734 = vsel %vm714, %v665, 0
        %v737 = vsel %vm714, %v666, 0
        %vm739 = vcmask 1045504
        %vm740 = vcmask 1046528
        %v741 = vsel %vm739, 4294967295, 65535
        %v742 = vsel %vm740, %v741, 0
        %v744 = vand.u32 %v706, %v742
        %746 = vmatprep.subr.bf16.mxu0 0
        %747 = vmatpush1.bf16.msra.mxu0 %v699
        %748 = vmatprep.subr.bf16.mxu0 0
        %749 = vmatpush1.bf16.msra.mxu0 %v700
        %750 = vmatprep.subr.bf16.mxu0 0
        %751 = vmatpush1.bf16.msra.mxu0 %v701
        %752 = vmatprep.subr.bf16.mxu0 0
        %753 = vmatpush1.bf16.msra.mxu0 %v702
        %754 = vmatprep.subr.bf16.mxu0 0
        %755 = vmatpush1.bf16.msra.mxu0 %v703
        %756 = vmatprep.subr.bf16.mxu0 0
        %757 = vmatpush1.bf16.msra.mxu0 %v704
        %758 = vmatprep.subr.bf16.mxu0 0
        %759 = vmatpush1.bf16.msra.mxu0 %v705
        %760 = vmatprep.subr.bf16.mxu0 0
        %761 = vmatpush1.bf16.msra.mxu0 %v744
        %762 = vmatprep.subr.bf16.mxu0 0
        %763 = vmatpush1.bf16.msra.mxu0 0
        %764 = vmatprep.subr.bf16.mxu0 0
        %765 = vmatpush1.bf16.msra.mxu0 0
        %766 = vmatprep.subr.bf16.mxu0 0
        %767 = vmatpush1.bf16.msra.mxu0 0
        %768 = vmatprep.subr.bf16.mxu0 0
        %769 = vmatpush1.bf16.msra.mxu0 0
        %770 = vmatprep.subr.bf16.mxu0 0
        %771 = vmatpush1.bf16.msra.mxu0 0
        %772 = vmatprep.subr.bf16.mxu0 0
        %773 = vmatpush1.bf16.msra.mxu0 0
        %774 = vmatprep.subr.bf16.mxu0 0
        %775 = vmatpush1.bf16.msra.mxu0 0
        %776 = vmatprep.subr.bf16.mxu0 0
        %777 = vmatpush1.bf16.msra.mxu0 0
        %778 = vmatprep.mubr.bf16.mxu0 0
        %779 = vmatmul.mubr.bf16.gmra.mrb[0].mxu0 %v716
        %v780 = vpop.f32.mrb[0].mxu0
        %v781 = vadd.f32 %v625, %v780
        %v782 = vpop.f32.mrb[0].mxu0
        %v783 = vpop.f32.mrb[0].mxu0
        %v784 = vadd.f32 %v625, %v783
        %v785 = vpop.f32.mrb[0].mxu0
        %786 = vmatprep.mubr.bf16.mxu0 0
        %787 = vmatmul.mubr.bf16.gmra.mrb[0].mxu0 %v719
        %v788 = vpop.f32.mrb[0].mxu0
        %v789 = vadd.f32 %v625, %v788
        %v790 = vpop.f32.mrb[0].mxu0
        %v791 = vpop.f32.mrb[0].mxu0
        %v792 = vadd.f32 %v625, %v791
        %v793 = vpop.f32.mrb[0].mxu0
        %794 = vmatprep.mubr.bf16.mxu0 0
        %795 = vmatmul.mubr.bf16.gmra.mrb[0].mxu0 %v722
        %v796 = vpop.f32.mrb[0].mxu0
        %v797 = vadd.f32 %v625, %v796
        %v798 = vpop.f32.mrb[0].mxu0
        %v799 = vpop.f32.mrb[0].mxu0
        %v800 = vadd.f32 %v625, %v799
        %v801 = vpop.f32.mrb[0].mxu0
        %802 = vmatprep.mubr.bf16.mxu0 0
        %803 = vmatmul.mubr.bf16.gmra.mrb[0].mxu0 %v725
        %v804 = vpop.f32.mrb[0].mxu0
        %v805 = vadd.f32 %v625, %v804
        %v806 = vpop.f32.mrb[0].mxu0
        %v807 = vpop.f32.mrb[0].mxu0
        %v808 = vadd.f32 %v625, %v807
        %v809 = vpop.f32.mrb[0].mxu0
        %810 = vmatprep.mubr.bf16.mxu0 0
        %811 = vmatmul.mubr.bf16.gmra.mrb[0].mxu0 %v728
        %v812 = vpop.f32.mrb[0].mxu0
        %v813 = vadd.f32 %v625, %v812
        %v814 = vpop.f32.mrb[0].mxu0
        %v815 = vpop.f32.mrb[0].mxu0
        %v816 = vadd.f32 %v625, %v815
        %v817 = vpop.f32.mrb[0].mxu0
        %818 = vmatprep.mubr.bf16.mxu0 0
        %819 = vmatmul.mubr.bf16.gmra.mrb[0].mxu0 %v731
        %v820 = vpop.f32.mrb[0].mxu0
        %v821 = vadd.f32 %v625, %v820
        %v822 = vpop.f32.mrb[0].mxu0
        %v823 = vpop.f32.mrb[0].mxu0
        %v824 = vadd.f32 %v625, %v823
        %v825 = vpop.f32.mrb[0].mxu0
        %826 = vmatprep.mubr.bf16.mxu0 0
        %827 = vmatmul.mubr.bf16.gmra.mrb[0].mxu0 %v734
        %v828 = vpop.f32.mrb[0].mxu0
        %v829 = vadd.f32 %v625, %v828
        %v830 = vpop.f32.mrb[0].mxu0
        %v831 = vpop.f32.mrb[0].mxu0
        %v832 = vadd.f32 %v625, %v831
        %v833 = vpop.f32.mrb[0].mxu0
        %834 = vmatprep.mubr.bf16.mxu0 0
        %835 = vmatmul.mubr.bf16.gmra.mrb[0].mxu0 %v737
        %v836 = vpop.f32.mrb[0].mxu0
        %v837 = vadd.f32 %v625, %v836
        %v838 = vpop.f32.mrb[0].mxu0
        %v839 = vpop.f32.mrb[0].mxu0
        %v840 = vadd.f32 %v625, %v839
        %v841 = vpop.f32.mrb[0].mxu0
        %842 = vdwg.mxu0
        %v843 = vmax.f32 %v781, 0.0
        %v844 = vmax.f32 %v784, 0.0
        %v845 = vmax.f32 %v789, 0.0
        %v846 = vmax.f32 %v792, 0.0
        %v847 = vmax.f32 %v797, 0.0
        %v848 = vmax.f32 %v800, 0.0
        %v849 = vmax.f32 %v805, 0.0
        %v850 = vmax.f32 %v808, 0.0
        %v851 = vmax.f32 %v813, 0.0
        %v852 = vmax.f32 %v816, 0.0
        %v853 = vmax.f32 %v821, 0.0
        %v854 = vmax.f32 %v824, 0.0
        %v855 = vmax.f32 %v829, 0.0
        %v856 = vmax.f32 %v832, 0.0
        %v857 = vmax.f32 %v837, 0.0
        %v858 = vmax.f32 %v840, 0.0
        %s859 = scalar_lea.vmem %s557, 64 [#allocation2]
        %v860 = vld [vmem:[%s859] sm:$0xf]
        %v861 = vld [vmem:[%s859 + $0x4] sm:$0xf]
        %v862 = vld [vmem:[%s859 + $0x8] sm:$0xf]
        %v863 = vld [vmem:[%s859 + $0xc] sm:$0xf]
        %v864 = vld [vmem:[%s859 + $0x10] sm:$0xf]
        %v865 = vld [vmem:[%s859 + $0x14] sm:$0xf]
        %v866 = vld [vmem:[%s859 + $0x18] sm:$0xf]
        %v867 = vld [vmem:[%s859 + $0x1c] sm:$0xf]
        %v868 = vld [vmem:[%s859 + $0x20] sm:$0xf]
        %v869 = vld [vmem:[%s859 + $0x24] sm:$0xf]
        %v870 = vld [vmem:[%s859 + $0x28] sm:$0xf]
        %v871 = vld [vmem:[%s859 + $0x2c] sm:$0xf]
        %v872 = vld [vmem:[%s859 + $0x30] sm:$0xf]
        %v873 = vld [vmem:[%s859 + $0x34] sm:$0xf]
        %v874 = vld [vmem:[%s859 + $0x38] sm:$0xf]
        %v875 = vld [vmem:[%s859 + $0x3c] sm:$0xf]
        %v892 = vunpack.c.l.b16 %v860
        %v893 = vunpack.c.l.b16 %v861
        %v894 = vunpack.c.l.b16 %v862
        %v895 = vunpack.c.l.b16 %v863
        %v896 = vunpack.c.l.b16 %v864
        %v897 = vunpack.c.l.b16 %v865
        %v898 = vunpack.c.l.b16 %v866
        %v899 = vunpack.c.l.b16 %v867
        %v900 = vunpack.c.l.b16 %v868
        %v901 = vunpack.c.l.b16 %v869
        %v902 = vunpack.c.l.b16 %v870
        %v903 = vunpack.c.l.b16 %v871
        %v904 = vunpack.c.l.b16 %v872
        %v905 = vunpack.c.l.b16 %v873
        %v906 = vunpack.c.l.b16 %v874
        %v907 = vunpack.c.l.b16 %v875
        %v908 = vpack.c.b16 %v893, %v892
        %v909 = vpack.c.b16 %v895, %v894
        %v910 = vpack.c.b16 %v897, %v896
        %v911 = vpack.c.b16 %v899, %v898
        %v912 = vpack.c.b16 %v901, %v900
        %v913 = vpack.c.b16 %v903, %v902
        %v914 = vpack.c.b16 %v905, %v904
        %v915 = vpack.c.b16 %v907, %v906
        %v917 = vsel %vm714, %v908, 0
        %v920 = vsel %vm714, %v909, 0
        %v923 = vsel %vm714, %v910, 0
        %v926 = vsel %vm714, %v911, 0
        %v929 = vsel %vm714, %v912, 0
        %v932 = vsel %vm714, %v913, 0
        %v935 = vsel %vm714, %v914, 0
        %v938 = vsel %vm714, %v915, 0
        %940 = vmatprep.subr.bf16.mxu0 0
        %941 = vmatpush1.bf16.msra.mxu0 %v699
        %942 = vmatprep.subr.bf16.mxu0 0
        %943 = vmatpush1.bf16.msra.mxu0 %v700
        %944 = vmatprep.subr.bf16.mxu0 0
        %945 = vmatpush1.bf16.msra.mxu0 %v701
        %946 = vmatprep.subr.bf16.mxu0 0
        %947 = vmatpush1.bf16.msra.mxu0 %v702
        %948 = vmatprep.subr.bf16.mxu0 0
        %949 = vmatpush1.bf16.msra.mxu0 %v703
        %950 = vmatprep.subr.bf16.mxu0 0
        %951 = vmatpush1.bf16.msra.mxu0 %v704
        %952 = vmatprep.subr.bf16.mxu0 0
        %953 = vmatpush1.bf16.msra.mxu0 %v705
        %954 = vmatprep.subr.bf16.mxu0 0
        %955 = vmatpush1.bf16.msra.mxu0 %v744
        %956 = vmatprep.subr.bf16.mxu0 0
        %957 = vmatpush1.bf16.msra.mxu0 0
        %958 = vmatprep.subr.bf16.mxu0 0
        %959 = vmatpush1.bf16.msra.mxu0 0
        %960 = vmatprep.subr.bf16.mxu0 0
        %961 = vmatpush1.bf16.msra.mxu0 0
        %962 = vmatprep.subr.bf16.mxu0 0
        %963 = vmatpush1.bf16.msra.mxu0 0
        %964 = vmatprep.subr.bf16.mxu0 0
        %965 = vmatpush1.bf16.msra.mxu0 0
        %966 = vmatprep.subr.bf16.mxu0 0
        %967 = vmatpush1.bf16.msra.mxu0 0
        %968 = vmatprep.subr.bf16.mxu0 0
        %969 = vmatpush1.bf16.msra.mxu0 0
        %970 = vmatprep.subr.bf16.mxu0 0
        %971 = vmatpush1.bf16.msra.mxu0 0
        %972 = vmatprep.mubr.bf16.mxu0 0
        %973 = vmatmul.mubr.bf16.gmra.mrb[0].mxu0 %v917
        %v974 = vpop.f32.mrb[0].mxu0
        %v975 = vadd.f32 %v625, %v974
        %v976 = vpop.f32.mrb[0].mxu0
        %v977 = vpop.f32.mrb[0].mxu0
        %v978 = vadd.f32 %v625, %v977
        %v979 = vpop.f32.mrb[0].mxu0
        %980 = vmatprep.mubr.bf16.mxu0 0
        %981 = vmatmul.mubr.bf16.gmra.mrb[0].mxu0 %v920
        %v982 = vpop.f32.mrb[0].mxu0
        %v983 = vadd.f32 %v625, %v982
        %v984 = vpop.f32.mrb[0].mxu0
        %v985 = vpop.f32.mrb[0].mxu0
        %v986 = vadd.f32 %v625, %v985
        %v987 = vpop.f32.mrb[0].mxu0
        %988 = vmatprep.mubr.bf16.mxu0 0
        %989 = vmatmul.mubr.bf16.gmra.mrb[0].mxu0 %v923
        %v990 = vpop.f32.mrb[0].mxu0
        %v991 = vadd.f32 %v625, %v990
        %v992 = vpop.f32.mrb[0].mxu0
        %v993 = vpop.f32.mrb[0].mxu0
        %v994 = vadd.f32 %v625, %v993
        %v995 = vpop.f32.mrb[0].mxu0
        %996 = vmatprep.mubr.bf16.mxu0 0
        %997 = vmatmul.mubr.bf16.gmra.mrb[0].mxu0 %v926
        %v998 = vpop.f32.mrb[0].mxu0
        %v999 = vadd.f32 %v625, %v998
        %v1000 = vpop.f32.mrb[0].mxu0
        %v1001 = vpop.f32.mrb[0].mxu0
        %v1002 = vadd.f32 %v625, %v1001
        %v1003 = vpop.f32.mrb[0].mxu0
        %1004 = vmatprep.mubr.bf16.mxu0 0
        %1005 = vmatmul.mubr.bf16.gmra.mrb[0].mxu0 %v929
        %v1006 = vpop.f32.mrb[0].mxu0
        %v1007 = vadd.f32 %v625, %v1006
        %v1008 = vpop.f32.mrb[0].mxu0
        %v1009 = vpop.f32.mrb[0].mxu0
        %v1010 = vadd.f32 %v625, %v1009
        %v1011 = vpop.f32.mrb[0].mxu0
        %1012 = vmatprep.mubr.bf16.mxu0 0
        %1013 = vmatmul.mubr.bf16.gmra.mrb[0].mxu0 %v932
        %v1014 = vpop.f32.mrb[0].mxu0
        %v1015 = vadd.f32 %v625, %v1014
        %v1016 = vpop.f32.mrb[0].mxu0
        %v1017 = vpop.f32.mrb[0].mxu0
        %v1018 = vadd.f32 %v625, %v1017
        %v1019 = vpop.f32.mrb[0].mxu0
        %1020 = vmatprep.mubr.bf16.mxu0 0
        %1021 = vmatmul.mubr.bf16.gmra.mrb[0].mxu0 %v935
        %v1022 = vpop.f32.mrb[0].mxu0
        %v1023 = vadd.f32 %v625, %v1022
        %v1024 = vpop.f32.mrb[0].mxu0
        %v1025 = vpop.f32.mrb[0].mxu0
        %v1026 = vadd.f32 %v625, %v1025
        %v1027 = vpop.f32.mrb[0].mxu0
        %1028 = vmatprep.mubr.bf16.mxu0 0
        %1029 = vmatmul.mubr.bf16.gmra.mrb[0].mxu0 %v938
        %v1030 = vpop.f32.mrb[0].mxu0
        %v1031 = vadd.f32 %v625, %v1030
        %v1032 = vpop.f32.mrb[0].mxu0
        %v1033 = vpop.f32.mrb[0].mxu0
        %v1034 = vadd.f32 %v625, %v1033
        %v1035 = vpop.f32.mrb[0].mxu0
        %1036 = vdwg.mxu0
        %v1037 = vmax.f32 %v975, 0.0
        %v1038 = vmax.f32 %v978, 0.0
        %v1039 = vmax.f32 %v983, 0.0
        %v1040 = vmax.f32 %v986, 0.0
        %v1041 = vmax.f32 %v991, 0.0
        %v1042 = vmax.f32 %v994, 0.0
        %v1043 = vmax.f32 %v999, 0.0
        %v1044 = vmax.f32 %v1002, 0.0
        %v1045 = vmax.f32 %v1007, 0.0
        %v1046 = vmax.f32 %v1010, 0.0
        %v1047 = vmax.f32 %v1015, 0.0
        %v1048 = vmax.f32 %v1018, 0.0
        %v1049 = vmax.f32 %v1023, 0.0
        %v1050 = vmax.f32 %v1026, 0.0
        %v1051 = vmax.f32 %v1031, 0.0
        %v1052 = vmax.f32 %v1034, 0.0
        %v1053 = vmax.f32 %v843, %v1037
        %v1054 = vmax.f32 %v844, %v1038
        %v1055 = vmax.f32 %v845, %v1039
        %v1056 = vmax.f32 %v846, %v1040
        %v1057 = vmax.f32 %v847, %v1041
        %v1058 = vmax.f32 %v848, %v1042
        %v1059 = vmax.f32 %v849, %v1043
        %v1060 = vmax.f32 %v850, %v1044
        %v1061 = vmax.f32 %v851, %v1045
        %v1062 = vmax.f32 %v852, %v1046
        %v1063 = vmax.f32 %v853, %v1047
        %v1064 = vmax.f32 %v854, %v1048
        %v1065 = vmax.f32 %v855, %v1049
        %v1066 = vmax.f32 %v856, %v1050
        %v1067 = vmax.f32 %v857, %v1051
        %v1068 = vmax.f32 %v858, %v1052
        %s1069 = scalar_lea.vmem %s557, 128 [#allocation2]
        %v1070 = vld [vmem:[%s1069] sm:$0xf]
        %v1071 = vld [vmem:[%s1069 + $0x4] sm:$0xf]
        %v1072 = vld [vmem:[%s1069 + $0x8] sm:$0xf]
        %v1073 = vld [vmem:[%s1069 + $0xc] sm:$0xf]
        %v1074 = vld [vmem:[%s1069 + $0x10] sm:$0xf]
        %v1075 = vld [vmem:[%s1069 + $0x14] sm:$0xf]
        %v1076 = vld [vmem:[%s1069 + $0x18] sm:$0xf]
        %v1077 = vld [vmem:[%s1069 + $0x1c] sm:$0xf]
        %v1078 = vld [vmem:[%s1069 + $0x20] sm:$0xf]
        %v1079 = vld [vmem:[%s1069 + $0x24] sm:$0xf]
        %v1080 = vld [vmem:[%s1069 + $0x28] sm:$0xf]
        %v1081 = vld [vmem:[%s1069 + $0x2c] sm:$0xf]
        %v1082 = vld [vmem:[%s1069 + $0x30] sm:$0xf]
        %v1083 = vld [vmem:[%s1069 + $0x34] sm:$0xf]
        %v1084 = vld [vmem:[%s1069 + $0x38] sm:$0xf]
        %v1085 = vld [vmem:[%s1069 + $0x3c] sm:$0xf]
        %v1102 = vunpack.c.l.b16 %v1070
        %v1103 = vunpack.c.l.b16 %v1071
        %v1104 = vunpack.c.l.b16 %v1072
        %v1105 = vunpack.c.l.b16 %v1073
        %v1106 = vunpack.c.l.b16 %v1074
        %v1107 = vunpack.c.l.b16 %v1075
        %v1108 = vunpack.c.l.b16 %v1076
        %v1109 = vunpack.c.l.b16 %v1077
        %v1110 = vunpack.c.l.b16 %v1078
        %v1111 = vunpack.c.l.b16 %v1079
        %v1112 = vunpack.c.l.b16 %v1080
        %v1113 = vunpack.c.l.b16 %v1081
        %v1114 = vunpack.c.l.b16 %v1082
        %v1115 = vunpack.c.l.b16 %v1083
        %v1116 = vunpack.c.l.b16 %v1084
        %v1117 = vunpack.c.l.b16 %v1085
        %v1118 = vpack.c.b16 %v1103, %v1102
        %v1119 = vpack.c.b16 %v1105, %v1104
        %v1120 = vpack.c.b16 %v1107, %v1106
        %v1121 = vpack.c.b16 %v1109, %v1108
        %v1122 = vpack.c.b16 %v1111, %v1110
        %v1123 = vpack.c.b16 %v1113, %v1112
        %v1124 = vpack.c.b16 %v1115, %v1114
        %v1125 = vpack.c.b16 %v1117, %v1116
        %v1127 = vsel %vm714, %v1118, 0
        %v1130 = vsel %vm714, %v1119, 0
        %v1133 = vsel %vm714, %v1120, 0
        %v1136 = vsel %vm714, %v1121, 0
        %v1139 = vsel %vm714, %v1122, 0
        %v1142 = vsel %vm714, %v1123, 0
        %v1145 = vsel %vm714, %v1124, 0
        %v1148 = vsel %vm714, %v1125, 0
        %1150 = vmatprep.subr.bf16.mxu0 0
        %1151 = vmatpush1.bf16.msra.mxu0 %v699
        %1152 = vmatprep.subr.bf16.mxu0 0
        %1153 = vmatpush1.bf16.msra.mxu0 %v700
        %1154 = vmatprep.subr.bf16.mxu0 0
        %1155 = vmatpush1.bf16.msra.mxu0 %v701
        %1156 = vmatprep.subr.bf16.mxu0 0
        %1157 = vmatpush1.bf16.msra.mxu0 %v702
        %1158 = vmatprep.subr.bf16.mxu0 0
        %1159 = vmatpush1.bf16.msra.mxu0 %v703
        %1160 = vmatprep.subr.bf16.mxu0 0
        %1161 = vmatpush1.bf16.msra.mxu0 %v704
        %1162 = vmatprep.subr.bf16.mxu0 0
        %1163 = vmatpush1.bf16.msra.mxu0 %v705
        %1164 = vmatprep.subr.bf16.mxu0 0
        %1165 = vmatpush1.bf16.msra.mxu0 %v744
        %1166 = vmatprep.subr.bf16.mxu0 0
        %1167 = vmatpush1.bf16.msra.mxu0 0
        %1168 = vmatprep.subr.bf16.mxu0 0
        %1169 = vmatpush1.bf16.msra.mxu0 0
        %1170 = vmatprep.subr.bf16.mxu0 0
        %1171 = vmatpush1.bf16.msra.mxu0 0
        %1172 = vmatprep.subr.bf16.mxu0 0
        %1173 = vmatpush1.bf16.msra.mxu0 0
        %1174 = vmatprep.subr.bf16.mxu0 0
        %1175 = vmatpush1.bf16.msra.mxu0 0
        %1176 = vmatprep.subr.bf16.mxu0 0
        %1177 = vmatpush1.bf16.msra.mxu0 0
        %1178 = vmatprep.subr.bf16.mxu0 0
        %1179 = vmatpush1.bf16.msra.mxu0 0
        %1180 = vmatprep.subr.bf16.mxu0 0
        %1181 = vmatpush1.bf16.msra.mxu0 0
        %1182 = vmatprep.mubr.bf16.mxu0 0
        %1183 = vmatmul.mubr.bf16.gmra.mrb[0].mxu0 %v1127
        %v1184 = vpop.f32.mrb[0].mxu0
        %v1185 = vadd.f32 %v625, %v1184
        %v1186 = vpop.f32.mrb[0].mxu0
        %v1187 = vpop.f32.mrb[0].mxu0
        %v1188 = vadd.f32 %v625, %v1187
        %v1189 = vpop.f32.mrb[0].mxu0
        %1190 = vmatprep.mubr.bf16.mxu0 0
        %1191 = vmatmul.mubr.bf16.gmra.mrb[0].mxu0 %v1130
        %v1192 = vpop.f32.mrb[0].mxu0
        %v1193 = vadd.f32 %v625, %v1192
        %v1194 = vpop.f32.mrb[0].mxu0
        %v1195 = vpop.f32.mrb[0].mxu0
        %v1196 = vadd.f32 %v625, %v1195
        %v1197 = vpop.f32.mrb[0].mxu0
        %1198 = vmatprep.mubr.bf16.mxu0 0
        %1199 = vmatmul.mubr.bf16.gmra.mrb[0].mxu0 %v1133
        %v1200 = vpop.f32.mrb[0].mxu0
        %v1201 = vadd.f32 %v625, %v1200
        %v1202 = vpop.f32.mrb[0].mxu0
        %v1203 = vpop.f32.mrb[0].mxu0
        %v1204 = vadd.f32 %v625, %v1203
        %v1205 = vpop.f32.mrb[0].mxu0
        %1206 = vmatprep.mubr.bf16.mxu0 0
        %1207 = vmatmul.mubr.bf16.gmra.mrb[0].mxu0 %v1136
        %v1208 = vpop.f32.mrb[0].mxu0
        %v1209 = vadd.f32 %v625, %v1208
        %v1210 = vpop.f32.mrb[0].mxu0
        %v1211 = vpop.f32.mrb[0].mxu0
        %v1212 = vadd.f32 %v625, %v1211
        %v1213 = vpop.f32.mrb[0].mxu0
        %1214 = vmatprep.mubr.bf16.mxu0 0
        %1215 = vmatmul.mubr.bf16.gmra.mrb[0].mxu0 %v1139
        %v1216 = vpop.f32.mrb[0].mxu0
        %v1217 = vadd.f32 %v625, %v1216
        %v1218 = vpop.f32.mrb[0].mxu0
        %v1219 = vpop.f32.mrb[0].mxu0
        %v1220 = vadd.f32 %v625, %v1219
        %v1221 = vpop.f32.mrb[0].mxu0
        %1222 = vmatprep.mubr.bf16.mxu0 0
        %1223 = vmatmul.mubr.bf16.gmra.mrb[0].mxu0 %v1142
        %v1224 = vpop.f32.mrb[0].mxu0
        %v1225 = vadd.f32 %v625, %v1224
        %v1226 = vpop.f32.mrb[0].mxu0
        %v1227 = vpop.f32.mrb[0].mxu0
        %v1228 = vadd.f32 %v625, %v1227
        %v1229 = vpop.f32.mrb[0].mxu0
        %1230 = vmatprep.mubr.bf16.mxu0 0
        %1231 = vmatmul.mubr.bf16.gmra.mrb[0].mxu0 %v1145
        %v1232 = vpop.f32.mrb[0].mxu0
        %v1233 = vadd.f32 %v625, %v1232
        %v1234 = vpop.f32.mrb[0].mxu0
        %v1235 = vpop.f32.mrb[0].mxu0
        %v1236 = vadd.f32 %v625, %v1235
        %v1237 = vpop.f32.mrb[0].mxu0
        %1238 = vmatprep.mubr.bf16.mxu0 0
        %1239 = vmatmul.mubr.bf16.gmra.mrb[0].mxu0 %v1148
        %v1240 = vpop.f32.mrb[0].mxu0
        %v1241 = vadd.f32 %v625, %v1240
        %v1242 = vpop.f32.mrb[0].mxu0
        %v1243 = vpop.f32.mrb[0].mxu0
        %v1244 = vadd.f32 %v625, %v1243
        %v1245 = vpop.f32.mrb[0].mxu0
        %1246 = vdwg.mxu0
        %v1247 = vmax.f32 %v1185, 0.0
        %v1248 = vmax.f32 %v1188, 0.0
        %v1249 = vmax.f32 %v1193, 0.0
        %v1250 = vmax.f32 %v1196, 0.0
        %v1251 = vmax.f32 %v1201, 0.0
        %v1252 = vmax.f32 %v1204, 0.0
        %v1253 = vmax.f32 %v1209, 0.0
        %v1254 = vmax.f32 %v1212, 0.0
        %v1255 = vmax.f32 %v1217, 0.0
        %v1256 = vmax.f32 %v1220, 0.0
        %v1257 = vmax.f32 %v1225, 0.0
        %v1258 = vmax.f32 %v1228, 0.0
        %v1259 = vmax.f32 %v1233, 0.0
        %v1260 = vmax.f32 %v1236, 0.0
        %v1261 = vmax.f32 %v1241, 0.0
        %v1262 = vmax.f32 %v1244, 0.0
        %s1263 = scalar_lea.vmem %s557, 192 [#allocation2]
        %v1264 = vld [vmem:[%s1263] sm:$0xf]
        %v1265 = vld [vmem:[%s1263 + $0x4] sm:$0xf]
        %v1266 = vld [vmem:[%s1263 + $0x8] sm:$0xf]
        %v1267 = vld [vmem:[%s1263 + $0xc] sm:$0xf]
        %v1268 = vld [vmem:[%s1263 + $0x10] sm:$0xf]
        %v1269 = vld [vmem:[%s1263 + $0x14] sm:$0xf]
        %v1270 = vld [vmem:[%s1263 + $0x18] sm:$0xf]
        %v1271 = vld [vmem:[%s1263 + $0x1c] sm:$0xf]
        %v1272 = vld [vmem:[%s1263 + $0x20] sm:$0xf]
        %v1273 = vld [vmem:[%s1263 + $0x24] sm:$0xf]
        %v1274 = vld [vmem:[%s1263 + $0x28] sm:$0xf]
        %v1275 = vld [vmem:[%s1263 + $0x2c] sm:$0xf]
        %v1276 = vld [vmem:[%s1263 + $0x30] sm:$0xf]
        %v1277 = vld [vmem:[%s1263 + $0x34] sm:$0xf]
        %v1278 = vld [vmem:[%s1263 + $0x38] sm:$0xf]
        %v1279 = vld [vmem:[%s1263 + $0x3c] sm:$0xf]
        %v1296 = vunpack.c.l.b16 %v1264
        %v1297 = vunpack.c.l.b16 %v1265
        %v1298 = vunpack.c.l.b16 %v1266
        %v1299 = vunpack.c.l.b16 %v1267
        %v1300 = vunpack.c.l.b16 %v1268
        %v1301 = vunpack.c.l.b16 %v1269
        %v1302 = vunpack.c.l.b16 %v1270
        %v1303 = vunpack.c.l.b16 %v1271
        %v1304 = vunpack.c.l.b16 %v1272
        %v1305 = vunpack.c.l.b16 %v1273
        %v1306 = vunpack.c.l.b16 %v1274
        %v1307 = vunpack.c.l.b16 %v1275
        %v1308 = vunpack.c.l.b16 %v1276
        %v1309 = vunpack.c.l.b16 %v1277
        %v1310 = vunpack.c.l.b16 %v1278
        %v1311 = vunpack.c.l.b16 %v1279
        %v1312 = vpack.c.b16 %v1297, %v1296
        %v1313 = vpack.c.b16 %v1299, %v1298
        %v1314 = vpack.c.b16 %v1301, %v1300
        %v1315 = vpack.c.b16 %v1303, %v1302
        %v1316 = vpack.c.b16 %v1305, %v1304
        %v1317 = vpack.c.b16 %v1307, %v1306
        %v1318 = vpack.c.b16 %v1309, %v1308
        %v1319 = vpack.c.b16 %v1311, %v1310
        %v1321 = vsel %vm714, %v1312, 0
        %v1324 = vsel %vm714, %v1313, 0
        %v1327 = vsel %vm714, %v1314, 0
        %v1330 = vsel %vm714, %v1315, 0
        %v1333 = vsel %vm714, %v1316, 0
        %v1336 = vsel %vm714, %v1317, 0
        %v1339 = vsel %vm714, %v1318, 0
        %v1342 = vsel %vm714, %v1319, 0
        %1344 = vmatprep.subr.bf16.mxu0 0
        %1345 = vmatpush1.bf16.msra.mxu0 %v699
        %1346 = vmatprep.subr.bf16.mxu0 0
        %1347 = vmatpush1.bf16.msra.mxu0 %v700
        %1348 = vmatprep.subr.bf16.mxu0 0
        %1349 = vmatpush1.bf16.msra.mxu0 %v701
        %1350 = vmatprep.subr.bf16.mxu0 0
        %1351 = vmatpush1.bf16.msra.mxu0 %v702
        %1352 = vmatprep.subr.bf16.mxu0 0
        %1353 = vmatpush1.bf16.msra.mxu0 %v703
        %1354 = vmatprep.subr.bf16.mxu0 0
        %1355 = vmatpush1.bf16.msra.mxu0 %v704
        %1356 = vmatprep.subr.bf16.mxu0 0
        %1357 = vmatpush1.bf16.msra.mxu0 %v705
        %1358 = vmatprep.subr.bf16.mxu0 0
        %1359 = vmatpush1.bf16.msra.mxu0 %v744
        %1360 = vmatprep.subr.bf16.mxu0 0
        %1361 = vmatpush1.bf16.msra.mxu0 0
        %1362 = vmatprep.subr.bf16.mxu0 0
        %1363 = vmatpush1.bf16.msra.mxu0 0
        %1364 = vmatprep.subr.bf16.mxu0 0
        %1365 = vmatpush1.bf16.msra.mxu0 0
        %1366 = vmatprep.subr.bf16.mxu0 0
        %1367 = vmatpush1.bf16.msra.mxu0 0
        %1368 = vmatprep.subr.bf16.mxu0 0
        %1369 = vmatpush1.bf16.msra.mxu0 0
        %1370 = vmatprep.subr.bf16.mxu0 0
        %1371 = vmatpush1.bf16.msra.mxu0 0
        %1372 = vmatprep.subr.bf16.mxu0 0
        %1373 = vmatpush1.bf16.msra.mxu0 0
        %1374 = vmatprep.subr.bf16.mxu0 0
        %1375 = vmatpush1.bf16.msra.mxu0 0
        %1376 = vmatprep.mubr.bf16.mxu0 0
        %1377 = vmatmul.mubr.bf16.gmra.mrb[0].mxu0 %v1321
        %v1378 = vpop.f32.mrb[0].mxu0
        %v1379 = vadd.f32 %v625, %v1378
        %v1380 = vpop.f32.mrb[0].mxu0
        %v1381 = vpop.f32.mrb[0].mxu0
        %v1382 = vadd.f32 %v625, %v1381
        %v1383 = vpop.f32.mrb[0].mxu0
        %1384 = vmatprep.mubr.bf16.mxu0 0
        %1385 = vmatmul.mubr.bf16.gmra.mrb[0].mxu0 %v1324
        %v1386 = vpop.f32.mrb[0].mxu0
        %v1387 = vadd.f32 %v625, %v1386
        %v1388 = vpop.f32.mrb[0].mxu0
        %v1389 = vpop.f32.mrb[0].mxu0
        %v1390 = vadd.f32 %v625, %v1389
        %v1391 = vpop.f32.mrb[0].mxu0
        %1392 = vmatprep.mubr.bf16.mxu0 0
        %1393 = vmatmul.mubr.bf16.gmra.mrb[0].mxu0 %v1327
        %v1394 = vpop.f32.mrb[0].mxu0
        %v1395 = vadd.f32 %v625, %v1394
        %v1396 = vpop.f32.mrb[0].mxu0
        %v1397 = vpop.f32.mrb[0].mxu0
        %v1398 = vadd.f32 %v625, %v1397
        %v1399 = vpop.f32.mrb[0].mxu0
        %1400 = vmatprep.mubr.bf16.mxu0 0
        %1401 = vmatmul.mubr.bf16.gmra.mrb[0].mxu0 %v1330
        %v1402 = vpop.f32.mrb[0].mxu0
        %v1403 = vadd.f32 %v625, %v1402
        %v1404 = vpop.f32.mrb[0].mxu0
        %v1405 = vpop.f32.mrb[0].mxu0
        %v1406 = vadd.f32 %v625, %v1405
        %v1407 = vpop.f32.mrb[0].mxu0
        %1408 = vmatprep.mubr.bf16.mxu0 0
        %1409 = vmatmul.mubr.bf16.gmra.mrb[0].mxu0 %v1333
        %v1410 = vpop.f32.mrb[0].mxu0
        %v1411 = vadd.f32 %v625, %v1410
        %v1412 = vpop.f32.mrb[0].mxu0
        %v1413 = vpop.f32.mrb[0].mxu0
        %v1414 = vadd.f32 %v625, %v1413
        %v1415 = vpop.f32.mrb[0].mxu0
        %1416 = vmatprep.mubr.bf16.mxu0 0
        %1417 = vmatmul.mubr.bf16.gmra.mrb[0].mxu0 %v1336
        %v1418 = vpop.f32.mrb[0].mxu0
        %v1419 = vadd.f32 %v625, %v1418
        %v1420 = vpop.f32.mrb[0].mxu0
        %v1421 = vpop.f32.mrb[0].mxu0
        %v1422 = vadd.f32 %v625, %v1421
        %v1423 = vpop.f32.mrb[0].mxu0
        %1424 = vmatprep.mubr.bf16.mxu0 0
        %1425 = vmatmul.mubr.bf16.gmra.mrb[0].mxu0 %v1339
        %v1426 = vpop.f32.mrb[0].mxu0
        %v1427 = vadd.f32 %v625, %v1426
        %v1428 = vpop.f32.mrb[0].mxu0
        %v1429 = vpop.f32.mrb[0].mxu0
        %v1430 = vadd.f32 %v625, %v1429
        %v1431 = vpop.f32.mrb[0].mxu0
        %1432 = vmatprep.mubr.bf16.mxu0 0
        %1433 = vmatmul.mubr.bf16.gmra.mrb[0].mxu0 %v1342
        %v1434 = vpop.f32.mrb[0].mxu0
        %v1435 = vadd.f32 %v625, %v1434
        %v1436 = vpop.f32.mrb[0].mxu0
        %v1437 = vpop.f32.mrb[0].mxu0
        %v1438 = vadd.f32 %v625, %v1437
        %v1439 = vpop.f32.mrb[0].mxu0
        %1440 = vdwg.mxu0
        %v1441 = vmax.f32 %v1379, 0.0
        %v1442 = vmax.f32 %v1382, 0.0
        %v1443 = vmax.f32 %v1387, 0.0
        %v1444 = vmax.f32 %v1390, 0.0
        %v1445 = vmax.f32 %v1395, 0.0
        %v1446 = vmax.f32 %v1398, 0.0
        %v1447 = vmax.f32 %v1403, 0.0
        %v1448 = vmax.f32 %v1406, 0.0
        %v1449 = vmax.f32 %v1411, 0.0
        %v1450 = vmax.f32 %v1414, 0.0
        %v1451 = vmax.f32 %v1419, 0.0
        %v1452 = vmax.f32 %v1422, 0.0
        %v1453 = vmax.f32 %v1427, 0.0
        %v1454 = vmax.f32 %v1430, 0.0
        %v1455 = vmax.f32 %v1435, 0.0
        %v1456 = vmax.f32 %v1438, 0.0
        %v1457 = vmax.f32 %v1247, %v1441
        %v1458 = vmax.f32 %v1248, %v1442
        %v1459 = vmax.f32 %v1249, %v1443
        %v1460 = vmax.f32 %v1250, %v1444
        %v1461 = vmax.f32 %v1251, %v1445
        %v1462 = vmax.f32 %v1252, %v1446
        %v1463 = vmax.f32 %v1253, %v1447
        %v1464 = vmax.f32 %v1254, %v1448
        %v1465 = vmax.f32 %v1255, %v1449
        %v1466 = vmax.f32 %v1256, %v1450
        %v1467 = vmax.f32 %v1257, %v1451
        %v1468 = vmax.f32 %v1258, %v1452
        %v1469 = vmax.f32 %v1259, %v1453
        %v1470 = vmax.f32 %v1260, %v1454
        %v1471 = vmax.f32 %v1261, %v1455
        %v1472 = vmax.f32 %v1262, %v1456
        %v1473 = vmax.f32 %v1053, %v1457
        %v1474 = vmax.f32 %v1054, %v1458
        %v1475 = vmax.f32 %v1055, %v1459
        %v1476 = vmax.f32 %v1056, %v1460
        %v1477 = vmax.f32 %v1057, %v1461
        %v1478 = vmax.f32 %v1058, %v1462
        %v1479 = vmax.f32 %v1059, %v1463
        %v1480 = vmax.f32 %v1060, %v1464
        %v1481 = vmax.f32 %v1061, %v1465
        %v1482 = vmax.f32 %v1062, %v1466
        %v1483 = vmax.f32 %v1063, %v1467
        %v1484 = vmax.f32 %v1064, %v1468
        %v1485 = vmax.f32 %v1065, %v1469
        %v1486 = vmax.f32 %v1066, %v1470
        %v1487 = vmax.f32 %v1067, %v1471
        %v1488 = vmax.f32 %v1068, %v1472
        %v1489 = vpack.c.bf16 %v1474, %v1473
        %v1490 = vpack.c.bf16 %v1476, %v1475
        %v1491 = vpack.c.bf16 %v1478, %v1477
        %v1492 = vpack.c.bf16 %v1480, %v1479
        %v1493 = vpack.c.bf16 %v1482, %v1481
        %v1494 = vpack.c.bf16 %v1484, %v1483
        %v1495 = vpack.c.bf16 %v1486, %v1485
        %v1496 = vpack.c.bf16 %v1488, %v1487
        %v1505 = vunpack.c.l.b16 %v1489
        %v1506 = vunpack.c.h.b16 %v1489
        %v1507 = vunpack.c.l.b16 %v1490
        %v1508 = vunpack.c.h.b16 %v1490
        %v1509 = vunpack.c.l.b16 %v1491
        %v1510 = vunpack.c.h.b16 %v1491
        %v1511 = vunpack.c.l.b16 %v1492
        %v1512 = vunpack.c.h.b16 %v1492
        %v1513 = vunpack.c.l.b16 %v1493
        %v1514 = vunpack.c.h.b16 %v1493
        %v1515 = vunpack.c.l.b16 %v1494
        %v1516 = vunpack.c.h.b16 %v1494
        %v1517 = vunpack.c.l.b16 %v1495
        %v1518 = vunpack.c.h.b16 %v1495
        %v1519 = vunpack.c.l.b16 %v1496
        %v1520 = vunpack.c.h.b16 %v1496
        %v1521 = vpack.c.b16 %v1505, %v1505
        %v1522 = vpack.c.b16 %v1506, %v1506
        %v1523 = vpack.c.b16 %v1507, %v1507
        %v1524 = vpack.c.b16 %v1508, %v1508
        %v1525 = vpack.c.b16 %v1509, %v1509
        %v1526 = vpack.c.b16 %v1510, %v1510
        %v1527 = vpack.c.b16 %v1511, %v1511
        %v1528 = vpack.c.b16 %v1512, %v1512
        %v1529 = vpack.c.b16 %v1513, %v1513
        %v1530 = vpack.c.b16 %v1514, %v1514
        %v1531 = vpack.c.b16 %v1515, %v1515
        %v1532 = vpack.c.b16 %v1516, %v1516
        %v1533 = vpack.c.b16 %v1517, %v1517
        %v1534 = vpack.c.b16 %v1518, %v1518
        %v1535 = vpack.c.b16 %v1519, %v1519
        %v1536 = vpack.c.b16 %v1520, %v1520
        %vm1553 = vcmask 76800
        %1554 = vst.msk [vmem:[%s576] sm:$0xf] %vm1553, %v1521
        %1555 = vst.msk [vmem:[%s576 + $0x4] sm:$0xf] %vm1553, %v1522
        %1556 = vst.msk [vmem:[%s576 + $0x8] sm:$0xf] %vm1553, %v1523
        %1557 = vst.msk [vmem:[%s576 + $0xc] sm:$0xf] %vm1553, %v1524
        %1558 = vst.msk [vmem:[%s576 + $0x10] sm:$0xf] %vm1553, %v1525
        %1559 = vst.msk [vmem:[%s576 + $0x14] sm:$0xf] %vm1553, %v1526
        %1560 = vst.msk [vmem:[%s576 + $0x18] sm:$0xf] %vm1553, %v1527
        %1561 = vst.msk [vmem:[%s576 + $0x1c] sm:$0xf] %vm1553, %v1528
        %1562 = vst.msk [vmem:[%s576 + $0x20] sm:$0xf] %vm1553, %v1529
        %1563 = vst.msk [vmem:[%s576 + $0x24] sm:$0xf] %vm1553, %v1530
        %1564 = vst.msk [vmem:[%s576 + $0x28] sm:$0xf] %vm1553, %v1531
        %1565 = vst.msk [vmem:[%s576 + $0x2c] sm:$0xf] %vm1553, %v1532
        %1566 = vst.msk [vmem:[%s576 + $0x30] sm:$0xf] %vm1553, %v1533
        %1567 = vst.msk [vmem:[%s576 + $0x34] sm:$0xf] %vm1553, %v1534
        %1568 = vst.msk [vmem:[%s576 + $0x38] sm:$0xf] %vm1553, %v1535
        %1569 = vst.msk [vmem:[%s576 + $0x3c] sm:$0xf] %vm1553, %v1536
        %s1570 = sand.u32 %s90, 1
        %s1571 = sand.u32 %s90, 1
        %s1572 = smul.addr %s1571, 64
        %s1573 = scalar_lea.vmem [#allocation3], %s1572
        // Predicated region
        $region95: #{lenet_forward.9} parent=89 // pred_check
          %p1574 = pneg %p100
        $region96: #{lenet_forward.9} parent=89 // pred_check_branch
          %1576 = sbr.rel (%p1574) target = $region98
        $region97: #{lenet_forward.9} parent=89 // pred_region
          %s1577 = smul.u32 16, %s14
          %s1578 = ssub.s32 21, %s1577
          %p1579 = scmp.lt.s32.totalorder %s1578, 16
          %s1580 = scalar_select %p1579, %s1578, 16
          %s1581 = smul.u32 64, %s1580
          %p1582 = scmp.ne.s32.totalorder 0, %s1581
          %s1583 = smul.addr %s1577, 4
          %s1584 = scalar_lea.vmem %s3, %s1583
          // Predicated region
          $region99: #{lenet_forward.9} parent=97 // pred_check
            %p1585 = pneg %p1582
          $region100: #{lenet_forward.9} parent=97 // pred_check_branch
            %1587 = sbr.rel (%p1585) target = $region102
          $region101: #{lenet_forward.9} parent=97 // pred_region
            // Predicated region
            $region103: #{lenet_forward.9} parent=101 // pred_check
              _
            $region104: #{lenet_forward.9} parent=101 // pred_check_branch
              %1589 = sbr.rel target = $region106
            $region105: #{lenet_forward.9} parent=101 // pred_region
              // Predicated region
              $region125: #{lenet_forward.9} parent=105 // pred_check
                _
              $region126: #{lenet_forward.9} parent=105 // pred_check_branch
                %1668 = sbr.rel (0) target = $region128
              $region127: #{lenet_forward.9} parent=105 // pred_region
                %s1670 = sshrl.u32 %s1580, 4
                // While loop
                $region129: #{lenet_forward.9} parent=127 // loop_pre_header
                  _
                $region130: #{lenet_forward.9} parent=127 // loop_header
                  %s1672 = sphi 0, %s1674
                  %p1673 = scmp.ge.s32.totalorder %s1672, %s1670
                  %s1677 = sphi 0, %s1714
                  %s1678 = sphi %s1573, %s1717
                  %s1679 = sphi %s1584, %s1718
                $region131: #{lenet_forward.9} parent=127 // loop_header_branch
                  %1676 = sbr.rel (%p1673) target = $region135
                $region132: #{lenet_forward.9} parent=127 // loop_body
                  %v1680 = vld [vmem:[%s1678] sm:$0xf]
                  %1681 = vst [vmem:[%s1679] sm:$0xf] %v1680
                  %v1682 = vld [vmem:[%s1678 + $0x4] sm:$0xf]
                  %1683 = vst [vmem:[%s1679 + $0x4] sm:$0xf] %v1682
                  %v1684 = vld [vmem:[%s1678 + $0x8] sm:$0xf]
                  %1685 = vst [vmem:[%s1679 + $0x8] sm:$0xf] %v1684
                  %v1686 = vld [vmem:[%s1678 + $0xc] sm:$0xf]
                  %1687 = vst [vmem:[%s1679 + $0xc] sm:$0xf] %v1686
                  %v1688 = vld [vmem:[%s1678 + $0x10] sm:$0xf]
                  %1689 = vst [vmem:[%s1679 + $0x10] sm:$0xf] %v1688
                  %v1690 = vld [vmem:[%s1678 + $0x14] sm:$0xf]
                  %1691 = vst [vmem:[%s1679 + $0x14] sm:$0xf] %v1690
                  %v1692 = vld [vmem:[%s1678 + $0x18] sm:$0xf]
                  %1693 = vst [vmem:[%s1679 + $0x18] sm:$0xf] %v1692
                  %v1694 = vld [vmem:[%s1678 + $0x1c] sm:$0xf]
                  %1695 = vst [vmem:[%s1679 + $0x1c] sm:$0xf] %v1694
                  %v1696 = vld [vmem:[%s1678 + $0x20] sm:$0xf]
                  %1697 = vst [vmem:[%s1679 + $0x20] sm:$0xf] %v1696
                  %v1698 = vld [vmem:[%s1678 + $0x24] sm:$0xf]
                  %1699 = vst [vmem:[%s1679 + $0x24] sm:$0xf] %v1698
                  %v1700 = vld [vmem:[%s1678 + $0x28] sm:$0xf]
                  %1701 = vst [vmem:[%s1679 + $0x28] sm:$0xf] %v1700
                  %v1702 = vld [vmem:[%s1678 + $0x2c] sm:$0xf]
                  %1703 = vst [vmem:[%s1679 + $0x2c] sm:$0xf] %v1702
                  %v1704 = vld [vmem:[%s1678 + $0x30] sm:$0xf]
                  %1705 = vst [vmem:[%s1679 + $0x30] sm:$0xf] %v1704
                  %v1706 = vld [vmem:[%s1678 + $0x34] sm:$0xf]
                  %1707 = vst [vmem:[%s1679 + $0x34] sm:$0xf] %v1706
                  %v1708 = vld [vmem:[%s1678 + $0x38] sm:$0xf]
                  %1709 = vst [vmem:[%s1679 + $0x38] sm:$0xf] %v1708
                  %v1710 = vld [vmem:[%s1678 + $0x3c] sm:$0xf]
                  %1711 = vst [vmem:[%s1679 + $0x3c] sm:$0xf] %v1710
                  %s1712 = sadd.s32 1, %s1677
                  %p1713 = scmp.ge.s32.totalorder %s1712, %s1670
                  %s1714 = scalar_select %p1713, 0, %s1712
                  %s1715 = smul.u32 %s1714, 64
                  %s1716 = smul.u32 %s1714, 64
                  %s1717 = scalar_lea.vmem %s1573, %s1715 [#allocation3]
                  %s1718 = scalar_lea.vmem %s1584, %s1716
                $region133: #{lenet_forward.9} parent=127 // loop_footer
                  %s1674 = sadd.s32 %s1672, 1
                $region134: #{lenet_forward.9} parent=127 // loop_footer_branch
                  %1671 = sbr.rel target = $region130
                $region135: #{lenet_forward.9} parent=127 // loop_exit
                  _
                %s1719 = sshrl.u32 %s1580, 4
                %s1720 = sand.u32 %s1580, 15
                %s1721 = smul.u32 %s1719, 16
                %s1722 = smul.u32 4, %s1721
                %s1723 = scalar_lea.vmem %s1573, %s1722 [#allocation3]
                %s1724 = smul.u32 4, %s1721
                %s1725 = scalar_lea.vmem %s1584, %s1724
                // While loop
                $region136: #{lenet_forward.9} parent=127 // loop_pre_header
                  _
                $region137: #{lenet_forward.9} parent=127 // loop_header
                  %s1727 = sphi 0, %s1729
                  %p1728 = scmp.ge.s32.totalorder %s1727, %s1720
                  %s1732 = sphi 0, %s1739
                  %s1733 = sphi %s1723, %s1742
                  %s1734 = sphi %s1725, %s1743
                $region138: #{lenet_forward.9} parent=127 // loop_header_branch
                  %1731 = sbr.rel (%p1728) target = $region142
                $region139: #{lenet_forward.9} parent=127 // loop_body
                  %v1735 = vld [vmem:[%s1733] sm:$0xf]
                  %1736 = vst [vmem:[%s1734] sm:$0xf] %v1735
                  %s1737 = sadd.s32 1, %s1732
                  %p1738 = scmp.ge.s32.totalorder %s1737, %s1720
                  %s1739 = scalar_select %p1738, 0, %s1737
                  %s1740 = smul.u32 %s1739, 4
                  %s1741 = smul.u32 %s1739, 4
                  %s1742 = scalar_lea.vmem %s1723, %s1740 [#allocation3]
                  %s1743 = scalar_lea.vmem %s1725, %s1741
                $region140: #{lenet_forward.9} parent=127 // loop_footer
                  %s1729 = sadd.s32 %s1727, 1
                $region141: #{lenet_forward.9} parent=127 // loop_footer_branch
                  %1726 = sbr.rel target = $region137
                $region142: #{lenet_forward.9} parent=127 // loop_exit
                  _
              $region128: #{lenet_forward.9} parent=105 // pred_fallthru
                _
            $region106: #{lenet_forward.9} parent=101 // pred_fallthru
              _
            // Predicated region
            $region107: #{lenet_forward.9} parent=101 // pred_check
              _
            $region108: #{lenet_forward.9} parent=101 // pred_check_branch
              %1591 = sbr.rel (0) target = $region110
            $region109: #{lenet_forward.9} parent=101 // pred_region
              %s1593 = sshrl.u32 %s1580, 4
              // While loop
              $region111: #{lenet_forward.9} parent=109 // loop_pre_header
                _
              $region112: #{lenet_forward.9} parent=109 // loop_header
                %s1595 = sphi 0, %s1597
                %p1596 = scmp.ge.s32.totalorder %s1595, %s1593
                %s1600 = sphi 0, %s1637
                %s1601 = sphi %s1573, %s1640
                %s1602 = sphi %s1584, %s1641
              $region113: #{lenet_forward.9} parent=109 // loop_header_branch
                %1599 = sbr.rel (%p1596) target = $region117
              $region114: #{lenet_forward.9} parent=109 // loop_body
                %v1603 = vld [vmem:[%s1601] sm:$0xf]
                %1604 = vst [vmem:[%s1602] sm:$0xf] %v1603
                %v1605 = vld [vmem:[%s1601 + $0x4] sm:$0xf]
                %1606 = vst [vmem:[%s1602 + $0x4] sm:$0xf] %v1605
                %v1607 = vld [vmem:[%s1601 + $0x8] sm:$0xf]
                %1608 = vst [vmem:[%s1602 + $0x8] sm:$0xf] %v1607
                %v1609 = vld [vmem:[%s1601 + $0xc] sm:$0xf]
                %1610 = vst [vmem:[%s1602 + $0xc] sm:$0xf] %v1609
                %v1611 = vld [vmem:[%s1601 + $0x10] sm:$0xf]
                %1612 = vst [vmem:[%s1602 + $0x10] sm:$0xf] %v1611
                %v1613 = vld [vmem:[%s1601 + $0x14] sm:$0xf]
                %1614 = vst [vmem:[%s1602 + $0x14] sm:$0xf] %v1613
                %v1615 = vld [vmem:[%s1601 + $0x18] sm:$0xf]
                %1616 = vst [vmem:[%s1602 + $0x18] sm:$0xf] %v1615
                %v1617 = vld [vmem:[%s1601 + $0x1c] sm:$0xf]
                %1618 = vst [vmem:[%s1602 + $0x1c] sm:$0xf] %v1617
                %v1619 = vld [vmem:[%s1601 + $0x20] sm:$0xf]
                %1620 = vst [vmem:[%s1602 + $0x20] sm:$0xf] %v1619
                %v1621 = vld [vmem:[%s1601 + $0x24] sm:$0xf]
                %1622 = vst [vmem:[%s1602 + $0x24] sm:$0xf] %v1621
                %v1623 = vld [vmem:[%s1601 + $0x28] sm:$0xf]
                %1624 = vst [vmem:[%s1602 + $0x28] sm:$0xf] %v1623
                %v1625 = vld [vmem:[%s1601 + $0x2c] sm:$0xf]
                %1626 = vst [vmem:[%s1602 + $0x2c] sm:$0xf] %v1625
                %v1627 = vld [vmem:[%s1601 + $0x30] sm:$0xf]
                %1628 = vst [vmem:[%s1602 + $0x30] sm:$0xf] %v1627
                %v1629 = vld [vmem:[%s1601 + $0x34] sm:$0xf]
                %1630 = vst [vmem:[%s1602 + $0x34] sm:$0xf] %v1629
                %v1631 = vld [vmem:[%s1601 + $0x38] sm:$0xf]
                %1632 = vst [vmem:[%s1602 + $0x38] sm:$0xf] %v1631
                %v1633 = vld [vmem:[%s1601 + $0x3c] sm:$0xf]
                %1634 = vst [vmem:[%s1602 + $0x3c] sm:$0xf] %v1633
                %s1635 = sadd.s32 1, %s1600
                %p1636 = scmp.ge.s32.totalorder %s1635, %s1593
                %s1637 = scalar_select %p1636, 0, %s1635
                %s1638 = smul.u32 %s1637, 64
                %s1639 = smul.u32 %s1637, 64
                %s1640 = scalar_lea.vmem %s1573, %s1638 [#allocation3]
                %s1641 = scalar_lea.vmem %s1584, %s1639
              $region115: #{lenet_forward.9} parent=109 // loop_footer
                %s1597 = sadd.s32 %s1595, 1
              $region116: #{lenet_forward.9} parent=109 // loop_footer_branch
                %1594 = sbr.rel target = $region112
              $region117: #{lenet_forward.9} parent=109 // loop_exit
                _
              %s1642 = sshrl.u32 %s1580, 4
              %s1643 = sand.u32 %s1580, 15
              %s1644 = smul.u32 %s1642, 16
              %s1645 = smul.u32 4, %s1644
              %s1646 = scalar_lea.vmem %s1573, %s1645 [#allocation3]
              %s1647 = smul.u32 4, %s1644
              %s1648 = scalar_lea.vmem %s1584, %s1647
              // While loop
              $region118: #{lenet_forward.9} parent=109 // loop_pre_header
                _
              $region119: #{lenet_forward.9} parent=109 // loop_header
                %s1650 = sphi 0, %s1652
                %p1651 = scmp.ge.s32.totalorder %s1650, %s1643
                %s1655 = sphi 0, %s1662
                %s1656 = sphi %s1646, %s1665
                %s1657 = sphi %s1648, %s1666
              $region120: #{lenet_forward.9} parent=109 // loop_header_branch
                %1654 = sbr.rel (%p1651) target = $region124
              $region121: #{lenet_forward.9} parent=109 // loop_body
                %v1658 = vld [vmem:[%s1656] sm:$0xf]
                %1659 = vst [vmem:[%s1657] sm:$0xf] %v1658
                %s1660 = sadd.s32 1, %s1655
                %p1661 = scmp.ge.s32.totalorder %s1660, %s1643
                %s1662 = scalar_select %p1661, 0, %s1660
                %s1663 = smul.u32 %s1662, 4
                %s1664 = smul.u32 %s1662, 4
                %s1665 = scalar_lea.vmem %s1646, %s1663 [#allocation3]
                %s1666 = scalar_lea.vmem %s1648, %s1664
              $region122: #{lenet_forward.9} parent=109 // loop_footer
                %s1652 = sadd.s32 %s1650, 1
              $region123: #{lenet_forward.9} parent=109 // loop_footer_branch
                %1649 = sbr.rel target = $region119
              $region124: #{lenet_forward.9} parent=109 // loop_exit
                _
            $region110: #{lenet_forward.9} parent=101 // pred_fallthru
              _
          $region102: #{lenet_forward.9} parent=97 // pred_fallthru
            _
          %1744 = vnop
        $region98: #{lenet_forward.9} parent=89 // pred_fallthru
          _
      $region90: #{lenet_forward.9} parent=5 // pred_fallthru
        _
      %p1745 = scmp.le.s32.totalorder 2, %s9
      // Predicated region
      $region143: #{lenet_forward.9} parent=5 // pred_check
        %p1746 = pneg %p1745
      $region144: #{lenet_forward.9} parent=5 // pred_check_branch
        %1748 = sbr.rel (%p1746) target = $region146
      $region145: #{lenet_forward.9} parent=5 // pred_region
        %s1749 = ssub.s32 %s9, 2
        // Predicated region
        $region147: #{lenet_forward.9} parent=145 // pred_check
          %p1750 = pneg %p106
        $region148: #{lenet_forward.9} parent=145 // pred_check_branch
          %1752 = sbr.rel (%p1750) target = $region150
        $region149: #{lenet_forward.9} parent=145 // pred_region
          %s1753 = sand.u32 %s91, 1
          %s1754 = sand.u32 %s91, 1
          %s1755 = smul.addr %s1754, 64
          %s1756 = scalar_lea.vmem [#allocation3], %s1755
        $region150: #{lenet_forward.9} parent=145 // pred_fallthru
          _
      $region146: #{lenet_forward.9} parent=5 // pred_fallthru
        _
    $region6: #{lenet_forward.9} parent=1 // loop_footer
      %s13 = sadd.s32 1, %s9
    $region7: #{lenet_forward.9} parent=1 // loop_footer_branch
      %8 = sbr.rel target = $region3
    $region8: #{lenet_forward.9} parent=1 // loop_exit
      _

// kernel: lenet_forward.10
$region0: #{lenet_forward.10}
  #allocation0 [shape = 'u32[]', space=smem, size = 0x4, offset = 0x4, fixed_abs, tag = 'smem constant byte address 0x4 - core index']
  #allocation1 [shape = 'u32[144,128]{1,0:T(1,128)}', space=vmem, size = 0x12000, scoped, tag = 'internal scratch']
  %s0 = inlined_call_operand.vmem [shape: bf16[4,72,250], index: 0, kind: input, shape index: {}]
  %s1 = inlined_call_operand.vmem [shape: bf16[250,20], index: 1, kind: input, shape index: {}]
  %s2 = inlined_call_operand.vmem [shape: f32[1,20], index: 2, kind: input, shape index: {}]
  %s3 = inlined_call_operand.vmem [shape: bf16[72,20], index: 3, kind: output, shape index: {}]
  %s4 = sld [smem:[#allocation0]]
  $region22: #{lenet_forward.10} parent=0
    _
  %s6 = ssub.s32 1, %s4
  %s7 = scalar_select 0, %s6, %s4
  // Predicated region
  $region2: #{lenet_forward.10} parent=0 // pred_check
    _
  $region3: #{lenet_forward.10} parent=0 // pred_check_branch
    %9 = sbr.rel (0) target = $region5
  $region4: #{lenet_forward.10} parent=0 // pred_region
    _
  $region5: #{lenet_forward.10} parent=0 // pred_fallthru
    _
  // Predicated region
  $region6: #{lenet_forward.10} parent=0 // pred_check
    _
  $region7: #{lenet_forward.10} parent=0 // pred_check_branch
    %11 = sbr.rel (0) target = $region9
  $region8: #{lenet_forward.10} parent=0 // pred_region
    _
  $region9: #{lenet_forward.10} parent=0 // pred_fallthru
    _
  // Predicated region
  $region10: #{lenet_forward.10} parent=0 // pred_check
    _
  $region11: #{lenet_forward.10} parent=0 // pred_check_branch
    %13 = sbr.rel (0) target = $region13
  $region12: #{lenet_forward.10} parent=0 // pred_region
    _
  $region13: #{lenet_forward.10} parent=0 // pred_fallthru
    _
  %v15 = vld [vmem:[%s1] sm:$0xf]
  %v16 = vld [vmem:[%s1 + $0x4] sm:$0xf]
  %v17 = vld [vmem:[%s1 + $0x8] sm:$0xf]
  %v18 = vld [vmem:[%s1 + $0xc] sm:$0xf]
  %v19 = vld [vmem:[%s1 + $0x10] sm:$0xf]
  %v20 = vld [vmem:[%s1 + $0x14] sm:$0xf]
  %v21 = vld [vmem:[%s1 + $0x18] sm:$0xf]
  %v22 = vld [vmem:[%s1 + $0x1c] sm:$0xf]
  %v23 = vld [vmem:[%s1 + $0x20] sm:$0xf]
  %v24 = vld [vmem:[%s1 + $0x24] sm:$0xf]
  %v25 = vld [vmem:[%s1 + $0x28] sm:$0xf]
  %v26 = vld [vmem:[%s1 + $0x2c] sm:$0xf]
  %v27 = vld [vmem:[%s1 + $0x30] sm:$0xf]
  %v28 = vld [vmem:[%s1 + $0x34] sm:$0xf]
  %v29 = vld [vmem:[%s1 + $0x38] sm:$0xf]
  %v30 = vld [vmem:[%s1 + $0x3c] sm:$0xf]
  %v31 = vld [vmem:[%s1 + $0x40] sm:$0xf]
  %v32 = vld [vmem:[%s1 + $0x44] sm:$0xf]
  %v33 = vld [vmem:[%s1 + $0x48] sm:$0xf]
  %v34 = vld [vmem:[%s1 + $0x4c] sm:$0xf]
  %v35 = vld [vmem:[%s1 + $0x50] sm:$0xf]
  %v36 = vld [vmem:[%s1 + $0x54] sm:$0xf]
  %v37 = vld [vmem:[%s1 + $0x58] sm:$0xf]
  %v38 = vld [vmem:[%s1 + $0x5c] sm:$0xf]
  %v39 = vld [vmem:[%s1 + $0x60] sm:$0xf]
  %v40 = vld [vmem:[%s1 + $0x64] sm:$0xf]
  %v41 = vld [vmem:[%s1 + $0x68] sm:$0xf]
  %v42 = vld [vmem:[%s1 + $0x6c] sm:$0xf]
  %v43 = vld [vmem:[%s1 + $0x70] sm:$0xf]
  %v44 = vld [vmem:[%s1 + $0x74] sm:$0xf]
  %v45 = vld [vmem:[%s1 + $0x78] sm:$0xf]
  %v46 = vld [vmem:[%s1 + $0x7c] sm:$0x1]
  %v47 = vld [vmem:[%s2] sm:$0x1]
  %v48 = vld [vmem:[%s0] sm:$0xff]
  %v49 = vld [vmem:[%s0 + $0x8] sm:$0xff]
  %v50 = vld [vmem:[%s0 + $0x10] sm:$0xff]
  %v51 = vld [vmem:[%s0 + $0x18] sm:$0xff]
  %v52 = vld [vmem:[%s0 + $0x20] sm:$0xff]
  %v53 = vld [vmem:[%s0 + $0x28] sm:$0xff]
  %v54 = vld [vmem:[%s0 + $0x30] sm:$0xff]
  %v55 = vld [vmem:[%s0 + $0x38] sm:$0xff]
  %v56 = vld [vmem:[%s0 + $0x40] sm:$0xff]
  %v58 = vlaneseq
  %v59 = vshrl.u32 %v58, 7
  %v60 = vsub.s32 0, %v59
  %v61 = vrot.slane %v47, %v60
  %v72 = vunpack.c.l.b16 %v48
  %v73 = vunpack.c.h.b16 %v48
  %v74 = vunpack.c.l.b16 %v49
  %v75 = vunpack.c.h.b16 %v49
  %v76 = vunpack.c.l.b16 %v50
  %v77 = vunpack.c.h.b16 %v50
  %v78 = vunpack.c.l.b16 %v51
  %v79 = vunpack.c.h.b16 %v51
  %v80 = vunpack.c.l.b16 %v52
  %v81 = vunpack.c.h.b16 %v52
  %v82 = vunpack.c.l.b16 %v53
  %v83 = vunpack.c.h.b16 %v53
  %v84 = vunpack.c.l.b16 %v54
  %v85 = vunpack.c.h.b16 %v54
  %v86 = vunpack.c.l.b16 %v55
  %v87 = vunpack.c.h.b16 %v55
  %v88 = vunpack.c.l.b16 %v56
  %v89 = vunpack.c.h.b16 %v56
  %v90 = vpack.c.b16 %v74, %v72
  %v91 = vpack.c.b16 %v75, %v73
  %v92 = vpack.c.b16 %v78, %v76
  %v93 = vpack.c.b16 %v79, %v77
  %v94 = vpack.c.b16 %v82, %v80
  %v95 = vpack.c.b16 %v83, %v81
  %v96 = vpack.c.b16 %v86, %v84
  %v97 = vpack.c.b16 %v87, %v85
  %v98 = vpack.c.b16 %v88, %v88
  %v99 = vpack.c.b16 %v89, %v89
  %v137 = vunpack.c.l.b16 %v15
  %v138 = vunpack.c.l.b16 %v16
  %v139 = vunpack.c.l.b16 %v17
  %v140 = vunpack.c.l.b16 %v18
  %v141 = vunpack.c.l.b16 %v19
  %v142 = vunpack.c.l.b16 %v20
  %v143 = vunpack.c.l.b16 %v21
  %v144 = vunpack.c.l.b16 %v22
  %v145 = vunpack.c.l.b16 %v23
  %v146 = vunpack.c.l.b16 %v24
  %v147 = vunpack.c.l.b16 %v25
  %v148 = vunpack.c.l.b16 %v26
  %v149 = vunpack.c.l.b16 %v27
  %v150 = vunpack.c.l.b16 %v28
  %v151 = vunpack.c.l.b16 %v29
  %v152 = vunpack.c.l.b16 %v30
  %v153 = vunpack.c.l.b16 %v31
  %v154 = vunpack.c.l.b16 %v32
  %v155 = vunpack.c.l.b16 %v33
  %v156 = vunpack.c.l.b16 %v34
  %v157 = vunpack.c.l.b16 %v35
  %v158 = vunpack.c.l.b16 %v36
  %v159 = vunpack.c.l.b16 %v37
  %v160 = vunpack.c.l.b16 %v38
  %v161 = vunpack.c.l.b16 %v39
  %v162 = vunpack.c.l.b16 %v40
  %v163 = vunpack.c.l.b16 %v41
  %v164 = vunpack.c.l.b16 %v42
  %v165 = vunpack.c.l.b16 %v43
  %v166 = vunpack.c.l.b16 %v44
  %v167 = vunpack.c.l.b16 %v45
  %v168 = vunpack.c.l.b16 %v46
  %v169 = vpack.c.b16 %v138, %v137
  %v170 = vpack.c.b16 %v140, %v139
  %v171 = vpack.c.b16 %v142, %v141
  %v172 = vpack.c.b16 %v144, %v143
  %v173 = vpack.c.b16 %v146, %v145
  %v174 = vpack.c.b16 %v148, %v147
  %v175 = vpack.c.b16 %v150, %v149
  %v176 = vpack.c.b16 %v152, %v151
  %v177 = vpack.c.b16 %v154, %v153
  %v178 = vpack.c.b16 %v156, %v155
  %v179 = vpack.c.b16 %v158, %v157
  %v180 = vpack.c.b16 %v160, %v159
  %v181 = vpack.c.b16 %v162, %v161
  %v182 = vpack.c.b16 %v164, %v163
  %v183 = vpack.c.b16 %v166, %v165
  %v184 = vpack.c.b16 %v168, %v167
  %vm200 = vcmask 998400
  %v202 = vsel %vm200, %v91, 0
  %v205 = vsel %vm200, %v93, 0
  %v208 = vsel %vm200, %v95, 0
  %v211 = vsel %vm200, %v97, 0
  %v214 = vsel %vm200, %v99, 0
  %vm216 = vcmask 1044480
  %v218 = vsel %vm216, %v184, 0
  %220 = vmatprep.subr.bf16.mxu0 0
  %221 = vmatpush1.bf16.msra.mxu0 %v169
  %222 = vmatprep.subr.bf16.mxu0 0
  %223 = vmatpush1.bf16.msra.mxu0 %v170
  %224 = vmatprep.subr.bf16.mxu0 0
  %225 = vmatpush1.bf16.msra.mxu0 %v171
  %226 = vmatprep.subr.bf16.mxu0 0
  %227 = vmatpush1.bf16.msra.mxu0 %v172
  %228 = vmatprep.subr.bf16.mxu0 0
  %229 = vmatpush1.bf16.msra.mxu0 %v173
  %230 = vmatprep.subr.bf16.mxu0 0
  %231 = vmatpush1.bf16.msra.mxu0 %v174
  %232 = vmatprep.subr.bf16.mxu0 0
  %233 = vmatpush1.bf16.msra.mxu0 %v175
  %234 = vmatprep.subr.bf16.mxu0 0
  %235 = vmatpush1.bf16.msra.mxu0 %v176
  %236 = vmatprep.subr.bf16.mxu0 0
  %237 = vmatpush1.bf16.msra.mxu0 %v177
  %238 = vmatprep.subr.bf16.mxu0 0
  %239 = vmatpush1.bf16.msra.mxu0 %v178
  %240 = vmatprep.subr.bf16.mxu0 0
  %241 = vmatpush1.bf16.msra.mxu0 %v179
  %242 = vmatprep.subr.bf16.mxu0 0
  %243 = vmatpush1.bf16.msra.mxu0 %v180
  %244 = vmatprep.subr.bf16.mxu0 0
  %245 = vmatpush1.bf16.msra.mxu0 %v181
  %246 = vmatprep.subr.bf16.mxu0 0
  %247 = vmatpush1.bf16.msra.mxu0 %v182
  %248 = vmatprep.subr.bf16.mxu0 0
  %249 = vmatpush1.bf16.msra.mxu0 %v183
  %250 = vmatprep.subr.bf16.mxu0 0
  %251 = vmatpush1.bf16.msra.mxu0 %v218
  %252 = vmatprep.mubr.bf16.mxu0 %v202
  %253 = vmatmul.mubr.bf16.gmra.mrb[0].mxu0 %v90
  %v254 = vpop.f32.mrb[0].mxu0
  %v255 = vadd.f32 %v61, %v254
  %v256 = vpop.f32.mrb[0].mxu0
  %v257 = vpop.f32.mrb[0].mxu0
  %v258 = vadd.f32 %v61, %v257
  %v259 = vpop.f32.mrb[0].mxu0
  %260 = vmatprep.mubr.bf16.mxu0 %v205
  %261 = vmatmul.mubr.bf16.gmra.mrb[0].mxu0 %v92
  %v262 = vpop.f32.mrb[0].mxu0
  %v263 = vadd.f32 %v61, %v262
  %v264 = vpop.f32.mrb[0].mxu0
  %v265 = vpop.f32.mrb[0].mxu0
  %v266 = vadd.f32 %v61, %v265
  %v267 = vpop.f32.mrb[0].mxu0
  %268 = vmatprep.mubr.bf16.mxu0 %v208
  %269 = vmatmul.mubr.bf16.gmra.mrb[0].mxu0 %v94
  %v270 = vpop.f32.mrb[0].mxu0
  %v271 = vadd.f32 %v61, %v270
  %v272 = vpop.f32.mrb[0].mxu0
  %v273 = vpop.f32.mrb[0].mxu0
  %v274 = vadd.f32 %v61, %v273
  %v275 = vpop.f32.mrb[0].mxu0
  %276 = vmatprep.mubr.bf16.mxu0 %v211
  %277 = vmatmul.mubr.bf16.gmra.mrb[0].mxu0 %v96
  %v278 = vpop.f32.mrb[0].mxu0
  %v279 = vadd.f32 %v61, %v278
  %v280 = vpop.f32.mrb[0].mxu0
  %v281 = vpop.f32.mrb[0].mxu0
  %v282 = vadd.f32 %v61, %v281
  %v283 = vpop.f32.mrb[0].mxu0
  %284 = vmatprep.mubr.bf16.mxu0 %v214
  %285 = vmatmul.mubr.bf16.gmra.mrb[0].mxu0 %v98
  %v286 = vpop.f32.mrb[0].mxu0
  %v287 = vadd.f32 %v61, %v286
  %v288 = vpop.f32.mrb[0].mxu0
  %v289 = vpop.f32.mrb[0].mxu0
  %v290 = vpop.f32.mrb[0].mxu0
  %291 = vdwg.mxu0
  %v292 = vmax.f32 %v255, 0.0
  %v293 = vmax.f32 %v258, 0.0
  %v294 = vmax.f32 %v263, 0.0
  %v295 = vmax.f32 %v266, 0.0
  %v296 = vmax.f32 %v271, 0.0
  %v297 = vmax.f32 %v274, 0.0
  %v298 = vmax.f32 %v279, 0.0
  %v299 = vmax.f32 %v282, 0.0
  %v300 = vmax.f32 %v287, 0.0
  %s301 = scalar_lea.vmem %s0, 72
  %v302 = vld [vmem:[%s301] sm:$0xff]
  %v303 = vld [vmem:[%s301 + $0x8] sm:$0xff]
  %v304 = vld [vmem:[%s301 + $0x10] sm:$0xff]
  %v305 = vld [vmem:[%s301 + $0x18] sm:$0xff]
  %v306 = vld [vmem:[%s301 + $0x20] sm:$0xff]
  %v307 = vld [vmem:[%s301 + $0x28] sm:$0xff]
  %v308 = vld [vmem:[%s301 + $0x30] sm:$0xff]
  %v309 = vld [vmem:[%s301 + $0x38] sm:$0xff]
  %v310 = vld [vmem:[%s301 + $0x40] sm:$0xff]
  %v320 = vunpack.c.l.b16 %v302
  %v321 = vunpack.c.h.b16 %v302
  %v322 = vunpack.c.l.b16 %v303
  %v323 = vunpack.c.h.b16 %v303
  %v324 = vunpack.c.l.b16 %v304
  %v325 = vunpack.c.h.b16 %v304
  %v326 = vunpack.c.l.b16 %v305
  %v327 = vunpack.c.h.b16 %v305
  %v328 = vunpack.c.l.b16 %v306
  %v329 = vunpack.c.h.b16 %v306
  %v330 = vunpack.c.l.b16 %v307
  %v331 = vunpack.c.h.b16 %v307
  %v332 = vunpack.c.l.b16 %v308
  %v333 = vunpack.c.h.b16 %v308
  %v334 = vunpack.c.l.b16 %v309
  %v335 = vunpack.c.h.b16 %v309
  %v336 = vunpack.c.l.b16 %v310
  %v337 = vunpack.c.h.b16 %v310
  %v338 = vpack.c.b16 %v322, %v320
  %v339 = vpack.c.b16 %v323, %v321
  %v340 = vpack.c.b16 %v326, %v324
  %v341 = vpack.c.b16 %v327, %v325
  %v342 = vpack.c.b16 %v330, %v328
  %v343 = vpack.c.b16 %v331, %v329
  %v344 = vpack.c.b16 %v334, %v332
  %v345 = vpack.c.b16 %v335, %v333
  %v346 = vpack.c.b16 %v336, %v336
  %v347 = vpack.c.b16 %v337, %v337
  %v354 = vsel %vm200, %v339, 0
  %v357 = vsel %vm200, %v341, 0
  %v360 = vsel %vm200, %v343, 0
  %v363 = vsel %vm200, %v345, 0
  %v366 = vsel %vm200, %v347, 0
  %368 = vmatprep.subr.bf16.mxu0 0
  %369 = vmatpush1.bf16.msra.mxu0 %v169
  %370 = vmatprep.subr.bf16.mxu0 0
  %371 = vmatpush1.bf16.msra.mxu0 %v170
  %372 = vmatprep.subr.bf16.mxu0 0
  %373 = vmatpush1.bf16.msra.mxu0 %v171
  %374 = vmatprep.subr.bf16.mxu0 0
  %375 = vmatpush1.bf16.msra.mxu0 %v172
  %376 = vmatprep.subr.bf16.mxu0 0
  %377 = vmatpush1.bf16.msra.mxu0 %v173
  %378 = vmatprep.subr.bf16.mxu0 0
  %379 = vmatpush1.bf16.msra.mxu0 %v174
  %380 = vmatprep.subr.bf16.mxu0 0
  %381 = vmatpush1.bf16.msra.mxu0 %v175
  %382 = vmatprep.subr.bf16.mxu0 0
  %383 = vmatpush1.bf16.msra.mxu0 %v176
  %384 = vmatprep.subr.bf16.mxu0 0
  %385 = vmatpush1.bf16.msra.mxu0 %v177
  %386 = vmatprep.subr.bf16.mxu0 0
  %387 = vmatpush1.bf16.msra.mxu0 %v178
  %388 = vmatprep.subr.bf16.mxu0 0
  %389 = vmatpush1.bf16.msra.mxu0 %v179
  %390 = vmatprep.subr.bf16.mxu0 0
  %391 = vmatpush1.bf16.msra.mxu0 %v180
  %392 = vmatprep.subr.bf16.mxu0 0
  %393 = vmatpush1.bf16.msra.mxu0 %v181
  %394 = vmatprep.subr.bf16.mxu0 0
  %395 = vmatpush1.bf16.msra.mxu0 %v182
  %396 = vmatprep.subr.bf16.mxu0 0
  %397 = vmatpush1.bf16.msra.mxu0 %v183
  %398 = vmatprep.subr.bf16.mxu0 0
  %399 = vmatpush1.bf16.msra.mxu0 %v218
  %400 = vmatprep.mubr.bf16.mxu0 %v354
  %401 = vmatmul.mubr.bf16.gmra.mrb[0].mxu0 %v338
  %v402 = vpop.f32.mrb[0].mxu0
  %v403 = vadd.f32 %v61, %v402
  %v404 = vpop.f32.mrb[0].mxu0
  %v405 = vpop.f32.mrb[0].mxu0
  %v406 = vadd.f32 %v61, %v405
  %v407 = vpop.f32.mrb[0].mxu0
  %408 = vmatprep.mubr.bf16.mxu0 %v357
  %409 = vmatmul.mubr.bf16.gmra.mrb[0].mxu0 %v340
  %v410 = vpop.f32.mrb[0].mxu0
  %v411 = vadd.f32 %v61, %v410
  %v412 = vpop.f32.mrb[0].mxu0
  %v413 = vpop.f32.mrb[0].mxu0
  %v414 = vadd.f32 %v61, %v413
  %v415 = vpop.f32.mrb[0].mxu0
  %416 = vmatprep.mubr.bf16.mxu0 %v360
  %417 = vmatmul.mubr.bf16.gmra.mrb[0].mxu0 %v342
  %v418 = vpop.f32.mrb[0].mxu0
  %v419 = vadd.f32 %v61, %v418
  %v420 = vpop.f32.mrb[0].mxu0
  %v421 = vpop.f32.mrb[0].mxu0
  %v422 = vadd.f32 %v61, %v421
  %v423 = vpop.f32.mrb[0].mxu0
  %424 = vmatprep.mubr.bf16.mxu0 %v363
  %425 = vmatmul.mubr.bf16.gmra.mrb[0].mxu0 %v344
  %v426 = vpop.f32.mrb[0].mxu0
  %v427 = vadd.f32 %v61, %v426
  %v428 = vpop.f32.mrb[0].mxu0
  %v429 = vpop.f32.mrb[0].mxu0
  %v430 = vadd.f32 %v61, %v429
  %v431 = vpop.f32.mrb[0].mxu0
  %432 = vmatprep.mubr.bf16.mxu0 %v366
  %433 = vmatmul.mubr.bf16.gmra.mrb[0].mxu0 %v346
  %v434 = vpop.f32.mrb[0].mxu0
  %v435 = vadd.f32 %v61, %v434
  %v436 = vpop.f32.mrb[0].mxu0
  %v437 = vpop.f32.mrb[0].mxu0
  %v438 = vpop.f32.mrb[0].mxu0
  %439 = vdwg.mxu0
  %v440 = vmax.f32 %v403, 0.0
  %v441 = vmax.f32 %v406, 0.0
  %v442 = vmax.f32 %v411, 0.0
  %v443 = vmax.f32 %v414, 0.0
  %v444 = vmax.f32 %v419, 0.0
  %v445 = vmax.f32 %v422, 0.0
  %v446 = vmax.f32 %v427, 0.0
  %v447 = vmax.f32 %v430, 0.0
  %v448 = vmax.f32 %v435, 0.0
  %v449 = vmax.f32 %v292, %v440
  %v450 = vmax.f32 %v293, %v441
  %v451 = vmax.f32 %v294, %v442
  %v452 = vmax.f32 %v295, %v443
  %v453 = vmax.f32 %v296, %v444
  %v454 = vmax.f32 %v297, %v445
  %v455 = vmax.f32 %v298, %v446
  %v456 = vmax.f32 %v299, %v447
  %v457 = vmax.f32 %v300, %v448
  %s458 = scalar_lea.vmem %s0, 144
  %v459 = vld [vmem:[%s458] sm:$0xff]
  %v460 = vld [vmem:[%s458 + $0x8] sm:$0xff]
  %v461 = vld [vmem:[%s458 + $0x10] sm:$0xff]
  %v462 = vld [vmem:[%s458 + $0x18] sm:$0xff]
  %v463 = vld [vmem:[%s458 + $0x20] sm:$0xff]
  %v464 = vld [vmem:[%s458 + $0x28] sm:$0xff]
  %v465 = vld [vmem:[%s458 + $0x30] sm:$0xff]
  %v466 = vld [vmem:[%s458 + $0x38] sm:$0xff]
  %v467 = vld [vmem:[%s458 + $0x40] sm:$0xff]
  %v477 = vunpack.c.l.b16 %v459
  %v478 = vunpack.c.h.b16 %v459
  %v479 = vunpack.c.l.b16 %v460
  %v480 = vunpack.c.h.b16 %v460
  %v481 = vunpack.c.l.b16 %v461
  %v482 = vunpack.c.h.b16 %v461
  %v483 = vunpack.c.l.b16 %v462
  %v484 = vunpack.c.h.b16 %v462
  %v485 = vunpack.c.l.b16 %v463
  %v486 = vunpack.c.h.b16 %v463
  %v487 = vunpack.c.l.b16 %v464
  %v488 = vunpack.c.h.b16 %v464
  %v489 = vunpack.c.l.b16 %v465
  %v490 = vunpack.c.h.b16 %v465
  %v491 = vunpack.c.l.b16 %v466
  %v492 = vunpack.c.h.b16 %v466
  %v493 = vunpack.c.l.b16 %v467
  %v494 = vunpack.c.h.b16 %v467
  %v495 = vpack.c.b16 %v479, %v477
  %v496 = vpack.c.b16 %v480, %v478
  %v497 = vpack.c.b16 %v483, %v481
  %v498 = vpack.c.b16 %v484, %v482
  %v499 = vpack.c.b16 %v487, %v485
  %v500 = vpack.c.b16 %v488, %v486
  %v501 = vpack.c.b16 %v491, %v489
  %v502 = vpack.c.b16 %v492, %v490
  %v503 = vpack.c.b16 %v493, %v493
  %v504 = vpack.c.b16 %v494, %v494
  %v511 = vsel %vm200, %v496, 0
  %v514 = vsel %vm200, %v498, 0
  %v517 = vsel %vm200, %v500, 0
  %v520 = vsel %vm200, %v502, 0
  %v523 = vsel %vm200, %v504, 0
  %525 = vmatprep.subr.bf16.mxu0 0
  %526 = vmatpush1.bf16.msra.mxu0 %v169
  %527 = vmatprep.subr.bf16.mxu0 0
  %528 = vmatpush1.bf16.msra.mxu0 %v170
  %529 = vmatprep.subr.bf16.mxu0 0
  %530 = vmatpush1.bf16.msra.mxu0 %v171
  %531 = vmatprep.subr.bf16.mxu0 0
  %532 = vmatpush1.bf16.msra.mxu0 %v172
  %533 = vmatprep.subr.bf16.mxu0 0
  %534 = vmatpush1.bf16.msra.mxu0 %v173
  %535 = vmatprep.subr.bf16.mxu0 0
  %536 = vmatpush1.bf16.msra.mxu0 %v174
  %537 = vmatprep.subr.bf16.mxu0 0
  %538 = vmatpush1.bf16.msra.mxu0 %v175
  %539 = vmatprep.subr.bf16.mxu0 0
  %540 = vmatpush1.bf16.msra.mxu0 %v176
  %541 = vmatprep.subr.bf16.mxu0 0
  %542 = vmatpush1.bf16.msra.mxu0 %v177
  %543 = vmatprep.subr.bf16.mxu0 0
  %544 = vmatpush1.bf16.msra.mxu0 %v178
  %545 = vmatprep.subr.bf16.mxu0 0
  %546 = vmatpush1.bf16.msra.mxu0 %v179
  %547 = vmatprep.subr.bf16.mxu0 0
  %548 = vmatpush1.bf16.msra.mxu0 %v180
  %549 = vmatprep.subr.bf16.mxu0 0
  %550 = vmatpush1.bf16.msra.mxu0 %v181
  %551 = vmatprep.subr.bf16.mxu0 0
  %552 = vmatpush1.bf16.msra.mxu0 %v182
  %553 = vmatprep.subr.bf16.mxu0 0
  %554 = vmatpush1.bf16.msra.mxu0 %v183
  %555 = vmatprep.subr.bf16.mxu0 0
  %556 = vmatpush1.bf16.msra.mxu0 %v218
  %557 = vmatprep.mubr.bf16.mxu0 %v511
  %558 = vmatmul.mubr.bf16.gmra.mrb[0].mxu0 %v495
  %v559 = vpop.f32.mrb[0].mxu0
  %v560 = vadd.f32 %v61, %v559
  %v561 = vpop.f32.mrb[0].mxu0
  %v562 = vpop.f32.mrb[0].mxu0
  %v563 = vadd.f32 %v61, %v562
  %v564 = vpop.f32.mrb[0].mxu0
  %565 = vmatprep.mubr.bf16.mxu0 %v514
  %566 = vmatmul.mubr.bf16.gmra.mrb[0].mxu0 %v497
  %v567 = vpop.f32.mrb[0].mxu0
  %v568 = vadd.f32 %v61, %v567
  %v569 = vpop.f32.mrb[0].mxu0
  %v570 = vpop.f32.mrb[0].mxu0
  %v571 = vadd.f32 %v61, %v570
  %v572 = vpop.f32.mrb[0].mxu0
  %573 = vmatprep.mubr.bf16.mxu0 %v517
  %574 = vmatmul.mubr.bf16.gmra.mrb[0].mxu0 %v499
  %v575 = vpop.f32.mrb[0].mxu0
  %v576 = vadd.f32 %v61, %v575
  %v577 = vpop.f32.mrb[0].mxu0
  %v578 = vpop.f32.mrb[0].mxu0
  %v579 = vadd.f32 %v61, %v578
  %v580 = vpop.f32.mrb[0].mxu0
  %581 = vmatprep.mubr.bf16.mxu0 %v520
  %582 = vmatmul.mubr.bf16.gmra.mrb[0].mxu0 %v501
  %v583 = vpop.f32.mrb[0].mxu0
  %v584 = vadd.f32 %v61, %v583
  %v585 = vpop.f32.mrb[0].mxu0
  %v586 = vpop.f32.mrb[0].mxu0
  %v587 = vadd.f32 %v61, %v586
  %v588 = vpop.f32.mrb[0].mxu0
  %589 = vmatprep.mubr.bf16.mxu0 %v523
  %590 = vmatmul.mubr.bf16.gmra.mrb[0].mxu0 %v503
  %v591 = vpop.f32.mrb[0].mxu0
  %v592 = vadd.f32 %v61, %v591
  %v593 = vpop.f32.mrb[0].mxu0
  %v594 = vpop.f32.mrb[0].mxu0
  %v595 = vpop.f32.mrb[0].mxu0
  %596 = vdwg.mxu0
  %v597 = vmax.f32 %v560, 0.0
  %v598 = vmax.f32 %v563, 0.0
  %v599 = vmax.f32 %v568, 0.0
  %v600 = vmax.f32 %v571, 0.0
  %v601 = vmax.f32 %v576, 0.0
  %v602 = vmax.f32 %v579, 0.0
  %v603 = vmax.f32 %v584, 0.0
  %v604 = vmax.f32 %v587, 0.0
  %v605 = vmax.f32 %v592, 0.0
  %s606 = scalar_lea.vmem %s0, 216
  %v607 = vld [vmem:[%s606] sm:$0xff]
  %v608 = vld [vmem:[%s606 + $0x8] sm:$0xff]
  %v609 = vld [vmem:[%s606 + $0x10] sm:$0xff]
  %v610 = vld [vmem:[%s606 + $0x18] sm:$0xff]
  %v611 = vld [vmem:[%s606 + $0x20] sm:$0xff]
  %v612 = vld [vmem:[%s606 + $0x28] sm:$0xff]
  %v613 = vld [vmem:[%s606 + $0x30] sm:$0xff]
  %v614 = vld [vmem:[%s606 + $0x38] sm:$0xff]
  %v615 = vld [vmem:[%s606 + $0x40] sm:$0xff]
  %v625 = vunpack.c.l.b16 %v607
  %v626 = vunpack.c.h.b16 %v607
  %v627 = vunpack.c.l.b16 %v608
  %v628 = vunpack.c.h.b16 %v608
  %v629 = vunpack.c.l.b16 %v609
  %v630 = vunpack.c.h.b16 %v609
  %v631 = vunpack.c.l.b16 %v610
  %v632 = vunpack.c.h.b16 %v610
  %v633 = vunpack.c.l.b16 %v611
  %v634 = vunpack.c.h.b16 %v611
  %v635 = vunpack.c.l.b16 %v612
  %v636 = vunpack.c.h.b16 %v612
  %v637 = vunpack.c.l.b16 %v613
  %v638 = vunpack.c.h.b16 %v613
  %v639 = vunpack.c.l.b16 %v614
  %v640 = vunpack.c.h.b16 %v614
  %v641 = vunpack.c.l.b16 %v615
  %v642 = vunpack.c.h.b16 %v615
  %v643 = vpack.c.b16 %v627, %v625
  %v644 = vpack.c.b16 %v628, %v626
  %v645 = vpack.c.b16 %v631, %v629
  %v646 = vpack.c.b16 %v632, %v630
  %v647 = vpack.c.b16 %v635, %v633
  %v648 = vpack.c.b16 %v636, %v634
  %v649 = vpack.c.b16 %v639, %v637
  %v650 = vpack.c.b16 %v640, %v638
  %v651 = vpack.c.b16 %v641, %v641
  %v652 = vpack.c.b16 %v642, %v642
  %v659 = vsel %vm200, %v644, 0
  %v662 = vsel %vm200, %v646, 0
  %v665 = vsel %vm200, %v648, 0
  %v668 = vsel %vm200, %v650, 0
  %v671 = vsel %vm200, %v652, 0
  %673 = vmatprep.subr.bf16.mxu0 0
  %674 = vmatpush1.bf16.msra.mxu0 %v169
  %675 = vmatprep.subr.bf16.mxu0 0
  %676 = vmatpush1.bf16.msra.mxu0 %v170
  %677 = vmatprep.subr.bf16.mxu0 0
  %678 = vmatpush1.bf16.msra.mxu0 %v171
  %679 = vmatprep.subr.bf16.mxu0 0
  %680 = vmatpush1.bf16.msra.mxu0 %v172
  %681 = vmatprep.subr.bf16.mxu0 0
  %682 = vmatpush1.bf16.msra.mxu0 %v173
  %683 = vmatprep.subr.bf16.mxu0 0
  %684 = vmatpush1.bf16.msra.mxu0 %v174
  %685 = vmatprep.subr.bf16.mxu0 0
  %686 = vmatpush1.bf16.msra.mxu0 %v175
  %687 = vmatprep.subr.bf16.mxu0 0
  %688 = vmatpush1.bf16.msra.mxu0 %v176
  %689 = vmatprep.subr.bf16.mxu0 0
  %690 = vmatpush1.bf16.msra.mxu0 %v177
  %691 = vmatprep.subr.bf16.mxu0 0
  %692 = vmatpush1.bf16.msra.mxu0 %v178
  %693 = vmatprep.subr.bf16.mxu0 0
  %694 = vmatpush1.bf16.msra.mxu0 %v179
  %695 = vmatprep.subr.bf16.mxu0 0
  %696 = vmatpush1.bf16.msra.mxu0 %v180
  %697 = vmatprep.subr.bf16.mxu0 0
  %698 = vmatpush1.bf16.msra.mxu0 %v181
  %699 = vmatprep.subr.bf16.mxu0 0
  %700 = vmatpush1.bf16.msra.mxu0 %v182
  %701 = vmatprep.subr.bf16.mxu0 0
  %702 = vmatpush1.bf16.msra.mxu0 %v183
  %703 = vmatprep.subr.bf16.mxu0 0
  %704 = vmatpush1.bf16.msra.mxu0 %v218
  %705 = vmatprep.mubr.bf16.mxu0 %v659
  %706 = vmatmul.mubr.bf16.gmra.mrb[0].mxu0 %v643
  %v707 = vpop.f32.mrb[0].mxu0
  %v708 = vadd.f32 %v61, %v707
  %v709 = vpop.f32.mrb[0].mxu0
  %v710 = vpop.f32.mrb[0].mxu0
  %v711 = vadd.f32 %v61, %v710
  %v712 = vpop.f32.mrb[0].mxu0
  %713 = vmatprep.mubr.bf16.mxu0 %v662
  %714 = vmatmul.mubr.bf16.gmra.mrb[0].mxu0 %v645
  %v715 = vpop.f32.mrb[0].mxu0
  %v716 = vadd.f32 %v61, %v715
  %v717 = vpop.f32.mrb[0].mxu0
  %v718 = vpop.f32.mrb[0].mxu0
  %v719 = vadd.f32 %v61, %v718
  %v720 = vpop.f32.mrb[0].mxu0
  %721 = vmatprep.mubr.bf16.mxu0 %v665
  %722 = vmatmul.mubr.bf16.gmra.mrb[0].mxu0 %v647
  %v723 = vpop.f32.mrb[0].mxu0
  %v724 = vadd.f32 %v61, %v723
  %v725 = vpop.f32.mrb[0].mxu0
  %v726 = vpop.f32.mrb[0].mxu0
  %v727 = vadd.f32 %v61, %v726
  %v728 = vpop.f32.mrb[0].mxu0
  %729 = vmatprep.mubr.bf16.mxu0 %v668
  %730 = vmatmul.mubr.bf16.gmra.mrb[0].mxu0 %v649
  %v731 = vpop.f32.mrb[0].mxu0
  %v732 = vadd.f32 %v61, %v731
  %v733 = vpop.f32.mrb[0].mxu0
  %v734 = vpop.f32.mrb[0].mxu0
  %v735 = vadd.f32 %v61, %v734
  %v736 = vpop.f32.mrb[0].mxu0
  %737 = vmatprep.mubr.bf16.mxu0 %v671
  %738 = vmatmul.mubr.bf16.gmra.mrb[0].mxu0 %v651
  %v739 = vpop.f32.mrb[0].mxu0
  %v740 = vadd.f32 %v61, %v739
  %v741 = vpop.f32.mrb[0].mxu0
  %v742 = vpop.f32.mrb[0].mxu0
  %v743 = vpop.f32.mrb[0].mxu0
  %744 = vdwg.mxu0
  %v745 = vmax.f32 %v708, 0.0
  %v746 = vmax.f32 %v711, 0.0
  %v747 = vmax.f32 %v716, 0.0
  %v748 = vmax.f32 %v719, 0.0
  %v749 = vmax.f32 %v724, 0.0
  %v750 = vmax.f32 %v727, 0.0
  %v751 = vmax.f32 %v732, 0.0
  %v752 = vmax.f32 %v735, 0.0
  %v753 = vmax.f32 %v740, 0.0
  %v754 = vmax.f32 %v597, %v745
  %v755 = vmax.f32 %v598, %v746
  %v756 = vmax.f32 %v599, %v747
  %v757 = vmax.f32 %v600, %v748
  %v758 = vmax.f32 %v601, %v749
  %v759 = vmax.f32 %v602, %v750
  %v760 = vmax.f32 %v603, %v751
  %v761 = vmax.f32 %v604, %v752
  %v762 = vmax.f32 %v605, %v753
  %v763 = vmax.f32 %v449, %v754
  %v764 = vmax.f32 %v450, %v755
  %v765 = vmax.f32 %v451, %v756
  %v766 = vmax.f32 %v452, %v757
  %v767 = vmax.f32 %v453, %v758
  %v768 = vmax.f32 %v454, %v759
  %v769 = vmax.f32 %v455, %v760
  %v770 = vmax.f32 %v456, %v761
  %v771 = vmax.f32 %v457, %v762
  %v772 = vpack.c.bf16 %v764, %v763
  %v773 = vpack.c.bf16 %v766, %v765
  %v774 = vpack.c.bf16 %v768, %v767
  %v775 = vpack.c.bf16 %v770, %v769
  %v776 = vpack.c.bf16 %v771, %v771
  %v782 = vunpack.c.l.b16 %v772
  %v783 = vunpack.c.h.b16 %v772
  %v784 = vunpack.c.l.b16 %v773
  %v785 = vunpack.c.h.b16 %v773
  %v786 = vunpack.c.l.b16 %v774
  %v787 = vunpack.c.h.b16 %v774
  %v788 = vunpack.c.l.b16 %v775
  %v789 = vunpack.c.h.b16 %v775
  %v790 = vunpack.c.l.b16 %v776
  %v791 = vpack.c.b16 %v782, %v782
  %v792 = vpack.c.b16 %v783, %v783
  %v793 = vpack.c.b16 %v784, %v784
  %v794 = vpack.c.b16 %v785, %v785
  %v795 = vpack.c.b16 %v786, %v786
  %v796 = vpack.c.b16 %v787, %v787
  %v797 = vpack.c.b16 %v788, %v788
  %v798 = vpack.c.b16 %v789, %v789
  %v799 = vpack.c.b16 %v790, %v790
  %vm809 = vcmask 158720
  %810 = vst.msk [vmem:[%s3] sm:$0xf] %vm809, %v791
  %811 = vst.msk [vmem:[%s3 + $0x4] sm:$0xf] %vm809, %v792
  %812 = vst.msk [vmem:[%s3 + $0x8] sm:$0xf] %vm809, %v793
  %813 = vst.msk [vmem:[%s3 + $0xc] sm:$0xf] %vm809, %v794
  %814 = vst.msk [vmem:[%s3 + $0x10] sm:$0xf] %vm809, %v795
  %815 = vst.msk [vmem:[%s3 + $0x14] sm:$0xf] %vm809, %v796
  %816 = vst.msk [vmem:[%s3 + $0x18] sm:$0xf] %vm809, %v797
  %817 = vst.msk [vmem:[%s3 + $0x1c] sm:$0xf] %vm809, %v798
  %818 = vst.msk [vmem:[%s3 + $0x20] sm:$0xf] %vm809, %v799
  // Predicated region
  $region14: #{lenet_forward.10} parent=0 // pred_check
    _
  $region15: #{lenet_forward.10} parent=0 // pred_check_branch
    %820 = sbr.rel (0) target = $region17
  $region16: #{lenet_forward.10} parent=0 // pred_region
    _
  $region17: #{lenet_forward.10} parent=0 // pred_fallthru
    _
  // Predicated region
  $region18: #{lenet_forward.10} parent=0 // pred_check
    _
  $region19: #{lenet_forward.10} parent=0 // pred_check_branch
    %822 = sbr.rel (0) target = $region21
  $region20: #{lenet_forward.10} parent=0 // pred_region
    _
  $region21: #{lenet_forward.10} parent=0 // pred_fallthru
    _

// kernel: lenet_forward.11
$region0: #{lenet_forward.11}
  #allocation0 [shape = 'u32[]', space=smem, size = 0x4, offset = 0x4, fixed_abs, tag = 'smem constant byte address 0x4 - core index']
  #allocation1 [shape = 'u32[144,128]{1,0:T(1,128)}', space=vmem, size = 0x12000, scoped, tag = 'internal scratch']
  %s0 = inlined_call_operand.vmem [shape: bf16[2,720], index: 0, kind: input, shape index: {}]
  %s1 = inlined_call_operand.vmem [shape: bf16[720,84], index: 1, kind: input, shape index: {}]
  %s2 = inlined_call_operand.vmem [shape: f32[1,84], index: 2, kind: input, shape index: {}]
  %s3 = inlined_call_operand.vmem [shape: f32[84,10], index: 3, kind: input, shape index: {}]
  %s4 = inlined_call_operand.vmem [shape: f32[1,10], index: 4, kind: input, shape index: {}]
  %s5 = inlined_call_operand.hbm [shape: f32[2,10], index: 5, kind: output, shape index: {}]
  %s6 = sld [smem:[#allocation0]]
  $region30: #{lenet_forward.11} parent=0
    _
  %s8 = ssub.s32 1, %s6
  %s9 = scalar_select 0, %s8, %s6
  $region1: #{lenet_forward.11} parent=0
    #allocation2 [shape = 'u8[1024]{0}', space=vmem, size = 0x400, scoped, tag = 'output window, operand 0, single buffered']
    #allocation3 [shape = 's32[1]{0}', space=sflag, size = 0x4, scoped, tag = 'scoped memory for lenet_forward.11']
    %10 = vsyncpa [#allocation3], 0
    // Predicated region
    $region2: #{lenet_forward.11} parent=1 // pred_check
      _
    $region3: #{lenet_forward.11} parent=1 // pred_check_branch
      %12 = sbr.rel (0) target = $region5
    $region4: #{lenet_forward.11} parent=1 // pred_region
      _
    $region5: #{lenet_forward.11} parent=1 // pred_fallthru
      _
    // Predicated region
    $region6: #{lenet_forward.11} parent=1 // pred_check
      _
    $region7: #{lenet_forward.11} parent=1 // pred_check_branch
      %14 = sbr.rel (0) target = $region9
    $region8: #{lenet_forward.11} parent=1 // pred_region
      _
    $region9: #{lenet_forward.11} parent=1 // pred_fallthru
      _
    // Predicated region
    $region10: #{lenet_forward.11} parent=1 // pred_check
      _
    $region11: #{lenet_forward.11} parent=1 // pred_check_branch
      %16 = sbr.rel (0) target = $region13
    $region12: #{lenet_forward.11} parent=1 // pred_region
      _
    $region13: #{lenet_forward.11} parent=1 // pred_fallthru
      _
    // Predicated region
    $region14: #{lenet_forward.11} parent=1 // pred_check
      _
    $region15: #{lenet_forward.11} parent=1 // pred_check_branch
      %18 = sbr.rel (0) target = $region17
    $region16: #{lenet_forward.11} parent=1 // pred_region
      _
    $region17: #{lenet_forward.11} parent=1 // pred_fallthru
      _
    // Predicated region
    $region18: #{lenet_forward.11} parent=1 // pred_check
      _
    $region19: #{lenet_forward.11} parent=1 // pred_check_branch
      %20 = sbr.rel (0) target = $region21
    $region20: #{lenet_forward.11} parent=1 // pred_region
      _
    $region21: #{lenet_forward.11} parent=1 // pred_fallthru
      _
    %v22 = vld [vmem:[%s0] sm:$0x3f]
    %v23 = vld [vmem:[%s1] sm:$0xf]
    %v24 = vld [vmem:[%s1 + $0x4] sm:$0xf]
    %v25 = vld [vmem:[%s1 + $0x8] sm:$0xf]
    %v26 = vld [vmem:[%s1 + $0xc] sm:$0xf]
    %v27 = vld [vmem:[%s1 + $0x10] sm:$0xf]
    %v28 = vld [vmem:[%s1 + $0x14] sm:$0xf]
    %v29 = vld [vmem:[%s1 + $0x18] sm:$0xf]
    %v30 = vld [vmem:[%s1 + $0x1c] sm:$0xf]
    %v31 = vld [vmem:[%s1 + $0x20] sm:$0xf]
    %v32 = vld [vmem:[%s1 + $0x24] sm:$0xf]
    %v33 = vld [vmem:[%s1 + $0x28] sm:$0xf]
    %v34 = vld [vmem:[%s1 + $0x2c] sm:$0xf]
    %v35 = vld [vmem:[%s1 + $0x30] sm:$0xf]
    %v36 = vld [vmem:[%s1 + $0x34] sm:$0xf]
    %v37 = vld [vmem:[%s1 + $0x38] sm:$0xf]
    %v38 = vld [vmem:[%s1 + $0x3c] sm:$0xf]
    %v39 = vld [vmem:[%s1 + $0x40] sm:$0xf]
    %v40 = vld [vmem:[%s1 + $0x44] sm:$0xf]
    %v41 = vld [vmem:[%s1 + $0x48] sm:$0xf]
    %v42 = vld [vmem:[%s1 + $0x4c] sm:$0xf]
    %v43 = vld [vmem:[%s1 + $0x50] sm:$0xf]
    %v44 = vld [vmem:[%s1 + $0x54] sm:$0xf]
    %v45 = vld [vmem:[%s1 + $0x58] sm:$0xf]
    %v46 = vld [vmem:[%s1 + $0x5c] sm:$0xf]
    %v47 = vld [vmem:[%s1 + $0x60] sm:$0xf]
    %v48 = vld [vmem:[%s1 + $0x64] sm:$0xf]
    %v49 = vld [vmem:[%s1 + $0x68] sm:$0xf]
    %v50 = vld [vmem:[%s1 + $0x6c] sm:$0xf]
    %v51 = vld [vmem:[%s1 + $0x70] sm:$0xf]
    %v52 = vld [vmem:[%s1 + $0x74] sm:$0xf]
    %v53 = vld [vmem:[%s1 + $0x78] sm:$0xf]
    %v54 = vld [vmem:[%s1 + $0x7c] sm:$0xf]
    %v55 = vld [vmem:[%s1 + $0x80] sm:$0xf]
    %v56 = vld [vmem:[%s1 + $0x84] sm:$0xf]
    %v57 = vld [vmem:[%s1 + $0x88] sm:$0xf]
    %v58 = vld [vmem:[%s1 + $0x8c] sm:$0xf]
    %v59 = vld [vmem:[%s1 + $0x90] sm:$0xf]
    %v60 = vld [vmem:[%s1 + $0x94] sm:$0xf]
    %v61 = vld [vmem:[%s1 + $0x98] sm:$0xf]
    %v62 = vld [vmem:[%s1 + $0x9c] sm:$0xf]
    %v63 = vld [vmem:[%s1 + $0xa0] sm:$0xf]
    %v64 = vld [vmem:[%s1 + $0xa4] sm:$0xf]
    %v65 = vld [vmem:[%s1 + $0xa8] sm:$0xf]
    %v66 = vld [vmem:[%s1 + $0xac] sm:$0xf]
    %v67 = vld [vmem:[%s1 + $0xb0] sm:$0xf]
    %v68 = vld [vmem:[%s1 + $0xb4] sm:$0xf]
    %v69 = vld [vmem:[%s1 + $0xb8] sm:$0xf]
    %v70 = vld [vmem:[%s1 + $0xbc] sm:$0xf]
    %v71 = vld [vmem:[%s1 + $0xc0] sm:$0xf]
    %v72 = vld [vmem:[%s1 + $0xc4] sm:$0xf]
    %v73 = vld [vmem:[%s1 + $0xc8] sm:$0xf]
    %v74 = vld [vmem:[%s1 + $0xcc] sm:$0xf]
    %v75 = vld [vmem:[%s1 + $0xd0] sm:$0xf]
    %v76 = vld [vmem:[%s1 + $0xd4] sm:$0xf]
    %v77 = vld [vmem:[%s1 + $0xd8] sm:$0xf]
    %v78 = vld [vmem:[%s1 + $0xdc] sm:$0xf]
    %v79 = vld [vmem:[%s1 + $0xe0] sm:$0xf]
    %v80 = vld [vmem:[%s1 + $0xe4] sm:$0xf]
    %v81 = vld [vmem:[%s1 + $0xe8] sm:$0xf]
    %v82 = vld [vmem:[%s1 + $0xec] sm:$0xf]
    %v83 = vld [vmem:[%s1 + $0xf0] sm:$0xf]
    %v84 = vld [vmem:[%s1 + $0xf4] sm:$0xf]
    %v85 = vld [vmem:[%s1 + $0xf8] sm:$0xf]
    %v86 = vld [vmem:[%s1 + $0xfc] sm:$0xf]
    %v87 = vld [vmem:[%s1 + $0x100] sm:$0xf]
    %v88 = vld [vmem:[%s1 + $0x104] sm:$0xf]
    %v89 = vld [vmem:[%s1 + $0x108] sm:$0xf]
    %v90 = vld [vmem:[%s1 + $0x10c] sm:$0xf]
    %v91 = vld [vmem:[%s1 + $0x110] sm:$0xf]
    %v92 = vld [vmem:[%s1 + $0x114] sm:$0xf]
    %v93 = vld [vmem:[%s1 + $0x118] sm:$0xf]
    %v94 = vld [vmem:[%s1 + $0x11c] sm:$0xf]
    %v95 = vld [vmem:[%s1 + $0x120] sm:$0xf]
    %v96 = vld [vmem:[%s1 + $0x124] sm:$0xf]
    %v97 = vld [vmem:[%s1 + $0x128] sm:$0xf]
    %v98 = vld [vmem:[%s1 + $0x12c] sm:$0xf]
    %v99 = vld [vmem:[%s1 + $0x130] sm:$0xf]
    %v100 = vld [vmem:[%s1 + $0x134] sm:$0xf]
    %v101 = vld [vmem:[%s1 + $0x138] sm:$0xf]
    %v102 = vld [vmem:[%s1 + $0x13c] sm:$0xf]
    %v103 = vld [vmem:[%s1 + $0x140] sm:$0xf]
    %v104 = vld [vmem:[%s1 + $0x144] sm:$0xf]
    %v105 = vld [vmem:[%s1 + $0x148] sm:$0xf]
    %v106 = vld [vmem:[%s1 + $0x14c] sm:$0xf]
    %v107 = vld [vmem:[%s1 + $0x150] sm:$0xf]
    %v108 = vld [vmem:[%s1 + $0x154] sm:$0xf]
    %v109 = vld [vmem:[%s1 + $0x158] sm:$0xf]
    %v110 = vld [vmem:[%s1 + $0x15c] sm:$0xf]
    %v111 = vld [vmem:[%s1 + $0x160] sm:$0xf]
    %v112 = vld [vmem:[%s1 + $0x164] sm:$0xf]
    %v113 = vld [vmem:[%s2] sm:$0x1]
    %v115 = vlaneseq
    %v116 = vshrl.u32 %v115, 7
    %v117 = vsub.s32 0, %v116
    %v118 = vrot.slane %v113, %v117
    %v121 = vcombine.high %v22, %v22
    %v123 = vunpack.c.l.s4 1966171168
    %v124 = vunpack.c.0.s8 %v123
    %v125 = vlaneseq
    %v126 = vshrl.u32 %v125, 7
    %v127 = vsub.s32 %v124, %v126
    %v128 = vrot.slane %v22, %v127
    %v130 = vunpack.c.l.s4 1966171168
    %v131 = vunpack.c.0.s8 %v130
    %v132 = vlaneseq
    %v133 = vshrl.u32 %v132, 7
    %v134 = vsub.s32 %v131, %v133
    %v135 = vrot.slane %v121, %v134
    %v136 = vcombine.high %v128, %v128
    %v137 = vcombine.high %v135, %v135
    %v139 = vunpack.c.l.s4 1966171168
    %v140 = vunpack.c.0.s8 %v139
    %v141 = vlaneseq
    %v142 = vshrl.u32 %v141, 7
    %v143 = vsub.s32 %v140, %v142
    %v144 = vrot.slane %v128, %v143
    %v146 = vunpack.c.l.s4 1966171168
    %v147 = vunpack.c.0.s8 %v146
    %v148 = vlaneseq
    %v149 = vshrl.u32 %v148, 7
    %v150 = vsub.s32 %v147, %v149
    %v151 = vrot.slane %v135, %v150
    %v153 = vunpack.c.l.s4 1966171168
    %v154 = vunpack.c.0.s8 %v153
    %v155 = vlaneseq
    %v156 = vshrl.u32 %v155, 7
    %v157 = vsub.s32 %v154, %v156
    %v158 = vrot.slane %v136, %v157
    %v160 = vunpack.c.l.s4 1966171168
    %v161 = vunpack.c.0.s8 %v160
    %v162 = vlaneseq
    %v163 = vshrl.u32 %v162, 7
    %v164 = vsub.s32 %v161, %v163
    %v165 = vrot.slane %v137, %v164
    %v166 = vcombine.high %v144, %v144
    %v167 = vcombine.high %v158, %v158
    %v263 = vunpack.c.l.b16 %v23
    %v264 = vunpack.c.l.b16 %v24
    %v265 = vunpack.c.l.b16 %v25
    %v266 = vunpack.c.l.b16 %v26
    %v267 = vunpack.c.l.b16 %v27
    %v268 = vunpack.c.l.b16 %v28
    %v269 = vunpack.c.l.b16 %v29
    %v270 = vunpack.c.l.b16 %v30
    %v271 = vunpack.c.l.b16 %v31
    %v272 = vunpack.c.l.b16 %v32
    %v273 = vunpack.c.l.b16 %v33
    %v274 = vunpack.c.l.b16 %v34
    %v275 = vunpack.c.l.b16 %v35
    %v276 = vunpack.c.l.b16 %v36
    %v277 = vunpack.c.l.b16 %v37
    %v278 = vunpack.c.l.b16 %v38
    %v279 = vunpack.c.l.b16 %v39
    %v280 = vunpack.c.l.b16 %v40
    %v281 = vunpack.c.l.b16 %v41
    %v282 = vunpack.c.l.b16 %v42
    %v283 = vunpack.c.l.b16 %v43
    %v284 = vunpack.c.l.b16 %v44
    %v285 = vunpack.c.l.b16 %v45
    %v286 = vunpack.c.l.b16 %v46
    %v287 = vunpack.c.l.b16 %v47
    %v288 = vunpack.c.l.b16 %v48
    %v289 = vunpack.c.l.b16 %v49
    %v290 = vunpack.c.l.b16 %v50
    %v291 = vunpack.c.l.b16 %v51
    %v292 = vunpack.c.l.b16 %v52
    %v293 = vunpack.c.l.b16 %v53
    %v294 = vunpack.c.l.b16 %v54
    %v295 = vunpack.c.l.b16 %v55
    %v296 = vunpack.c.l.b16 %v56
    %v297 = vunpack.c.l.b16 %v57
    %v298 = vunpack.c.l.b16 %v58
    %v299 = vunpack.c.l.b16 %v59
    %v300 = vunpack.c.l.b16 %v60
    %v301 = vunpack.c.l.b16 %v61
    %v302 = vunpack.c.l.b16 %v62
    %v303 = vunpack.c.l.b16 %v63
    %v304 = vunpack.c.l.b16 %v64
    %v305 = vunpack.c.l.b16 %v65
    %v306 = vunpack.c.l.b16 %v66
    %v307 = vunpack.c.l.b16 %v67
    %v308 = vunpack.c.l.b16 %v68
    %v309 = vunpack.c.l.b16 %v69
    %v310 = vunpack.c.l.b16 %v70
    %v311 = vunpack.c.l.b16 %v71
    %v312 = vunpack.c.l.b16 %v72
    %v313 = vunpack.c.l.b16 %v73
    %v314 = vunpack.c.l.b16 %v74
    %v315 = vunpack.c.l.b16 %v75
    %v316 = vunpack.c.l.b16 %v76
    %v317 = vunpack.c.l.b16 %v77
    %v318 = vunpack.c.l.b16 %v78
    %v319 = vunpack.c.l.b16 %v79
    %v320 = vunpack.c.l.b16 %v80
    %v321 = vunpack.c.l.b16 %v81
    %v322 = vunpack.c.l.b16 %v82
    %v323 = vunpack.c.l.b16 %v83
    %v324 = vunpack.c.l.b16 %v84
    %v325 = vunpack.c.l.b16 %v85
    %v326 = vunpack.c.l.b16 %v86
    %v327 = vunpack.c.l.b16 %v87
    %v328 = vunpack.c.l.b16 %v88
    %v329 = vunpack.c.l.b16 %v89
    %v330 = vunpack.c.l.b16 %v90
    %v331 = vunpack.c.l.b16 %v91
    %v332 = vunpack.c.l.b16 %v92
    %v333 = vunpack.c.l.b16 %v93
    %v334 = vunpack.c.l.b16 %v94
    %v335 = vunpack.c.l.b16 %v95
    %v336 = vunpack.c.l.b16 %v96
    %v337 = vunpack.c.l.b16 %v97
    %v338 = vunpack.c.l.b16 %v98
    %v339 = vunpack.c.l.b16 %v99
    %v340 = vunpack.c.l.b16 %v100
    %v341 = vunpack.c.l.b16 %v101
    %v342 = vunpack.c.l.b16 %v102
    %v343 = vunpack.c.l.b16 %v103
    %v344 = vunpack.c.l.b16 %v104
    %v345 = vunpack.c.l.b16 %v105
    %v346 = vunpack.c.l.b16 %v106
    %v347 = vunpack.c.l.b16 %v107
    %v348 = vunpack.c.l.b16 %v108
    %v349 = vunpack.c.l.b16 %v109
    %v350 = vunpack.c.l.b16 %v110
    %v351 = vunpack.c.l.b16 %v111
    %v352 = vunpack.c.l.b16 %v112
    %v353 = vpack.c.b16 %v264, %v263
    %v354 = vpack.c.b16 %v266, %v265
    %v355 = vpack.c.b16 %v268, %v267
    %v356 = vpack.c.b16 %v270, %v269
    %v357 = vpack.c.b16 %v272, %v271
    %v358 = vpack.c.b16 %v274, %v273
    %v359 = vpack.c.b16 %v276, %v275
    %v360 = vpack.c.b16 %v278, %v277
    %v361 = vpack.c.b16 %v280, %v279
    %v362 = vpack.c.b16 %v282, %v281
    %v363 = vpack.c.b16 %v284, %v283
    %v364 = vpack.c.b16 %v286, %v285
    %v365 = vpack.c.b16 %v288, %v287
    %v366 = vpack.c.b16 %v290, %v289
    %v367 = vpack.c.b16 %v292, %v291
    %v368 = vpack.c.b16 %v294, %v293
    %v369 = vpack.c.b16 %v296, %v295
    %v370 = vpack.c.b16 %v298, %v297
    %v371 = vpack.c.b16 %v300, %v299
    %v372 = vpack.c.b16 %v302, %v301
    %v373 = vpack.c.b16 %v304, %v303
    %v374 = vpack.c.b16 %v306, %v305
    %v375 = vpack.c.b16 %v308, %v307
    %v376 = vpack.c.b16 %v310, %v309
    %v377 = vpack.c.b16 %v312, %v311
    %v378 = vpack.c.b16 %v314, %v313
    %v379 = vpack.c.b16 %v316, %v315
    %v380 = vpack.c.b16 %v318, %v317
    %v381 = vpack.c.b16 %v320, %v319
    %v382 = vpack.c.b16 %v322, %v321
    %v383 = vpack.c.b16 %v324, %v323
    %v384 = vpack.c.b16 %v326, %v325
    %v385 = vpack.c.b16 %v328, %v327
    %v386 = vpack.c.b16 %v330, %v329
    %v387 = vpack.c.b16 %v332, %v331
    %v388 = vpack.c.b16 %v334, %v333
    %v389 = vpack.c.b16 %v336, %v335
    %v390 = vpack.c.b16 %v338, %v337
    %v391 = vpack.c.b16 %v340, %v339
    %v392 = vpack.c.b16 %v342, %v341
    %v393 = vpack.c.b16 %v344, %v343
    %v394 = vpack.c.b16 %v346, %v345
    %v395 = vpack.c.b16 %v348, %v347
    %v396 = vpack.c.b16 %v350, %v349
    %v397 = vpack.c.b16 %v352, %v351
    %vm443 = vcmask 654336
    %v445 = vsel %vm443, %v165, 0
    %447 = vmatprep.subr.bf16.mxu0 0
    %448 = vmatpush1.bf16.msra.mxu0 %v353
    %449 = vmatprep.subr.bf16.mxu0 0
    %450 = vmatpush1.bf16.msra.mxu0 %v354
    %451 = vmatprep.subr.bf16.mxu0 0
    %452 = vmatpush1.bf16.msra.mxu0 %v355
    %453 = vmatprep.subr.bf16.mxu0 0
    %454 = vmatpush1.bf16.msra.mxu0 %v356
    %455 = vmatprep.subr.bf16.mxu0 0
    %456 = vmatpush1.bf16.msra.mxu0 %v357
    %457 = vmatprep.subr.bf16.mxu0 0
    %458 = vmatpush1.bf16.msra.mxu0 %v358
    %459 = vmatprep.subr.bf16.mxu0 0
    %460 = vmatpush1.bf16.msra.mxu0 %v359
    %461 = vmatprep.subr.bf16.mxu0 0
    %462 = vmatpush1.bf16.msra.mxu0 %v360
    %463 = vmatprep.subr.bf16.mxu0 0
    %464 = vmatpush1.bf16.msra.mxu0 %v361
    %465 = vmatprep.subr.bf16.mxu0 0
    %466 = vmatpush1.bf16.msra.mxu0 %v362
    %467 = vmatprep.subr.bf16.mxu0 0
    %468 = vmatpush1.bf16.msra.mxu0 %v363
    %469 = vmatprep.subr.bf16.mxu0 0
    %470 = vmatpush1.bf16.msra.mxu0 %v364
    %471 = vmatprep.subr.bf16.mxu0 0
    %472 = vmatpush1.bf16.msra.mxu0 %v365
    %473 = vmatprep.subr.bf16.mxu0 0
    %474 = vmatpush1.bf16.msra.mxu0 %v366
    %475 = vmatprep.subr.bf16.mxu0 0
    %476 = vmatpush1.bf16.msra.mxu0 %v367
    %477 = vmatprep.subr.bf16.mxu0 0
    %478 = vmatpush1.bf16.msra.mxu0 %v368
    %479 = vmatprep.mubr.bf16.mxu0 %v158
    %480 = vmatmul.mubr.bf16.gmra.mrb[0].mxu0 %v144
    %v481 = vpop.f32.mrb[0].mxu0
    %v482 = vadd.f32 %v118, %v481
    %v483 = vpop.f32.mrb[0].mxu0
    %v484 = vpop.f32.mrb[0].mxu0
    %v485 = vpop.f32.mrb[0].mxu0
    %486 = vdwg.mxu0
    %487 = vmatprep.subr.bf16.mxu0 0
    %488 = vmatpush1.bf16.msra.mxu0 %v369
    %489 = vmatprep.subr.bf16.mxu0 0
    %490 = vmatpush1.bf16.msra.mxu0 %v370
    %491 = vmatprep.subr.bf16.mxu0 0
    %492 = vmatpush1.bf16.msra.mxu0 %v371
    %493 = vmatprep.subr.bf16.mxu0 0
    %494 = vmatpush1.bf16.msra.mxu0 %v372
    %495 = vmatprep.subr.bf16.mxu0 0
    %496 = vmatpush1.bf16.msra.mxu0 %v373
    %497 = vmatprep.subr.bf16.mxu0 0
    %498 = vmatpush1.bf16.msra.mxu0 %v374
    %499 = vmatprep.subr.bf16.mxu0 0
    %500 = vmatpush1.bf16.msra.mxu0 %v375
    %501 = vmatprep.subr.bf16.mxu0 0
    %502 = vmatpush1.bf16.msra.mxu0 %v376
    %503 = vmatprep.subr.bf16.mxu0 0
    %504 = vmatpush1.bf16.msra.mxu0 %v377
    %505 = vmatprep.subr.bf16.mxu0 0
    %506 = vmatpush1.bf16.msra.mxu0 %v378
    %507 = vmatprep.subr.bf16.mxu0 0
    %508 = vmatpush1.bf16.msra.mxu0 %v379
    %509 = vmatprep.subr.bf16.mxu0 0
    %510 = vmatpush1.bf16.msra.mxu0 %v380
    %511 = vmatprep.subr.bf16.mxu0 0
    %512 = vmatpush1.bf16.msra.mxu0 %v381
    %513 = vmatprep.subr.bf16.mxu0 0
    %514 = vmatpush1.bf16.msra.mxu0 %v382
    %515 = vmatprep.subr.bf16.mxu0 0
    %516 = vmatpush1.bf16.msra.mxu0 %v383
    %517 = vmatprep.subr.bf16.mxu0 0
    %518 = vmatpush1.bf16.msra.mxu0 %v384
    %519 = vmatprep.mubr.bf16.mxu0 %v167
    %520 = vmatmul.mubr.bf16.gmra.mrb[0].mxu0 %v166
    %v521 = vpop.f32.mrb[0].mxu0
    %v522 = vadd.f32 %v482, %v521
    %v523 = vpop.f32.mrb[0].mxu0
    %v524 = vpop.f32.mrb[0].mxu0
    %v525 = vpop.f32.mrb[0].mxu0
    %526 = vdwg.mxu0
    %527 = vmatprep.subr.bf16.mxu0 0
    %528 = vmatpush1.bf16.msra.mxu0 %v385
    %529 = vmatprep.subr.bf16.mxu0 0
    %530 = vmatpush1.bf16.msra.mxu0 %v386
    %531 = vmatprep.subr.bf16.mxu0 0
    %532 = vmatpush1.bf16.msra.mxu0 %v387
    %533 = vmatprep.subr.bf16.mxu0 0
    %534 = vmatpush1.bf16.msra.mxu0 %v388
    %535 = vmatprep.subr.bf16.mxu0 0
    %536 = vmatpush1.bf16.msra.mxu0 %v389
    %537 = vmatprep.subr.bf16.mxu0 0
    %538 = vmatpush1.bf16.msra.mxu0 %v390
    %539 = vmatprep.subr.bf16.mxu0 0
    %540 = vmatpush1.bf16.msra.mxu0 %v391
    %541 = vmatprep.subr.bf16.mxu0 0
    %542 = vmatpush1.bf16.msra.mxu0 %v392
    %543 = vmatprep.subr.bf16.mxu0 0
    %544 = vmatpush1.bf16.msra.mxu0 %v393
    %545 = vmatprep.subr.bf16.mxu0 0
    %546 = vmatpush1.bf16.msra.mxu0 %v394
    %547 = vmatprep.subr.bf16.mxu0 0
    %548 = vmatpush1.bf16.msra.mxu0 %v395
    %549 = vmatprep.subr.bf16.mxu0 0
    %550 = vmatpush1.bf16.msra.mxu0 %v396
    %551 = vmatprep.subr.bf16.mxu0 0
    %552 = vmatpush1.bf16.msra.mxu0 %v397
    %553 = vmatprep.subr.bf16.mxu0 0
    %554 = vmatpush1.bf16.msra.mxu0 0
    %555 = vmatprep.subr.bf16.mxu0 0
    %556 = vmatpush1.bf16.msra.mxu0 0
    %557 = vmatprep.subr.bf16.mxu0 0
    %558 = vmatpush1.bf16.msra.mxu0 0
    %559 = vmatprep.mubr.bf16.mxu0 %v445
    %560 = vmatmul.mubr.bf16.gmra.mrb[0].mxu0 %v151
    %v561 = vpop.f32.mrb[0].mxu0
    %v562 = vadd.f32 %v522, %v561
    %v563 = vpop.f32.mrb[0].mxu0
    %v564 = vpop.f32.mrb[0].mxu0
    %v565 = vpop.f32.mrb[0].mxu0
    %566 = vdwg.mxu0
    %v567 = vld [vmem:[%s3] sm:$0xff]
    %v568 = vld [vmem:[%s3 + $0x8] sm:$0xff]
    %v569 = vld [vmem:[%s3 + $0x10] sm:$0xff]
    %v570 = vld [vmem:[%s3 + $0x18] sm:$0xff]
    %v571 = vld [vmem:[%s3 + $0x20] sm:$0xff]
    %v572 = vld [vmem:[%s3 + $0x28] sm:$0xff]
    %v573 = vld [vmem:[%s3 + $0x30] sm:$0xff]
    %v574 = vld [vmem:[%s3 + $0x38] sm:$0xff]
    %v575 = vld [vmem:[%s3 + $0x40] sm:$0xff]
    %v576 = vld [vmem:[%s3 + $0x48] sm:$0xff]
    %v577 = vld [vmem:[%s3 + $0x50] sm:$0xf]
    %v578 = vld [vmem:[%s4] sm:$0x1]
    %v580 = vlaneseq
    %v581 = vshrl.u32 %v580, 7
    %v582 = vsub.s32 0, %v581
    %v583 = vrot.slane %v578, %v582
    %vm585 = vcmask 687104
    %v587 = vsel %vm585, %v562, 0
    %vm589 = vcmask 1043456
    %v591 = vsel %vm589, %v577, 0
    %593 = vmatprep.subr.mxu0 0.0
    %594 = vmatpush1.msra.mxu0 %v567
    %595 = vmatprep.subr.mxu0 0.0
    %596 = vmatpush1.msra.mxu0 %v568
    %597 = vmatprep.subr.mxu0 0.0
    %598 = vmatpush1.msra.mxu0 %v569
    %599 = vmatprep.subr.mxu0 0.0
    %600 = vmatpush1.msra.mxu0 %v570
    %601 = vmatprep.subr.mxu0 0.0
    %602 = vmatpush1.msra.mxu0 %v571
    %603 = vmatprep.subr.mxu0 0.0
    %604 = vmatpush1.msra.mxu0 %v572
    %605 = vmatprep.subr.mxu0 0.0
    %606 = vmatpush1.msra.mxu0 %v573
    %607 = vmatprep.subr.mxu0 0.0
    %608 = vmatpush1.msra.mxu0 %v574
    %609 = vmatprep.subr.mxu0 0.0
    %610 = vmatpush1.msra.mxu0 %v575
    %611 = vmatprep.subr.mxu0 0.0
    %612 = vmatpush1.msra.mxu0 %v576
    %613 = vmatprep.subr.mxu0 0.0
    %614 = vmatpush1.msra.mxu0 %v591
    %615 = vmatprep.subr.mxu0 0.0
    %616 = vmatpush1.msra.mxu0 0.0
    %617 = vmatprep.subr.mxu0 0.0
    %618 = vmatpush1.msra.mxu0 0.0
    %619 = vmatprep.subr.mxu0 0.0
    %620 = vmatpush1.msra.mxu0 0.0
    %621 = vmatprep.subr.mxu0 0.0
    %622 = vmatpush1.msra.mxu0 0.0
    %623 = vmatprep.subr.mxu0 0.0
    %624 = vmatpush1.msra.mxu0 0.0
    %625 = vmatprep.subr.mxu0 0.0
    %626 = vmatpush1.msra.mxu0 0.0
    %627 = vmatprep.subr.mxu0 0.0
    %628 = vmatpush1.msra.mxu0 0.0
    %629 = vmatprep.subr.mxu0 0.0
    %630 = vmatpush1.msra.mxu0 0.0
    %631 = vmatprep.subr.mxu0 0.0
    %632 = vmatpush1.msra.mxu0 0.0
    %633 = vmatprep.subr.mxu0 0.0
    %634 = vmatpush1.msra.mxu0 0.0
    %635 = vmatprep.subr.mxu0 0.0
    %636 = vmatpush1.msra.mxu0 0.0
    %637 = vmatprep.subr.mxu0 0.0
    %638 = vmatpush1.msra.mxu0 0.0
    %639 = vmatprep.subr.mxu0 0.0
    %640 = vmatpush1.msra.mxu0 0.0
    %641 = vmatprep.subr.mxu0 0.0
    %642 = vmatpush1.msra.mxu0 0.0
    %643 = vmatprep.subr.mxu0 0.0
    %644 = vmatpush1.msra.mxu0 0.0
    %645 = vmatprep.subr.mxu0 0.0
    %646 = vmatpush1.msra.mxu0 0.0
    %647 = vmatprep.subr.mxu0 0.0
    %648 = vmatpush1.msra.mxu0 0.0
    %649 = vmatprep.subr.mxu0 0.0
    %650 = vmatpush1.msra.mxu0 0.0
    %651 = vmatprep.subr.mxu0 0.0
    %652 = vmatpush1.msra.mxu0 0.0
    %653 = vmatprep.subr.mxu0 0.0
    %654 = vmatpush1.msra.mxu0 0.0
    %655 = vmatprep.subr.mxu0 0.0
    %656 = vmatpush1.msra.mxu0 0.0
    %657 = vmatprep.mubr.f32.mxu0 0.0
    %658 = vmatmul.mubr.f32.gmra.mrb[0].mxu0 %v587
    %v659 = vpop.f32.mrb[0].mxu0
    %v660 = vadd.f32 %v583, %v659
    %v661 = vpop.f32.mrb[0].mxu0
    %662 = vdwg.mxu0
    %vm663 = vcmask 74752
    %664 = vst.msk [vmem:[#allocation2] sm:$0x3] %vm663, %v660
    // Predicated region
    $region22: #{lenet_forward.11} parent=1 // pred_check
      _
    $region23: #{lenet_forward.11} parent=1 // pred_check_branch
      %666 = sbr.rel (0) target = $region25
    $region24: #{lenet_forward.11} parent=1 // pred_region
      %s668 = ssub.s32 32, 32
      %669 = vsyncadd [#allocation3], %s668
      %s671 = sshll.u32 [#allocation2], 4
      %s672 = int_to_ptr.vmem [resolvable:$true] %s671
      %674 = dma.vmem_to_hbm [thread:$0]  %s672, 32, %s5, [#allocation3]
    $region25: #{lenet_forward.11} parent=1 // pred_fallthru
      _
    // Predicated region
    $region26: #{lenet_forward.11} parent=1 // pred_check
      _
    $region27: #{lenet_forward.11} parent=1 // pred_check_branch
      %676 = sbr.rel (0) target = $region29
    $region28: #{lenet_forward.11} parent=1 // pred_region
      %677 = dma.done [#allocation3], 32
    $region29: #{lenet_forward.11} parent=1 // pred_fallthru
      _
    %678 = vsyncpa [#allocation3], 1

// kernel: lenet_forward.7
$region0: #{lenet_forward.7}
  #allocation0 [shape = 'u32[]', space=smem, size = 0x4, offset = 0x4, fixed_abs, tag = 'smem constant byte address 0x4 - core index']
  #allocation1 [shape = 'u32[144,128]{1,0:T(1,128)}', space=vmem, size = 0x12000, scoped, tag = 'internal scratch']
  %s0 = inlined_call_operand.vmem [shape: bf16[4,128,45], index: 0, kind: input, shape index: {}]
  %s1 = inlined_call_operand.vmem [shape: bf16[45,10], index: 1, kind: input, shape index: {}]
  %s2 = inlined_call_operand.vmem [shape: f32[1,10], index: 2, kind: input, shape index: {}]
  %s3 = inlined_call_operand.vmem [shape: bf16[128,10], index: 3, kind: output, shape index: {}]
  %s4 = sld [smem:[#allocation0]]
  $region22: #{lenet_forward.7} parent=0
    _
  %s6 = ssub.s32 1, %s4
  %s7 = scalar_select 0, %s6, %s4
  // Predicated region
  $region2: #{lenet_forward.7} parent=0 // pred_check
    _
  $region3: #{lenet_forward.7} parent=0 // pred_check_branch
    %9 = sbr.rel (0) target = $region5
  $region4: #{lenet_forward.7} parent=0 // pred_region
    _
  $region5: #{lenet_forward.7} parent=0 // pred_fallthru
    _
  // Predicated region
  $region6: #{lenet_forward.7} parent=0 // pred_check
    _
  $region7: #{lenet_forward.7} parent=0 // pred_check_branch
    %11 = sbr.rel (0) target = $region9
  $region8: #{lenet_forward.7} parent=0 // pred_region
    _
  $region9: #{lenet_forward.7} parent=0 // pred_fallthru
    _
  // Predicated region
  $region10: #{lenet_forward.7} parent=0 // pred_check
    _
  $region11: #{lenet_forward.7} parent=0 // pred_check_branch
    %13 = sbr.rel (0) target = $region13
  $region12: #{lenet_forward.7} parent=0 // pred_region
    _
  $region13: #{lenet_forward.7} parent=0 // pred_fallthru
    _
  %v15 = vld [vmem:[%s1] sm:$0xf]
  %v16 = vld [vmem:[%s1 + $0x4] sm:$0xf]
  %v17 = vld [vmem:[%s1 + $0x8] sm:$0xf]
  %v18 = vld [vmem:[%s1 + $0xc] sm:$0xf]
  %v19 = vld [vmem:[%s1 + $0x10] sm:$0xf]
  %v20 = vld [vmem:[%s1 + $0x14] sm:$0x7]
  %v21 = vld [vmem:[%s2] sm:$0x1]
  %v22 = vld [vmem:[%s0] sm:$0xf]
  %v23 = vld [vmem:[%s0 + $0x4] sm:$0xf]
  %v24 = vld [vmem:[%s0 + $0x8] sm:$0xf]
  %v25 = vld [vmem:[%s0 + $0xc] sm:$0xf]
  %v26 = vld [vmem:[%s0 + $0x10] sm:$0xf]
  %v27 = vld [vmem:[%s0 + $0x14] sm:$0xf]
  %v28 = vld [vmem:[%s0 + $0x18] sm:$0xf]
  %v29 = vld [vmem:[%s0 + $0x1c] sm:$0xf]
  %v30 = vld [vmem:[%s0 + $0x20] sm:$0xf]
  %v31 = vld [vmem:[%s0 + $0x24] sm:$0xf]
  %v32 = vld [vmem:[%s0 + $0x28] sm:$0xf]
  %v33 = vld [vmem:[%s0 + $0x2c] sm:$0xf]
  %v34 = vld [vmem:[%s0 + $0x30] sm:$0xf]
  %v35 = vld [vmem:[%s0 + $0x34] sm:$0xf]
  %v36 = vld [vmem:[%s0 + $0x38] sm:$0xf]
  %v37 = vld [vmem:[%s0 + $0x3c] sm:$0xf]
  %v39 = vlaneseq
  %v40 = vshrl.u32 %v39, 7
  %v41 = vsub.s32 0, %v40
  %v42 = vrot.slane %v21, %v41
  %v60 = vunpack.c.l.b16 %v22
  %v61 = vunpack.c.l.b16 %v23
  %v62 = vunpack.c.l.b16 %v24
  %v63 = vunpack.c.l.b16 %v25
  %v64 = vunpack.c.l.b16 %v26
  %v65 = vunpack.c.l.b16 %v27
  %v66 = vunpack.c.l.b16 %v28
  %v67 = vunpack.c.l.b16 %v29
  %v68 = vunpack.c.l.b16 %v30
  %v69 = vunpack.c.l.b16 %v31
  %v70 = vunpack.c.l.b16 %v32
  %v71 = vunpack.c.l.b16 %v33
  %v72 = vunpack.c.l.b16 %v34
  %v73 = vunpack.c.l.b16 %v35
  %v74 = vunpack.c.l.b16 %v36
  %v75 = vunpack.c.l.b16 %v37
  %v76 = vpack.c.b16 %v61, %v60
  %v77 = vpack.c.b16 %v63, %v62
  %v78 = vpack.c.b16 %v65, %v64
  %v79 = vpack.c.b16 %v67, %v66
  %v80 = vpack.c.b16 %v69, %v68
  %v81 = vpack.c.b16 %v71, %v70
  %v82 = vpack.c.b16 %v73, %v72
  %v83 = vpack.c.b16 %v75, %v74
  %v90 = vunpack.c.l.b16 %v15
  %v91 = vunpack.c.l.b16 %v16
  %v92 = vunpack.c.l.b16 %v17
  %v93 = vunpack.c.l.b16 %v18
  %v94 = vunpack.c.l.b16 %v19
  %v95 = vunpack.c.l.b16 %v20
  %v96 = vpack.c.b16 %v91, %v90
  %v97 = vpack.c.b16 %v93, %v92
  %v98 = vpack.c.b16 %v95, %v94
  %vm101 = vcmask 367616
  %v103 = vsel %vm101, %v76, 0
  %v106 = vsel %vm101, %v77, 0
  %v109 = vsel %vm101, %v78, 0
  %v112 = vsel %vm101, %v79, 0
  %v115 = vsel %vm101, %v80, 0
  %v118 = vsel %vm101, %v81, 0
  %v121 = vsel %vm101, %v82, 0
  %v124 = vsel %vm101, %v83, 0
  %vm126 = vcmask 1045504
  %vm127 = vcmask 1046528
  %v128 = vsel %vm126, 4294967295, 65535
  %v129 = vsel %vm127, %v128, 0
  %v131 = vand.u32 %v98, %v129
  %133 = vmatprep.subr.bf16.mxu0 0
  %134 = vmatpush1.bf16.msra.mxu0 %v96
  %135 = vmatprep.subr.bf16.mxu0 0
  %136 = vmatpush1.bf16.msra.mxu0 %v97
  %137 = vmatprep.subr.bf16.mxu0 0
  %138 = vmatpush1.bf16.msra.mxu0 %v131
  %139 = vmatprep.subr.bf16.mxu0 0
  %140 = vmatpush1.bf16.msra.mxu0 0
  %141 = vmatprep.subr.bf16.mxu0 0
  %142 = vmatpush1.bf16.msra.mxu0 0
  %143 = vmatprep.subr.bf16.mxu0 0
  %144 = vmatpush1.bf16.msra.mxu0 0
  %145 = vmatprep.subr.bf16.mxu0 0
  %146 = vmatpush1.bf16.msra.mxu0 0
  %147 = vmatprep.subr.bf16.mxu0 0
  %148 = vmatpush1.bf16.msra.mxu0 0
  %149 = vmatprep.subr.bf16.mxu0 0
  %150 = vmatpush1.bf16.msra.mxu0 0
  %151 = vmatprep.subr.bf16.mxu0 0
  %152 = vmatpush1.bf16.msra.mxu0 0
  %153 = vmatprep.subr.bf16.mxu0 0
  %154 = vmatpush1.bf16.msra.mxu0 0
  %155 = vmatprep.subr.bf16.mxu0 0
  %156 = vmatpush1.bf16.msra.mxu0 0
  %157 = vmatprep.subr.bf16.mxu0 0
  %158 = vmatpush1.bf16.msra.mxu0 0
  %159 = vmatprep.subr.bf16.mxu0 0
  %160 = vmatpush1.bf16.msra.mxu0 0
  %161 = vmatprep.subr.bf16.mxu0 0
  %162 = vmatpush1.bf16.msra.mxu0 0
  %163 = vmatprep.subr.bf16.mxu0 0
  %164 = vmatpush1.bf16.msra.mxu0 0
  %165 = vmatprep.mubr.bf16.mxu0 0
  %166 = vmatmul.mubr.bf16.gmra.mrb[0].mxu0 %v103
  %v167 = vpop.f32.mrb[0].mxu0
  %v168 = vadd.f32 %v42, %v167
  %v169 = vpop.f32.mrb[0].mxu0
  %v170 = vpop.f32.mrb[0].mxu0
  %v171 = vadd.f32 %v42, %v170
  %v172 = vpop.f32.mrb[0].mxu0
  %173 = vmatprep.mubr.bf16.mxu0 0
  %174 = vmatmul.mubr.bf16.gmra.mrb[0].mxu0 %v106
  %v175 = vpop.f32.mrb[0].mxu0
  %v176 = vadd.f32 %v42, %v175
  %v177 = vpop.f32.mrb[0].mxu0
  %v178 = vpop.f32.mrb[0].mxu0
  %v179 = vadd.f32 %v42, %v178
  %v180 = vpop.f32.mrb[0].mxu0
  %181 = vmatprep.mubr.bf16.mxu0 0
  %182 = vmatmul.mubr.bf16.gmra.mrb[0].mxu0 %v109
  %v183 = vpop.f32.mrb[0].mxu0
  %v184 = vadd.f32 %v42, %v183
  %v185 = vpop.f32.mrb[0].mxu0
  %v186 = vpop.f32.mrb[0].mxu0
  %v187 = vadd.f32 %v42, %v186
  %v188 = vpop.f32.mrb[0].mxu0
  %189 = vmatprep.mubr.bf16.mxu0 0
  %190 = vmatmul.mubr.bf16.gmra.mrb[0].mxu0 %v112
  %v191 = vpop.f32.mrb[0].mxu0
  %v192 = vadd.f32 %v42, %v191
  %v193 = vpop.f32.mrb[0].mxu0
  %v194 = vpop.f32.mrb[0].mxu0
  %v195 = vadd.f32 %v42, %v194
  %v196 = vpop.f32.mrb[0].mxu0
  %197 = vmatprep.mubr.bf16.mxu0 0
  %198 = vmatmul.mubr.bf16.gmra.mrb[0].mxu0 %v115
  %v199 = vpop.f32.mrb[0].mxu0
  %v200 = vadd.f32 %v42, %v199
  %v201 = vpop.f32.mrb[0].mxu0
  %v202 = vpop.f32.mrb[0].mxu0
  %v203 = vadd.f32 %v42, %v202
  %v204 = vpop.f32.mrb[0].mxu0
  %205 = vmatprep.mubr.bf16.mxu0 0
  %206 = vmatmul.mubr.bf16.gmra.mrb[0].mxu0 %v118
  %v207 = vpop.f32.mrb[0].mxu0
  %v208 = vadd.f32 %v42, %v207
  %v209 = vpop.f32.mrb[0].mxu0
  %v210 = vpop.f32.mrb[0].mxu0
  %v211 = vadd.f32 %v42, %v210
  %v212 = vpop.f32.mrb[0].mxu0
  %213 = vmatprep.mubr.bf16.mxu0 0
  %214 = vmatmul.mubr.bf16.gmra.mrb[0].mxu0 %v121
  %v215 = vpop.f32.mrb[0].mxu0
  %v216 = vadd.f32 %v42, %v215
  %v217 = vpop.f32.mrb[0].mxu0
  %v218 = vpop.f32.mrb[0].mxu0
  %v219 = vadd.f32 %v42, %v218
  %v220 = vpop.f32.mrb[0].mxu0
  %221 = vmatprep.mubr.bf16.mxu0 0
  %222 = vmatmul.mubr.bf16.gmra.mrb[0].mxu0 %v124
  %v223 = vpop.f32.mrb[0].mxu0
  %v224 = vadd.f32 %v42, %v223
  %v225 = vpop.f32.mrb[0].mxu0
  %v226 = vpop.f32.mrb[0].mxu0
  %v227 = vadd.f32 %v42, %v226
  %v228 = vpop.f32.mrb[0].mxu0
  %229 = vdwg.mxu0
  %v230 = vmax.f32 %v168, 0.0
  %v231 = vmax.f32 %v171, 0.0
  %v232 = vmax.f32 %v176, 0.0
  %v233 = vmax.f32 %v179, 0.0
  %v234 = vmax.f32 %v184, 0.0
  %v235 = vmax.f32 %v187, 0.0
  %v236 = vmax.f32 %v192, 0.0
  %v237 = vmax.f32 %v195, 0.0
  %v238 = vmax.f32 %v200, 0.0
  %v239 = vmax.f32 %v203, 0.0
  %v240 = vmax.f32 %v208, 0.0
  %v241 = vmax.f32 %v211, 0.0
  %v242 = vmax.f32 %v216, 0.0
  %v243 = vmax.f32 %v219, 0.0
  %v244 = vmax.f32 %v224, 0.0
  %v245 = vmax.f32 %v227, 0.0
  %s246 = scalar_lea.vmem %s0, 64
  %v247 = vld [vmem:[%s246] sm:$0xf]
  %v248 = vld [vmem:[%s246 + $0x4] sm:$0xf]
  %v249 = vld [vmem:[%s246 + $0x8] sm:$0xf]
  %v250 = vld [vmem:[%s246 + $0xc] sm:$0xf]
  %v251 = vld [vmem:[%s246 + $0x10] sm:$0xf]
  %v252 = vld [vmem:[%s246 + $0x14] sm:$0xf]
  %v253 = vld [vmem:[%s246 + $0x18] sm:$0xf]
  %v254 = vld [vmem:[%s246 + $0x1c] sm:$0xf]
  %v255 = vld [vmem:[%s246 + $0x20] sm:$0xf]
  %v256 = vld [vmem:[%s246 + $0x24] sm:$0xf]
  %v257 = vld [vmem:[%s246 + $0x28] sm:$0xf]
  %v258 = vld [vmem:[%s246 + $0x2c] sm:$0xf]
  %v259 = vld [vmem:[%s246 + $0x30] sm:$0xf]
  %v260 = vld [vmem:[%s246 + $0x34] sm:$0xf]
  %v261 = vld [vmem:[%s246 + $0x38] sm:$0xf]
  %v262 = vld [vmem:[%s246 + $0x3c] sm:$0xf]
  %v279 = vunpack.c.l.b16 %v247
  %v280 = vunpack.c.l.b16 %v248
  %v281 = vunpack.c.l.b16 %v249
  %v282 = vunpack.c.l.b16 %v250
  %v283 = vunpack.c.l.b16 %v251
  %v284 = vunpack.c.l.b16 %v252
  %v285 = vunpack.c.l.b16 %v253
  %v286 = vunpack.c.l.b16 %v254
  %v287 = vunpack.c.l.b16 %v255
  %v288 = vunpack.c.l.b16 %v256
  %v289 = vunpack.c.l.b16 %v257
  %v290 = vunpack.c.l.b16 %v258
  %v291 = vunpack.c.l.b16 %v259
  %v292 = vunpack.c.l.b16 %v260
  %v293 = vunpack.c.l.b16 %v261
  %v294 = vunpack.c.l.b16 %v262
  %v295 = vpack.c.b16 %v280, %v279
  %v296 = vpack.c.b16 %v282, %v281
  %v297 = vpack.c.b16 %v284, %v283
  %v298 = vpack.c.b16 %v286, %v285
  %v299 = vpack.c.b16 %v288, %v287
  %v300 = vpack.c.b16 %v290, %v289
  %v301 = vpack.c.b16 %v292, %v291
  %v302 = vpack.c.b16 %v294, %v293
  %v304 = vsel %vm101, %v295, 0
  %v307 = vsel %vm101, %v296, 0
  %v310 = vsel %vm101, %v297, 0
  %v313 = vsel %vm101, %v298, 0
  %v316 = vsel %vm101, %v299, 0
  %v319 = vsel %vm101, %v300, 0
  %v322 = vsel %vm101, %v301, 0
  %v325 = vsel %vm101, %v302, 0
  %327 = vmatprep.subr.bf16.mxu0 0
  %328 = vmatpush1.bf16.msra.mxu0 %v96
  %329 = vmatprep.subr.bf16.mxu0 0
  %330 = vmatpush1.bf16.msra.mxu0 %v97
  %331 = vmatprep.subr.bf16.mxu0 0
  %332 = vmatpush1.bf16.msra.mxu0 %v131
  %333 = vmatprep.subr.bf16.mxu0 0
  %334 = vmatpush1.bf16.msra.mxu0 0
  %335 = vmatprep.subr.bf16.mxu0 0
  %336 = vmatpush1.bf16.msra.mxu0 0
  %337 = vmatprep.subr.bf16.mxu0 0
  %338 = vmatpush1.bf16.msra.mxu0 0
  %339 = vmatprep.subr.bf16.mxu0 0
  %340 = vmatpush1.bf16.msra.mxu0 0
  %341 = vmatprep.subr.bf16.mxu0 0
  %342 = vmatpush1.bf16.msra.mxu0 0
  %343 = vmatprep.subr.bf16.mxu0 0
  %344 = vmatpush1.bf16.msra.mxu0 0
  %345 = vmatprep.subr.bf16.mxu0 0
  %346 = vmatpush1.bf16.msra.mxu0 0
  %347 = vmatprep.subr.bf16.mxu0 0
  %348 = vmatpush1.bf16.msra.mxu0 0
  %349 = vmatprep.subr.bf16.mxu0 0
  %350 = vmatpush1.bf16.msra.mxu0 0
  %351 = vmatprep.subr.bf16.mxu0 0
  %352 = vmatpush1.bf16.msra.mxu0 0
  %353 = vmatprep.subr.bf16.mxu0 0
  %354 = vmatpush1.bf16.msra.mxu0 0
  %355 = vmatprep.subr.bf16.mxu0 0
  %356 = vmatpush1.bf16.msra.mxu0 0
  %357 = vmatprep.subr.bf16.mxu0 0
  %358 = vmatpush1.bf16.msra.mxu0 0
  %359 = vmatprep.mubr.bf16.mxu0 0
  %360 = vmatmul.mubr.bf16.gmra.mrb[0].mxu0 %v304
  %v361 = vpop.f32.mrb[0].mxu0
  %v362 = vadd.f32 %v42, %v361
  %v363 = vpop.f32.mrb[0].mxu0
  %v364 = vpop.f32.mrb[0].mxu0
  %v365 = vadd.f32 %v42, %v364
  %v366 = vpop.f32.mrb[0].mxu0
  %367 = vmatprep.mubr.bf16.mxu0 0
  %368 = vmatmul.mubr.bf16.gmra.mrb[0].mxu0 %v307
  %v369 = vpop.f32.mrb[0].mxu0
  %v370 = vadd.f32 %v42, %v369
  %v371 = vpop.f32.mrb[0].mxu0
  %v372 = vpop.f32.mrb[0].mxu0
  %v373 = vadd.f32 %v42, %v372
  %v374 = vpop.f32.mrb[0].mxu0
  %375 = vmatprep.mubr.bf16.mxu0 0
  %376 = vmatmul.mubr.bf16.gmra.mrb[0].mxu0 %v310
  %v377 = vpop.f32.mrb[0].mxu0
  %v378 = vadd.f32 %v42, %v377
  %v379 = vpop.f32.mrb[0].mxu0
  %v380 = vpop.f32.mrb[0].mxu0
  %v381 = vadd.f32 %v42, %v380
  %v382 = vpop.f32.mrb[0].mxu0
  %383 = vmatprep.mubr.bf16.mxu0 0
  %384 = vmatmul.mubr.bf16.gmra.mrb[0].mxu0 %v313
  %v385 = vpop.f32.mrb[0].mxu0
  %v386 = vadd.f32 %v42, %v385
  %v387 = vpop.f32.mrb[0].mxu0
  %v388 = vpop.f32.mrb[0].mxu0
  %v389 = vadd.f32 %v42, %v388
  %v390 = vpop.f32.mrb[0].mxu0
  %391 = vmatprep.mubr.bf16.mxu0 0
  %392 = vmatmul.mubr.bf16.gmra.mrb[0].mxu0 %v316
  %v393 = vpop.f32.mrb[0].mxu0
  %v394 = vadd.f32 %v42, %v393
  %v395 = vpop.f32.mrb[0].mxu0
  %v396 = vpop.f32.mrb[0].mxu0
  %v397 = vadd.f32 %v42, %v396
  %v398 = vpop.f32.mrb[0].mxu0
  %399 = vmatprep.mubr.bf16.mxu0 0
  %400 = vmatmul.mubr.bf16.gmra.mrb[0].mxu0 %v319
  %v401 = vpop.f32.mrb[0].mxu0
  %v402 = vadd.f32 %v42, %v401
  %v403 = vpop.f32.mrb[0].mxu0
  %v404 = vpop.f32.mrb[0].mxu0
  %v405 = vadd.f32 %v42, %v404
  %v406 = vpop.f32.mrb[0].mxu0
  %407 = vmatprep.mubr.bf16.mxu0 0
  %408 = vmatmul.mubr.bf16.gmra.mrb[0].mxu0 %v322
  %v409 = vpop.f32.mrb[0].mxu0
  %v410 = vadd.f32 %v42, %v409
  %v411 = vpop.f32.mrb[0].mxu0
  %v412 = vpop.f32.mrb[0].mxu0
  %v413 = vadd.f32 %v42, %v412
  %v414 = vpop.f32.mrb[0].mxu0
  %415 = vmatprep.mubr.bf16.mxu0 0
  %416 = vmatmul.mubr.bf16.gmra.mrb[0].mxu0 %v325
  %v417 = vpop.f32.mrb[0].mxu0
  %v418 = vadd.f32 %v42, %v417
  %v419 = vpop.f32.mrb[0].mxu0
  %v420 = vpop.f32.mrb[0].mxu0
  %v421 = vadd.f32 %v42, %v420
  %v422 = vpop.f32.mrb[0].mxu0
  %423 = vdwg.mxu0
  %v424 = vmax.f32 %v362, 0.0
  %v425 = vmax.f32 %v365, 0.0
  %v426 = vmax.f32 %v370, 0.0
  %v427 = vmax.f32 %v373, 0.0
  %v428 = vmax.f32 %v378, 0.0
  %v429 = vmax.f32 %v381, 0.0
  %v430 = vmax.f32 %v386, 0.0
  %v431 = vmax.f32 %v389, 0.0
  %v432 = vmax.f32 %v394, 0.0
  %v433 = vmax.f32 %v397, 0.0
  %v434 = vmax.f32 %v402, 0.0
  %v435 = vmax.f32 %v405, 0.0
  %v436 = vmax.f32 %v410, 0.0
  %v437 = vmax.f32 %v413, 0.0
  %v438 = vmax.f32 %v418, 0.0
  %v439 = vmax.f32 %v421, 0.0
  %v440 = vmax.f32 %v230, %v424
  %v441 = vmax.f32 %v231, %v425
  %v442 = vmax.f32 %v232, %v426
  %v443 = vmax.f32 %v233, %v427
  %v444 = vmax.f32 %v234, %v428
  %v445 = vmax.f32 %v235, %v429
  %v446 = vmax.f32 %v236, %v430
  %v447 = vmax.f32 %v237, %v431
  %v448 = vmax.f32 %v238, %v432
  %v449 = vmax.f32 %v239, %v433
  %v450 = vmax.f32 %v240, %v434
  %v451 = vmax.f32 %v241, %v435
  %v452 = vmax.f32 %v242, %v436
  %v453 = vmax.f32 %v243, %v437
  %v454 = vmax.f32 %v244, %v438
  %v455 = vmax.f32 %v245, %v439
  %s456 = scalar_lea.vmem %s0, 128
  %v457 = vld [vmem:[%s456] sm:$0xf]
  %v458 = vld [vmem:[%s456 + $0x4] sm:$0xf]
  %v459 = vld [vmem:[%s456 + $0x8] sm:$0xf]
  %v460 = vld [vmem:[%s456 + $0xc] sm:$0xf]
  %v461 = vld [vmem:[%s456 + $0x10] sm:$0xf]
  %v462 = vld [vmem:[%s456 + $0x14] sm:$0xf]
  %v463 = vld [vmem:[%s456 + $0x18] sm:$0xf]
  %v464 = vld [vmem:[%s456 + $0x1c] sm:$0xf]
  %v465 = vld [vmem:[%s456 + $0x20] sm:$0xf]
  %v466 = vld [vmem:[%s456 + $0x24] sm:$0xf]
  %v467 = vld [vmem:[%s456 + $0x28] sm:$0xf]
  %v468 = vld [vmem:[%s456 + $0x2c] sm:$0xf]
  %v469 = vld [vmem:[%s456 + $0x30] sm:$0xf]
  %v470 = vld [vmem:[%s456 + $0x34] sm:$0xf]
  %v471 = vld [vmem:[%s456 + $0x38] sm:$0xf]
  %v472 = vld [vmem:[%s456 + $0x3c] sm:$0xf]
  %v489 = vunpack.c.l.b16 %v457
  %v490 = vunpack.c.l.b16 %v458
  %v491 = vunpack.c.l.b16 %v459
  %v492 = vunpack.c.l.b16 %v460
  %v493 = vunpack.c.l.b16 %v461
  %v494 = vunpack.c.l.b16 %v462
  %v495 = vunpack.c.l.b16 %v463
  %v496 = vunpack.c.l.b16 %v464
  %v497 = vunpack.c.l.b16 %v465
  %v498 = vunpack.c.l.b16 %v466
  %v499 = vunpack.c.l.b16 %v467
  %v500 = vunpack.c.l.b16 %v468
  %v501 = vunpack.c.l.b16 %v469
  %v502 = vunpack.c.l.b16 %v470
  %v503 = vunpack.c.l.b16 %v471
  %v504 = vunpack.c.l.b16 %v472
  %v505 = vpack.c.b16 %v490, %v489
  %v506 = vpack.c.b16 %v492, %v491
  %v507 = vpack.c.b16 %v494, %v493
  %v508 = vpack.c.b16 %v496, %v495
  %v509 = vpack.c.b16 %v498, %v497
  %v510 = vpack.c.b16 %v500, %v499
  %v511 = vpack.c.b16 %v502, %v501
  %v512 = vpack.c.b16 %v504, %v503
  %v514 = vsel %vm101, %v505, 0
  %v517 = vsel %vm101, %v506, 0
  %v520 = vsel %vm101, %v507, 0
  %v523 = vsel %vm101, %v508, 0
  %v526 = vsel %vm101, %v509, 0
  %v529 = vsel %vm101, %v510, 0
  %v532 = vsel %vm101, %v511, 0
  %v535 = vsel %vm101, %v512, 0
  %537 = vmatprep.subr.bf16.mxu0 0
  %538 = vmatpush1.bf16.msra.mxu0 %v96
  %539 = vmatprep.subr.bf16.mxu0 0
  %540 = vmatpush1.bf16.msra.mxu0 %v97
  %541 = vmatprep.subr.bf16.mxu0 0
  %542 = vmatpush1.bf16.msra.mxu0 %v131
  %543 = vmatprep.subr.bf16.mxu0 0
  %544 = vmatpush1.bf16.msra.mxu0 0
  %545 = vmatprep.subr.bf16.mxu0 0
  %546 = vmatpush1.bf16.msra.mxu0 0
  %547 = vmatprep.subr.bf16.mxu0 0
  %548 = vmatpush1.bf16.msra.mxu0 0
  %549 = vmatprep.subr.bf16.mxu0 0
  %550 = vmatpush1.bf16.msra.mxu0 0
  %551 = vmatprep.subr.bf16.mxu0 0
  %552 = vmatpush1.bf16.msra.mxu0 0
  %553 = vmatprep.subr.bf16.mxu0 0
  %554 = vmatpush1.bf16.msra.mxu0 0
  %555 = vmatprep.subr.bf16.mxu0 0
  %556 = vmatpush1.bf16.msra.mxu0 0
  %557 = vmatprep.subr.bf16.mxu0 0
  %558 = vmatpush1.bf16.msra.mxu0 0
  %559 = vmatprep.subr.bf16.mxu0 0
  %560 = vmatpush1.bf16.msra.mxu0 0
  %561 = vmatprep.subr.bf16.mxu0 0
  %562 = vmatpush1.bf16.msra.mxu0 0
  %563 = vmatprep.subr.bf16.mxu0 0
  %564 = vmatpush1.bf16.msra.mxu0 0
  %565 = vmatprep.subr.bf16.mxu0 0
  %566 = vmatpush1.bf16.msra.mxu0 0
  %567 = vmatprep.subr.bf16.mxu0 0
  %568 = vmatpush1.bf16.msra.mxu0 0
  %569 = vmatprep.mubr.bf16.mxu0 0
  %570 = vmatmul.mubr.bf16.gmra.mrb[0].mxu0 %v514
  %v571 = vpop.f32.mrb[0].mxu0
  %v572 = vadd.f32 %v42, %v571
  %v573 = vpop.f32.mrb[0].mxu0
  %v574 = vpop.f32.mrb[0].mxu0
  %v575 = vadd.f32 %v42, %v574
  %v576 = vpop.f32.mrb[0].mxu0
  %577 = vmatprep.mubr.bf16.mxu0 0
  %578 = vmatmul.mubr.bf16.gmra.mrb[0].mxu0 %v517
  %v579 = vpop.f32.mrb[0].mxu0
  %v580 = vadd.f32 %v42, %v579
  %v581 = vpop.f32.mrb[0].mxu0
  %v582 = vpop.f32.mrb[0].mxu0
  %v583 = vadd.f32 %v42, %v582
  %v584 = vpop.f32.mrb[0].mxu0
  %585 = vmatprep.mubr.bf16.mxu0 0
  %586 = vmatmul.mubr.bf16.gmra.mrb[0].mxu0 %v520
  %v587 = vpop.f32.mrb[0].mxu0
  %v588 = vadd.f32 %v42, %v587
  %v589 = vpop.f32.mrb[0].mxu0
  %v590 = vpop.f32.mrb[0].mxu0
  %v591 = vadd.f32 %v42, %v590
  %v592 = vpop.f32.mrb[0].mxu0
  %593 = vmatprep.mubr.bf16.mxu0 0
  %594 = vmatmul.mubr.bf16.gmra.mrb[0].mxu0 %v523
  %v595 = vpop.f32.mrb[0].mxu0
  %v596 = vadd.f32 %v42, %v595
  %v597 = vpop.f32.mrb[0].mxu0
  %v598 = vpop.f32.mrb[0].mxu0
  %v599 = vadd.f32 %v42, %v598
  %v600 = vpop.f32.mrb[0].mxu0
  %601 = vmatprep.mubr.bf16.mxu0 0
  %602 = vmatmul.mubr.bf16.gmra.mrb[0].mxu0 %v526
  %v603 = vpop.f32.mrb[0].mxu0
  %v604 = vadd.f32 %v42, %v603
  %v605 = vpop.f32.mrb[0].mxu0
  %v606 = vpop.f32.mrb[0].mxu0
  %v607 = vadd.f32 %v42, %v606
  %v608 = vpop.f32.mrb[0].mxu0
  %609 = vmatprep.mubr.bf16.mxu0 0
  %610 = vmatmul.mubr.bf16.gmra.mrb[0].mxu0 %v529
  %v611 = vpop.f32.mrb[0].mxu0
  %v612 = vadd.f32 %v42, %v611
  %v613 = vpop.f32.mrb[0].mxu0
  %v614 = vpop.f32.mrb[0].mxu0
  %v615 = vadd.f32 %v42, %v614
  %v616 = vpop.f32.mrb[0].mxu0
  %617 = vmatprep.mubr.bf16.mxu0 0
  %618 = vmatmul.mubr.bf16.gmra.mrb[0].mxu0 %v532
  %v619 = vpop.f32.mrb[0].mxu0
  %v620 = vadd.f32 %v42, %v619
  %v621 = vpop.f32.mrb[0].mxu0
  %v622 = vpop.f32.mrb[0].mxu0
  %v623 = vadd.f32 %v42, %v622
  %v624 = vpop.f32.mrb[0].mxu0
  %625 = vmatprep.mubr.bf16.mxu0 0
  %626 = vmatmul.mubr.bf16.gmra.mrb[0].mxu0 %v535
  %v627 = vpop.f32.mrb[0].mxu0
  %v628 = vadd.f32 %v42, %v627
  %v629 = vpop.f32.mrb[0].mxu0
  %v630 = vpop.f32.mrb[0].mxu0
  %v631 = vadd.f32 %v42, %v630
  %v632 = vpop.f32.mrb[0].mxu0
  %633 = vdwg.mxu0
  %v634 = vmax.f32 %v572, 0.0
  %v635 = vmax.f32 %v575, 0.0
  %v636 = vmax.f32 %v580, 0.0
  %v637 = vmax.f32 %v583, 0.0
  %v638 = vmax.f32 %v588, 0.0
  %v639 = vmax.f32 %v591, 0.0
  %v640 = vmax.f32 %v596, 0.0
  %v641 = vmax.f32 %v599, 0.0
  %v642 = vmax.f32 %v604, 0.0
  %v643 = vmax.f32 %v607, 0.0
  %v644 = vmax.f32 %v612, 0.0
  %v645 = vmax.f32 %v615, 0.0
  %v646 = vmax.f32 %v620, 0.0
  %v647 = vmax.f32 %v623, 0.0
  %v648 = vmax.f32 %v628, 0.0
  %v649 = vmax.f32 %v631, 0.0
  %s650 = scalar_lea.vmem %s0, 192
  %v651 = vld [vmem:[%s650] sm:$0xf]
  %v652 = vld [vmem:[%s650 + $0x4] sm:$0xf]
  %v653 = vld [vmem:[%s650 + $0x8] sm:$0xf]
  %v654 = vld [vmem:[%s650 + $0xc] sm:$0xf]
  %v655 = vld [vmem:[%s650 + $0x10] sm:$0xf]
  %v656 = vld [vmem:[%s650 + $0x14] sm:$0xf]
  %v657 = vld [vmem:[%s650 + $0x18] sm:$0xf]
  %v658 = vld [vmem:[%s650 + $0x1c] sm:$0xf]
  %v659 = vld [vmem:[%s650 + $0x20] sm:$0xf]
  %v660 = vld [vmem:[%s650 + $0x24] sm:$0xf]
  %v661 = vld [vmem:[%s650 + $0x28] sm:$0xf]
  %v662 = vld [vmem:[%s650 + $0x2c] sm:$0xf]
  %v663 = vld [vmem:[%s650 + $0x30] sm:$0xf]
  %v664 = vld [vmem:[%s650 + $0x34] sm:$0xf]
  %v665 = vld [vmem:[%s650 + $0x38] sm:$0xf]
  %v666 = vld [vmem:[%s650 + $0x3c] sm:$0xf]
  %v683 = vunpack.c.l.b16 %v651
  %v684 = vunpack.c.l.b16 %v652
  %v685 = vunpack.c.l.b16 %v653
  %v686 = vunpack.c.l.b16 %v654
  %v687 = vunpack.c.l.b16 %v655
  %v688 = vunpack.c.l.b16 %v656
  %v689 = vunpack.c.l.b16 %v657
  %v690 = vunpack.c.l.b16 %v658
  %v691 = vunpack.c.l.b16 %v659
  %v692 = vunpack.c.l.b16 %v660
  %v693 = vunpack.c.l.b16 %v661
  %v694 = vunpack.c.l.b16 %v662
  %v695 = vunpack.c.l.b16 %v663
  %v696 = vunpack.c.l.b16 %v664
  %v697 = vunpack.c.l.b16 %v665
  %v698 = vunpack.c.l.b16 %v666
  %v699 = vpack.c.b16 %v684, %v683
  %v700 = vpack.c.b16 %v686, %v685
  %v701 = vpack.c.b16 %v688, %v687
  %v702 = vpack.c.b16 %v690, %v689
  %v703 = vpack.c.b16 %v692, %v691
  %v704 = vpack.c.b16 %v694, %v693
  %v705 = vpack.c.b16 %v696, %v695
  %v706 = vpack.c.b16 %v698, %v697
  %v708 = vsel %vm101, %v699, 0
  %v711 = vsel %vm101, %v700, 0
  %v714 = vsel %vm101, %v701, 0
  %v717 = vsel %vm101, %v702, 0
  %v720 = vsel %vm101, %v703, 0
  %v723 = vsel %vm101, %v704, 0
  %v726 = vsel %vm101, %v705, 0
  %v729 = vsel %vm101, %v706, 0
  %731 = vmatprep.subr.bf16.mxu0 0
  %732 = vmatpush1.bf16.msra.mxu0 %v96
  %733 = vmatprep.subr.bf16.mxu0 0
  %734 = vmatpush1.bf16.msra.mxu0 %v97
  %735 = vmatprep.subr.bf16.mxu0 0
  %736 = vmatpush1.bf16.msra.mxu0 %v131
  %737 = vmatprep.subr.bf16.mxu0 0
  %738 = vmatpush1.bf16.msra.mxu0 0
  %739 = vmatprep.subr.bf16.mxu0 0
  %740 = vmatpush1.bf16.msra.mxu0 0
  %741 = vmatprep.subr.bf16.mxu0 0
  %742 = vmatpush1.bf16.msra.mxu0 0
  %743 = vmatprep.subr.bf16.mxu0 0
  %744 = vmatpush1.bf16.msra.mxu0 0
  %745 = vmatprep.subr.bf16.mxu0 0
  %746 = vmatpush1.bf16.msra.mxu0 0
  %747 = vmatprep.subr.bf16.mxu0 0
  %748 = vmatpush1.bf16.msra.mxu0 0
  %749 = vmatprep.subr.bf16.mxu0 0
  %750 = vmatpush1.bf16.msra.mxu0 0
  %751 = vmatprep.subr.bf16.mxu0 0
  %752 = vmatpush1.bf16.msra.mxu0 0
  %753 = vmatprep.subr.bf16.mxu0 0
  %754 = vmatpush1.bf16.msra.mxu0 0
  %755 = vmatprep.subr.bf16.mxu0 0
  %756 = vmatpush1.bf16.msra.mxu0 0
  %757 = vmatprep.subr.bf16.mxu0 0
  %758 = vmatpush1.bf16.msra.mxu0 0
  %759 = vmatprep.subr.bf16.mxu0 0
  %760 = vmatpush1.bf16.msra.mxu0 0
  %761 = vmatprep.subr.bf16.mxu0 0
  %762 = vmatpush1.bf16.msra.mxu0 0
  %763 = vmatprep.mubr.bf16.mxu0 0
  %764 = vmatmul.mubr.bf16.gmra.mrb[0].mxu0 %v708
  %v765 = vpop.f32.mrb[0].mxu0
  %v766 = vadd.f32 %v42, %v765
  %v767 = vpop.f32.mrb[0].mxu0
  %v768 = vpop.f32.mrb[0].mxu0
  %v769 = vadd.f32 %v42, %v768
  %v770 = vpop.f32.mrb[0].mxu0
  %771 = vmatprep.mubr.bf16.mxu0 0
  %772 = vmatmul.mubr.bf16.gmra.mrb[0].mxu0 %v711
  %v773 = vpop.f32.mrb[0].mxu0
  %v774 = vadd.f32 %v42, %v773
  %v775 = vpop.f32.mrb[0].mxu0
  %v776 = vpop.f32.mrb[0].mxu0
  %v777 = vadd.f32 %v42, %v776
  %v778 = vpop.f32.mrb[0].mxu0
  %779 = vmatprep.mubr.bf16.mxu0 0
  %780 = vmatmul.mubr.bf16.gmra.mrb[0].mxu0 %v714
  %v781 = vpop.f32.mrb[0].mxu0
  %v782 = vadd.f32 %v42, %v781
  %v783 = vpop.f32.mrb[0].mxu0
  %v784 = vpop.f32.mrb[0].mxu0
  %v785 = vadd.f32 %v42, %v784
  %v786 = vpop.f32.mrb[0].mxu0
  %787 = vmatprep.mubr.bf16.mxu0 0
  %788 = vmatmul.mubr.bf16.gmra.mrb[0].mxu0 %v717
  %v789 = vpop.f32.mrb[0].mxu0
  %v790 = vadd.f32 %v42, %v789
  %v791 = vpop.f32.mrb[0].mxu0
  %v792 = vpop.f32.mrb[0].mxu0
  %v793 = vadd.f32 %v42, %v792
  %v794 = vpop.f32.mrb[0].mxu0
  %795 = vmatprep.mubr.bf16.mxu0 0
  %796 = vmatmul.mubr.bf16.gmra.mrb[0].mxu0 %v720
  %v797 = vpop.f32.mrb[0].mxu0
  %v798 = vadd.f32 %v42, %v797
  %v799 = vpop.f32.mrb[0].mxu0
  %v800 = vpop.f32.mrb[0].mxu0
  %v801 = vadd.f32 %v42, %v800
  %v802 = vpop.f32.mrb[0].mxu0
  %803 = vmatprep.mubr.bf16.mxu0 0
  %804 = vmatmul.mubr.bf16.gmra.mrb[0].mxu0 %v723
  %v805 = vpop.f32.mrb[0].mxu0
  %v806 = vadd.f32 %v42, %v805
  %v807 = vpop.f32.mrb[0].mxu0
  %v808 = vpop.f32.mrb[0].mxu0
  %v809 = vadd.f32 %v42, %v808
  %v810 = vpop.f32.mrb[0].mxu0
  %811 = vmatprep.mubr.bf16.mxu0 0
  %812 = vmatmul.mubr.bf16.gmra.mrb[0].mxu0 %v726
  %v813 = vpop.f32.mrb[0].mxu0
  %v814 = vadd.f32 %v42, %v813
  %v815 = vpop.f32.mrb[0].mxu0
  %v816 = vpop.f32.mrb[0].mxu0
  %v817 = vadd.f32 %v42, %v816
  %v818 = vpop.f32.mrb[0].mxu0
  %819 = vmatprep.mubr.bf16.mxu0 0
  %820 = vmatmul.mubr.bf16.gmra.mrb[0].mxu0 %v729
  %v821 = vpop.f32.mrb[0].mxu0
  %v822 = vadd.f32 %v42, %v821
  %v823 = vpop.f32.mrb[0].mxu0
  %v824 = vpop.f32.mrb[0].mxu0
  %v825 = vadd.f32 %v42, %v824
  %v826 = vpop.f32.mrb[0].mxu0
  %827 = vdwg.mxu0
  %v828 = vmax.f32 %v766, 0.0
  %v829 = vmax.f32 %v769, 0.0
  %v830 = vmax.f32 %v774, 0.0
  %v831 = vmax.f32 %v777, 0.0
  %v832 = vmax.f32 %v782, 0.0
  %v833 = vmax.f32 %v785, 0.0
  %v834 = vmax.f32 %v790, 0.0
  %v835 = vmax.f32 %v793, 0.0
  %v836 = vmax.f32 %v798, 0.0
  %v837 = vmax.f32 %v801, 0.0
  %v838 = vmax.f32 %v806, 0.0
  %v839 = vmax.f32 %v809, 0.0
  %v840 = vmax.f32 %v814, 0.0
  %v841 = vmax.f32 %v817, 0.0
  %v842 = vmax.f32 %v822, 0.0
  %v843 = vmax.f32 %v825, 0.0
  %v844 = vmax.f32 %v634, %v828
  %v845 = vmax.f32 %v635, %v829
  %v846 = vmax.f32 %v636, %v830
  %v847 = vmax.f32 %v637, %v831
  %v848 = vmax.f32 %v638, %v832
  %v849 = vmax.f32 %v639, %v833
  %v850 = vmax.f32 %v640, %v834
  %v851 = vmax.f32 %v641, %v835
  %v852 = vmax.f32 %v642, %v836
  %v853 = vmax.f32 %v643, %v837
  %v854 = vmax.f32 %v644, %v838
  %v855 = vmax.f32 %v645, %v839
  %v856 = vmax.f32 %v646, %v840
  %v857 = vmax.f32 %v647, %v841
  %v858 = vmax.f32 %v648, %v842
  %v859 = vmax.f32 %v649, %v843
  %v860 = vmax.f32 %v440, %v844
  %v861 = vmax.f32 %v441, %v845
  %v862 = vmax.f32 %v442, %v846
  %v863 = vmax.f32 %v443, %v847
  %v864 = vmax.f32 %v444, %v848
  %v865 = vmax.f32 %v445, %v849
  %v866 = vmax.f32 %v446, %v850
  %v867 = vmax.f32 %v447, %v851
  %v868 = vmax.f32 %v448, %v852
  %v869 = vmax.f32 %v449, %v853
  %v870 = vmax.f32 %v450, %v854
  %v871 = vmax.f32 %v451, %v855
  %v872 = vmax.f32 %v452, %v856
  %v873 = vmax.f32 %v453, %v857
  %v874 = vmax.f32 %v454, %v858
  %v875 = vmax.f32 %v455, %v859
  %v876 = vpack.c.bf16 %v861, %v860
  %v877 = vpack.c.bf16 %v863, %v862
  %v878 = vpack.c.bf16 %v865, %v864
  %v879 = vpack.c.bf16 %v867, %v866
  %v880 = vpack.c.bf16 %v869, %v868
  %v881 = vpack.c.bf16 %v871, %v870
  %v882 = vpack.c.bf16 %v873, %v872
  %v883 = vpack.c.bf16 %v875, %v874
  %v892 = vunpack.c.l.b16 %v876
  %v893 = vunpack.c.h.b16 %v876
  %v894 = vunpack.c.l.b16 %v877
  %v895 = vunpack.c.h.b16 %v877
  %v896 = vunpack.c.l.b16 %v878
  %v897 = vunpack.c.h.b16 %v878
  %v898 = vunpack.c.l.b16 %v879
  %v899 = vunpack.c.h.b16 %v879
  %v900 = vunpack.c.l.b16 %v880
  %v901 = vunpack.c.h.b16 %v880
  %v902 = vunpack.c.l.b16 %v881
  %v903 = vunpack.c.h.b16 %v881
  %v904 = vunpack.c.l.b16 %v882
  %v905 = vunpack.c.h.b16 %v882
  %v906 = vunpack.c.l.b16 %v883
  %v907 = vunpack.c.h.b16 %v883
  %v908 = vpack.c.b16 %v892, %v892
  %v909 = vpack.c.b16 %v893, %v893
  %v910 = vpack.c.b16 %v894, %v894
  %v911 = vpack.c.b16 %v895, %v895
  %v912 = vpack.c.b16 %v896, %v896
  %v913 = vpack.c.b16 %v897, %v897
  %v914 = vpack.c.b16 %v898, %v898
  %v915 = vpack.c.b16 %v899, %v899
  %v916 = vpack.c.b16 %v900, %v900
  %v917 = vpack.c.b16 %v901, %v901
  %v918 = vpack.c.b16 %v902, %v902
  %v919 = vpack.c.b16 %v903, %v903
  %v920 = vpack.c.b16 %v904, %v904
  %v921 = vpack.c.b16 %v905, %v905
  %v922 = vpack.c.b16 %v906, %v906
  %v923 = vpack.c.b16 %v907, %v907
  %vm940 = vcmask 76800
  %941 = vst.msk [vmem:[%s3] sm:$0xf] %vm940, %v908
  %942 = vst.msk [vmem:[%s3 + $0x4] sm:$0xf] %vm940, %v909
  %943 = vst.msk [vmem:[%s3 + $0x8] sm:$0xf] %vm940, %v910
  %944 = vst.msk [vmem:[%s3 + $0xc] sm:$0xf] %vm940, %v911
  %945 = vst.msk [vmem:[%s3 + $0x10] sm:$0xf] %vm940, %v912
  %946 = vst.msk [vmem:[%s3 + $0x14] sm:$0xf] %vm940, %v913
  %947 = vst.msk [vmem:[%s3 + $0x18] sm:$0xf] %vm940, %v914
  %948 = vst.msk [vmem:[%s3 + $0x1c] sm:$0xf] %vm940, %v915
  %949 = vst.msk [vmem:[%s3 + $0x20] sm:$0xf] %vm940, %v916
  %950 = vst.msk [vmem:[%s3 + $0x24] sm:$0xf] %vm940, %v917
  %951 = vst.msk [vmem:[%s3 + $0x28] sm:$0xf] %vm940, %v918
  %952 = vst.msk [vmem:[%s3 + $0x2c] sm:$0xf] %vm940, %v919
  %953 = vst.msk [vmem:[%s3 + $0x30] sm:$0xf] %vm940, %v920
  %954 = vst.msk [vmem:[%s3 + $0x34] sm:$0xf] %vm940, %v921
  %955 = vst.msk [vmem:[%s3 + $0x38] sm:$0xf] %vm940, %v922
  %956 = vst.msk [vmem:[%s3 + $0x3c] sm:$0xf] %vm940, %v923
  // Predicated region
  $region14: #{lenet_forward.7} parent=0 // pred_check
    _
  $region15: #{lenet_forward.7} parent=0 // pred_check_branch
    %958 = sbr.rel (0) target = $region17
  $region16: #{lenet_forward.7} parent=0 // pred_region
    _
  $region17: #{lenet_forward.7} parent=0 // pred_fallthru
    _
  // Predicated region
  $region18: #{lenet_forward.7} parent=0 // pred_check
    _
  $region19: #{lenet_forward.7} parent=0 // pred_check_branch
    %960 = sbr.rel (0) target = $region21
  $region20: #{lenet_forward.7} parent=0 // pred_region
    _
  $region21: #{lenet_forward.7} parent=0 // pred_fallthru
    _

// kernel: lenet_forward.8
$region0: #{lenet_forward.8}
  #allocation0 [shape = 'u32[]', space=smem, size = 0x4, offset = 0x4, fixed_abs, tag = 'smem constant byte address 0x4 - core index']
  #allocation1 [shape = 'u32[144,128]{1,0:T(1,128)}', space=vmem, size = 0x12000, scoped, tag = 'internal scratch']
  %s0 = inlined_call_operand.vmem [shape: bf16[2,640], index: 0, kind: input, shape index: {}]
  %s1 = inlined_call_operand.vmem [shape: bf16[640,10], index: 1, kind: input, shape index: {}]
  %s2 = inlined_call_operand.vmem [shape: f32[1,10], index: 2, kind: input, shape index: {}]
  %s3 = inlined_call_operand.hbm [shape: f32[2,10], index: 3, kind: output, shape index: {}]
  %s4 = sld [smem:[#allocation0]]
  $region22: #{lenet_forward.8} parent=0
    _
  %s6 = ssub.s32 1, %s4
  %s7 = scalar_select 0, %s6, %s4
  $region1: #{lenet_forward.8} parent=0
    #allocation2 [shape = 'u8[1024]{0}', space=vmem, size = 0x400, scoped, tag = 'output window, operand 0, single buffered']
    #allocation3 [shape = 's32[1]{0}', space=sflag, size = 0x4, scoped, tag = 'scoped memory for lenet_forward.8']
    %8 = vsyncpa [#allocation3], 0
    // Predicated region
    $region2: #{lenet_forward.8} parent=1 // pred_check
      _
    $region3: #{lenet_forward.8} parent=1 // pred_check_branch
      %10 = sbr.rel (0) target = $region5
    $region4: #{lenet_forward.8} parent=1 // pred_region
      _
    $region5: #{lenet_forward.8} parent=1 // pred_fallthru
      _
    // Predicated region
    $region6: #{lenet_forward.8} parent=1 // pred_check
      _
    $region7: #{lenet_forward.8} parent=1 // pred_check_branch
      %12 = sbr.rel (0) target = $region9
    $region8: #{lenet_forward.8} parent=1 // pred_region
      _
    $region9: #{lenet_forward.8} parent=1 // pred_fallthru
      _
    // Predicated region
    $region10: #{lenet_forward.8} parent=1 // pred_check
      _
    $region11: #{lenet_forward.8} parent=1 // pred_check_branch
      %14 = sbr.rel (0) target = $region13
    $region12: #{lenet_forward.8} parent=1 // pred_region
      _
    $region13: #{lenet_forward.8} parent=1 // pred_fallthru
      _
    %v16 = vld [vmem:[%s0] sm:$0x1f]
    %v17 = vld [vmem:[%s1] sm:$0xf]
    %v18 = vld [vmem:[%s1 + $0x4] sm:$0xf]
    %v19 = vld [vmem:[%s1 + $0x8] sm:$0xf]
    %v20 = vld [vmem:[%s1 + $0xc] sm:$0xf]
    %v21 = vld [vmem:[%s1 + $0x10] sm:$0xf]
    %v22 = vld [vmem:[%s1 + $0x14] sm:$0xf]
    %v23 = vld [vmem:[%s1 + $0x18] sm:$0xf]
    %v24 = vld [vmem:[%s1 + $0x1c] sm:$0xf]
    %v25 = vld [vmem:[%s1 + $0x20] sm:$0xf]
    %v26 = vld [vmem:[%s1 + $0x24] sm:$0xf]
    %v27 = vld [vmem:[%s1 + $0x28] sm:$0xf]
    %v28 = vld [vmem:[%s1 + $0x2c] sm:$0xf]
    %v29 = vld [vmem:[%s1 + $0x30] sm:$0xf]
    %v30 = vld [vmem:[%s1 + $0x34] sm:$0xf]
    %v31 = vld [vmem:[%s1 + $0x38] sm:$0xf]
    %v32 = vld [vmem:[%s1 + $0x3c] sm:$0xf]
    %v33 = vld [vmem:[%s1 + $0x40] sm:$0xf]
    %v34 = vld [vmem:[%s1 + $0x44] sm:$0xf]
    %v35 = vld [vmem:[%s1 + $0x48] sm:$0xf]
    %v36 = vld [vmem:[%s1 + $0x4c] sm:$0xf]
    %v37 = vld [vmem:[%s1 + $0x50] sm:$0xf]
    %v38 = vld [vmem:[%s1 + $0x54] sm:$0xf]
    %v39 = vld [vmem:[%s1 + $0x58] sm:$0xf]
    %v40 = vld [vmem:[%s1 + $0x5c] sm:$0xf]
    %v41 = vld [vmem:[%s1 + $0x60] sm:$0xf]
    %v42 = vld [vmem:[%s1 + $0x64] sm:$0xf]
    %v43 = vld [vmem:[%s1 + $0x68] sm:$0xf]
    %v44 = vld [vmem:[%s1 + $0x6c] sm:$0xf]
    %v45 = vld [vmem:[%s1 + $0x70] sm:$0xf]
    %v46 = vld [vmem:[%s1 + $0x74] sm:$0xf]
    %v47 = vld [vmem:[%s1 + $0x78] sm:$0xf]
    %v48 = vld [vmem:[%s1 + $0x7c] sm:$0xf]
    %v49 = vld [vmem:[%s1 + $0x80] sm:$0xf]
    %v50 = vld [vmem:[%s1 + $0x84] sm:$0xf]
    %v51 = vld [vmem:[%s1 + $0x88] sm:$0xf]
    %v52 = vld [vmem:[%s1 + $0x8c] sm:$0xf]
    %v53 = vld [vmem:[%s1 + $0x90] sm:$0xf]
    %v54 = vld [vmem:[%s1 + $0x94] sm:$0xf]
    %v55 = vld [vmem:[%s1 + $0x98] sm:$0xf]
    %v56 = vld [vmem:[%s1 + $0x9c] sm:$0xf]
    %v57 = vld [vmem:[%s1 + $0xa0] sm:$0xf]
    %v58 = vld [vmem:[%s1 + $0xa4] sm:$0xf]
    %v59 = vld [vmem:[%s1 + $0xa8] sm:$0xf]
    %v60 = vld [vmem:[%s1 + $0xac] sm:$0xf]
    %v61 = vld [vmem:[%s1 + $0xb0] sm:$0xf]
    %v62 = vld [vmem:[%s1 + $0xb4] sm:$0xf]
    %v63 = vld [vmem:[%s1 + $0xb8] sm:$0xf]
    %v64 = vld [vmem:[%s1 + $0xbc] sm:$0xf]
    %v65 = vld [vmem:[%s1 + $0xc0] sm:$0xf]
    %v66 = vld [vmem:[%s1 + $0xc4] sm:$0xf]
    %v67 = vld [vmem:[%s1 + $0xc8] sm:$0xf]
    %v68 = vld [vmem:[%s1 + $0xcc] sm:$0xf]
    %v69 = vld [vmem:[%s1 + $0xd0] sm:$0xf]
    %v70 = vld [vmem:[%s1 + $0xd4] sm:$0xf]
    %v71 = vld [vmem:[%s1 + $0xd8] sm:$0xf]
    %v72 = vld [vmem:[%s1 + $0xdc] sm:$0xf]
    %v73 = vld [vmem:[%s1 + $0xe0] sm:$0xf]
    %v74 = vld [vmem:[%s1 + $0xe4] sm:$0xf]
    %v75 = vld [vmem:[%s1 + $0xe8] sm:$0xf]
    %v76 = vld [vmem:[%s1 + $0xec] sm:$0xf]
    %v77 = vld [vmem:[%s1 + $0xf0] sm:$0xf]
    %v78 = vld [vmem:[%s1 + $0xf4] sm:$0xf]
    %v79 = vld [vmem:[%s1 + $0xf8] sm:$0xf]
    %v80 = vld [vmem:[%s1 + $0xfc] sm:$0xf]
    %v81 = vld [vmem:[%s1 + $0x100] sm:$0xf]
    %v82 = vld [vmem:[%s1 + $0x104] sm:$0xf]
    %v83 = vld [vmem:[%s1 + $0x108] sm:$0xf]
    %v84 = vld [vmem:[%s1 + $0x10c] sm:$0xf]
    %v85 = vld [vmem:[%s1 + $0x110] sm:$0xf]
    %v86 = vld [vmem:[%s1 + $0x114] sm:$0xf]
    %v87 = vld [vmem:[%s1 + $0x118] sm:$0xf]
    %v88 = vld [vmem:[%s1 + $0x11c] sm:$0xf]
    %v89 = vld [vmem:[%s1 + $0x120] sm:$0xf]
    %v90 = vld [vmem:[%s1 + $0x124] sm:$0xf]
    %v91 = vld [vmem:[%s1 + $0x128] sm:$0xf]
    %v92 = vld [vmem:[%s1 + $0x12c] sm:$0xf]
    %v93 = vld [vmem:[%s1 + $0x130] sm:$0xf]
    %v94 = vld [vmem:[%s1 + $0x134] sm:$0xf]
    %v95 = vld [vmem:[%s1 + $0x138] sm:$0xf]
    %v96 = vld [vmem:[%s1 + $0x13c] sm:$0xf]
    %v97 = vld [vmem:[%s2] sm:$0x1]
    %v99 = vlaneseq
    %v100 = vshrl.u32 %v99, 7
    %v101 = vsub.s32 0, %v100
    %v102 = vrot.slane %v97, %v101
    %v105 = vcombine.high %v16, %v16
    %v107 = vunpack.c.l.s4 1966171168
    %v108 = vunpack.c.0.s8 %v107
    %v109 = vlaneseq
    %v110 = vshrl.u32 %v109, 7
    %v111 = vsub.s32 %v108, %v110
    %v112 = vrot.slane %v16, %v111
    %v114 = vunpack.c.l.s4 1966171168
    %v115 = vunpack.c.0.s8 %v114
    %v116 = vlaneseq
    %v117 = vshrl.u32 %v116, 7
    %v118 = vsub.s32 %v115, %v117
    %v119 = vrot.slane %v105, %v118
    %v120 = vcombine.high %v112, %v112
    %v122 = vunpack.c.l.s4 1966171168
    %v123 = vunpack.c.0.s8 %v122
    %v124 = vlaneseq
    %v125 = vshrl.u32 %v124, 7
    %v126 = vsub.s32 %v123, %v125
    %v127 = vrot.slane %v112, %v126
    %v129 = vunpack.c.l.s4 1966171168
    %v130 = vunpack.c.0.s8 %v129
    %v131 = vlaneseq
    %v132 = vshrl.u32 %v131, 7
    %v133 = vsub.s32 %v130, %v132
    %v134 = vrot.slane %v119, %v133
    %v136 = vunpack.c.l.s4 1966171168
    %v137 = vunpack.c.0.s8 %v136
    %v138 = vlaneseq
    %v139 = vshrl.u32 %v138, 7
    %v140 = vsub.s32 %v137, %v139
    %v141 = vrot.slane %v120, %v140
    %v142 = vcombine.high %v127, %v127
    %v143 = vcombine.high %v141, %v141
    %v229 = vunpack.c.l.b16 %v17
    %v230 = vunpack.c.l.b16 %v18
    %v231 = vunpack.c.l.b16 %v19
    %v232 = vunpack.c.l.b16 %v20
    %v233 = vunpack.c.l.b16 %v21
    %v234 = vunpack.c.l.b16 %v22
    %v235 = vunpack.c.l.b16 %v23
    %v236 = vunpack.c.l.b16 %v24
    %v237 = vunpack.c.l.b16 %v25
    %v238 = vunpack.c.l.b16 %v26
    %v239 = vunpack.c.l.b16 %v27
    %v240 = vunpack.c.l.b16 %v28
    %v241 = vunpack.c.l.b16 %v29
    %v242 = vunpack.c.l.b16 %v30
    %v243 = vunpack.c.l.b16 %v31
    %v244 = vunpack.c.l.b16 %v32
    %v245 = vunpack.c.l.b16 %v33
    %v246 = vunpack.c.l.b16 %v34
    %v247 = vunpack.c.l.b16 %v35
    %v248 = vunpack.c.l.b16 %v36
    %v249 = vunpack.c.l.b16 %v37
    %v250 = vunpack.c.l.b16 %v38
    %v251 = vunpack.c.l.b16 %v39
    %v252 = vunpack.c.l.b16 %v40
    %v253 = vunpack.c.l.b16 %v41
    %v254 = vunpack.c.l.b16 %v42
    %v255 = vunpack.c.l.b16 %v43
    %v256 = vunpack.c.l.b16 %v44
    %v257 = vunpack.c.l.b16 %v45
    %v258 = vunpack.c.l.b16 %v46
    %v259 = vunpack.c.l.b16 %v47
    %v260 = vunpack.c.l.b16 %v48
    %v261 = vunpack.c.l.b16 %v49
    %v262 = vunpack.c.l.b16 %v50
    %v263 = vunpack.c.l.b16 %v51
    %v264 = vunpack.c.l.b16 %v52
    %v265 = vunpack.c.l.b16 %v53
    %v266 = vunpack.c.l.b16 %v54
    %v267 = vunpack.c.l.b16 %v55
    %v268 = vunpack.c.l.b16 %v56
    %v269 = vunpack.c.l.b16 %v57
    %v270 = vunpack.c.l.b16 %v58
    %v271 = vunpack.c.l.b16 %v59
    %v272 = vunpack.c.l.b16 %v60
    %v273 = vunpack.c.l.b16 %v61
    %v274 = vunpack.c.l.b16 %v62
    %v275 = vunpack.c.l.b16 %v63
    %v276 = vunpack.c.l.b16 %v64
    %v277 = vunpack.c.l.b16 %v65
    %v278 = vunpack.c.l.b16 %v66
    %v279 = vunpack.c.l.b16 %v67
    %v280 = vunpack.c.l.b16 %v68
    %v281 = vunpack.c.l.b16 %v69
    %v282 = vunpack.c.l.b16 %v70
    %v283 = vunpack.c.l.b16 %v71
    %v284 = vunpack.c.l.b16 %v72
    %v285 = vunpack.c.l.b16 %v73
    %v286 = vunpack.c.l.b16 %v74
    %v287 = vunpack.c.l.b16 %v75
    %v288 = vunpack.c.l.b16 %v76
    %v289 = vunpack.c.l.b16 %v77
    %v290 = vunpack.c.l.b16 %v78
    %v291 = vunpack.c.l.b16 %v79
    %v292 = vunpack.c.l.b16 %v80
    %v293 = vunpack.c.l.b16 %v81
    %v294 = vunpack.c.l.b16 %v82
    %v295 = vunpack.c.l.b16 %v83
    %v296 = vunpack.c.l.b16 %v84
    %v297 = vunpack.c.l.b16 %v85
    %v298 = vunpack.c.l.b16 %v86
    %v299 = vunpack.c.l.b16 %v87
    %v300 = vunpack.c.l.b16 %v88
    %v301 = vunpack.c.l.b16 %v89
    %v302 = vunpack.c.l.b16 %v90
    %v303 = vunpack.c.l.b16 %v91
    %v304 = vunpack.c.l.b16 %v92
    %v305 = vunpack.c.l.b16 %v93
    %v306 = vunpack.c.l.b16 %v94
    %v307 = vunpack.c.l.b16 %v95
    %v308 = vunpack.c.l.b16 %v96
    %v309 = vpack.c.b16 %v230, %v229
    %v310 = vpack.c.b16 %v232, %v231
    %v311 = vpack.c.b16 %v234, %v233
    %v312 = vpack.c.b16 %v236, %v235
    %v313 = vpack.c.b16 %v238, %v237
    %v314 = vpack.c.b16 %v240, %v239
    %v315 = vpack.c.b16 %v242, %v241
    %v316 = vpack.c.b16 %v244, %v243
    %v317 = vpack.c.b16 %v246, %v245
    %v318 = vpack.c.b16 %v248, %v247
    %v319 = vpack.c.b16 %v250, %v249
    %v320 = vpack.c.b16 %v252, %v251
    %v321 = vpack.c.b16 %v254, %v253
    %v322 = vpack.c.b16 %v256, %v255
    %v323 = vpack.c.b16 %v258, %v257
    %v324 = vpack.c.b16 %v260, %v259
    %v325 = vpack.c.b16 %v262, %v261
    %v326 = vpack.c.b16 %v264, %v263
    %v327 = vpack.c.b16 %v266, %v265
    %v328 = vpack.c.b16 %v268, %v267
    %v329 = vpack.c.b16 %v270, %v269
    %v330 = vpack.c.b16 %v272, %v271
    %v331 = vpack.c.b16 %v274, %v273
    %v332 = vpack.c.b16 %v276, %v275
    %v333 = vpack.c.b16 %v278, %v277
    %v334 = vpack.c.b16 %v280, %v279
    %v335 = vpack.c.b16 %v282, %v281
    %v336 = vpack.c.b16 %v284, %v283
    %v337 = vpack.c.b16 %v286, %v285
    %v338 = vpack.c.b16 %v288, %v287
    %v339 = vpack.c.b16 %v290, %v289
    %v340 = vpack.c.b16 %v292, %v291
    %v341 = vpack.c.b16 %v294, %v293
    %v342 = vpack.c.b16 %v296, %v295
    %v343 = vpack.c.b16 %v298, %v297
    %v344 = vpack.c.b16 %v300, %v299
    %v345 = vpack.c.b16 %v302, %v301
    %v346 = vpack.c.b16 %v304, %v303
    %v347 = vpack.c.b16 %v306, %v305
    %v348 = vpack.c.b16 %v308, %v307
    %389 = vmatprep.subr.bf16.mxu0 0
    %390 = vmatpush1.bf16.msra.mxu0 %v309
    %391 = vmatprep.subr.bf16.mxu0 0
    %392 = vmatpush1.bf16.msra.mxu0 %v310
    %393 = vmatprep.subr.bf16.mxu0 0
    %394 = vmatpush1.bf16.msra.mxu0 %v311
    %395 = vmatprep.subr.bf16.mxu0 0
    %396 = vmatpush1.bf16.msra.mxu0 %v312
    %397 = vmatprep.subr.bf16.mxu0 0
    %398 = vmatpush1.bf16.msra.mxu0 %v313
    %399 = vmatprep.subr.bf16.mxu0 0
    %400 = vmatpush1.bf16.msra.mxu0 %v314
    %401 = vmatprep.subr.bf16.mxu0 0
    %402 = vmatpush1.bf16.msra.mxu0 %v315
    %403 = vmatprep.subr.bf16.mxu0 0
    %404 = vmatpush1.bf16.msra.mxu0 %v316
    %405 = vmatprep.subr.bf16.mxu0 0
    %406 = vmatpush1.bf16.msra.mxu0 %v317
    %407 = vmatprep.subr.bf16.mxu0 0
    %408 = vmatpush1.bf16.msra.mxu0 %v318
    %409 = vmatprep.subr.bf16.mxu0 0
    %410 = vmatpush1.bf16.msra.mxu0 %v319
    %411 = vmatprep.subr.bf16.mxu0 0
    %412 = vmatpush1.bf16.msra.mxu0 %v320
    %413 = vmatprep.subr.bf16.mxu0 0
    %414 = vmatpush1.bf16.msra.mxu0 %v321
    %415 = vmatprep.subr.bf16.mxu0 0
    %416 = vmatpush1.bf16.msra.mxu0 %v322
    %417 = vmatprep.subr.bf16.mxu0 0
    %418 = vmatpush1.bf16.msra.mxu0 %v323
    %419 = vmatprep.subr.bf16.mxu0 0
    %420 = vmatpush1.bf16.msra.mxu0 %v324
    %421 = vmatprep.mubr.bf16.mxu0 %v141
    %422 = vmatmul.mubr.bf16.gmra.mrb[0].mxu0 %v127
    %v423 = vpop.f32.mrb[0].mxu0
    %v424 = vadd.f32 %v102, %v423
    %v425 = vpop.f32.mrb[0].mxu0
    %v426 = vpop.f32.mrb[0].mxu0
    %v427 = vpop.f32.mrb[0].mxu0
    %428 = vdwg.mxu0
    %429 = vmatprep.subr.bf16.mxu0 0
    %430 = vmatpush1.bf16.msra.mxu0 %v325
    %431 = vmatprep.subr.bf16.mxu0 0
    %432 = vmatpush1.bf16.msra.mxu0 %v326
    %433 = vmatprep.subr.bf16.mxu0 0
    %434 = vmatpush1.bf16.msra.mxu0 %v327
    %435 = vmatprep.subr.bf16.mxu0 0
    %436 = vmatpush1.bf16.msra.mxu0 %v328
    %437 = vmatprep.subr.bf16.mxu0 0
    %438 = vmatpush1.bf16.msra.mxu0 %v329
    %439 = vmatprep.subr.bf16.mxu0 0
    %440 = vmatpush1.bf16.msra.mxu0 %v330
    %441 = vmatprep.subr.bf16.mxu0 0
    %442 = vmatpush1.bf16.msra.mxu0 %v331
    %443 = vmatprep.subr.bf16.mxu0 0
    %444 = vmatpush1.bf16.msra.mxu0 %v332
    %445 = vmatprep.subr.bf16.mxu0 0
    %446 = vmatpush1.bf16.msra.mxu0 %v333
    %447 = vmatprep.subr.bf16.mxu0 0
    %448 = vmatpush1.bf16.msra.mxu0 %v334
    %449 = vmatprep.subr.bf16.mxu0 0
    %450 = vmatpush1.bf16.msra.mxu0 %v335
    %451 = vmatprep.subr.bf16.mxu0 0
    %452 = vmatpush1.bf16.msra.mxu0 %v336
    %453 = vmatprep.subr.bf16.mxu0 0
    %454 = vmatpush1.bf16.msra.mxu0 %v337
    %455 = vmatprep.subr.bf16.mxu0 0
    %456 = vmatpush1.bf16.msra.mxu0 %v338
    %457 = vmatprep.subr.bf16.mxu0 0
    %458 = vmatpush1.bf16.msra.mxu0 %v339
    %459 = vmatprep.subr.bf16.mxu0 0
    %460 = vmatpush1.bf16.msra.mxu0 %v340
    %461 = vmatprep.mubr.bf16.mxu0 %v143
    %462 = vmatmul.mubr.bf16.gmra.mrb[0].mxu0 %v142
    %v463 = vpop.f32.mrb[0].mxu0
    %v464 = vadd.f32 %v424, %v463
    %v465 = vpop.f32.mrb[0].mxu0
    %v466 = vpop.f32.mrb[0].mxu0
    %v467 = vpop.f32.mrb[0].mxu0
    %468 = vdwg.mxu0
    %469 = vmatprep.subr.bf16.mxu0 0
    %470 = vmatpush1.bf16.msra.mxu0 %v341
    %471 = vmatprep.subr.bf16.mxu0 0
    %472 = vmatpush1.bf16.msra.mxu0 %v342
    %473 = vmatprep.subr.bf16.mxu0 0
    %474 = vmatpush1.bf16.msra.mxu0 %v343
    %475 = vmatprep.subr.bf16.mxu0 0
    %476 = vmatpush1.bf16.msra.mxu0 %v344
    %477 = vmatprep.subr.bf16.mxu0 0
    %478 = vmatpush1.bf16.msra.mxu0 %v345
    %479 = vmatprep.subr.bf16.mxu0 0
    %480 = vmatpush1.bf16.msra.mxu0 %v346
    %481 = vmatprep.subr.bf16.mxu0 0
    %482 = vmatpush1.bf16.msra.mxu0 %v347
    %483 = vmatprep.subr.bf16.mxu0 0
    %484 = vmatpush1.bf16.msra.mxu0 %v348
    %485 = vmatprep.subr.bf16.mxu0 0
    %486 = vmatpush1.bf16.msra.mxu0 0
    %487 = vmatprep.subr.bf16.mxu0 0
    %488 = vmatpush1.bf16.msra.mxu0 0
    %489 = vmatprep.subr.bf16.mxu0 0
    %490 = vmatpush1.bf16.msra.mxu0 0
    %491 = vmatprep.subr.bf16.mxu0 0
    %492 = vmatpush1.bf16.msra.mxu0 0
    %493 = vmatprep.subr.bf16.mxu0 0
    %494 = vmatpush1.bf16.msra.mxu0 0
    %495 = vmatprep.subr.bf16.mxu0 0
    %496 = vmatpush1.bf16.msra.mxu0 0
    %497 = vmatprep.subr.bf16.mxu0 0
    %498 = vmatpush1.bf16.msra.mxu0 0
    %499 = vmatprep.subr.bf16.mxu0 0
    %500 = vmatpush1.bf16.msra.mxu0 0
    %501 = vmatprep.mubr.bf16.mxu0 0
    %502 = vmatmul.mubr.bf16.gmra.mrb[0].mxu0 %v134
    %v503 = vpop.f32.mrb[0].mxu0
    %v504 = vadd.f32 %v464, %v503
    %v505 = vpop.f32.mrb[0].mxu0
    %v506 = vpop.f32.mrb[0].mxu0
    %v507 = vpop.f32.mrb[0].mxu0
    %508 = vdwg.mxu0
    %vm509 = vcmask 74752
    %510 = vst.msk [vmem:[#allocation2] sm:$0x3] %vm509, %v504
    // Predicated region
    $region14: #{lenet_forward.8} parent=1 // pred_check
      _
    $region15: #{lenet_forward.8} parent=1 // pred_check_branch
      %512 = sbr.rel (0) target = $region17
    $region16: #{lenet_forward.8} parent=1 // pred_region
      %s514 = ssub.s32 32, 32
      %515 = vsyncadd [#allocation3], %s514
      %s517 = sshll.u32 [#allocation2], 4
      %s518 = int_to_ptr.vmem [resolvable:$true] %s517
      %520 = dma.vmem_to_hbm [thread:$0]  %s518, 32, %s3, [#allocation3]
    $region17: #{lenet_forward.8} parent=1 // pred_fallthru
      _
    // Predicated region
    $region18: #{lenet_forward.8} parent=1 // pred_check
      _
    $region19: #{lenet_forward.8} parent=1 // pred_check_branch
      %522 = sbr.rel (0) target = $region21
    $region20: #{lenet_forward.8} parent=1 // pred_region
      %523 = dma.done [#allocation3], 32
    $region21: #{lenet_forward.8} parent=1 // pred_fallthru
      _
    %524 = vsyncpa [#allocation3], 1

</llo_original>
